<compile_context>
chip_gen: v7x
topology: tpu7x:2x2x1
jax: 0.10.0
libtpu: 0.0.40
codegen_flags: <defaults>
</compile_context>

<pallas_src>
import math

import jax
import jax.numpy as jnp
from jax.experimental import pallas as pl
from jax.experimental.pallas import tpu as pltpu

EPS = 1e-5
KS = (39, 19, 9)          # InceptionModule kernel sizes for the default ks=40
KMAX = KS[0]
HALF = KMAX // 2          # 19 -> per-sample zero padding width inside the kernel
DEPTH = 6                 # InceptionBlock default depth
NEG = -1.0e30             # stands in for -inf in the maxpool edge handling


# ----------------------------------------------------------------------------
# The fused kernel
# ----------------------------------------------------------------------------
def _inception_rnn_kernel(x_ref, wb_ref, wconv_ref, wmp_ref, shift_ref,
                          wsc_ref, scsh_ref, wih_ref, whh_ref, brnn_ref,
                          fcw_ref, fcb_ref, o_ref,
                          act_ref, res_ref, col_ref, xs_ref):
    depth, nf, cmax = wb_ref.shape
    bblk, c_in, L = x_ref.shape
    W = act_ref.shape[1]                       # = bblk * Lpad (padded layout width)
    Lpad = W // bblk
    nf4 = 4 * nf
    kmax = wconv_ref.shape[2] // nf
    half = kmax // 2
    H = wih_ref.shape[1]
    f32 = jnp.float32
    assert Lpad == L + 2 * half and W == bblk * Lpad
    assert col_ref.shape[0] >= max(kmax * nf, 2 * cmax)

    # valid (non padding) column mask, built once from an iota
    col_ids = jax.lax.broadcasted_iota(jnp.int32, (1, W), 1)
    maskb = (col_ids >= half) & (col_ids < half + L)
    for b in range(1, bblk):
        lo = b * Lpad + half
        maskb = maskb | ((col_ids >= lo) & (col_ids < lo + L))

    # ---- build the zero-padded input activation from this batch block ----
    act_ref[...] = jnp.zeros((cmax, W), f32)
    for b in range(bblk):
        lo = b * Lpad + half
        act_ref[0:c_in, lo:lo + L] = x_ref[b]
    res_ref[...] = act_ref[...]                # residual input for the d==2 shortcut

    def write_act(dst_ref, y):
        # keep padding columns (and unused channel rows) exactly zero so the next
        # module's convolutions see correct zero padding
        dst_ref[0:nf4, :] = jnp.where(maskb, y, 0.0)
        if cmax > nf4:
            dst_ref[nf4:, :] = jnp.zeros((cmax - nf4, W), f32)

    # ---------------------- depth-unrolled inception modules ----------------------
    for d in range(depth):
        act = act_ref[...]                                             # (cmax, W)

        # 1x1 bottleneck.  No bias -> zero padding columns stay zero, which makes
        # "conv on the padded input" equal to "pad the bottleneck output".
        bt = jnp.dot(wb_ref[d], act, preferred_element_type=f32)       # (nf, W)

        # im2col in scratch: row block t holds bt shifted so column c sees
        # bt[:, c + t - half].  Unwritten columns only feed padding output
        # columns, which are masked away below.
        for t in range(kmax):
            s = half - t
            r0 = t * nf
            if s >= 0:
                col_ref[r0:r0 + nf, s:W] = bt[:, 0:W - s]
            else:
                col_ref[r0:r0 + nf, 0:W + s] = bt[:, -s:W]

        # the three 'same' convolutions (k = 39/19/9) as ONE MXU matmul
        conv = jnp.dot(wconv_ref[d], col_ref[0:kmax * nf, :],
                       preferred_element_type=f32)                     # (3nf, W)

        # MaxPool1d(3, 1, 1) branch on the module input (edges treated as -inf)
        am = jnp.where(maskb, act, NEG)
        col_ref[0:cmax, 1:W] = am[:, 0:W - 1]              # column c -> input c-1
        col_ref[cmax:2 * cmax, 0:W - 1] = am[:, 1:W]       # column c -> input c+1
        mp = jnp.maximum(jnp.maximum(am, col_ref[0:cmax, :]),
                         col_ref[cmax:2 * cmax, :])
        mp = jnp.where(maskb, mp, 0.0)
        mpo = jnp.dot(wmp_ref[d], mp, preferred_element_type=f32)      # (nf, W)

        # concat branches -> eval-mode BN (scale pre-folded into weights) -> ReLU
        y = jnp.concatenate([conv, mpo], axis=0)                       # (4nf, W)
        y = jnp.maximum(y + shift_ref[d], 0.0)

        if d % 3 == 2:                         # residual shortcut every 3rd module
            j = d // 3
            sc = jnp.dot(wsc_ref[j], res_ref[...], preferred_element_type=f32)
            y = jnp.maximum(y + sc + scsh_ref[j], 0.0)
            write_act(act_ref, y)
            write_act(res_ref, y)
        else:
            write_act(act_ref, y)

    # ------------- RNN over channels (shuffle=True) + final Linear -------------
    # hoisted input projection: one (T, L) x (L, H) matmul per sample instead of
    # T tiny matmuls on the serial recurrence path (bias folded in here).
    wih_t = wih_ref[...]                                               # (L, H)
    brnn = brnn_ref[...]                                               # (1, H)
    for b in range(bblk):
        lo = b * Lpad + half
        xb = act_ref[0:nf4, lo:lo + L]                                 # (T, L)
        xs_ref[:, b * H:(b + 1) * H] = (
            jnp.dot(xb, wih_t, preferred_element_type=f32) + brnn)

    # recurrence on a lane-packed (1, bblk*H) state; Whh is block-diagonal so all
    # samples of the block advance with a single small matmul + tanh per step.
    whh_bd = whh_ref[...]

    def step(t, h):
        xt = xs_ref[pl.ds(t, 1), :]                                    # (1, bblk*H)
        return jnp.tanh(xt + jnp.dot(h, whh_bd, preferred_element_type=f32))

    h_last = jax.lax.fori_loop(0, nf4, step,
                               jnp.zeros((1, bblk * H), f32))

    # final Linear (block-diagonal fc weight -> lane-packed per-sample outputs)
    o_ref[0] = (jnp.dot(h_last, fcw_ref[...], preferred_element_type=f32)
                + fcb_ref[...]).astype(o_ref.dtype)


# ----------------------------------------------------------------------------
# Wrapper
# ----------------------------------------------------------------------------
def forward(x, p):
    """Fused forward pass.  x: (B, c_in, seq_len) float32, p: packed params."""
    B, c_in, L = x.shape
    depth, nf, cmax = p["wb"].shape
    nf4 = 4 * nf
    H = p["whh_t"].shape[0]
    c_out = p["fcw_t"].shape[1]

    Lpad = L + 2 * HALF
    # pack as many samples as fit a 128-lane tile into one grid step; larger
    # batches become a "parallel" grid axis (megacore / v7x dual-TC sharding).
    bblk = max(1, min(B, 128 // Lpad))
    nblk = -(-B // bblk)
    Bp = nblk * bblk
    if Bp != B:
        x = jnp.pad(x, ((0, Bp - B), (0, 0), (0, 0)))
    W = bblk * Lpad

    # block-diagonal RNN / FC weights so a whole batch block advances through the
    # recurrence as a single lane-packed (1, bblk*H) state
    eye = jnp.eye(bblk, dtype=jnp.float32)
    whh_bd = jnp.kron(eye, p["whh_t"])                 # (bblk*H, bblk*H)
    fcw_bd = jnp.kron(eye, p["fcw_t"])                 # (bblk*H, bblk*c_out)
    fcb_t = jnp.tile(p["fcb"], (1, bblk))              # (1, bblk*c_out)

    weights = (p["wb"], p["wconv"], p["wmp"], p["shift"], p["wsc"], p["scshift"],
               p["wih_t"], whh_bd, p["b_rnn"], fcw_bd, fcb_t)

    def full(a):
        return pl.BlockSpec(a.shape, lambda i, nd=a.ndim: (0,) * nd)

    out = pl.pallas_call(
        _inception_rnn_kernel,
        grid=(nblk,),
        in_specs=[pl.BlockSpec((bblk, c_in, L), lambda i: (i, 0, 0))]
                 + [full(w) for w in weights],
        out_specs=pl.BlockSpec((1, 1, bblk * c_out), lambda i: (i, 0, 0)),
        out_shape=jax.ShapeDtypeStruct((nblk, 1, bblk * c_out), jnp.float32),
        scratch_shapes=[
            pltpu.VMEM((cmax, W), jnp.float32),                       # activation
            pltpu.VMEM((cmax, W), jnp.float32),                       # residual
            pltpu.VMEM((max(KMAX * nf, 2 * cmax), W), jnp.float32),   # im2col / pool
            pltpu.VMEM((nf4, bblk * H), jnp.float32),                 # RNN inputs
        ],
        compiler_params=pltpu.CompilerParams(
            dimension_semantics=("parallel",)),
    )(x, *weights)

    return out.reshape(Bp, c_out)[:B]


# ----------------------------------------------------------------------------
# Parameters: PyTorch-like raw params + host-side packing for the fused kernel
# ----------------------------------------------------------------------------
def _uniform(key, shape, fan_in):
    bound = 1.0 / math.sqrt(float(fan_in))
    return jax.random.uniform(key, shape, jnp.float32, -bound, bound)


def _bn_init(c):
    return dict(bn_gamma=jnp.ones((c,), jnp.float32),
                bn_beta=jnp.zeros((c,), jnp.float32),
                bn_mean=jnp.zeros((c,), jnp.float32),
                bn_var=jnp.ones((c,), jnp.float32))


def init_params(key, c_in, c_out, seq_len, nf, hidden, depth=DEPTH):
    keys = iter(jax.random.split(key, 8 * depth + 16))
    modules = []
    for d in range(depth):
        cin_d = c_in if d == 0 else 4 * nf
        m = dict(
            wb=_uniform(next(keys), (nf, cin_d), cin_d),               # bottleneck 1x1 (no bias)
            w1=_uniform(next(keys), (nf, nf, KS[0]), nf * KS[0]),
            w2=_uniform(next(keys), (nf, nf, KS[1]), nf * KS[1]),
            w3=_uniform(next(keys), (nf, nf, KS[2]), nf * KS[2]),
            wmp=_uniform(next(keys), (nf, cin_d), cin_d),              # 1x1 after maxpool
        )
        m.update(_bn_init(4 * nf))
        modules.append(m)
    shortcuts = [
        dict(w=_uniform(next(keys), (4 * nf, c_in), c_in), **_bn_init(4 * nf)),  # d == 2
        dict(w=jnp.eye(4 * nf, dtype=jnp.float32), **_bn_init(4 * nf)),          # d == 5 (BN only)
    ]
    rnn = dict(
        wih=_uniform(next(keys), (hidden, seq_len), hidden),
        whh=_uniform(next(keys), (hidden, hidden), hidden),
        b_ih=_uniform(next(keys), (hidden,), hidden),
        b_hh=_uniform(next(keys), (hidden,), hidden),
    )
    fc = dict(w=_uniform(next(keys), (c_out, hidden), hidden),
              b=_uniform(next(keys), (c_out,), hidden))
    return dict(modules=modules, shortcuts=shortcuts, rnn=rnn, fc=fc)


def _pack_branch_weights(w1, w2, w3, scale3):
    """(nf,nf,39),(nf,nf,19),(nf,nf,9) -> (3nf, 39*nf): column block t multiplies
    the bottleneck output shifted by (t - 19); smaller kernels are zero padded
    into the 39-tap frame; BN scale of the first 3nf concat channels is folded."""
    nf = w1.shape[0]
    zeros = jnp.zeros((nf, nf), jnp.float32)
    blocks = []
    for t in range(KMAX):
        s = t - HALF
        b2 = w2[:, :, s + KS[1] // 2] if abs(s) <= KS[1] // 2 else zeros
        b3 = w3[:, :, s + KS[2] // 2] if abs(s) <= KS[2] // 2 else zeros
        blocks.append(jnp.concatenate([w1[:, :, t], b2, b3], axis=0))   # (3nf, nf)
    wflat = jnp.stack(blocks, axis=1).reshape(3 * nf, KMAX * nf)
    return wflat * scale3[:, None]


def pack_params(raw):
    """Fold eval-mode BatchNorm (actual running stats) into the conv/shortcut
    weights, flatten the three branch convs per module, pre-transpose RNN/FC
    weights and stack everything along depth for the fused kernel."""
    modules = raw["modules"]
    nf = modules[0]["wb"].shape[0]
    nf4 = 4 * nf
    cmax = max([nf4] + [m["wb"].shape[1] for m in modules])

    def bn_fold(q):
        scale = q["bn_gamma"] / jnp.sqrt(q["bn_var"] + EPS)
        shift = q["bn_beta"] - q["bn_mean"] * scale
        return scale, shift

    def pad_cols(w):
        return jnp.pad(w, ((0, 0), (0, cmax - w.shape[1])))

    wb_l, wconv_l, wmp_l, shift_l = [], [], [], []
    for m in modules:
        scale, shift = bn_fold(m)
        wb_l.append(pad_cols(m["wb"]))
        wconv_l.append(_pack_branch_weights(m["w1"], m["w2"], m["w3"], scale[:3 * nf]))
        wmp_l.append(pad_cols(m["wmp"]) * scale[3 * nf:][:, None])
        shift_l.append(shift[:, None])

    wsc_l, scsh_l = [], []
    for s in raw["shortcuts"]:
        scale, shift = bn_fold(s)
        wsc_l.append(pad_cols(s["w"]) * scale[:, None])
        scsh_l.append(shift[:, None])

    rnn, fc = raw["rnn"], raw["fc"]
    return dict(
        wb=jnp.stack(wb_l), wconv=jnp.stack(wconv_l), wmp=jnp.stack(wmp_l),
        shift=jnp.stack(shift_l),
        wsc=jnp.stack(wsc_l), scshift=jnp.stack(scsh_l),
        wih_t=rnn["wih"].T, whh_t=rnn["whh"].T,
        b_rnn=(rnn["b_ih"] + rnn["b_hh"])[None, :],
        fcw_t=fc["w"].T, fcb=fc["b"][None, :],
    )


if __name__ == "__main__":
    B, C_IN, SEQ_LEN = 2, 4, 16
    NF, HIDDEN, C_OUT = 8, 32, 3

    key = jax.random.PRNGKey(0)
    kx, kp = jax.random.split(key)
    x = jax.random.normal(kx, (B, C_IN, SEQ_LEN), jnp.float32)
    raw = init_params(kp, C_IN, C_OUT, SEQ_LEN, NF, HIDDEN)
    params = pack_params(raw)

    fwd = jax.jit(forward)
    out = jax.block_until_ready(fwd(x, params))

    assert out.shape == (B, C_OUT), out.shape
    assert bool(jnp.all(jnp.isfinite(out)))
    print("KERNEL_OK")
</pallas_src>

<mosaic_0001>
module attributes {stable_mosaic.version = 11 : i64} {
  func.func @_inception_rnn_kernel(%arg0: i32, %arg1: memref<2x4x16xf32, #tpu.memory_space<vmem>>, %arg2: memref<6x8x32xf32, #tpu.memory_space<vmem>>, %arg3: memref<6x24x312xf32, #tpu.memory_space<vmem>>, %arg4: memref<6x8x32xf32, #tpu.memory_space<vmem>>, %arg5: memref<6x32x1xf32, #tpu.memory_space<vmem>>, %arg6: memref<2x32x32xf32, #tpu.memory_space<vmem>>, %arg7: memref<2x32x1xf32, #tpu.memory_space<vmem>>, %arg8: memref<16x32xf32, #tpu.memory_space<vmem>>, %arg9: memref<64x64xf32, #tpu.memory_space<vmem>>, %arg10: memref<1x32xf32, #tpu.memory_space<vmem>>, %arg11: memref<64x6xf32, #tpu.memory_space<vmem>>, %arg12: memref<1x6xf32, #tpu.memory_space<vmem>>, %arg13: memref<1x1x6xf32, #tpu.memory_space<vmem>>, %arg14: memref<32x108xf32, #tpu.memory_space<vmem>>, %arg15: memref<32x108xf32, #tpu.memory_space<vmem>>, %arg16: memref<312x108xf32, #tpu.memory_space<vmem>>, %arg17: memref<32x64xf32, #tpu.memory_space<vmem>>) attributes {dimension_semantics = [#tpu.dimension_semantics<parallel>], iteration_bounds = array<i64: 1>, scalar_prefetch = 0 : i64, scratch_operands = 4 : i64, tpu.core_type = #tpu.core_type<tc>, window_params = [{transform_indices = @transform_0, window_bounds = array<i64: 2, 4, 16>}, {pipeline_mode = #tpu.pipeline_mode<synchronous>, transform_indices = @transform_1, window_bounds = array<i64: 6, 8, 32>}, {pipeline_mode = #tpu.pipeline_mode<synchronous>, transform_indices = @transform_2, window_bounds = array<i64: 6, 24, 312>}, {pipeline_mode = #tpu.pipeline_mode<synchronous>, transform_indices = @transform_3, window_bounds = array<i64: 6, 8, 32>}, {pipeline_mode = #tpu.pipeline_mode<synchronous>, transform_indices = @transform_4, window_bounds = array<i64: 6, 32, 1>}, {pipeline_mode = #tpu.pipeline_mode<synchronous>, transform_indices = @transform_5, window_bounds = array<i64: 2, 32, 32>}, {pipeline_mode = #tpu.pipeline_mode<synchronous>, transform_indices = @transform_6, window_bounds = array<i64: 2, 32, 1>}, {pipeline_mode = #tpu.pipeline_mode<synchronous>, transform_indices = @transform_7, window_bounds = array<i64: 16, 32>}, {pipeline_mode = #tpu.pipeline_mode<synchronous>, transform_indices = @transform_8, window_bounds = array<i64: 64, 64>}, {pipeline_mode = #tpu.pipeline_mode<synchronous>, transform_indices = @transform_9, window_bounds = array<i64: 1, 32>}, {pipeline_mode = #tpu.pipeline_mode<synchronous>, transform_indices = @transform_10, window_bounds = array<i64: 64, 6>}, {pipeline_mode = #tpu.pipeline_mode<synchronous>, transform_indices = @transform_11, window_bounds = array<i64: 1, 6>}, {transform_indices = @transform_12, window_bounds = array<i64: 1, 1, 6>}]} {
    %0 = tpu.iota {dimensions = array<i32: 1>} : vector<1x108xi32>
    %c19_i32 = arith.constant 19 : i32
    %1 = vector.broadcast %c19_i32 : i32 to vector<1x108xi32>
    %2 = arith.cmpi sge, %0, %1 : vector<1x108xi32>
    %c35_i32 = arith.constant 35 : i32
    %3 = vector.broadcast %c35_i32 : i32 to vector<1x108xi32>
    %4 = arith.cmpi slt, %0, %3 : vector<1x108xi32>
    %5 = arith.andi %2, %4 : vector<1x108xi1>
    %c73_i32 = arith.constant 73 : i32
    %6 = vector.broadcast %c73_i32 : i32 to vector<1x108xi32>
    %7 = arith.cmpi sge, %0, %6 : vector<1x108xi32>
    %c89_i32 = arith.constant 89 : i32
    %8 = vector.broadcast %c89_i32 : i32 to vector<1x108xi32>
    %9 = arith.cmpi slt, %0, %8 : vector<1x108xi32>
    %10 = arith.andi %7, %9 : vector<1x108xi1>
    %11 = arith.ori %5, %10 : vector<1x108xi1>
    %cst = arith.constant 0.000000e+00 : f32
    %12 = vector.broadcast %cst : f32 to vector<32x108xf32>
    %c0 = arith.constant 0 : index
    %c0_0 = arith.constant 0 : index
    %13 = vector.load %arg14[%c0, %c0_0] : memref<32x108xf32, #tpu.memory_space<vmem>>, vector<32x108xf32>
    tpu.vector_store %arg14[%c0, %c0_0], %12 {strides = array<i32>} : memref<32x108xf32, #tpu.memory_space<vmem>>, vector<32x108xf32>,
    %c0_1 = arith.constant 0 : index
    %c0_2 = arith.constant 0 : index
    %c0_3 = arith.constant 0 : index
    %14 = vector.load %arg1[%c0_1, %c0_2, %c0_3] : memref<2x4x16xf32, #tpu.memory_space<vmem>>, vector<1x4x16xf32>
    %15 = vector.shape_cast %14 : vector<1x4x16xf32> to vector<4x16xf32>
    %c0_4 = arith.constant 0 : index
    %c19 = arith.constant 19 : index
    %16 = vector.load %arg14[%c0_4, %c19] : memref<32x108xf32, #tpu.memory_space<vmem>>, vector<4x16xf32>
    tpu.vector_store %arg14[%c0_4, %c19], %15 {strides = array<i32>} : memref<32x108xf32, #tpu.memory_space<vmem>>, vector<4x16xf32>,
    %c1 = arith.constant 1 : index
    %c0_5 = arith.constant 0 : index
    %c0_6 = arith.constant 0 : index
    %17 = vector.load %arg1[%c1, %c0_5, %c0_6] : memref<2x4x16xf32, #tpu.memory_space<vmem>>, vector<1x4x16xf32>
    %18 = vector.shape_cast %17 : vector<1x4x16xf32> to vector<4x16xf32>
    %c0_7 = arith.constant 0 : index
    %c73 = arith.constant 73 : index
    %19 = vector.load %arg14[%c0_7, %c73] : memref<32x108xf32, #tpu.memory_space<vmem>>, vector<4x16xf32>
    tpu.vector_store %arg14[%c0_7, %c73], %18 {strides = array<i32>} : memref<32x108xf32, #tpu.memory_space<vmem>>, vector<4x16xf32>,
    %c0_8 = arith.constant 0 : index
    %c0_9 = arith.constant 0 : index
    %20 = vector.load %arg14[%c0_8, %c0_9] : memref<32x108xf32, #tpu.memory_space<vmem>>, vector<32x108xf32>
    %c0_10 = arith.constant 0 : index
    %c0_11 = arith.constant 0 : index
    %21 = vector.load %arg15[%c0_10, %c0_11] : memref<32x108xf32, #tpu.memory_space<vmem>>, vector<32x108xf32>
    tpu.vector_store %arg15[%c0_10, %c0_11], %20 {strides = array<i32>} : memref<32x108xf32, #tpu.memory_space<vmem>>, vector<32x108xf32>,
    %c0_12 = arith.constant 0 : index
    %c0_13 = arith.constant 0 : index
    %22 = vector.load %arg14[%c0_12, %c0_13] : memref<32x108xf32, #tpu.memory_space<vmem>>, vector<32x108xf32>
    %c0_14 = arith.constant 0 : index
    %c0_15 = arith.constant 0 : index
    %c0_16 = arith.constant 0 : index
    %23 = vector.load %arg2[%c0_14, %c0_15, %c0_16] : memref<6x8x32xf32, #tpu.memory_space<vmem>>, vector<1x8x32xf32>
    %24 = vector.shape_cast %23 : vector<1x8x32xf32> to vector<8x32xf32>
    %cst_17 = arith.constant dense<0.000000e+00> : vector<8x108xf32>
    %25 = tpu.matmul %24, %22, %cst_17 {dimension_numbers = #tpu.dot_dimension_numbers<[1], [0], [0], [1], [0, 0, 1, 1], [], []>} : vector<8x32xf32>, vector<32x108xf32>, vector<8x108xf32> -> vector<8x108xf32>
    %26 = vector.extract_strided_slice %25 {offsets = [0, 0], sizes = [8, 89], strides = [1, 1]} : vector<8x108xf32> to vector<8x89xf32>
    %c0_18 = arith.constant 0 : index
    %c19_19 = arith.constant 19 : index
    %27 = vector.load %arg16[%c0_18, %c19_19] : memref<312x108xf32, #tpu.memory_space<vmem>>, vector<8x89xf32>
    tpu.vector_store %arg16[%c0_18, %c19_19], %26 {strides = array<i32>} : memref<312x108xf32, #tpu.memory_space<vmem>>, vector<8x89xf32>,
    %28 = vector.extract_strided_slice %25 {offsets = [0, 0], sizes = [8, 90], strides = [1, 1]} : vector<8x108xf32> to vector<8x90xf32>
    %c8 = arith.constant 8 : index
    %c18 = arith.constant 18 : index
    %29 = vector.load %arg16[%c8, %c18] : memref<312x108xf32, #tpu.memory_space<vmem>>, vector<8x90xf32>
    tpu.vector_store %arg16[%c8, %c18], %28 {strides = array<i32>} : memref<312x108xf32, #tpu.memory_space<vmem>>, vector<8x90xf32>,
    %30 = vector.extract_strided_slice %25 {offsets = [0, 0], sizes = [8, 91], strides = [1, 1]} : vector<8x108xf32> to vector<8x91xf32>
    %c16 = arith.constant 16 : index
    %c17 = arith.constant 17 : index
    %31 = vector.load %arg16[%c16, %c17] : memref<312x108xf32, #tpu.memory_space<vmem>>, vector<8x91xf32>
    tpu.vector_store %arg16[%c16, %c17], %30 {strides = array<i32>} : memref<312x108xf32, #tpu.memory_space<vmem>>, vector<8x91xf32>,
    %32 = vector.extract_strided_slice %25 {offsets = [0, 0], sizes = [8, 92], strides = [1, 1]} : vector<8x108xf32> to vector<8x92xf32>
    %c24 = arith.constant 24 : index
    %c16_20 = arith.constant 16 : index
    %33 = vector.load %arg16[%c24, %c16_20] : memref<312x108xf32, #tpu.memory_space<vmem>>, vector<8x92xf32>
    tpu.vector_store %arg16[%c24, %c16_20], %32 {strides = array<i32>} : memref<312x108xf32, #tpu.memory_space<vmem>>, vector<8x92xf32>,
    %34 = vector.extract_strided_slice %25 {offsets = [0, 0], sizes = [8, 93], strides = [1, 1]} : vector<8x108xf32> to vector<8x93xf32>
    %c32 = arith.constant 32 : index
    %c15 = arith.constant 15 : index
    %35 = vector.load %arg16[%c32, %c15] : memref<312x108xf32, #tpu.memory_space<vmem>>, vector<8x93xf32>
    tpu.vector_store %arg16[%c32, %c15], %34 {strides = array<i32>} : memref<312x108xf32, #tpu.memory_space<vmem>>, vector<8x93xf32>,
    %36 = vector.extract_strided_slice %25 {offsets = [0, 0], sizes = [8, 94], strides = [1, 1]} : vector<8x108xf32> to vector<8x94xf32>
    %c40 = arith.constant 40 : index
    %c14 = arith.constant 14 : index
    %37 = vector.load %arg16[%c40, %c14] : memref<312x108xf32, #tpu.memory_space<vmem>>, vector<8x94xf32>
    tpu.vector_store %arg16[%c40, %c14], %36 {strides = array<i32>} : memref<312x108xf32, #tpu.memory_space<vmem>>, vector<8x94xf32>,
    %38 = vector.extract_strided_slice %25 {offsets = [0, 0], sizes = [8, 95], strides = [1, 1]} : vector<8x108xf32> to vector<8x95xf32>
    %c48 = arith.constant 48 : index
    %c13 = arith.constant 13 : index
    %39 = vector.load %arg16[%c48, %c13] : memref<312x108xf32, #tpu.memory_space<vmem>>, vector<8x95xf32>
    tpu.vector_store %arg16[%c48, %c13], %38 {strides = array<i32>} : memref<312x108xf32, #tpu.memory_space<vmem>>, vector<8x95xf32>,
    %40 = vector.extract_strided_slice %25 {offsets = [0, 0], sizes = [8, 96], strides = [1, 1]} : vector<8x108xf32> to vector<8x96xf32>
    %c56 = arith.constant 56 : index
    %c12 = arith.constant 12 : index
    %41 = vector.load %arg16[%c56, %c12] : memref<312x108xf32, #tpu.memory_space<vmem>>, vector<8x96xf32>
    tpu.vector_store %arg16[%c56, %c12], %40 {strides = array<i32>} : memref<312x108xf32, #tpu.memory_space<vmem>>, vector<8x96xf32>,
    %42 = vector.extract_strided_slice %25 {offsets = [0, 0], sizes = [8, 97], strides = [1, 1]} : vector<8x108xf32> to vector<8x97xf32>
    %c64 = arith.constant 64 : index
    %c11 = arith.constant 11 : index
    %43 = vector.load %arg16[%c64, %c11] : memref<312x108xf32, #tpu.memory_space<vmem>>, vector<8x97xf32>
    tpu.vector_store %arg16[%c64, %c11], %42 {strides = array<i32>} : memref<312x108xf32, #tpu.memory_space<vmem>>, vector<8x97xf32>,
    %44 = vector.extract_strided_slice %25 {offsets = [0, 0], sizes = [8, 98], strides = [1, 1]} : vector<8x108xf32> to vector<8x98xf32>
    %c72 = arith.constant 72 : index
    %c10 = arith.constant 10 : index
    %45 = vector.load %arg16[%c72, %c10] : memref<312x108xf32, #tpu.memory_space<vmem>>, vector<8x98xf32>
    tpu.vector_store %arg16[%c72, %c10], %44 {strides = array<i32>} : memref<312x108xf32, #tpu.memory_space<vmem>>, vector<8x98xf32>,
    %46 = vector.extract_strided_slice %25 {offsets = [0, 0], sizes = [8, 99], strides = [1, 1]} : vector<8x108xf32> to vector<8x99xf32>
    %c80 = arith.constant 80 : index
    %c9 = arith.constant 9 : index
    %47 = vector.load %arg16[%c80, %c9] : memref<312x108xf32, #tpu.memory_space<vmem>>, vector<8x99xf32>
    tpu.vector_store %arg16[%c80, %c9], %46 {strides = array<i32>} : memref<312x108xf32, #tpu.memory_space<vmem>>, vector<8x99xf32>,
    %48 = vector.extract_strided_slice %25 {offsets = [0, 0], sizes = [8, 100], strides = [1, 1]} : vector<8x108xf32> to vector<8x100xf32>
    %c88 = arith.constant 88 : index
    %c8_21 = arith.constant 8 : index
    %49 = vector.load %arg16[%c88, %c8_21] : memref<312x108xf32, #tpu.memory_space<vmem>>, vector<8x100xf32>
    tpu.vector_store %arg16[%c88, %c8_21], %48 {strides = array<i32>} : memref<312x108xf32, #tpu.memory_space<vmem>>, vector<8x100xf32>,
    %50 = vector.extract_strided_slice %25 {offsets = [0, 0], sizes = [8, 101], strides = [1, 1]} : vector<8x108xf32> to vector<8x101xf32>
    %c96 = arith.constant 96 : index
    %c7 = arith.constant 7 : index
    %51 = vector.load %arg16[%c96, %c7] : memref<312x108xf32, #tpu.memory_space<vmem>>, vector<8x101xf32>
    tpu.vector_store %arg16[%c96, %c7], %50 {strides = array<i32>} : memref<312x108xf32, #tpu.memory_space<vmem>>, vector<8x101xf32>,
    %52 = vector.extract_strided_slice %25 {offsets = [0, 0], sizes = [8, 102], strides = [1, 1]} : vector<8x108xf32> to vector<8x102xf32>
    %c104 = arith.constant 104 : index
    %c6 = arith.constant 6 : index
    %53 = vector.load %arg16[%c104, %c6] : memref<312x108xf32, #tpu.memory_space<vmem>>, vector<8x102xf32>
    tpu.vector_store %arg16[%c104, %c6], %52 {strides = array<i32>} : memref<312x108xf32, #tpu.memory_space<vmem>>, vector<8x102xf32>,
    %54 = vector.extract_strided_slice %25 {offsets = [0, 0], sizes = [8, 103], strides = [1, 1]} : vector<8x108xf32> to vector<8x103xf32>
    %c112 = arith.constant 112 : index
    %c5 = arith.constant 5 : index
    %55 = vector.load %arg16[%c112, %c5] : memref<312x108xf32, #tpu.memory_space<vmem>>, vector<8x103xf32>
    tpu.vector_store %arg16[%c112, %c5], %54 {strides = array<i32>} : memref<312x108xf32, #tpu.memory_space<vmem>>, vector<8x103xf32>,
    %56 = vector.extract_strided_slice %25 {offsets = [0, 0], sizes = [8, 104], strides = [1, 1]} : vector<8x108xf32> to vector<8x104xf32>
    %c120 = arith.constant 120 : index
    %c4 = arith.constant 4 : index
    %57 = vector.load %arg16[%c120, %c4] : memref<312x108xf32, #tpu.memory_space<vmem>>, vector<8x104xf32>
    tpu.vector_store %arg16[%c120, %c4], %56 {strides = array<i32>} : memref<312x108xf32, #tpu.memory_space<vmem>>, vector<8x104xf32>,
    %58 = vector.extract_strided_slice %25 {offsets = [0, 0], sizes = [8, 105], strides = [1, 1]} : vector<8x108xf32> to vector<8x105xf32>
    %c128 = arith.constant 128 : index
    %c3 = arith.constant 3 : index
    %59 = vector.load %arg16[%c128, %c3] : memref<312x108xf32, #tpu.memory_space<vmem>>, vector<8x105xf32>
    tpu.vector_store %arg16[%c128, %c3], %58 {strides = array<i32>} : memref<312x108xf32, #tpu.memory_space<vmem>>, vector<8x105xf32>,
    %60 = vector.extract_strided_slice %25 {offsets = [0, 0], sizes = [8, 106], strides = [1, 1]} : vector<8x108xf32> to vector<8x106xf32>
    %c136 = arith.constant 136 : index
    %c2 = arith.constant 2 : index
    %61 = vector.load %arg16[%c136, %c2] : memref<312x108xf32, #tpu.memory_space<vmem>>, vector<8x106xf32>
    tpu.vector_store %arg16[%c136, %c2], %60 {strides = array<i32>} : memref<312x108xf32, #tpu.memory_space<vmem>>, vector<8x106xf32>,
    %62 = vector.extract_strided_slice %25 {offsets = [0, 0], sizes = [8, 107], strides = [1, 1]} : vector<8x108xf32> to vector<8x107xf32>
    %c144 = arith.constant 144 : index
    %c1_22 = arith.constant 1 : index
    %63 = vector.load %arg16[%c144, %c1_22] : memref<312x108xf32, #tpu.memory_space<vmem>>, vector<8x107xf32>
    tpu.vector_store %arg16[%c144, %c1_22], %62 {strides = array<i32>} : memref<312x108xf32, #tpu.memory_space<vmem>>, vector<8x107xf32>,
    %c152 = arith.constant 152 : index
    %c0_23 = arith.constant 0 : index
    %64 = vector.load %arg16[%c152, %c0_23] : memref<312x108xf32, #tpu.memory_space<vmem>>, vector<8x108xf32>
    tpu.vector_store %arg16[%c152, %c0_23], %25 {strides = array<i32>} : memref<312x108xf32, #tpu.memory_space<vmem>>, vector<8x108xf32>,
    %65 = vector.extract_strided_slice %25 {offsets = [0, 1], sizes = [8, 107], strides = [1, 1]} : vector<8x108xf32> to vector<8x107xf32>
    %c160 = arith.constant 160 : index
    %c0_24 = arith.constant 0 : index
    %66 = vector.load %arg16[%c160, %c0_24] : memref<312x108xf32, #tpu.memory_space<vmem>>, vector<8x107xf32>
    tpu.vector_store %arg16[%c160, %c0_24], %65 {strides = array<i32>} : memref<312x108xf32, #tpu.memory_space<vmem>>, vector<8x107xf32>,
    %67 = vector.extract_strided_slice %25 {offsets = [0, 2], sizes = [8, 106], strides = [1, 1]} : vector<8x108xf32> to vector<8x106xf32>
    %c168 = arith.constant 168 : index
    %c0_25 = arith.constant 0 : index
    %68 = vector.load %arg16[%c168, %c0_25] : memref<312x108xf32, #tpu.memory_space<vmem>>, vector<8x106xf32>
    tpu.vector_store %arg16[%c168, %c0_25], %67 {strides = array<i32>} : memref<312x108xf32, #tpu.memory_space<vmem>>, vector<8x106xf32>,
    %69 = vector.extract_strided_slice %25 {offsets = [0, 3], sizes = [8, 105], strides = [1, 1]} : vector<8x108xf32> to vector<8x105xf32>
    %c176 = arith.constant 176 : index
    %c0_26 = arith.constant 0 : index
    %70 = vector.load %arg16[%c176, %c0_26] : memref<312x108xf32, #tpu.memory_space<vmem>>, vector<8x105xf32>
    tpu.vector_store %arg16[%c176, %c0_26], %69 {strides = array<i32>} : memref<312x108xf32, #tpu.memory_space<vmem>>, vector<8x105xf32>,
    %71 = vector.extract_strided_slice %25 {offsets = [0, 4], sizes = [8, 104], strides = [1, 1]} : vector<8x108xf32> to vector<8x104xf32>
    %c184 = arith.constant 184 : index
    %c0_27 = arith.constant 0 : index
    %72 = vector.load %arg16[%c184, %c0_27] : memref<312x108xf32, #tpu.memory_space<vmem>>, vector<8x104xf32>
    tpu.vector_store %arg16[%c184, %c0_27], %71 {strides = array<i32>} : memref<312x108xf32, #tpu.memory_space<vmem>>, vector<8x104xf32>,
    %73 = vector.extract_strided_slice %25 {offsets = [0, 5], sizes = [8, 103], strides = [1, 1]} : vector<8x108xf32> to vector<8x103xf32>
    %c192 = arith.constant 192 : index
    %c0_28 = arith.constant 0 : index
    %74 = vector.load %arg16[%c192, %c0_28] : memref<312x108xf32, #tpu.memory_space<vmem>>, vector<8x103xf32>
    tpu.vector_store %arg16[%c192, %c0_28], %73 {strides = array<i32>} : memref<312x108xf32, #tpu.memory_space<vmem>>, vector<8x103xf32>,
    %75 = vector.extract_strided_slice %25 {offsets = [0, 6], sizes = [8, 102], strides = [1, 1]} : vector<8x108xf32> to vector<8x102xf32>
    %c200 = arith.constant 200 : index
    %c0_29 = arith.constant 0 : index
    %76 = vector.load %arg16[%c200, %c0_29] : memref<312x108xf32, #tpu.memory_space<vmem>>, vector<8x102xf32>
    tpu.vector_store %arg16[%c200, %c0_29], %75 {strides = array<i32>} : memref<312x108xf32, #tpu.memory_space<vmem>>, vector<8x102xf32>,
    %77 = vector.extract_strided_slice %25 {offsets = [0, 7], sizes = [8, 101], strides = [1, 1]} : vector<8x108xf32> to vector<8x101xf32>
    %c208 = arith.constant 208 : index
    %c0_30 = arith.constant 0 : index
    %78 = vector.load %arg16[%c208, %c0_30] : memref<312x108xf32, #tpu.memory_space<vmem>>, vector<8x101xf32>
    tpu.vector_store %arg16[%c208, %c0_30], %77 {strides = array<i32>} : memref<312x108xf32, #tpu.memory_space<vmem>>, vector<8x101xf32>,
    %79 = vector.extract_strided_slice %25 {offsets = [0, 8], sizes = [8, 100], strides = [1, 1]} : vector<8x108xf32> to vector<8x100xf32>
    %c216 = arith.constant 216 : index
    %c0_31 = arith.constant 0 : index
    %80 = vector.load %arg16[%c216, %c0_31] : memref<312x108xf32, #tpu.memory_space<vmem>>, vector<8x100xf32>
    tpu.vector_store %arg16[%c216, %c0_31], %79 {strides = array<i32>} : memref<312x108xf32, #tpu.memory_space<vmem>>, vector<8x100xf32>,
    %81 = vector.extract_strided_slice %25 {offsets = [0, 9], sizes = [8, 99], strides = [1, 1]} : vector<8x108xf32> to vector<8x99xf32>
    %c224 = arith.constant 224 : index
    %c0_32 = arith.constant 0 : index
    %82 = vector.load %arg16[%c224, %c0_32] : memref<312x108xf32, #tpu.memory_space<vmem>>, vector<8x99xf32>
    tpu.vector_store %arg16[%c224, %c0_32], %81 {strides = array<i32>} : memref<312x108xf32, #tpu.memory_space<vmem>>, vector<8x99xf32>,
    %83 = vector.extract_strided_slice %25 {offsets = [0, 10], sizes = [8, 98], strides = [1, 1]} : vector<8x108xf32> to vector<8x98xf32>
    %c232 = arith.constant 232 : index
    %c0_33 = arith.constant 0 : index
    %84 = vector.load %arg16[%c232, %c0_33] : memref<312x108xf32, #tpu.memory_space<vmem>>, vector<8x98xf32>
    tpu.vector_store %arg16[%c232, %c0_33], %83 {strides = array<i32>} : memref<312x108xf32, #tpu.memory_space<vmem>>, vector<8x98xf32>,
    %85 = vector.extract_strided_slice %25 {offsets = [0, 11], sizes = [8, 97], strides = [1, 1]} : vector<8x108xf32> to vector<8x97xf32>
    %c240 = arith.constant 240 : index
    %c0_34 = arith.constant 0 : index
    %86 = vector.load %arg16[%c240, %c0_34] : memref<312x108xf32, #tpu.memory_space<vmem>>, vector<8x97xf32>
    tpu.vector_store %arg16[%c240, %c0_34], %85 {strides = array<i32>} : memref<312x108xf32, #tpu.memory_space<vmem>>, vector<8x97xf32>,
    %87 = vector.extract_strided_slice %25 {offsets = [0, 12], sizes = [8, 96], strides = [1, 1]} : vector<8x108xf32> to vector<8x96xf32>
    %c248 = arith.constant 248 : index
    %c0_35 = arith.constant 0 : index
    %88 = vector.load %arg16[%c248, %c0_35] : memref<312x108xf32, #tpu.memory_space<vmem>>, vector<8x96xf32>
    tpu.vector_store %arg16[%c248, %c0_35], %87 {strides = array<i32>} : memref<312x108xf32, #tpu.memory_space<vmem>>, vector<8x96xf32>,
    %89 = vector.extract_strided_slice %25 {offsets = [0, 13], sizes = [8, 95], strides = [1, 1]} : vector<8x108xf32> to vector<8x95xf32>
    %c256 = arith.constant 256 : index
    %c0_36 = arith.constant 0 : index
    %90 = vector.load %arg16[%c256, %c0_36] : memref<312x108xf32, #tpu.memory_space<vmem>>, vector<8x95xf32>
    tpu.vector_store %arg16[%c256, %c0_36], %89 {strides = array<i32>} : memref<312x108xf32, #tpu.memory_space<vmem>>, vector<8x95xf32>,
    %91 = vector.extract_strided_slice %25 {offsets = [0, 14], sizes = [8, 94], strides = [1, 1]} : vector<8x108xf32> to vector<8x94xf32>
    %c264 = arith.constant 264 : index
    %c0_37 = arith.constant 0 : index
    %92 = vector.load %arg16[%c264, %c0_37] : memref<312x108xf32, #tpu.memory_space<vmem>>, vector<8x94xf32>
    tpu.vector_store %arg16[%c264, %c0_37], %91 {strides = array<i32>} : memref<312x108xf32, #tpu.memory_space<vmem>>, vector<8x94xf32>,
    %93 = vector.extract_strided_slice %25 {offsets = [0, 15], sizes = [8, 93], strides = [1, 1]} : vector<8x108xf32> to vector<8x93xf32>
    %c272 = arith.constant 272 : index
    %c0_38 = arith.constant 0 : index
    %94 = vector.load %arg16[%c272, %c0_38] : memref<312x108xf32, #tpu.memory_space<vmem>>, vector<8x93xf32>
    tpu.vector_store %arg16[%c272, %c0_38], %93 {strides = array<i32>} : memref<312x108xf32, #tpu.memory_space<vmem>>, vector<8x93xf32>,
    %95 = vector.extract_strided_slice %25 {offsets = [0, 16], sizes = [8, 92], strides = [1, 1]} : vector<8x108xf32> to vector<8x92xf32>
    %c280 = arith.constant 280 : index
    %c0_39 = arith.constant 0 : index
    %96 = vector.load %arg16[%c280, %c0_39] : memref<312x108xf32, #tpu.memory_space<vmem>>, vector<8x92xf32>
    tpu.vector_store %arg16[%c280, %c0_39], %95 {strides = array<i32>} : memref<312x108xf32, #tpu.memory_space<vmem>>, vector<8x92xf32>,
    %97 = vector.extract_strided_slice %25 {offsets = [0, 17], sizes = [8, 91], strides = [1, 1]} : vector<8x108xf32> to vector<8x91xf32>
    %c288 = arith.constant 288 : index
    %c0_40 = arith.constant 0 : index
    %98 = vector.load %arg16[%c288, %c0_40] : memref<312x108xf32, #tpu.memory_space<vmem>>, vector<8x91xf32>
    tpu.vector_store %arg16[%c288, %c0_40], %97 {strides = array<i32>} : memref<312x108xf32, #tpu.memory_space<vmem>>, vector<8x91xf32>,
    %99 = vector.extract_strided_slice %25 {offsets = [0, 18], sizes = [8, 90], strides = [1, 1]} : vector<8x108xf32> to vector<8x90xf32>
    %c296 = arith.constant 296 : index
    %c0_41 = arith.constant 0 : index
    %100 = vector.load %arg16[%c296, %c0_41] : memref<312x108xf32, #tpu.memory_space<vmem>>, vector<8x90xf32>
    tpu.vector_store %arg16[%c296, %c0_41], %99 {strides = array<i32>} : memref<312x108xf32, #tpu.memory_space<vmem>>, vector<8x90xf32>,
    %101 = vector.extract_strided_slice %25 {offsets = [0, 19], sizes = [8, 89], strides = [1, 1]} : vector<8x108xf32> to vector<8x89xf32>
    %c304 = arith.constant 304 : index
    %c0_42 = arith.constant 0 : index
    %102 = vector.load %arg16[%c304, %c0_42] : memref<312x108xf32, #tpu.memory_space<vmem>>, vector<8x89xf32>
    tpu.vector_store %arg16[%c304, %c0_42], %101 {strides = array<i32>} : memref<312x108xf32, #tpu.memory_space<vmem>>, vector<8x89xf32>,
    %c0_43 = arith.constant 0 : index
    %c0_44 = arith.constant 0 : index
    %c0_45 = arith.constant 0 : index
    %103 = vector.load %arg3[%c0_43, %c0_44, %c0_45] : memref<6x24x312xf32, #tpu.memory_space<vmem>>, vector<1x24x312xf32>
    %104 = vector.shape_cast %103 : vector<1x24x312xf32> to vector<24x312xf32>
    %c0_46 = arith.constant 0 : index
    %c0_47 = arith.constant 0 : index
    %105 = vector.load %arg16[%c0_46, %c0_47] : memref<312x108xf32, #tpu.memory_space<vmem>>, vector<312x108xf32>
    %cst_48 = arith.constant dense<0.000000e+00> : vector<24x108xf32>
    %106 = tpu.matmul %104, %105, %cst_48 {dimension_numbers = #tpu.dot_dimension_numbers<[1], [0], [0], [1], [0, 0, 1, 1], [], []>} : vector<24x312xf32>, vector<312x108xf32>, vector<24x108xf32> -> vector<24x108xf32>
    %cst_49 = arith.constant -1.000000e+30 : f32
    %107 = vector.shape_cast %11 : vector<1x108xi1> to vector<1x108xi1>
    %108 = vector.broadcast %107 : vector<1x108xi1> to vector<32x108xi1>
    %109 = vector.broadcast %cst_49 : f32 to vector<32x108xf32>
    %110 = arith.select %108, %22, %109 : vector<32x108xi1>, vector<32x108xf32>
    %111 = vector.extract_strided_slice %110 {offsets = [0, 0], sizes = [32, 107], strides = [1, 1]} : vector<32x108xf32> to vector<32x107xf32>
    %c0_50 = arith.constant 0 : index
    %c1_51 = arith.constant 1 : index
    %112 = vector.load %arg16[%c0_50, %c1_51] : memref<312x108xf32, #tpu.memory_space<vmem>>, vector<32x107xf32>
    tpu.vector_store %arg16[%c0_50, %c1_51], %111 {strides = array<i32>} : memref<312x108xf32, #tpu.memory_space<vmem>>, vector<32x107xf32>,
    %113 = vector.extract_strided_slice %110 {offsets = [0, 1], sizes = [32, 107], strides = [1, 1]} : vector<32x108xf32> to vector<32x107xf32>
    %c32_52 = arith.constant 32 : index
    %c0_53 = arith.constant 0 : index
    %114 = vector.load %arg16[%c32_52, %c0_53] : memref<312x108xf32, #tpu.memory_space<vmem>>, vector<32x107xf32>
    tpu.vector_store %arg16[%c32_52, %c0_53], %113 {strides = array<i32>} : memref<312x108xf32, #tpu.memory_space<vmem>>, vector<32x107xf32>,
    %c0_54 = arith.constant 0 : index
    %c0_55 = arith.constant 0 : index
    %115 = vector.load %arg16[%c0_54, %c0_55] : memref<312x108xf32, #tpu.memory_space<vmem>>, vector<32x108xf32>
    %116 = arith.maximumf %110, %115 : vector<32x108xf32>
    %c32_56 = arith.constant 32 : index
    %c0_57 = arith.constant 0 : index
    %117 = vector.load %arg16[%c32_56, %c0_57] : memref<312x108xf32, #tpu.memory_space<vmem>>, vector<32x108xf32>
    %118 = arith.maximumf %116, %117 : vector<32x108xf32>
    %cst_58 = arith.constant 0.000000e+00 : f32
    %119 = vector.shape_cast %11 : vector<1x108xi1> to vector<1x108xi1>
    %120 = vector.broadcast %119 : vector<1x108xi1> to vector<32x108xi1>
    %121 = vector.broadcast %cst_58 : f32 to vector<32x108xf32>
    %122 = arith.select %120, %118, %121 : vector<32x108xi1>, vector<32x108xf32>
    %c0_59 = arith.constant 0 : index
    %c0_60 = arith.constant 0 : index
    %c0_61 = arith.constant 0 : index
    %123 = vector.load %arg4[%c0_59, %c0_60, %c0_61] : memref<6x8x32xf32, #tpu.memory_space<vmem>>, vector<1x8x32xf32>
    %124 = vector.shape_cast %123 : vector<1x8x32xf32> to vector<8x32xf32>
    %cst_62 = arith.constant dense<0.000000e+00> : vector<8x108xf32>
    %125 = tpu.matmul %124, %122, %cst_62 {dimension_numbers = #tpu.dot_dimension_numbers<[1], [0], [0], [1], [0, 0, 1, 1], [], []>} : vector<8x32xf32>, vector<32x108xf32>, vector<8x108xf32> -> vector<8x108xf32>
    %126 = tpu.concatenate %106, %125 in 0 : vector<24x108xf32>, vector<8x108xf32> -> vector<32x108xf32>
    %c0_63 = arith.constant 0 : index
    %c0_64 = arith.constant 0 : index
    %c0_65 = arith.constant 0 : index
    %127 = vector.load %arg5[%c0_63, %c0_64, %c0_65] : memref<6x32x1xf32, #tpu.memory_space<vmem>>, vector<1x32x1xf32>
    %128 = vector.shape_cast %127 : vector<1x32x1xf32> to vector<32x1xf32>
    %129 = vector.broadcast %128 : vector<32x1xf32> to vector<32x108xf32>
    %130 = arith.addf %126, %129 : vector<32x108xf32>
    %cst_66 = arith.constant 0.000000e+00 : f32
    %131 = vector.broadcast %cst_66 : f32 to vector<32x108xf32>
    %132 = arith.maximumf %130, %131 : vector<32x108xf32>
    %cst_67 = arith.constant 0.000000e+00 : f32
    %133 = vector.shape_cast %11 : vector<1x108xi1> to vector<1x108xi1>
    %134 = vector.broadcast %133 : vector<1x108xi1> to vector<32x108xi1>
    %135 = vector.broadcast %cst_67 : f32 to vector<32x108xf32>
    %136 = arith.select %134, %132, %135 : vector<32x108xi1>, vector<32x108xf32>
    %c0_68 = arith.constant 0 : index
    %c0_69 = arith.constant 0 : index
    %137 = vector.load %arg14[%c0_68, %c0_69] : memref<32x108xf32, #tpu.memory_space<vmem>>, vector<32x108xf32>
    tpu.vector_store %arg14[%c0_68, %c0_69], %136 {strides = array<i32>} : memref<32x108xf32, #tpu.memory_space<vmem>>, vector<32x108xf32>,
    %c0_70 = arith.constant 0 : index
    %c0_71 = arith.constant 0 : index
    %138 = vector.load %arg14[%c0_70, %c0_71] : memref<32x108xf32, #tpu.memory_space<vmem>>, vector<32x108xf32>
    %c1_72 = arith.constant 1 : index
    %c0_73 = arith.constant 0 : index
    %c0_74 = arith.constant 0 : index
    %139 = vector.load %arg2[%c1_72, %c0_73, %c0_74] : memref<6x8x32xf32, #tpu.memory_space<vmem>>, vector<1x8x32xf32>
    %140 = vector.shape_cast %139 : vector<1x8x32xf32> to vector<8x32xf32>
    %cst_75 = arith.constant dense<0.000000e+00> : vector<8x108xf32>
    %141 = tpu.matmul %140, %138, %cst_75 {dimension_numbers = #tpu.dot_dimension_numbers<[1], [0], [0], [1], [0, 0, 1, 1], [], []>} : vector<8x32xf32>, vector<32x108xf32>, vector<8x108xf32> -> vector<8x108xf32>
    %142 = vector.extract_strided_slice %141 {offsets = [0, 0], sizes = [8, 89], strides = [1, 1]} : vector<8x108xf32> to vector<8x89xf32>
    %c0_76 = arith.constant 0 : index
    %c19_77 = arith.constant 19 : index
    %143 = vector.load %arg16[%c0_76, %c19_77] : memref<312x108xf32, #tpu.memory_space<vmem>>, vector<8x89xf32>
    tpu.vector_store %arg16[%c0_76, %c19_77], %142 {strides = array<i32>} : memref<312x108xf32, #tpu.memory_space<vmem>>, vector<8x89xf32>,
    %144 = vector.extract_strided_slice %141 {offsets = [0, 0], sizes = [8, 90], strides = [1, 1]} : vector<8x108xf32> to vector<8x90xf32>
    %c8_78 = arith.constant 8 : index
    %c18_79 = arith.constant 18 : index
    %145 = vector.load %arg16[%c8_78, %c18_79] : memref<312x108xf32, #tpu.memory_space<vmem>>, vector<8x90xf32>
    tpu.vector_store %arg16[%c8_78, %c18_79], %144 {strides = array<i32>} : memref<312x108xf32, #tpu.memory_space<vmem>>, vector<8x90xf32>,
    %146 = vector.extract_strided_slice %141 {offsets = [0, 0], sizes = [8, 91], strides = [1, 1]} : vector<8x108xf32> to vector<8x91xf32>
    %c16_80 = arith.constant 16 : index
    %c17_81 = arith.constant 17 : index
    %147 = vector.load %arg16[%c16_80, %c17_81] : memref<312x108xf32, #tpu.memory_space<vmem>>, vector<8x91xf32>
    tpu.vector_store %arg16[%c16_80, %c17_81], %146 {strides = array<i32>} : memref<312x108xf32, #tpu.memory_space<vmem>>, vector<8x91xf32>,
    %148 = vector.extract_strided_slice %141 {offsets = [0, 0], sizes = [8, 92], strides = [1, 1]} : vector<8x108xf32> to vector<8x92xf32>
    %c24_82 = arith.constant 24 : index
    %c16_83 = arith.constant 16 : index
    %149 = vector.load %arg16[%c24_82, %c16_83] : memref<312x108xf32, #tpu.memory_space<vmem>>, vector<8x92xf32>
    tpu.vector_store %arg16[%c24_82, %c16_83], %148 {strides = array<i32>} : memref<312x108xf32, #tpu.memory_space<vmem>>, vector<8x92xf32>,
    %150 = vector.extract_strided_slice %141 {offsets = [0, 0], sizes = [8, 93], strides = [1, 1]} : vector<8x108xf32> to vector<8x93xf32>
    %c32_84 = arith.constant 32 : index
    %c15_85 = arith.constant 15 : index
    %151 = vector.load %arg16[%c32_84, %c15_85] : memref<312x108xf32, #tpu.memory_space<vmem>>, vector<8x93xf32>
    tpu.vector_store %arg16[%c32_84, %c15_85], %150 {strides = array<i32>} : memref<312x108xf32, #tpu.memory_space<vmem>>, vector<8x93xf32>,
    %152 = vector.extract_strided_slice %141 {offsets = [0, 0], sizes = [8, 94], strides = [1, 1]} : vector<8x108xf32> to vector<8x94xf32>
    %c40_86 = arith.constant 40 : index
    %c14_87 = arith.constant 14 : index
    %153 = vector.load %arg16[%c40_86, %c14_87] : memref<312x108xf32, #tpu.memory_space<vmem>>, vector<8x94xf32>
    tpu.vector_store %arg16[%c40_86, %c14_87], %152 {strides = array<i32>} : memref<312x108xf32, #tpu.memory_space<vmem>>, vector<8x94xf32>,
    %154 = vector.extract_strided_slice %141 {offsets = [0, 0], sizes = [8, 95], strides = [1, 1]} : vector<8x108xf32> to vector<8x95xf32>
    %c48_88 = arith.constant 48 : index
    %c13_89 = arith.constant 13 : index
    %155 = vector.load %arg16[%c48_88, %c13_89] : memref<312x108xf32, #tpu.memory_space<vmem>>, vector<8x95xf32>
    tpu.vector_store %arg16[%c48_88, %c13_89], %154 {strides = array<i32>} : memref<312x108xf32, #tpu.memory_space<vmem>>, vector<8x95xf32>,
    %156 = vector.extract_strided_slice %141 {offsets = [0, 0], sizes = [8, 96], strides = [1, 1]} : vector<8x108xf32> to vector<8x96xf32>
    %c56_90 = arith.constant 56 : index
    %c12_91 = arith.constant 12 : index
    %157 = vector.load %arg16[%c56_90, %c12_91] : memref<312x108xf32, #tpu.memory_space<vmem>>, vector<8x96xf32>
    tpu.vector_store %arg16[%c56_90, %c12_91], %156 {strides = array<i32>} : memref<312x108xf32, #tpu.memory_space<vmem>>, vector<8x96xf32>,
    %158 = vector.extract_strided_slice %141 {offsets = [0, 0], sizes = [8, 97], strides = [1, 1]} : vector<8x108xf32> to vector<8x97xf32>
    %c64_92 = arith.constant 64 : index
    %c11_93 = arith.constant 11 : index
    %159 = vector.load %arg16[%c64_92, %c11_93] : memref<312x108xf32, #tpu.memory_space<vmem>>, vector<8x97xf32>
    tpu.vector_store %arg16[%c64_92, %c11_93], %158 {strides = array<i32>} : memref<312x108xf32, #tpu.memory_space<vmem>>, vector<8x97xf32>,
    %160 = vector.extract_strided_slice %141 {offsets = [0, 0], sizes = [8, 98], strides = [1, 1]} : vector<8x108xf32> to vector<8x98xf32>
    %c72_94 = arith.constant 72 : index
    %c10_95 = arith.constant 10 : index
    %161 = vector.load %arg16[%c72_94, %c10_95] : memref<312x108xf32, #tpu.memory_space<vmem>>, vector<8x98xf32>
    tpu.vector_store %arg16[%c72_94, %c10_95], %160 {strides = array<i32>} : memref<312x108xf32, #tpu.memory_space<vmem>>, vector<8x98xf32>,
    %162 = vector.extract_strided_slice %141 {offsets = [0, 0], sizes = [8, 99], strides = [1, 1]} : vector<8x108xf32> to vector<8x99xf32>
    %c80_96 = arith.constant 80 : index
    %c9_97 = arith.constant 9 : index
    %163 = vector.load %arg16[%c80_96, %c9_97] : memref<312x108xf32, #tpu.memory_space<vmem>>, vector<8x99xf32>
    tpu.vector_store %arg16[%c80_96, %c9_97], %162 {strides = array<i32>} : memref<312x108xf32, #tpu.memory_space<vmem>>, vector<8x99xf32>,
    %164 = vector.extract_strided_slice %141 {offsets = [0, 0], sizes = [8, 100], strides = [1, 1]} : vector<8x108xf32> to vector<8x100xf32>
    %c88_98 = arith.constant 88 : index
    %c8_99 = arith.constant 8 : index
    %165 = vector.load %arg16[%c88_98, %c8_99] : memref<312x108xf32, #tpu.memory_space<vmem>>, vector<8x100xf32>
    tpu.vector_store %arg16[%c88_98, %c8_99], %164 {strides = array<i32>} : memref<312x108xf32, #tpu.memory_space<vmem>>, vector<8x100xf32>,
    %166 = vector.extract_strided_slice %141 {offsets = [0, 0], sizes = [8, 101], strides = [1, 1]} : vector<8x108xf32> to vector<8x101xf32>
    %c96_100 = arith.constant 96 : index
    %c7_101 = arith.constant 7 : index
    %167 = vector.load %arg16[%c96_100, %c7_101] : memref<312x108xf32, #tpu.memory_space<vmem>>, vector<8x101xf32>
    tpu.vector_store %arg16[%c96_100, %c7_101], %166 {strides = array<i32>} : memref<312x108xf32, #tpu.memory_space<vmem>>, vector<8x101xf32>,
    %168 = vector.extract_strided_slice %141 {offsets = [0, 0], sizes = [8, 102], strides = [1, 1]} : vector<8x108xf32> to vector<8x102xf32>
    %c104_102 = arith.constant 104 : index
    %c6_103 = arith.constant 6 : index
    %169 = vector.load %arg16[%c104_102, %c6_103] : memref<312x108xf32, #tpu.memory_space<vmem>>, vector<8x102xf32>
    tpu.vector_store %arg16[%c104_102, %c6_103], %168 {strides = array<i32>} : memref<312x108xf32, #tpu.memory_space<vmem>>, vector<8x102xf32>,
    %170 = vector.extract_strided_slice %141 {offsets = [0, 0], sizes = [8, 103], strides = [1, 1]} : vector<8x108xf32> to vector<8x103xf32>
    %c112_104 = arith.constant 112 : index
    %c5_105 = arith.constant 5 : index
    %171 = vector.load %arg16[%c112_104, %c5_105] : memref<312x108xf32, #tpu.memory_space<vmem>>, vector<8x103xf32>
    tpu.vector_store %arg16[%c112_104, %c5_105], %170 {strides = array<i32>} : memref<312x108xf32, #tpu.memory_space<vmem>>, vector<8x103xf32>,
    %172 = vector.extract_strided_slice %141 {offsets = [0, 0], sizes = [8, 104], strides = [1, 1]} : vector<8x108xf32> to vector<8x104xf32>
    %c120_106 = arith.constant 120 : index
    %c4_107 = arith.constant 4 : index
    %173 = vector.load %arg16[%c120_106, %c4_107] : memref<312x108xf32, #tpu.memory_space<vmem>>, vector<8x104xf32>
    tpu.vector_store %arg16[%c120_106, %c4_107], %172 {strides = array<i32>} : memref<312x108xf32, #tpu.memory_space<vmem>>, vector<8x104xf32>,
    %174 = vector.extract_strided_slice %141 {offsets = [0, 0], sizes = [8, 105], strides = [1, 1]} : vector<8x108xf32> to vector<8x105xf32>
    %c128_108 = arith.constant 128 : index
    %c3_109 = arith.constant 3 : index
    %175 = vector.load %arg16[%c128_108, %c3_109] : memref<312x108xf32, #tpu.memory_space<vmem>>, vector<8x105xf32>
    tpu.vector_store %arg16[%c128_108, %c3_109], %174 {strides = array<i32>} : memref<312x108xf32, #tpu.memory_space<vmem>>, vector<8x105xf32>,
    %176 = vector.extract_strided_slice %141 {offsets = [0, 0], sizes = [8, 106], strides = [1, 1]} : vector<8x108xf32> to vector<8x106xf32>
    %c136_110 = arith.constant 136 : index
    %c2_111 = arith.constant 2 : index
    %177 = vector.load %arg16[%c136_110, %c2_111] : memref<312x108xf32, #tpu.memory_space<vmem>>, vector<8x106xf32>
    tpu.vector_store %arg16[%c136_110, %c2_111], %176 {strides = array<i32>} : memref<312x108xf32, #tpu.memory_space<vmem>>, vector<8x106xf32>,
    %178 = vector.extract_strided_slice %141 {offsets = [0, 0], sizes = [8, 107], strides = [1, 1]} : vector<8x108xf32> to vector<8x107xf32>
    %c144_112 = arith.constant 144 : index
    %c1_113 = arith.constant 1 : index
    %179 = vector.load %arg16[%c144_112, %c1_113] : memref<312x108xf32, #tpu.memory_space<vmem>>, vector<8x107xf32>
    tpu.vector_store %arg16[%c144_112, %c1_113], %178 {strides = array<i32>} : memref<312x108xf32, #tpu.memory_space<vmem>>, vector<8x107xf32>,
    %c152_114 = arith.constant 152 : index
    %c0_115 = arith.constant 0 : index
    %180 = vector.load %arg16[%c152_114, %c0_115] : memref<312x108xf32, #tpu.memory_space<vmem>>, vector<8x108xf32>
    tpu.vector_store %arg16[%c152_114, %c0_115], %141 {strides = array<i32>} : memref<312x108xf32, #tpu.memory_space<vmem>>, vector<8x108xf32>,
    %181 = vector.extract_strided_slice %141 {offsets = [0, 1], sizes = [8, 107], strides = [1, 1]} : vector<8x108xf32> to vector<8x107xf32>
    %c160_116 = arith.constant 160 : index
    %c0_117 = arith.constant 0 : index
    %182 = vector.load %arg16[%c160_116, %c0_117] : memref<312x108xf32, #tpu.memory_space<vmem>>, vector<8x107xf32>
    tpu.vector_store %arg16[%c160_116, %c0_117], %181 {strides = array<i32>} : memref<312x108xf32, #tpu.memory_space<vmem>>, vector<8x107xf32>,
    %183 = vector.extract_strided_slice %141 {offsets = [0, 2], sizes = [8, 106], strides = [1, 1]} : vector<8x108xf32> to vector<8x106xf32>
    %c168_118 = arith.constant 168 : index
    %c0_119 = arith.constant 0 : index
    %184 = vector.load %arg16[%c168_118, %c0_119] : memref<312x108xf32, #tpu.memory_space<vmem>>, vector<8x106xf32>
    tpu.vector_store %arg16[%c168_118, %c0_119], %183 {strides = array<i32>} : memref<312x108xf32, #tpu.memory_space<vmem>>, vector<8x106xf32>,
    %185 = vector.extract_strided_slice %141 {offsets = [0, 3], sizes = [8, 105], strides = [1, 1]} : vector<8x108xf32> to vector<8x105xf32>
    %c176_120 = arith.constant 176 : index
    %c0_121 = arith.constant 0 : index
    %186 = vector.load %arg16[%c176_120, %c0_121] : memref<312x108xf32, #tpu.memory_space<vmem>>, vector<8x105xf32>
    tpu.vector_store %arg16[%c176_120, %c0_121], %185 {strides = array<i32>} : memref<312x108xf32, #tpu.memory_space<vmem>>, vector<8x105xf32>,
    %187 = vector.extract_strided_slice %141 {offsets = [0, 4], sizes = [8, 104], strides = [1, 1]} : vector<8x108xf32> to vector<8x104xf32>
    %c184_122 = arith.constant 184 : index
    %c0_123 = arith.constant 0 : index
    %188 = vector.load %arg16[%c184_122, %c0_123] : memref<312x108xf32, #tpu.memory_space<vmem>>, vector<8x104xf32>
    tpu.vector_store %arg16[%c184_122, %c0_123], %187 {strides = array<i32>} : memref<312x108xf32, #tpu.memory_space<vmem>>, vector<8x104xf32>,
    %189 = vector.extract_strided_slice %141 {offsets = [0, 5], sizes = [8, 103], strides = [1, 1]} : vector<8x108xf32> to vector<8x103xf32>
    %c192_124 = arith.constant 192 : index
    %c0_125 = arith.constant 0 : index
    %190 = vector.load %arg16[%c192_124, %c0_125] : memref<312x108xf32, #tpu.memory_space<vmem>>, vector<8x103xf32>
    tpu.vector_store %arg16[%c192_124, %c0_125], %189 {strides = array<i32>} : memref<312x108xf32, #tpu.memory_space<vmem>>, vector<8x103xf32>,
    %191 = vector.extract_strided_slice %141 {offsets = [0, 6], sizes = [8, 102], strides = [1, 1]} : vector<8x108xf32> to vector<8x102xf32>
    %c200_126 = arith.constant 200 : index
    %c0_127 = arith.constant 0 : index
    %192 = vector.load %arg16[%c200_126, %c0_127] : memref<312x108xf32, #tpu.memory_space<vmem>>, vector<8x102xf32>
    tpu.vector_store %arg16[%c200_126, %c0_127], %191 {strides = array<i32>} : memref<312x108xf32, #tpu.memory_space<vmem>>, vector<8x102xf32>,
    %193 = vector.extract_strided_slice %141 {offsets = [0, 7], sizes = [8, 101], strides = [1, 1]} : vector<8x108xf32> to vector<8x101xf32>
    %c208_128 = arith.constant 208 : index
    %c0_129 = arith.constant 0 : index
    %194 = vector.load %arg16[%c208_128, %c0_129] : memref<312x108xf32, #tpu.memory_space<vmem>>, vector<8x101xf32>
    tpu.vector_store %arg16[%c208_128, %c0_129], %193 {strides = array<i32>} : memref<312x108xf32, #tpu.memory_space<vmem>>, vector<8x101xf32>,
    %195 = vector.extract_strided_slice %141 {offsets = [0, 8], sizes = [8, 100], strides = [1, 1]} : vector<8x108xf32> to vector<8x100xf32>
    %c216_130 = arith.constant 216 : index
    %c0_131 = arith.constant 0 : index
    %196 = vector.load %arg16[%c216_130, %c0_131] : memref<312x108xf32, #tpu.memory_space<vmem>>, vector<8x100xf32>
    tpu.vector_store %arg16[%c216_130, %c0_131], %195 {strides = array<i32>} : memref<312x108xf32, #tpu.memory_space<vmem>>, vector<8x100xf32>,
    %197 = vector.extract_strided_slice %141 {offsets = [0, 9], sizes = [8, 99], strides = [1, 1]} : vector<8x108xf32> to vector<8x99xf32>
    %c224_132 = arith.constant 224 : index
    %c0_133 = arith.constant 0 : index
    %198 = vector.load %arg16[%c224_132, %c0_133] : memref<312x108xf32, #tpu.memory_space<vmem>>, vector<8x99xf32>
    tpu.vector_store %arg16[%c224_132, %c0_133], %197 {strides = array<i32>} : memref<312x108xf32, #tpu.memory_space<vmem>>, vector<8x99xf32>,
    %199 = vector.extract_strided_slice %141 {offsets = [0, 10], sizes = [8, 98], strides = [1, 1]} : vector<8x108xf32> to vector<8x98xf32>
    %c232_134 = arith.constant 232 : index
    %c0_135 = arith.constant 0 : index
    %200 = vector.load %arg16[%c232_134, %c0_135] : memref<312x108xf32, #tpu.memory_space<vmem>>, vector<8x98xf32>
    tpu.vector_store %arg16[%c232_134, %c0_135], %199 {strides = array<i32>} : memref<312x108xf32, #tpu.memory_space<vmem>>, vector<8x98xf32>,
    %201 = vector.extract_strided_slice %141 {offsets = [0, 11], sizes = [8, 97], strides = [1, 1]} : vector<8x108xf32> to vector<8x97xf32>
    %c240_136 = arith.constant 240 : index
    %c0_137 = arith.constant 0 : index
    %202 = vector.load %arg16[%c240_136, %c0_137] : memref<312x108xf32, #tpu.memory_space<vmem>>, vector<8x97xf32>
    tpu.vector_store %arg16[%c240_136, %c0_137], %201 {strides = array<i32>} : memref<312x108xf32, #tpu.memory_space<vmem>>, vector<8x97xf32>,
    %203 = vector.extract_strided_slice %141 {offsets = [0, 12], sizes = [8, 96], strides = [1, 1]} : vector<8x108xf32> to vector<8x96xf32>
    %c248_138 = arith.constant 248 : index
    %c0_139 = arith.constant 0 : index
    %204 = vector.load %arg16[%c248_138, %c0_139] : memref<312x108xf32, #tpu.memory_space<vmem>>, vector<8x96xf32>
    tpu.vector_store %arg16[%c248_138, %c0_139], %203 {strides = array<i32>} : memref<312x108xf32, #tpu.memory_space<vmem>>, vector<8x96xf32>,
    %205 = vector.extract_strided_slice %141 {offsets = [0, 13], sizes = [8, 95], strides = [1, 1]} : vector<8x108xf32> to vector<8x95xf32>
    %c256_140 = arith.constant 256 : index
    %c0_141 = arith.constant 0 : index
    %206 = vector.load %arg16[%c256_140, %c0_141] : memref<312x108xf32, #tpu.memory_space<vmem>>, vector<8x95xf32>
    tpu.vector_store %arg16[%c256_140, %c0_141], %205 {strides = array<i32>} : memref<312x108xf32, #tpu.memory_space<vmem>>, vector<8x95xf32>,
    %207 = vector.extract_strided_slice %141 {offsets = [0, 14], sizes = [8, 94], strides = [1, 1]} : vector<8x108xf32> to vector<8x94xf32>
    %c264_142 = arith.constant 264 : index
    %c0_143 = arith.constant 0 : index
    %208 = vector.load %arg16[%c264_142, %c0_143] : memref<312x108xf32, #tpu.memory_space<vmem>>, vector<8x94xf32>
    tpu.vector_store %arg16[%c264_142, %c0_143], %207 {strides = array<i32>} : memref<312x108xf32, #tpu.memory_space<vmem>>, vector<8x94xf32>,
    %209 = vector.extract_strided_slice %141 {offsets = [0, 15], sizes = [8, 93], strides = [1, 1]} : vector<8x108xf32> to vector<8x93xf32>
    %c272_144 = arith.constant 272 : index
    %c0_145 = arith.constant 0 : index
    %210 = vector.load %arg16[%c272_144, %c0_145] : memref<312x108xf32, #tpu.memory_space<vmem>>, vector<8x93xf32>
    tpu.vector_store %arg16[%c272_144, %c0_145], %209 {strides = array<i32>} : memref<312x108xf32, #tpu.memory_space<vmem>>, vector<8x93xf32>,
    %211 = vector.extract_strided_slice %141 {offsets = [0, 16], sizes = [8, 92], strides = [1, 1]} : vector<8x108xf32> to vector<8x92xf32>
    %c280_146 = arith.constant 280 : index
    %c0_147 = arith.constant 0 : index
    %212 = vector.load %arg16[%c280_146, %c0_147] : memref<312x108xf32, #tpu.memory_space<vmem>>, vector<8x92xf32>
    tpu.vector_store %arg16[%c280_146, %c0_147], %211 {strides = array<i32>} : memref<312x108xf32, #tpu.memory_space<vmem>>, vector<8x92xf32>,
    %213 = vector.extract_strided_slice %141 {offsets = [0, 17], sizes = [8, 91], strides = [1, 1]} : vector<8x108xf32> to vector<8x91xf32>
    %c288_148 = arith.constant 288 : index
    %c0_149 = arith.constant 0 : index
    %214 = vector.load %arg16[%c288_148, %c0_149] : memref<312x108xf32, #tpu.memory_space<vmem>>, vector<8x91xf32>
    tpu.vector_store %arg16[%c288_148, %c0_149], %213 {strides = array<i32>} : memref<312x108xf32, #tpu.memory_space<vmem>>, vector<8x91xf32>,
    %215 = vector.extract_strided_slice %141 {offsets = [0, 18], sizes = [8, 90], strides = [1, 1]} : vector<8x108xf32> to vector<8x90xf32>
    %c296_150 = arith.constant 296 : index
    %c0_151 = arith.constant 0 : index
    %216 = vector.load %arg16[%c296_150, %c0_151] : memref<312x108xf32, #tpu.memory_space<vmem>>, vector<8x90xf32>
    tpu.vector_store %arg16[%c296_150, %c0_151], %215 {strides = array<i32>} : memref<312x108xf32, #tpu.memory_space<vmem>>, vector<8x90xf32>,
    %217 = vector.extract_strided_slice %141 {offsets = [0, 19], sizes = [8, 89], strides = [1, 1]} : vector<8x108xf32> to vector<8x89xf32>
    %c304_152 = arith.constant 304 : index
    %c0_153 = arith.constant 0 : index
    %218 = vector.load %arg16[%c304_152, %c0_153] : memref<312x108xf32, #tpu.memory_space<vmem>>, vector<8x89xf32>
    tpu.vector_store %arg16[%c304_152, %c0_153], %217 {strides = array<i32>} : memref<312x108xf32, #tpu.memory_space<vmem>>, vector<8x89xf32>,
    %c1_154 = arith.constant 1 : index
    %c0_155 = arith.constant 0 : index
    %c0_156 = arith.constant 0 : index
    %219 = vector.load %arg3[%c1_154, %c0_155, %c0_156] : memref<6x24x312xf32, #tpu.memory_space<vmem>>, vector<1x24x312xf32>
    %220 = vector.shape_cast %219 : vector<1x24x312xf32> to vector<24x312xf32>
    %c0_157 = arith.constant 0 : index
    %c0_158 = arith.constant 0 : index
    %221 = vector.load %arg16[%c0_157, %c0_158] : memref<312x108xf32, #tpu.memory_space<vmem>>, vector<312x108xf32>
    %cst_159 = arith.constant dense<0.000000e+00> : vector<24x108xf32>
    %222 = tpu.matmul %220, %221, %cst_159 {dimension_numbers = #tpu.dot_dimension_numbers<[1], [0], [0], [1], [0, 0, 1, 1], [], []>} : vector<24x312xf32>, vector<312x108xf32>, vector<24x108xf32> -> vector<24x108xf32>
    %cst_160 = arith.constant -1.000000e+30 : f32
    %223 = vector.shape_cast %11 : vector<1x108xi1> to vector<1x108xi1>
    %224 = vector.broadcast %223 : vector<1x108xi1> to vector<32x108xi1>
    %225 = vector.broadcast %cst_160 : f32 to vector<32x108xf32>
    %226 = arith.select %224, %138, %225 : vector<32x108xi1>, vector<32x108xf32>
    %227 = vector.extract_strided_slice %226 {offsets = [0, 0], sizes = [32, 107], strides = [1, 1]} : vector<32x108xf32> to vector<32x107xf32>
    %c0_161 = arith.constant 0 : index
    %c1_162 = arith.constant 1 : index
    %228 = vector.load %arg16[%c0_161, %c1_162] : memref<312x108xf32, #tpu.memory_space<vmem>>, vector<32x107xf32>
    tpu.vector_store %arg16[%c0_161, %c1_162], %227 {strides = array<i32>} : memref<312x108xf32, #tpu.memory_space<vmem>>, vector<32x107xf32>,
    %229 = vector.extract_strided_slice %226 {offsets = [0, 1], sizes = [32, 107], strides = [1, 1]} : vector<32x108xf32> to vector<32x107xf32>
    %c32_163 = arith.constant 32 : index
    %c0_164 = arith.constant 0 : index
    %230 = vector.load %arg16[%c32_163, %c0_164] : memref<312x108xf32, #tpu.memory_space<vmem>>, vector<32x107xf32>
    tpu.vector_store %arg16[%c32_163, %c0_164], %229 {strides = array<i32>} : memref<312x108xf32, #tpu.memory_space<vmem>>, vector<32x107xf32>,
    %c0_165 = arith.constant 0 : index
    %c0_166 = arith.constant 0 : index
    %231 = vector.load %arg16[%c0_165, %c0_166] : memref<312x108xf32, #tpu.memory_space<vmem>>, vector<32x108xf32>
    %232 = arith.maximumf %226, %231 : vector<32x108xf32>
    %c32_167 = arith.constant 32 : index
    %c0_168 = arith.constant 0 : index
    %233 = vector.load %arg16[%c32_167, %c0_168] : memref<312x108xf32, #tpu.memory_space<vmem>>, vector<32x108xf32>
    %234 = arith.maximumf %232, %233 : vector<32x108xf32>
    %cst_169 = arith.constant 0.000000e+00 : f32
    %235 = vector.shape_cast %11 : vector<1x108xi1> to vector<1x108xi1>
    %236 = vector.broadcast %235 : vector<1x108xi1> to vector<32x108xi1>
    %237 = vector.broadcast %cst_169 : f32 to vector<32x108xf32>
    %238 = arith.select %236, %234, %237 : vector<32x108xi1>, vector<32x108xf32>
    %c1_170 = arith.constant 1 : index
    %c0_171 = arith.constant 0 : index
    %c0_172 = arith.constant 0 : index
    %239 = vector.load %arg4[%c1_170, %c0_171, %c0_172] : memref<6x8x32xf32, #tpu.memory_space<vmem>>, vector<1x8x32xf32>
    %240 = vector.shape_cast %239 : vector<1x8x32xf32> to vector<8x32xf32>
    %cst_173 = arith.constant dense<0.000000e+00> : vector<8x108xf32>
    %241 = tpu.matmul %240, %238, %cst_173 {dimension_numbers = #tpu.dot_dimension_numbers<[1], [0], [0], [1], [0, 0, 1, 1], [], []>} : vector<8x32xf32>, vector<32x108xf32>, vector<8x108xf32> -> vector<8x108xf32>
    %242 = tpu.concatenate %222, %241 in 0 : vector<24x108xf32>, vector<8x108xf32> -> vector<32x108xf32>
    %c1_174 = arith.constant 1 : index
    %c0_175 = arith.constant 0 : index
    %c0_176 = arith.constant 0 : index
    %243 = vector.load %arg5[%c1_174, %c0_175, %c0_176] : memref<6x32x1xf32, #tpu.memory_space<vmem>>, vector<1x32x1xf32>
    %244 = vector.shape_cast %243 : vector<1x32x1xf32> to vector<32x1xf32>
    %245 = vector.broadcast %244 : vector<32x1xf32> to vector<32x108xf32>
    %246 = arith.addf %242, %245 : vector<32x108xf32>
    %cst_177 = arith.constant 0.000000e+00 : f32
    %247 = vector.broadcast %cst_177 : f32 to vector<32x108xf32>
    %248 = arith.maximumf %246, %247 : vector<32x108xf32>
    %cst_178 = arith.constant 0.000000e+00 : f32
    %249 = vector.shape_cast %11 : vector<1x108xi1> to vector<1x108xi1>
    %250 = vector.broadcast %249 : vector<1x108xi1> to vector<32x108xi1>
    %251 = vector.broadcast %cst_178 : f32 to vector<32x108xf32>
    %252 = arith.select %250, %248, %251 : vector<32x108xi1>, vector<32x108xf32>
    %c0_179 = arith.constant 0 : index
    %c0_180 = arith.constant 0 : index
    %253 = vector.load %arg14[%c0_179, %c0_180] : memref<32x108xf32, #tpu.memory_space<vmem>>, vector<32x108xf32>
    tpu.vector_store %arg14[%c0_179, %c0_180], %252 {strides = array<i32>} : memref<32x108xf32, #tpu.memory_space<vmem>>, vector<32x108xf32>,
    %c0_181 = arith.constant 0 : index
    %c0_182 = arith.constant 0 : index
    %254 = vector.load %arg14[%c0_181, %c0_182] : memref<32x108xf32, #tpu.memory_space<vmem>>, vector<32x108xf32>
    %c2_183 = arith.constant 2 : index
    %c0_184 = arith.constant 0 : index
    %c0_185 = arith.constant 0 : index
    %255 = vector.load %arg2[%c2_183, %c0_184, %c0_185] : memref<6x8x32xf32, #tpu.memory_space<vmem>>, vector<1x8x32xf32>
    %256 = vector.shape_cast %255 : vector<1x8x32xf32> to vector<8x32xf32>
    %cst_186 = arith.constant dense<0.000000e+00> : vector<8x108xf32>
    %257 = tpu.matmul %256, %254, %cst_186 {dimension_numbers = #tpu.dot_dimension_numbers<[1], [0], [0], [1], [0, 0, 1, 1], [], []>} : vector<8x32xf32>, vector<32x108xf32>, vector<8x108xf32> -> vector<8x108xf32>
    %258 = vector.extract_strided_slice %257 {offsets = [0, 0], sizes = [8, 89], strides = [1, 1]} : vector<8x108xf32> to vector<8x89xf32>
    %c0_187 = arith.constant 0 : index
    %c19_188 = arith.constant 19 : index
    %259 = vector.load %arg16[%c0_187, %c19_188] : memref<312x108xf32, #tpu.memory_space<vmem>>, vector<8x89xf32>
    tpu.vector_store %arg16[%c0_187, %c19_188], %258 {strides = array<i32>} : memref<312x108xf32, #tpu.memory_space<vmem>>, vector<8x89xf32>,
    %260 = vector.extract_strided_slice %257 {offsets = [0, 0], sizes = [8, 90], strides = [1, 1]} : vector<8x108xf32> to vector<8x90xf32>
    %c8_189 = arith.constant 8 : index
    %c18_190 = arith.constant 18 : index
    %261 = vector.load %arg16[%c8_189, %c18_190] : memref<312x108xf32, #tpu.memory_space<vmem>>, vector<8x90xf32>
    tpu.vector_store %arg16[%c8_189, %c18_190], %260 {strides = array<i32>} : memref<312x108xf32, #tpu.memory_space<vmem>>, vector<8x90xf32>,
    %262 = vector.extract_strided_slice %257 {offsets = [0, 0], sizes = [8, 91], strides = [1, 1]} : vector<8x108xf32> to vector<8x91xf32>
    %c16_191 = arith.constant 16 : index
    %c17_192 = arith.constant 17 : index
    %263 = vector.load %arg16[%c16_191, %c17_192] : memref<312x108xf32, #tpu.memory_space<vmem>>, vector<8x91xf32>
    tpu.vector_store %arg16[%c16_191, %c17_192], %262 {strides = array<i32>} : memref<312x108xf32, #tpu.memory_space<vmem>>, vector<8x91xf32>,
    %264 = vector.extract_strided_slice %257 {offsets = [0, 0], sizes = [8, 92], strides = [1, 1]} : vector<8x108xf32> to vector<8x92xf32>
    %c24_193 = arith.constant 24 : index
    %c16_194 = arith.constant 16 : index
    %265 = vector.load %arg16[%c24_193, %c16_194] : memref<312x108xf32, #tpu.memory_space<vmem>>, vector<8x92xf32>
    tpu.vector_store %arg16[%c24_193, %c16_194], %264 {strides = array<i32>} : memref<312x108xf32, #tpu.memory_space<vmem>>, vector<8x92xf32>,
    %266 = vector.extract_strided_slice %257 {offsets = [0, 0], sizes = [8, 93], strides = [1, 1]} : vector<8x108xf32> to vector<8x93xf32>
    %c32_195 = arith.constant 32 : index
    %c15_196 = arith.constant 15 : index
    %267 = vector.load %arg16[%c32_195, %c15_196] : memref<312x108xf32, #tpu.memory_space<vmem>>, vector<8x93xf32>
    tpu.vector_store %arg16[%c32_195, %c15_196], %266 {strides = array<i32>} : memref<312x108xf32, #tpu.memory_space<vmem>>, vector<8x93xf32>,
    %268 = vector.extract_strided_slice %257 {offsets = [0, 0], sizes = [8, 94], strides = [1, 1]} : vector<8x108xf32> to vector<8x94xf32>
    %c40_197 = arith.constant 40 : index
    %c14_198 = arith.constant 14 : index
    %269 = vector.load %arg16[%c40_197, %c14_198] : memref<312x108xf32, #tpu.memory_space<vmem>>, vector<8x94xf32>
    tpu.vector_store %arg16[%c40_197, %c14_198], %268 {strides = array<i32>} : memref<312x108xf32, #tpu.memory_space<vmem>>, vector<8x94xf32>,
    %270 = vector.extract_strided_slice %257 {offsets = [0, 0], sizes = [8, 95], strides = [1, 1]} : vector<8x108xf32> to vector<8x95xf32>
    %c48_199 = arith.constant 48 : index
    %c13_200 = arith.constant 13 : index
    %271 = vector.load %arg16[%c48_199, %c13_200] : memref<312x108xf32, #tpu.memory_space<vmem>>, vector<8x95xf32>
    tpu.vector_store %arg16[%c48_199, %c13_200], %270 {strides = array<i32>} : memref<312x108xf32, #tpu.memory_space<vmem>>, vector<8x95xf32>,
    %272 = vector.extract_strided_slice %257 {offsets = [0, 0], sizes = [8, 96], strides = [1, 1]} : vector<8x108xf32> to vector<8x96xf32>
    %c56_201 = arith.constant 56 : index
    %c12_202 = arith.constant 12 : index
    %273 = vector.load %arg16[%c56_201, %c12_202] : memref<312x108xf32, #tpu.memory_space<vmem>>, vector<8x96xf32>
    tpu.vector_store %arg16[%c56_201, %c12_202], %272 {strides = array<i32>} : memref<312x108xf32, #tpu.memory_space<vmem>>, vector<8x96xf32>,
    %274 = vector.extract_strided_slice %257 {offsets = [0, 0], sizes = [8, 97], strides = [1, 1]} : vector<8x108xf32> to vector<8x97xf32>
    %c64_203 = arith.constant 64 : index
    %c11_204 = arith.constant 11 : index
    %275 = vector.load %arg16[%c64_203, %c11_204] : memref<312x108xf32, #tpu.memory_space<vmem>>, vector<8x97xf32>
    tpu.vector_store %arg16[%c64_203, %c11_204], %274 {strides = array<i32>} : memref<312x108xf32, #tpu.memory_space<vmem>>, vector<8x97xf32>,
    %276 = vector.extract_strided_slice %257 {offsets = [0, 0], sizes = [8, 98], strides = [1, 1]} : vector<8x108xf32> to vector<8x98xf32>
    %c72_205 = arith.constant 72 : index
    %c10_206 = arith.constant 10 : index
    %277 = vector.load %arg16[%c72_205, %c10_206] : memref<312x108xf32, #tpu.memory_space<vmem>>, vector<8x98xf32>
    tpu.vector_store %arg16[%c72_205, %c10_206], %276 {strides = array<i32>} : memref<312x108xf32, #tpu.memory_space<vmem>>, vector<8x98xf32>,
    %278 = vector.extract_strided_slice %257 {offsets = [0, 0], sizes = [8, 99], strides = [1, 1]} : vector<8x108xf32> to vector<8x99xf32>
    %c80_207 = arith.constant 80 : index
    %c9_208 = arith.constant 9 : index
    %279 = vector.load %arg16[%c80_207, %c9_208] : memref<312x108xf32, #tpu.memory_space<vmem>>, vector<8x99xf32>
    tpu.vector_store %arg16[%c80_207, %c9_208], %278 {strides = array<i32>} : memref<312x108xf32, #tpu.memory_space<vmem>>, vector<8x99xf32>,
    %280 = vector.extract_strided_slice %257 {offsets = [0, 0], sizes = [8, 100], strides = [1, 1]} : vector<8x108xf32> to vector<8x100xf32>
    %c88_209 = arith.constant 88 : index
    %c8_210 = arith.constant 8 : index
    %281 = vector.load %arg16[%c88_209, %c8_210] : memref<312x108xf32, #tpu.memory_space<vmem>>, vector<8x100xf32>
    tpu.vector_store %arg16[%c88_209, %c8_210], %280 {strides = array<i32>} : memref<312x108xf32, #tpu.memory_space<vmem>>, vector<8x100xf32>,
    %282 = vector.extract_strided_slice %257 {offsets = [0, 0], sizes = [8, 101], strides = [1, 1]} : vector<8x108xf32> to vector<8x101xf32>
    %c96_211 = arith.constant 96 : index
    %c7_212 = arith.constant 7 : index
    %283 = vector.load %arg16[%c96_211, %c7_212] : memref<312x108xf32, #tpu.memory_space<vmem>>, vector<8x101xf32>
    tpu.vector_store %arg16[%c96_211, %c7_212], %282 {strides = array<i32>} : memref<312x108xf32, #tpu.memory_space<vmem>>, vector<8x101xf32>,
    %284 = vector.extract_strided_slice %257 {offsets = [0, 0], sizes = [8, 102], strides = [1, 1]} : vector<8x108xf32> to vector<8x102xf32>
    %c104_213 = arith.constant 104 : index
    %c6_214 = arith.constant 6 : index
    %285 = vector.load %arg16[%c104_213, %c6_214] : memref<312x108xf32, #tpu.memory_space<vmem>>, vector<8x102xf32>
    tpu.vector_store %arg16[%c104_213, %c6_214], %284 {strides = array<i32>} : memref<312x108xf32, #tpu.memory_space<vmem>>, vector<8x102xf32>,
    %286 = vector.extract_strided_slice %257 {offsets = [0, 0], sizes = [8, 103], strides = [1, 1]} : vector<8x108xf32> to vector<8x103xf32>
    %c112_215 = arith.constant 112 : index
    %c5_216 = arith.constant 5 : index
    %287 = vector.load %arg16[%c112_215, %c5_216] : memref<312x108xf32, #tpu.memory_space<vmem>>, vector<8x103xf32>
    tpu.vector_store %arg16[%c112_215, %c5_216], %286 {strides = array<i32>} : memref<312x108xf32, #tpu.memory_space<vmem>>, vector<8x103xf32>,
    %288 = vector.extract_strided_slice %257 {offsets = [0, 0], sizes = [8, 104], strides = [1, 1]} : vector<8x108xf32> to vector<8x104xf32>
    %c120_217 = arith.constant 120 : index
    %c4_218 = arith.constant 4 : index
    %289 = vector.load %arg16[%c120_217, %c4_218] : memref<312x108xf32, #tpu.memory_space<vmem>>, vector<8x104xf32>
    tpu.vector_store %arg16[%c120_217, %c4_218], %288 {strides = array<i32>} : memref<312x108xf32, #tpu.memory_space<vmem>>, vector<8x104xf32>,
    %290 = vector.extract_strided_slice %257 {offsets = [0, 0], sizes = [8, 105], strides = [1, 1]} : vector<8x108xf32> to vector<8x105xf32>
    %c128_219 = arith.constant 128 : index
    %c3_220 = arith.constant 3 : index
    %291 = vector.load %arg16[%c128_219, %c3_220] : memref<312x108xf32, #tpu.memory_space<vmem>>, vector<8x105xf32>
    tpu.vector_store %arg16[%c128_219, %c3_220], %290 {strides = array<i32>} : memref<312x108xf32, #tpu.memory_space<vmem>>, vector<8x105xf32>,
    %292 = vector.extract_strided_slice %257 {offsets = [0, 0], sizes = [8, 106], strides = [1, 1]} : vector<8x108xf32> to vector<8x106xf32>
    %c136_221 = arith.constant 136 : index
    %c2_222 = arith.constant 2 : index
    %293 = vector.load %arg16[%c136_221, %c2_222] : memref<312x108xf32, #tpu.memory_space<vmem>>, vector<8x106xf32>
    tpu.vector_store %arg16[%c136_221, %c2_222], %292 {strides = array<i32>} : memref<312x108xf32, #tpu.memory_space<vmem>>, vector<8x106xf32>,
    %294 = vector.extract_strided_slice %257 {offsets = [0, 0], sizes = [8, 107], strides = [1, 1]} : vector<8x108xf32> to vector<8x107xf32>
    %c144_223 = arith.constant 144 : index
    %c1_224 = arith.constant 1 : index
    %295 = vector.load %arg16[%c144_223, %c1_224] : memref<312x108xf32, #tpu.memory_space<vmem>>, vector<8x107xf32>
    tpu.vector_store %arg16[%c144_223, %c1_224], %294 {strides = array<i32>} : memref<312x108xf32, #tpu.memory_space<vmem>>, vector<8x107xf32>,
    %c152_225 = arith.constant 152 : index
    %c0_226 = arith.constant 0 : index
    %296 = vector.load %arg16[%c152_225, %c0_226] : memref<312x108xf32, #tpu.memory_space<vmem>>, vector<8x108xf32>
    tpu.vector_store %arg16[%c152_225, %c0_226], %257 {strides = array<i32>} : memref<312x108xf32, #tpu.memory_space<vmem>>, vector<8x108xf32>,
    %297 = vector.extract_strided_slice %257 {offsets = [0, 1], sizes = [8, 107], strides = [1, 1]} : vector<8x108xf32> to vector<8x107xf32>
    %c160_227 = arith.constant 160 : index
    %c0_228 = arith.constant 0 : index
    %298 = vector.load %arg16[%c160_227, %c0_228] : memref<312x108xf32, #tpu.memory_space<vmem>>, vector<8x107xf32>
    tpu.vector_store %arg16[%c160_227, %c0_228], %297 {strides = array<i32>} : memref<312x108xf32, #tpu.memory_space<vmem>>, vector<8x107xf32>,
    %299 = vector.extract_strided_slice %257 {offsets = [0, 2], sizes = [8, 106], strides = [1, 1]} : vector<8x108xf32> to vector<8x106xf32>
    %c168_229 = arith.constant 168 : index
    %c0_230 = arith.constant 0 : index
    %300 = vector.load %arg16[%c168_229, %c0_230] : memref<312x108xf32, #tpu.memory_space<vmem>>, vector<8x106xf32>
    tpu.vector_store %arg16[%c168_229, %c0_230], %299 {strides = array<i32>} : memref<312x108xf32, #tpu.memory_space<vmem>>, vector<8x106xf32>,
    %301 = vector.extract_strided_slice %257 {offsets = [0, 3], sizes = [8, 105], strides = [1, 1]} : vector<8x108xf32> to vector<8x105xf32>
    %c176_231 = arith.constant 176 : index
    %c0_232 = arith.constant 0 : index
    %302 = vector.load %arg16[%c176_231, %c0_232] : memref<312x108xf32, #tpu.memory_space<vmem>>, vector<8x105xf32>
    tpu.vector_store %arg16[%c176_231, %c0_232], %301 {strides = array<i32>} : memref<312x108xf32, #tpu.memory_space<vmem>>, vector<8x105xf32>,
    %303 = vector.extract_strided_slice %257 {offsets = [0, 4], sizes = [8, 104], strides = [1, 1]} : vector<8x108xf32> to vector<8x104xf32>
    %c184_233 = arith.constant 184 : index
    %c0_234 = arith.constant 0 : index
    %304 = vector.load %arg16[%c184_233, %c0_234] : memref<312x108xf32, #tpu.memory_space<vmem>>, vector<8x104xf32>
    tpu.vector_store %arg16[%c184_233, %c0_234], %303 {strides = array<i32>} : memref<312x108xf32, #tpu.memory_space<vmem>>, vector<8x104xf32>,
    %305 = vector.extract_strided_slice %257 {offsets = [0, 5], sizes = [8, 103], strides = [1, 1]} : vector<8x108xf32> to vector<8x103xf32>
    %c192_235 = arith.constant 192 : index
    %c0_236 = arith.constant 0 : index
    %306 = vector.load %arg16[%c192_235, %c0_236] : memref<312x108xf32, #tpu.memory_space<vmem>>, vector<8x103xf32>
    tpu.vector_store %arg16[%c192_235, %c0_236], %305 {strides = array<i32>} : memref<312x108xf32, #tpu.memory_space<vmem>>, vector<8x103xf32>,
    %307 = vector.extract_strided_slice %257 {offsets = [0, 6], sizes = [8, 102], strides = [1, 1]} : vector<8x108xf32> to vector<8x102xf32>
    %c200_237 = arith.constant 200 : index
    %c0_238 = arith.constant 0 : index
    %308 = vector.load %arg16[%c200_237, %c0_238] : memref<312x108xf32, #tpu.memory_space<vmem>>, vector<8x102xf32>
    tpu.vector_store %arg16[%c200_237, %c0_238], %307 {strides = array<i32>} : memref<312x108xf32, #tpu.memory_space<vmem>>, vector<8x102xf32>,
    %309 = vector.extract_strided_slice %257 {offsets = [0, 7], sizes = [8, 101], strides = [1, 1]} : vector<8x108xf32> to vector<8x101xf32>
    %c208_239 = arith.constant 208 : index
    %c0_240 = arith.constant 0 : index
    %310 = vector.load %arg16[%c208_239, %c0_240] : memref<312x108xf32, #tpu.memory_space<vmem>>, vector<8x101xf32>
    tpu.vector_store %arg16[%c208_239, %c0_240], %309 {strides = array<i32>} : memref<312x108xf32, #tpu.memory_space<vmem>>, vector<8x101xf32>,
    %311 = vector.extract_strided_slice %257 {offsets = [0, 8], sizes = [8, 100], strides = [1, 1]} : vector<8x108xf32> to vector<8x100xf32>
    %c216_241 = arith.constant 216 : index
    %c0_242 = arith.constant 0 : index
    %312 = vector.load %arg16[%c216_241, %c0_242] : memref<312x108xf32, #tpu.memory_space<vmem>>, vector<8x100xf32>
    tpu.vector_store %arg16[%c216_241, %c0_242], %311 {strides = array<i32>} : memref<312x108xf32, #tpu.memory_space<vmem>>, vector<8x100xf32>,
    %313 = vector.extract_strided_slice %257 {offsets = [0, 9], sizes = [8, 99], strides = [1, 1]} : vector<8x108xf32> to vector<8x99xf32>
    %c224_243 = arith.constant 224 : index
    %c0_244 = arith.constant 0 : index
    %314 = vector.load %arg16[%c224_243, %c0_244] : memref<312x108xf32, #tpu.memory_space<vmem>>, vector<8x99xf32>
    tpu.vector_store %arg16[%c224_243, %c0_244], %313 {strides = array<i32>} : memref<312x108xf32, #tpu.memory_space<vmem>>, vector<8x99xf32>,
    %315 = vector.extract_strided_slice %257 {offsets = [0, 10], sizes = [8, 98], strides = [1, 1]} : vector<8x108xf32> to vector<8x98xf32>
    %c232_245 = arith.constant 232 : index
    %c0_246 = arith.constant 0 : index
    %316 = vector.load %arg16[%c232_245, %c0_246] : memref<312x108xf32, #tpu.memory_space<vmem>>, vector<8x98xf32>
    tpu.vector_store %arg16[%c232_245, %c0_246], %315 {strides = array<i32>} : memref<312x108xf32, #tpu.memory_space<vmem>>, vector<8x98xf32>,
    %317 = vector.extract_strided_slice %257 {offsets = [0, 11], sizes = [8, 97], strides = [1, 1]} : vector<8x108xf32> to vector<8x97xf32>
    %c240_247 = arith.constant 240 : index
    %c0_248 = arith.constant 0 : index
    %318 = vector.load %arg16[%c240_247, %c0_248] : memref<312x108xf32, #tpu.memory_space<vmem>>, vector<8x97xf32>
    tpu.vector_store %arg16[%c240_247, %c0_248], %317 {strides = array<i32>} : memref<312x108xf32, #tpu.memory_space<vmem>>, vector<8x97xf32>,
    %319 = vector.extract_strided_slice %257 {offsets = [0, 12], sizes = [8, 96], strides = [1, 1]} : vector<8x108xf32> to vector<8x96xf32>
    %c248_249 = arith.constant 248 : index
    %c0_250 = arith.constant 0 : index
    %320 = vector.load %arg16[%c248_249, %c0_250] : memref<312x108xf32, #tpu.memory_space<vmem>>, vector<8x96xf32>
    tpu.vector_store %arg16[%c248_249, %c0_250], %319 {strides = array<i32>} : memref<312x108xf32, #tpu.memory_space<vmem>>, vector<8x96xf32>,
    %321 = vector.extract_strided_slice %257 {offsets = [0, 13], sizes = [8, 95], strides = [1, 1]} : vector<8x108xf32> to vector<8x95xf32>
    %c256_251 = arith.constant 256 : index
    %c0_252 = arith.constant 0 : index
    %322 = vector.load %arg16[%c256_251, %c0_252] : memref<312x108xf32, #tpu.memory_space<vmem>>, vector<8x95xf32>
    tpu.vector_store %arg16[%c256_251, %c0_252], %321 {strides = array<i32>} : memref<312x108xf32, #tpu.memory_space<vmem>>, vector<8x95xf32>,
    %323 = vector.extract_strided_slice %257 {offsets = [0, 14], sizes = [8, 94], strides = [1, 1]} : vector<8x108xf32> to vector<8x94xf32>
    %c264_253 = arith.constant 264 : index
    %c0_254 = arith.constant 0 : index
    %324 = vector.load %arg16[%c264_253, %c0_254] : memref<312x108xf32, #tpu.memory_space<vmem>>, vector<8x94xf32>
    tpu.vector_store %arg16[%c264_253, %c0_254], %323 {strides = array<i32>} : memref<312x108xf32, #tpu.memory_space<vmem>>, vector<8x94xf32>,
    %325 = vector.extract_strided_slice %257 {offsets = [0, 15], sizes = [8, 93], strides = [1, 1]} : vector<8x108xf32> to vector<8x93xf32>
    %c272_255 = arith.constant 272 : index
    %c0_256 = arith.constant 0 : index
    %326 = vector.load %arg16[%c272_255, %c0_256] : memref<312x108xf32, #tpu.memory_space<vmem>>, vector<8x93xf32>
    tpu.vector_store %arg16[%c272_255, %c0_256], %325 {strides = array<i32>} : memref<312x108xf32, #tpu.memory_space<vmem>>, vector<8x93xf32>,
    %327 = vector.extract_strided_slice %257 {offsets = [0, 16], sizes = [8, 92], strides = [1, 1]} : vector<8x108xf32> to vector<8x92xf32>
    %c280_257 = arith.constant 280 : index
    %c0_258 = arith.constant 0 : index
    %328 = vector.load %arg16[%c280_257, %c0_258] : memref<312x108xf32, #tpu.memory_space<vmem>>, vector<8x92xf32>
    tpu.vector_store %arg16[%c280_257, %c0_258], %327 {strides = array<i32>} : memref<312x108xf32, #tpu.memory_space<vmem>>, vector<8x92xf32>,
    %329 = vector.extract_strided_slice %257 {offsets = [0, 17], sizes = [8, 91], strides = [1, 1]} : vector<8x108xf32> to vector<8x91xf32>
    %c288_259 = arith.constant 288 : index
    %c0_260 = arith.constant 0 : index
    %330 = vector.load %arg16[%c288_259, %c0_260] : memref<312x108xf32, #tpu.memory_space<vmem>>, vector<8x91xf32>
    tpu.vector_store %arg16[%c288_259, %c0_260], %329 {strides = array<i32>} : memref<312x108xf32, #tpu.memory_space<vmem>>, vector<8x91xf32>,
    %331 = vector.extract_strided_slice %257 {offsets = [0, 18], sizes = [8, 90], strides = [1, 1]} : vector<8x108xf32> to vector<8x90xf32>
    %c296_261 = arith.constant 296 : index
    %c0_262 = arith.constant 0 : index
    %332 = vector.load %arg16[%c296_261, %c0_262] : memref<312x108xf32, #tpu.memory_space<vmem>>, vector<8x90xf32>
    tpu.vector_store %arg16[%c296_261, %c0_262], %331 {strides = array<i32>} : memref<312x108xf32, #tpu.memory_space<vmem>>, vector<8x90xf32>,
    %333 = vector.extract_strided_slice %257 {offsets = [0, 19], sizes = [8, 89], strides = [1, 1]} : vector<8x108xf32> to vector<8x89xf32>
    %c304_263 = arith.constant 304 : index
    %c0_264 = arith.constant 0 : index
    %334 = vector.load %arg16[%c304_263, %c0_264] : memref<312x108xf32, #tpu.memory_space<vmem>>, vector<8x89xf32>
    tpu.vector_store %arg16[%c304_263, %c0_264], %333 {strides = array<i32>} : memref<312x108xf32, #tpu.memory_space<vmem>>, vector<8x89xf32>,
    %c2_265 = arith.constant 2 : index
    %c0_266 = arith.constant 0 : index
    %c0_267 = arith.constant 0 : index
    %335 = vector.load %arg3[%c2_265, %c0_266, %c0_267] : memref<6x24x312xf32, #tpu.memory_space<vmem>>, vector<1x24x312xf32>
    %336 = vector.shape_cast %335 : vector<1x24x312xf32> to vector<24x312xf32>
    %c0_268 = arith.constant 0 : index
    %c0_269 = arith.constant 0 : index
    %337 = vector.load %arg16[%c0_268, %c0_269] : memref<312x108xf32, #tpu.memory_space<vmem>>, vector<312x108xf32>
    %cst_270 = arith.constant dense<0.000000e+00> : vector<24x108xf32>
    %338 = tpu.matmul %336, %337, %cst_270 {dimension_numbers = #tpu.dot_dimension_numbers<[1], [0], [0], [1], [0, 0, 1, 1], [], []>} : vector<24x312xf32>, vector<312x108xf32>, vector<24x108xf32> -> vector<24x108xf32>
    %cst_271 = arith.constant -1.000000e+30 : f32
    %339 = vector.shape_cast %11 : vector<1x108xi1> to vector<1x108xi1>
    %340 = vector.broadcast %339 : vector<1x108xi1> to vector<32x108xi1>
    %341 = vector.broadcast %cst_271 : f32 to vector<32x108xf32>
    %342 = arith.select %340, %254, %341 : vector<32x108xi1>, vector<32x108xf32>
    %343 = vector.extract_strided_slice %342 {offsets = [0, 0], sizes = [32, 107], strides = [1, 1]} : vector<32x108xf32> to vector<32x107xf32>
    %c0_272 = arith.constant 0 : index
    %c1_273 = arith.constant 1 : index
    %344 = vector.load %arg16[%c0_272, %c1_273] : memref<312x108xf32, #tpu.memory_space<vmem>>, vector<32x107xf32>
    tpu.vector_store %arg16[%c0_272, %c1_273], %343 {strides = array<i32>} : memref<312x108xf32, #tpu.memory_space<vmem>>, vector<32x107xf32>,
    %345 = vector.extract_strided_slice %342 {offsets = [0, 1], sizes = [32, 107], strides = [1, 1]} : vector<32x108xf32> to vector<32x107xf32>
    %c32_274 = arith.constant 32 : index
    %c0_275 = arith.constant 0 : index
    %346 = vector.load %arg16[%c32_274, %c0_275] : memref<312x108xf32, #tpu.memory_space<vmem>>, vector<32x107xf32>
    tpu.vector_store %arg16[%c32_274, %c0_275], %345 {strides = array<i32>} : memref<312x108xf32, #tpu.memory_space<vmem>>, vector<32x107xf32>,
    %c0_276 = arith.constant 0 : index
    %c0_277 = arith.constant 0 : index
    %347 = vector.load %arg16[%c0_276, %c0_277] : memref<312x108xf32, #tpu.memory_space<vmem>>, vector<32x108xf32>
    %348 = arith.maximumf %342, %347 : vector<32x108xf32>
    %c32_278 = arith.constant 32 : index
    %c0_279 = arith.constant 0 : index
    %349 = vector.load %arg16[%c32_278, %c0_279] : memref<312x108xf32, #tpu.memory_space<vmem>>, vector<32x108xf32>
    %350 = arith.maximumf %348, %349 : vector<32x108xf32>
    %cst_280 = arith.constant 0.000000e+00 : f32
    %351 = vector.shape_cast %11 : vector<1x108xi1> to vector<1x108xi1>
    %352 = vector.broadcast %351 : vector<1x108xi1> to vector<32x108xi1>
    %353 = vector.broadcast %cst_280 : f32 to vector<32x108xf32>
    %354 = arith.select %352, %350, %353 : vector<32x108xi1>, vector<32x108xf32>
    %c2_281 = arith.constant 2 : index
    %c0_282 = arith.constant 0 : index
    %c0_283 = arith.constant 0 : index
    %355 = vector.load %arg4[%c2_281, %c0_282, %c0_283] : memref<6x8x32xf32, #tpu.memory_space<vmem>>, vector<1x8x32xf32>
    %356 = vector.shape_cast %355 : vector<1x8x32xf32> to vector<8x32xf32>
    %cst_284 = arith.constant dense<0.000000e+00> : vector<8x108xf32>
    %357 = tpu.matmul %356, %354, %cst_284 {dimension_numbers = #tpu.dot_dimension_numbers<[1], [0], [0], [1], [0, 0, 1, 1], [], []>} : vector<8x32xf32>, vector<32x108xf32>, vector<8x108xf32> -> vector<8x108xf32>
    %358 = tpu.concatenate %338, %357 in 0 : vector<24x108xf32>, vector<8x108xf32> -> vector<32x108xf32>
    %c2_285 = arith.constant 2 : index
    %c0_286 = arith.constant 0 : index
    %c0_287 = arith.constant 0 : index
    %359 = vector.load %arg5[%c2_285, %c0_286, %c0_287] : memref<6x32x1xf32, #tpu.memory_space<vmem>>, vector<1x32x1xf32>
    %360 = vector.shape_cast %359 : vector<1x32x1xf32> to vector<32x1xf32>
    %361 = vector.broadcast %360 : vector<32x1xf32> to vector<32x108xf32>
    %362 = arith.addf %358, %361 : vector<32x108xf32>
    %cst_288 = arith.constant 0.000000e+00 : f32
    %363 = vector.broadcast %cst_288 : f32 to vector<32x108xf32>
    %364 = arith.maximumf %362, %363 : vector<32x108xf32>
    %c0_289 = arith.constant 0 : index
    %c0_290 = arith.constant 0 : index
    %c0_291 = arith.constant 0 : index
    %365 = vector.load %arg6[%c0_289, %c0_290, %c0_291] : memref<2x32x32xf32, #tpu.memory_space<vmem>>, vector<1x32x32xf32>
    %366 = vector.shape_cast %365 : vector<1x32x32xf32> to vector<32x32xf32>
    %c0_292 = arith.constant 0 : index
    %c0_293 = arith.constant 0 : index
    %367 = vector.load %arg15[%c0_292, %c0_293] : memref<32x108xf32, #tpu.memory_space<vmem>>, vector<32x108xf32>
    %cst_294 = arith.constant dense<0.000000e+00> : vector<32x108xf32>
    %368 = tpu.matmul %366, %367, %cst_294 {dimension_numbers = #tpu.dot_dimension_numbers<[1], [0], [0], [1], [0, 0, 1, 1], [], []>} : vector<32x32xf32>, vector<32x108xf32>, vector<32x108xf32> -> vector<32x108xf32>
    %369 = arith.addf %364, %368 : vector<32x108xf32>
    %c0_295 = arith.constant 0 : index
    %c0_296 = arith.constant 0 : index
    %c0_297 = arith.constant 0 : index
    %370 = vector.load %arg7[%c0_295, %c0_296, %c0_297] : memref<2x32x1xf32, #tpu.memory_space<vmem>>, vector<1x32x1xf32>
    %371 = vector.shape_cast %370 : vector<1x32x1xf32> to vector<32x1xf32>
    %372 = vector.broadcast %371 : vector<32x1xf32> to vector<32x108xf32>
    %373 = arith.addf %369, %372 : vector<32x108xf32>
    %cst_298 = arith.constant 0.000000e+00 : f32
    %374 = vector.broadcast %cst_298 : f32 to vector<32x108xf32>
    %375 = arith.maximumf %373, %374 : vector<32x108xf32>
    %cst_299 = arith.constant 0.000000e+00 : f32
    %376 = vector.shape_cast %11 : vector<1x108xi1> to vector<1x108xi1>
    %377 = vector.broadcast %376 : vector<1x108xi1> to vector<32x108xi1>
    %378 = vector.broadcast %cst_299 : f32 to vector<32x108xf32>
    %379 = arith.select %377, %375, %378 : vector<32x108xi1>, vector<32x108xf32>
    %c0_300 = arith.constant 0 : index
    %c0_301 = arith.constant 0 : index
    %380 = vector.load %arg14[%c0_300, %c0_301] : memref<32x108xf32, #tpu.memory_space<vmem>>, vector<32x108xf32>
    tpu.vector_store %arg14[%c0_300, %c0_301], %379 {strides = array<i32>} : memref<32x108xf32, #tpu.memory_space<vmem>>, vector<32x108xf32>,
    %cst_302 = arith.constant 0.000000e+00 : f32
    %381 = vector.shape_cast %11 : vector<1x108xi1> to vector<1x108xi1>
    %382 = vector.broadcast %381 : vector<1x108xi1> to vector<32x108xi1>
    %383 = vector.broadcast %cst_302 : f32 to vector<32x108xf32>
    %384 = arith.select %382, %375, %383 : vector<32x108xi1>, vector<32x108xf32>
    %c0_303 = arith.constant 0 : index
    %c0_304 = arith.constant 0 : index
    %385 = vector.load %arg15[%c0_303, %c0_304] : memref<32x108xf32, #tpu.memory_space<vmem>>, vector<32x108xf32>
    tpu.vector_store %arg15[%c0_303, %c0_304], %384 {strides = array<i32>} : memref<32x108xf32, #tpu.memory_space<vmem>>, vector<32x108xf32>,
    %c0_305 = arith.constant 0 : index
    %c0_306 = arith.constant 0 : index
    %386 = vector.load %arg14[%c0_305, %c0_306] : memref<32x108xf32, #tpu.memory_space<vmem>>, vector<32x108xf32>
    %c3_307 = arith.constant 3 : index
    %c0_308 = arith.constant 0 : index
    %c0_309 = arith.constant 0 : index
    %387 = vector.load %arg2[%c3_307, %c0_308, %c0_309] : memref<6x8x32xf32, #tpu.memory_space<vmem>>, vector<1x8x32xf32>
    %388 = vector.shape_cast %387 : vector<1x8x32xf32> to vector<8x32xf32>
    %cst_310 = arith.constant dense<0.000000e+00> : vector<8x108xf32>
    %389 = tpu.matmul %388, %386, %cst_310 {dimension_numbers = #tpu.dot_dimension_numbers<[1], [0], [0], [1], [0, 0, 1, 1], [], []>} : vector<8x32xf32>, vector<32x108xf32>, vector<8x108xf32> -> vector<8x108xf32>
    %390 = vector.extract_strided_slice %389 {offsets = [0, 0], sizes = [8, 89], strides = [1, 1]} : vector<8x108xf32> to vector<8x89xf32>
    %c0_311 = arith.constant 0 : index
    %c19_312 = arith.constant 19 : index
    %391 = vector.load %arg16[%c0_311, %c19_312] : memref<312x108xf32, #tpu.memory_space<vmem>>, vector<8x89xf32>
    tpu.vector_store %arg16[%c0_311, %c19_312], %390 {strides = array<i32>} : memref<312x108xf32, #tpu.memory_space<vmem>>, vector<8x89xf32>,
    %392 = vector.extract_strided_slice %389 {offsets = [0, 0], sizes = [8, 90], strides = [1, 1]} : vector<8x108xf32> to vector<8x90xf32>
    %c8_313 = arith.constant 8 : index
    %c18_314 = arith.constant 18 : index
    %393 = vector.load %arg16[%c8_313, %c18_314] : memref<312x108xf32, #tpu.memory_space<vmem>>, vector<8x90xf32>
    tpu.vector_store %arg16[%c8_313, %c18_314], %392 {strides = array<i32>} : memref<312x108xf32, #tpu.memory_space<vmem>>, vector<8x90xf32>,
    %394 = vector.extract_strided_slice %389 {offsets = [0, 0], sizes = [8, 91], strides = [1, 1]} : vector<8x108xf32> to vector<8x91xf32>
    %c16_315 = arith.constant 16 : index
    %c17_316 = arith.constant 17 : index
    %395 = vector.load %arg16[%c16_315, %c17_316] : memref<312x108xf32, #tpu.memory_space<vmem>>, vector<8x91xf32>
    tpu.vector_store %arg16[%c16_315, %c17_316], %394 {strides = array<i32>} : memref<312x108xf32, #tpu.memory_space<vmem>>, vector<8x91xf32>,
    %396 = vector.extract_strided_slice %389 {offsets = [0, 0], sizes = [8, 92], strides = [1, 1]} : vector<8x108xf32> to vector<8x92xf32>
    %c24_317 = arith.constant 24 : index
    %c16_318 = arith.constant 16 : index
    %397 = vector.load %arg16[%c24_317, %c16_318] : memref<312x108xf32, #tpu.memory_space<vmem>>, vector<8x92xf32>
    tpu.vector_store %arg16[%c24_317, %c16_318], %396 {strides = array<i32>} : memref<312x108xf32, #tpu.memory_space<vmem>>, vector<8x92xf32>,
    %398 = vector.extract_strided_slice %389 {offsets = [0, 0], sizes = [8, 93], strides = [1, 1]} : vector<8x108xf32> to vector<8x93xf32>
    %c32_319 = arith.constant 32 : index
    %c15_320 = arith.constant 15 : index
    %399 = vector.load %arg16[%c32_319, %c15_320] : memref<312x108xf32, #tpu.memory_space<vmem>>, vector<8x93xf32>
    tpu.vector_store %arg16[%c32_319, %c15_320], %398 {strides = array<i32>} : memref<312x108xf32, #tpu.memory_space<vmem>>, vector<8x93xf32>,
    %400 = vector.extract_strided_slice %389 {offsets = [0, 0], sizes = [8, 94], strides = [1, 1]} : vector<8x108xf32> to vector<8x94xf32>
    %c40_321 = arith.constant 40 : index
    %c14_322 = arith.constant 14 : index
    %401 = vector.load %arg16[%c40_321, %c14_322] : memref<312x108xf32, #tpu.memory_space<vmem>>, vector<8x94xf32>
    tpu.vector_store %arg16[%c40_321, %c14_322], %400 {strides = array<i32>} : memref<312x108xf32, #tpu.memory_space<vmem>>, vector<8x94xf32>,
    %402 = vector.extract_strided_slice %389 {offsets = [0, 0], sizes = [8, 95], strides = [1, 1]} : vector<8x108xf32> to vector<8x95xf32>
    %c48_323 = arith.constant 48 : index
    %c13_324 = arith.constant 13 : index
    %403 = vector.load %arg16[%c48_323, %c13_324] : memref<312x108xf32, #tpu.memory_space<vmem>>, vector<8x95xf32>
    tpu.vector_store %arg16[%c48_323, %c13_324], %402 {strides = array<i32>} : memref<312x108xf32, #tpu.memory_space<vmem>>, vector<8x95xf32>,
    %404 = vector.extract_strided_slice %389 {offsets = [0, 0], sizes = [8, 96], strides = [1, 1]} : vector<8x108xf32> to vector<8x96xf32>
    %c56_325 = arith.constant 56 : index
    %c12_326 = arith.constant 12 : index
    %405 = vector.load %arg16[%c56_325, %c12_326] : memref<312x108xf32, #tpu.memory_space<vmem>>, vector<8x96xf32>
    tpu.vector_store %arg16[%c56_325, %c12_326], %404 {strides = array<i32>} : memref<312x108xf32, #tpu.memory_space<vmem>>, vector<8x96xf32>,
    %406 = vector.extract_strided_slice %389 {offsets = [0, 0], sizes = [8, 97], strides = [1, 1]} : vector<8x108xf32> to vector<8x97xf32>
    %c64_327 = arith.constant 64 : index
    %c11_328 = arith.constant 11 : index
    %407 = vector.load %arg16[%c64_327, %c11_328] : memref<312x108xf32, #tpu.memory_space<vmem>>, vector<8x97xf32>
    tpu.vector_store %arg16[%c64_327, %c11_328], %406 {strides = array<i32>} : memref<312x108xf32, #tpu.memory_space<vmem>>, vector<8x97xf32>,
    %408 = vector.extract_strided_slice %389 {offsets = [0, 0], sizes = [8, 98], strides = [1, 1]} : vector<8x108xf32> to vector<8x98xf32>
    %c72_329 = arith.constant 72 : index
    %c10_330 = arith.constant 10 : index
    %409 = vector.load %arg16[%c72_329, %c10_330] : memref<312x108xf32, #tpu.memory_space<vmem>>, vector<8x98xf32>
    tpu.vector_store %arg16[%c72_329, %c10_330], %408 {strides = array<i32>} : memref<312x108xf32, #tpu.memory_space<vmem>>, vector<8x98xf32>,
    %410 = vector.extract_strided_slice %389 {offsets = [0, 0], sizes = [8, 99], strides = [1, 1]} : vector<8x108xf32> to vector<8x99xf32>
    %c80_331 = arith.constant 80 : index
    %c9_332 = arith.constant 9 : index
    %411 = vector.load %arg16[%c80_331, %c9_332] : memref<312x108xf32, #tpu.memory_space<vmem>>, vector<8x99xf32>
    tpu.vector_store %arg16[%c80_331, %c9_332], %410 {strides = array<i32>} : memref<312x108xf32, #tpu.memory_space<vmem>>, vector<8x99xf32>,
    %412 = vector.extract_strided_slice %389 {offsets = [0, 0], sizes = [8, 100], strides = [1, 1]} : vector<8x108xf32> to vector<8x100xf32>
    %c88_333 = arith.constant 88 : index
    %c8_334 = arith.constant 8 : index
    %413 = vector.load %arg16[%c88_333, %c8_334] : memref<312x108xf32, #tpu.memory_space<vmem>>, vector<8x100xf32>
    tpu.vector_store %arg16[%c88_333, %c8_334], %412 {strides = array<i32>} : memref<312x108xf32, #tpu.memory_space<vmem>>, vector<8x100xf32>,
    %414 = vector.extract_strided_slice %389 {offsets = [0, 0], sizes = [8, 101], strides = [1, 1]} : vector<8x108xf32> to vector<8x101xf32>
    %c96_335 = arith.constant 96 : index
    %c7_336 = arith.constant 7 : index
    %415 = vector.load %arg16[%c96_335, %c7_336] : memref<312x108xf32, #tpu.memory_space<vmem>>, vector<8x101xf32>
    tpu.vector_store %arg16[%c96_335, %c7_336], %414 {strides = array<i32>} : memref<312x108xf32, #tpu.memory_space<vmem>>, vector<8x101xf32>,
    %416 = vector.extract_strided_slice %389 {offsets = [0, 0], sizes = [8, 102], strides = [1, 1]} : vector<8x108xf32> to vector<8x102xf32>
    %c104_337 = arith.constant 104 : index
    %c6_338 = arith.constant 6 : index
    %417 = vector.load %arg16[%c104_337, %c6_338] : memref<312x108xf32, #tpu.memory_space<vmem>>, vector<8x102xf32>
    tpu.vector_store %arg16[%c104_337, %c6_338], %416 {strides = array<i32>} : memref<312x108xf32, #tpu.memory_space<vmem>>, vector<8x102xf32>,
    %418 = vector.extract_strided_slice %389 {offsets = [0, 0], sizes = [8, 103], strides = [1, 1]} : vector<8x108xf32> to vector<8x103xf32>
    %c112_339 = arith.constant 112 : index
    %c5_340 = arith.constant 5 : index
    %419 = vector.load %arg16[%c112_339, %c5_340] : memref<312x108xf32, #tpu.memory_space<vmem>>, vector<8x103xf32>
    tpu.vector_store %arg16[%c112_339, %c5_340], %418 {strides = array<i32>} : memref<312x108xf32, #tpu.memory_space<vmem>>, vector<8x103xf32>,
    %420 = vector.extract_strided_slice %389 {offsets = [0, 0], sizes = [8, 104], strides = [1, 1]} : vector<8x108xf32> to vector<8x104xf32>
    %c120_341 = arith.constant 120 : index
    %c4_342 = arith.constant 4 : index
    %421 = vector.load %arg16[%c120_341, %c4_342] : memref<312x108xf32, #tpu.memory_space<vmem>>, vector<8x104xf32>
    tpu.vector_store %arg16[%c120_341, %c4_342], %420 {strides = array<i32>} : memref<312x108xf32, #tpu.memory_space<vmem>>, vector<8x104xf32>,
    %422 = vector.extract_strided_slice %389 {offsets = [0, 0], sizes = [8, 105], strides = [1, 1]} : vector<8x108xf32> to vector<8x105xf32>
    %c128_343 = arith.constant 128 : index
    %c3_344 = arith.constant 3 : index
    %423 = vector.load %arg16[%c128_343, %c3_344] : memref<312x108xf32, #tpu.memory_space<vmem>>, vector<8x105xf32>
    tpu.vector_store %arg16[%c128_343, %c3_344], %422 {strides = array<i32>} : memref<312x108xf32, #tpu.memory_space<vmem>>, vector<8x105xf32>,
    %424 = vector.extract_strided_slice %389 {offsets = [0, 0], sizes = [8, 106], strides = [1, 1]} : vector<8x108xf32> to vector<8x106xf32>
    %c136_345 = arith.constant 136 : index
    %c2_346 = arith.constant 2 : index
    %425 = vector.load %arg16[%c136_345, %c2_346] : memref<312x108xf32, #tpu.memory_space<vmem>>, vector<8x106xf32>
    tpu.vector_store %arg16[%c136_345, %c2_346], %424 {strides = array<i32>} : memref<312x108xf32, #tpu.memory_space<vmem>>, vector<8x106xf32>,
    %426 = vector.extract_strided_slice %389 {offsets = [0, 0], sizes = [8, 107], strides = [1, 1]} : vector<8x108xf32> to vector<8x107xf32>
    %c144_347 = arith.constant 144 : index
    %c1_348 = arith.constant 1 : index
    %427 = vector.load %arg16[%c144_347, %c1_348] : memref<312x108xf32, #tpu.memory_space<vmem>>, vector<8x107xf32>
    tpu.vector_store %arg16[%c144_347, %c1_348], %426 {strides = array<i32>} : memref<312x108xf32, #tpu.memory_space<vmem>>, vector<8x107xf32>,
    %c152_349 = arith.constant 152 : index
    %c0_350 = arith.constant 0 : index
    %428 = vector.load %arg16[%c152_349, %c0_350] : memref<312x108xf32, #tpu.memory_space<vmem>>, vector<8x108xf32>
    tpu.vector_store %arg16[%c152_349, %c0_350], %389 {strides = array<i32>} : memref<312x108xf32, #tpu.memory_space<vmem>>, vector<8x108xf32>,
    %429 = vector.extract_strided_slice %389 {offsets = [0, 1], sizes = [8, 107], strides = [1, 1]} : vector<8x108xf32> to vector<8x107xf32>
    %c160_351 = arith.constant 160 : index
    %c0_352 = arith.constant 0 : index
    %430 = vector.load %arg16[%c160_351, %c0_352] : memref<312x108xf32, #tpu.memory_space<vmem>>, vector<8x107xf32>
    tpu.vector_store %arg16[%c160_351, %c0_352], %429 {strides = array<i32>} : memref<312x108xf32, #tpu.memory_space<vmem>>, vector<8x107xf32>,
    %431 = vector.extract_strided_slice %389 {offsets = [0, 2], sizes = [8, 106], strides = [1, 1]} : vector<8x108xf32> to vector<8x106xf32>
    %c168_353 = arith.constant 168 : index
    %c0_354 = arith.constant 0 : index
    %432 = vector.load %arg16[%c168_353, %c0_354] : memref<312x108xf32, #tpu.memory_space<vmem>>, vector<8x106xf32>
    tpu.vector_store %arg16[%c168_353, %c0_354], %431 {strides = array<i32>} : memref<312x108xf32, #tpu.memory_space<vmem>>, vector<8x106xf32>,
    %433 = vector.extract_strided_slice %389 {offsets = [0, 3], sizes = [8, 105], strides = [1, 1]} : vector<8x108xf32> to vector<8x105xf32>
    %c176_355 = arith.constant 176 : index
    %c0_356 = arith.constant 0 : index
    %434 = vector.load %arg16[%c176_355, %c0_356] : memref<312x108xf32, #tpu.memory_space<vmem>>, vector<8x105xf32>
    tpu.vector_store %arg16[%c176_355, %c0_356], %433 {strides = array<i32>} : memref<312x108xf32, #tpu.memory_space<vmem>>, vector<8x105xf32>,
    %435 = vector.extract_strided_slice %389 {offsets = [0, 4], sizes = [8, 104], strides = [1, 1]} : vector<8x108xf32> to vector<8x104xf32>
    %c184_357 = arith.constant 184 : index
    %c0_358 = arith.constant 0 : index
    %436 = vector.load %arg16[%c184_357, %c0_358] : memref<312x108xf32, #tpu.memory_space<vmem>>, vector<8x104xf32>
    tpu.vector_store %arg16[%c184_357, %c0_358], %435 {strides = array<i32>} : memref<312x108xf32, #tpu.memory_space<vmem>>, vector<8x104xf32>,
    %437 = vector.extract_strided_slice %389 {offsets = [0, 5], sizes = [8, 103], strides = [1, 1]} : vector<8x108xf32> to vector<8x103xf32>
    %c192_359 = arith.constant 192 : index
    %c0_360 = arith.constant 0 : index
    %438 = vector.load %arg16[%c192_359, %c0_360] : memref<312x108xf32, #tpu.memory_space<vmem>>, vector<8x103xf32>
    tpu.vector_store %arg16[%c192_359, %c0_360], %437 {strides = array<i32>} : memref<312x108xf32, #tpu.memory_space<vmem>>, vector<8x103xf32>,
    %439 = vector.extract_strided_slice %389 {offsets = [0, 6], sizes = [8, 102], strides = [1, 1]} : vector<8x108xf32> to vector<8x102xf32>
    %c200_361 = arith.constant 200 : index
    %c0_362 = arith.constant 0 : index
    %440 = vector.load %arg16[%c200_361, %c0_362] : memref<312x108xf32, #tpu.memory_space<vmem>>, vector<8x102xf32>
    tpu.vector_store %arg16[%c200_361, %c0_362], %439 {strides = array<i32>} : memref<312x108xf32, #tpu.memory_space<vmem>>, vector<8x102xf32>,
    %441 = vector.extract_strided_slice %389 {offsets = [0, 7], sizes = [8, 101], strides = [1, 1]} : vector<8x108xf32> to vector<8x101xf32>
    %c208_363 = arith.constant 208 : index
    %c0_364 = arith.constant 0 : index
    %442 = vector.load %arg16[%c208_363, %c0_364] : memref<312x108xf32, #tpu.memory_space<vmem>>, vector<8x101xf32>
    tpu.vector_store %arg16[%c208_363, %c0_364], %441 {strides = array<i32>} : memref<312x108xf32, #tpu.memory_space<vmem>>, vector<8x101xf32>,
    %443 = vector.extract_strided_slice %389 {offsets = [0, 8], sizes = [8, 100], strides = [1, 1]} : vector<8x108xf32> to vector<8x100xf32>
    %c216_365 = arith.constant 216 : index
    %c0_366 = arith.constant 0 : index
    %444 = vector.load %arg16[%c216_365, %c0_366] : memref<312x108xf32, #tpu.memory_space<vmem>>, vector<8x100xf32>
    tpu.vector_store %arg16[%c216_365, %c0_366], %443 {strides = array<i32>} : memref<312x108xf32, #tpu.memory_space<vmem>>, vector<8x100xf32>,
    %445 = vector.extract_strided_slice %389 {offsets = [0, 9], sizes = [8, 99], strides = [1, 1]} : vector<8x108xf32> to vector<8x99xf32>
    %c224_367 = arith.constant 224 : index
    %c0_368 = arith.constant 0 : index
    %446 = vector.load %arg16[%c224_367, %c0_368] : memref<312x108xf32, #tpu.memory_space<vmem>>, vector<8x99xf32>
    tpu.vector_store %arg16[%c224_367, %c0_368], %445 {strides = array<i32>} : memref<312x108xf32, #tpu.memory_space<vmem>>, vector<8x99xf32>,
    %447 = vector.extract_strided_slice %389 {offsets = [0, 10], sizes = [8, 98], strides = [1, 1]} : vector<8x108xf32> to vector<8x98xf32>
    %c232_369 = arith.constant 232 : index
    %c0_370 = arith.constant 0 : index
    %448 = vector.load %arg16[%c232_369, %c0_370] : memref<312x108xf32, #tpu.memory_space<vmem>>, vector<8x98xf32>
    tpu.vector_store %arg16[%c232_369, %c0_370], %447 {strides = array<i32>} : memref<312x108xf32, #tpu.memory_space<vmem>>, vector<8x98xf32>,
    %449 = vector.extract_strided_slice %389 {offsets = [0, 11], sizes = [8, 97], strides = [1, 1]} : vector<8x108xf32> to vector<8x97xf32>
    %c240_371 = arith.constant 240 : index
    %c0_372 = arith.constant 0 : index
    %450 = vector.load %arg16[%c240_371, %c0_372] : memref<312x108xf32, #tpu.memory_space<vmem>>, vector<8x97xf32>
    tpu.vector_store %arg16[%c240_371, %c0_372], %449 {strides = array<i32>} : memref<312x108xf32, #tpu.memory_space<vmem>>, vector<8x97xf32>,
    %451 = vector.extract_strided_slice %389 {offsets = [0, 12], sizes = [8, 96], strides = [1, 1]} : vector<8x108xf32> to vector<8x96xf32>
    %c248_373 = arith.constant 248 : index
    %c0_374 = arith.constant 0 : index
    %452 = vector.load %arg16[%c248_373, %c0_374] : memref<312x108xf32, #tpu.memory_space<vmem>>, vector<8x96xf32>
    tpu.vector_store %arg16[%c248_373, %c0_374], %451 {strides = array<i32>} : memref<312x108xf32, #tpu.memory_space<vmem>>, vector<8x96xf32>,
    %453 = vector.extract_strided_slice %389 {offsets = [0, 13], sizes = [8, 95], strides = [1, 1]} : vector<8x108xf32> to vector<8x95xf32>
    %c256_375 = arith.constant 256 : index
    %c0_376 = arith.constant 0 : index
    %454 = vector.load %arg16[%c256_375, %c0_376] : memref<312x108xf32, #tpu.memory_space<vmem>>, vector<8x95xf32>
    tpu.vector_store %arg16[%c256_375, %c0_376], %453 {strides = array<i32>} : memref<312x108xf32, #tpu.memory_space<vmem>>, vector<8x95xf32>,
    %455 = vector.extract_strided_slice %389 {offsets = [0, 14], sizes = [8, 94], strides = [1, 1]} : vector<8x108xf32> to vector<8x94xf32>
    %c264_377 = arith.constant 264 : index
    %c0_378 = arith.constant 0 : index
    %456 = vector.load %arg16[%c264_377, %c0_378] : memref<312x108xf32, #tpu.memory_space<vmem>>, vector<8x94xf32>
    tpu.vector_store %arg16[%c264_377, %c0_378], %455 {strides = array<i32>} : memref<312x108xf32, #tpu.memory_space<vmem>>, vector<8x94xf32>,
    %457 = vector.extract_strided_slice %389 {offsets = [0, 15], sizes = [8, 93], strides = [1, 1]} : vector<8x108xf32> to vector<8x93xf32>
    %c272_379 = arith.constant 272 : index
    %c0_380 = arith.constant 0 : index
    %458 = vector.load %arg16[%c272_379, %c0_380] : memref<312x108xf32, #tpu.memory_space<vmem>>, vector<8x93xf32>
    tpu.vector_store %arg16[%c272_379, %c0_380], %457 {strides = array<i32>} : memref<312x108xf32, #tpu.memory_space<vmem>>, vector<8x93xf32>,
    %459 = vector.extract_strided_slice %389 {offsets = [0, 16], sizes = [8, 92], strides = [1, 1]} : vector<8x108xf32> to vector<8x92xf32>
    %c280_381 = arith.constant 280 : index
    %c0_382 = arith.constant 0 : index
    %460 = vector.load %arg16[%c280_381, %c0_382] : memref<312x108xf32, #tpu.memory_space<vmem>>, vector<8x92xf32>
    tpu.vector_store %arg16[%c280_381, %c0_382], %459 {strides = array<i32>} : memref<312x108xf32, #tpu.memory_space<vmem>>, vector<8x92xf32>,
    %461 = vector.extract_strided_slice %389 {offsets = [0, 17], sizes = [8, 91], strides = [1, 1]} : vector<8x108xf32> to vector<8x91xf32>
    %c288_383 = arith.constant 288 : index
    %c0_384 = arith.constant 0 : index
    %462 = vector.load %arg16[%c288_383, %c0_384] : memref<312x108xf32, #tpu.memory_space<vmem>>, vector<8x91xf32>
    tpu.vector_store %arg16[%c288_383, %c0_384], %461 {strides = array<i32>} : memref<312x108xf32, #tpu.memory_space<vmem>>, vector<8x91xf32>,
    %463 = vector.extract_strided_slice %389 {offsets = [0, 18], sizes = [8, 90], strides = [1, 1]} : vector<8x108xf32> to vector<8x90xf32>
    %c296_385 = arith.constant 296 : index
    %c0_386 = arith.constant 0 : index
    %464 = vector.load %arg16[%c296_385, %c0_386] : memref<312x108xf32, #tpu.memory_space<vmem>>, vector<8x90xf32>
    tpu.vector_store %arg16[%c296_385, %c0_386], %463 {strides = array<i32>} : memref<312x108xf32, #tpu.memory_space<vmem>>, vector<8x90xf32>,
    %465 = vector.extract_strided_slice %389 {offsets = [0, 19], sizes = [8, 89], strides = [1, 1]} : vector<8x108xf32> to vector<8x89xf32>
    %c304_387 = arith.constant 304 : index
    %c0_388 = arith.constant 0 : index
    %466 = vector.load %arg16[%c304_387, %c0_388] : memref<312x108xf32, #tpu.memory_space<vmem>>, vector<8x89xf32>
    tpu.vector_store %arg16[%c304_387, %c0_388], %465 {strides = array<i32>} : memref<312x108xf32, #tpu.memory_space<vmem>>, vector<8x89xf32>,
    %c3_389 = arith.constant 3 : index
    %c0_390 = arith.constant 0 : index
    %c0_391 = arith.constant 0 : index
    %467 = vector.load %arg3[%c3_389, %c0_390, %c0_391] : memref<6x24x312xf32, #tpu.memory_space<vmem>>, vector<1x24x312xf32>
    %468 = vector.shape_cast %467 : vector<1x24x312xf32> to vector<24x312xf32>
    %c0_392 = arith.constant 0 : index
    %c0_393 = arith.constant 0 : index
    %469 = vector.load %arg16[%c0_392, %c0_393] : memref<312x108xf32, #tpu.memory_space<vmem>>, vector<312x108xf32>
    %cst_394 = arith.constant dense<0.000000e+00> : vector<24x108xf32>
    %470 = tpu.matmul %468, %469, %cst_394 {dimension_numbers = #tpu.dot_dimension_numbers<[1], [0], [0], [1], [0, 0, 1, 1], [], []>} : vector<24x312xf32>, vector<312x108xf32>, vector<24x108xf32> -> vector<24x108xf32>
    %cst_395 = arith.constant -1.000000e+30 : f32
    %471 = vector.shape_cast %11 : vector<1x108xi1> to vector<1x108xi1>
    %472 = vector.broadcast %471 : vector<1x108xi1> to vector<32x108xi1>
    %473 = vector.broadcast %cst_395 : f32 to vector<32x108xf32>
    %474 = arith.select %472, %386, %473 : vector<32x108xi1>, vector<32x108xf32>
    %475 = vector.extract_strided_slice %474 {offsets = [0, 0], sizes = [32, 107], strides = [1, 1]} : vector<32x108xf32> to vector<32x107xf32>
    %c0_396 = arith.constant 0 : index
    %c1_397 = arith.constant 1 : index
    %476 = vector.load %arg16[%c0_396, %c1_397] : memref<312x108xf32, #tpu.memory_space<vmem>>, vector<32x107xf32>
    tpu.vector_store %arg16[%c0_396, %c1_397], %475 {strides = array<i32>} : memref<312x108xf32, #tpu.memory_space<vmem>>, vector<32x107xf32>,
    %477 = vector.extract_strided_slice %474 {offsets = [0, 1], sizes = [32, 107], strides = [1, 1]} : vector<32x108xf32> to vector<32x107xf32>
    %c32_398 = arith.constant 32 : index
    %c0_399 = arith.constant 0 : index
    %478 = vector.load %arg16[%c32_398, %c0_399] : memref<312x108xf32, #tpu.memory_space<vmem>>, vector<32x107xf32>
    tpu.vector_store %arg16[%c32_398, %c0_399], %477 {strides = array<i32>} : memref<312x108xf32, #tpu.memory_space<vmem>>, vector<32x107xf32>,
    %c0_400 = arith.constant 0 : index
    %c0_401 = arith.constant 0 : index
    %479 = vector.load %arg16[%c0_400, %c0_401] : memref<312x108xf32, #tpu.memory_space<vmem>>, vector<32x108xf32>
    %480 = arith.maximumf %474, %479 : vector<32x108xf32>
    %c32_402 = arith.constant 32 : index
    %c0_403 = arith.constant 0 : index
    %481 = vector.load %arg16[%c32_402, %c0_403] : memref<312x108xf32, #tpu.memory_space<vmem>>, vector<32x108xf32>
    %482 = arith.maximumf %480, %481 : vector<32x108xf32>
    %cst_404 = arith.constant 0.000000e+00 : f32
    %483 = vector.shape_cast %11 : vector<1x108xi1> to vector<1x108xi1>
    %484 = vector.broadcast %483 : vector<1x108xi1> to vector<32x108xi1>
    %485 = vector.broadcast %cst_404 : f32 to vector<32x108xf32>
    %486 = arith.select %484, %482, %485 : vector<32x108xi1>, vector<32x108xf32>
    %c3_405 = arith.constant 3 : index
    %c0_406 = arith.constant 0 : index
    %c0_407 = arith.constant 0 : index
    %487 = vector.load %arg4[%c3_405, %c0_406, %c0_407] : memref<6x8x32xf32, #tpu.memory_space<vmem>>, vector<1x8x32xf32>
    %488 = vector.shape_cast %487 : vector<1x8x32xf32> to vector<8x32xf32>
    %cst_408 = arith.constant dense<0.000000e+00> : vector<8x108xf32>
    %489 = tpu.matmul %488, %486, %cst_408 {dimension_numbers = #tpu.dot_dimension_numbers<[1], [0], [0], [1], [0, 0, 1, 1], [], []>} : vector<8x32xf32>, vector<32x108xf32>, vector<8x108xf32> -> vector<8x108xf32>
    %490 = tpu.concatenate %470, %489 in 0 : vector<24x108xf32>, vector<8x108xf32> -> vector<32x108xf32>
    %c3_409 = arith.constant 3 : index
    %c0_410 = arith.constant 0 : index
    %c0_411 = arith.constant 0 : index
    %491 = vector.load %arg5[%c3_409, %c0_410, %c0_411] : memref<6x32x1xf32, #tpu.memory_space<vmem>>, vector<1x32x1xf32>
    %492 = vector.shape_cast %491 : vector<1x32x1xf32> to vector<32x1xf32>
    %493 = vector.broadcast %492 : vector<32x1xf32> to vector<32x108xf32>
    %494 = arith.addf %490, %493 : vector<32x108xf32>
    %cst_412 = arith.constant 0.000000e+00 : f32
    %495 = vector.broadcast %cst_412 : f32 to vector<32x108xf32>
    %496 = arith.maximumf %494, %495 : vector<32x108xf32>
    %cst_413 = arith.constant 0.000000e+00 : f32
    %497 = vector.shape_cast %11 : vector<1x108xi1> to vector<1x108xi1>
    %498 = vector.broadcast %497 : vector<1x108xi1> to vector<32x108xi1>
    %499 = vector.broadcast %cst_413 : f32 to vector<32x108xf32>
    %500 = arith.select %498, %496, %499 : vector<32x108xi1>, vector<32x108xf32>
    %c0_414 = arith.constant 0 : index
    %c0_415 = arith.constant 0 : index
    %501 = vector.load %arg14[%c0_414, %c0_415] : memref<32x108xf32, #tpu.memory_space<vmem>>, vector<32x108xf32>
    tpu.vector_store %arg14[%c0_414, %c0_415], %500 {strides = array<i32>} : memref<32x108xf32, #tpu.memory_space<vmem>>, vector<32x108xf32>,
    %c0_416 = arith.constant 0 : index
    %c0_417 = arith.constant 0 : index
    %502 = vector.load %arg14[%c0_416, %c0_417] : memref<32x108xf32, #tpu.memory_space<vmem>>, vector<32x108xf32>
    %c4_418 = arith.constant 4 : index
    %c0_419 = arith.constant 0 : index
    %c0_420 = arith.constant 0 : index
    %503 = vector.load %arg2[%c4_418, %c0_419, %c0_420] : memref<6x8x32xf32, #tpu.memory_space<vmem>>, vector<1x8x32xf32>
    %504 = vector.shape_cast %503 : vector<1x8x32xf32> to vector<8x32xf32>
    %cst_421 = arith.constant dense<0.000000e+00> : vector<8x108xf32>
    %505 = tpu.matmul %504, %502, %cst_421 {dimension_numbers = #tpu.dot_dimension_numbers<[1], [0], [0], [1], [0, 0, 1, 1], [], []>} : vector<8x32xf32>, vector<32x108xf32>, vector<8x108xf32> -> vector<8x108xf32>
    %506 = vector.extract_strided_slice %505 {offsets = [0, 0], sizes = [8, 89], strides = [1, 1]} : vector<8x108xf32> to vector<8x89xf32>
    %c0_422 = arith.constant 0 : index
    %c19_423 = arith.constant 19 : index
    %507 = vector.load %arg16[%c0_422, %c19_423] : memref<312x108xf32, #tpu.memory_space<vmem>>, vector<8x89xf32>
    tpu.vector_store %arg16[%c0_422, %c19_423], %506 {strides = array<i32>} : memref<312x108xf32, #tpu.memory_space<vmem>>, vector<8x89xf32>,
    %508 = vector.extract_strided_slice %505 {offsets = [0, 0], sizes = [8, 90], strides = [1, 1]} : vector<8x108xf32> to vector<8x90xf32>
    %c8_424 = arith.constant 8 : index
    %c18_425 = arith.constant 18 : index
    %509 = vector.load %arg16[%c8_424, %c18_425] : memref<312x108xf32, #tpu.memory_space<vmem>>, vector<8x90xf32>
    tpu.vector_store %arg16[%c8_424, %c18_425], %508 {strides = array<i32>} : memref<312x108xf32, #tpu.memory_space<vmem>>, vector<8x90xf32>,
    %510 = vector.extract_strided_slice %505 {offsets = [0, 0], sizes = [8, 91], strides = [1, 1]} : vector<8x108xf32> to vector<8x91xf32>
    %c16_426 = arith.constant 16 : index
    %c17_427 = arith.constant 17 : index
    %511 = vector.load %arg16[%c16_426, %c17_427] : memref<312x108xf32, #tpu.memory_space<vmem>>, vector<8x91xf32>
    tpu.vector_store %arg16[%c16_426, %c17_427], %510 {strides = array<i32>} : memref<312x108xf32, #tpu.memory_space<vmem>>, vector<8x91xf32>,
    %512 = vector.extract_strided_slice %505 {offsets = [0, 0], sizes = [8, 92], strides = [1, 1]} : vector<8x108xf32> to vector<8x92xf32>
    %c24_428 = arith.constant 24 : index
    %c16_429 = arith.constant 16 : index
    %513 = vector.load %arg16[%c24_428, %c16_429] : memref<312x108xf32, #tpu.memory_space<vmem>>, vector<8x92xf32>
    tpu.vector_store %arg16[%c24_428, %c16_429], %512 {strides = array<i32>} : memref<312x108xf32, #tpu.memory_space<vmem>>, vector<8x92xf32>,
    %514 = vector.extract_strided_slice %505 {offsets = [0, 0], sizes = [8, 93], strides = [1, 1]} : vector<8x108xf32> to vector<8x93xf32>
    %c32_430 = arith.constant 32 : index
    %c15_431 = arith.constant 15 : index
    %515 = vector.load %arg16[%c32_430, %c15_431] : memref<312x108xf32, #tpu.memory_space<vmem>>, vector<8x93xf32>
    tpu.vector_store %arg16[%c32_430, %c15_431], %514 {strides = array<i32>} : memref<312x108xf32, #tpu.memory_space<vmem>>, vector<8x93xf32>,
    %516 = vector.extract_strided_slice %505 {offsets = [0, 0], sizes = [8, 94], strides = [1, 1]} : vector<8x108xf32> to vector<8x94xf32>
    %c40_432 = arith.constant 40 : index
    %c14_433 = arith.constant 14 : index
    %517 = vector.load %arg16[%c40_432, %c14_433] : memref<312x108xf32, #tpu.memory_space<vmem>>, vector<8x94xf32>
    tpu.vector_store %arg16[%c40_432, %c14_433], %516 {strides = array<i32>} : memref<312x108xf32, #tpu.memory_space<vmem>>, vector<8x94xf32>,
    %518 = vector.extract_strided_slice %505 {offsets = [0, 0], sizes = [8, 95], strides = [1, 1]} : vector<8x108xf32> to vector<8x95xf32>
    %c48_434 = arith.constant 48 : index
    %c13_435 = arith.constant 13 : index
    %519 = vector.load %arg16[%c48_434, %c13_435] : memref<312x108xf32, #tpu.memory_space<vmem>>, vector<8x95xf32>
    tpu.vector_store %arg16[%c48_434, %c13_435], %518 {strides = array<i32>} : memref<312x108xf32, #tpu.memory_space<vmem>>, vector<8x95xf32>,
    %520 = vector.extract_strided_slice %505 {offsets = [0, 0], sizes = [8, 96], strides = [1, 1]} : vector<8x108xf32> to vector<8x96xf32>
    %c56_436 = arith.constant 56 : index
    %c12_437 = arith.constant 12 : index
    %521 = vector.load %arg16[%c56_436, %c12_437] : memref<312x108xf32, #tpu.memory_space<vmem>>, vector<8x96xf32>
    tpu.vector_store %arg16[%c56_436, %c12_437], %520 {strides = array<i32>} : memref<312x108xf32, #tpu.memory_space<vmem>>, vector<8x96xf32>,
    %522 = vector.extract_strided_slice %505 {offsets = [0, 0], sizes = [8, 97], strides = [1, 1]} : vector<8x108xf32> to vector<8x97xf32>
    %c64_438 = arith.constant 64 : index
    %c11_439 = arith.constant 11 : index
    %523 = vector.load %arg16[%c64_438, %c11_439] : memref<312x108xf32, #tpu.memory_space<vmem>>, vector<8x97xf32>
    tpu.vector_store %arg16[%c64_438, %c11_439], %522 {strides = array<i32>} : memref<312x108xf32, #tpu.memory_space<vmem>>, vector<8x97xf32>,
    %524 = vector.extract_strided_slice %505 {offsets = [0, 0], sizes = [8, 98], strides = [1, 1]} : vector<8x108xf32> to vector<8x98xf32>
    %c72_440 = arith.constant 72 : index
    %c10_441 = arith.constant 10 : index
    %525 = vector.load %arg16[%c72_440, %c10_441] : memref<312x108xf32, #tpu.memory_space<vmem>>, vector<8x98xf32>
    tpu.vector_store %arg16[%c72_440, %c10_441], %524 {strides = array<i32>} : memref<312x108xf32, #tpu.memory_space<vmem>>, vector<8x98xf32>,
    %526 = vector.extract_strided_slice %505 {offsets = [0, 0], sizes = [8, 99], strides = [1, 1]} : vector<8x108xf32> to vector<8x99xf32>
    %c80_442 = arith.constant 80 : index
    %c9_443 = arith.constant 9 : index
    %527 = vector.load %arg16[%c80_442, %c9_443] : memref<312x108xf32, #tpu.memory_space<vmem>>, vector<8x99xf32>
    tpu.vector_store %arg16[%c80_442, %c9_443], %526 {strides = array<i32>} : memref<312x108xf32, #tpu.memory_space<vmem>>, vector<8x99xf32>,
    %528 = vector.extract_strided_slice %505 {offsets = [0, 0], sizes = [8, 100], strides = [1, 1]} : vector<8x108xf32> to vector<8x100xf32>
    %c88_444 = arith.constant 88 : index
    %c8_445 = arith.constant 8 : index
    %529 = vector.load %arg16[%c88_444, %c8_445] : memref<312x108xf32, #tpu.memory_space<vmem>>, vector<8x100xf32>
    tpu.vector_store %arg16[%c88_444, %c8_445], %528 {strides = array<i32>} : memref<312x108xf32, #tpu.memory_space<vmem>>, vector<8x100xf32>,
    %530 = vector.extract_strided_slice %505 {offsets = [0, 0], sizes = [8, 101], strides = [1, 1]} : vector<8x108xf32> to vector<8x101xf32>
    %c96_446 = arith.constant 96 : index
    %c7_447 = arith.constant 7 : index
    %531 = vector.load %arg16[%c96_446, %c7_447] : memref<312x108xf32, #tpu.memory_space<vmem>>, vector<8x101xf32>
    tpu.vector_store %arg16[%c96_446, %c7_447], %530 {strides = array<i32>} : memref<312x108xf32, #tpu.memory_space<vmem>>, vector<8x101xf32>,
    %532 = vector.extract_strided_slice %505 {offsets = [0, 0], sizes = [8, 102], strides = [1, 1]} : vector<8x108xf32> to vector<8x102xf32>
    %c104_448 = arith.constant 104 : index
    %c6_449 = arith.constant 6 : index
    %533 = vector.load %arg16[%c104_448, %c6_449] : memref<312x108xf32, #tpu.memory_space<vmem>>, vector<8x102xf32>
    tpu.vector_store %arg16[%c104_448, %c6_449], %532 {strides = array<i32>} : memref<312x108xf32, #tpu.memory_space<vmem>>, vector<8x102xf32>,
    %534 = vector.extract_strided_slice %505 {offsets = [0, 0], sizes = [8, 103], strides = [1, 1]} : vector<8x108xf32> to vector<8x103xf32>
    %c112_450 = arith.constant 112 : index
    %c5_451 = arith.constant 5 : index
    %535 = vector.load %arg16[%c112_450, %c5_451] : memref<312x108xf32, #tpu.memory_space<vmem>>, vector<8x103xf32>
    tpu.vector_store %arg16[%c112_450, %c5_451], %534 {strides = array<i32>} : memref<312x108xf32, #tpu.memory_space<vmem>>, vector<8x103xf32>,
    %536 = vector.extract_strided_slice %505 {offsets = [0, 0], sizes = [8, 104], strides = [1, 1]} : vector<8x108xf32> to vector<8x104xf32>
    %c120_452 = arith.constant 120 : index
    %c4_453 = arith.constant 4 : index
    %537 = vector.load %arg16[%c120_452, %c4_453] : memref<312x108xf32, #tpu.memory_space<vmem>>, vector<8x104xf32>
    tpu.vector_store %arg16[%c120_452, %c4_453], %536 {strides = array<i32>} : memref<312x108xf32, #tpu.memory_space<vmem>>, vector<8x104xf32>,
    %538 = vector.extract_strided_slice %505 {offsets = [0, 0], sizes = [8, 105], strides = [1, 1]} : vector<8x108xf32> to vector<8x105xf32>
    %c128_454 = arith.constant 128 : index
    %c3_455 = arith.constant 3 : index
    %539 = vector.load %arg16[%c128_454, %c3_455] : memref<312x108xf32, #tpu.memory_space<vmem>>, vector<8x105xf32>
    tpu.vector_store %arg16[%c128_454, %c3_455], %538 {strides = array<i32>} : memref<312x108xf32, #tpu.memory_space<vmem>>, vector<8x105xf32>,
    %540 = vector.extract_strided_slice %505 {offsets = [0, 0], sizes = [8, 106], strides = [1, 1]} : vector<8x108xf32> to vector<8x106xf32>
    %c136_456 = arith.constant 136 : index
    %c2_457 = arith.constant 2 : index
    %541 = vector.load %arg16[%c136_456, %c2_457] : memref<312x108xf32, #tpu.memory_space<vmem>>, vector<8x106xf32>
    tpu.vector_store %arg16[%c136_456, %c2_457], %540 {strides = array<i32>} : memref<312x108xf32, #tpu.memory_space<vmem>>, vector<8x106xf32>,
    %542 = vector.extract_strided_slice %505 {offsets = [0, 0], sizes = [8, 107], strides = [1, 1]} : vector<8x108xf32> to vector<8x107xf32>
    %c144_458 = arith.constant 144 : index
    %c1_459 = arith.constant 1 : index
    %543 = vector.load %arg16[%c144_458, %c1_459] : memref<312x108xf32, #tpu.memory_space<vmem>>, vector<8x107xf32>
    tpu.vector_store %arg16[%c144_458, %c1_459], %542 {strides = array<i32>} : memref<312x108xf32, #tpu.memory_space<vmem>>, vector<8x107xf32>,
    %c152_460 = arith.constant 152 : index
    %c0_461 = arith.constant 0 : index
    %544 = vector.load %arg16[%c152_460, %c0_461] : memref<312x108xf32, #tpu.memory_space<vmem>>, vector<8x108xf32>
    tpu.vector_store %arg16[%c152_460, %c0_461], %505 {strides = array<i32>} : memref<312x108xf32, #tpu.memory_space<vmem>>, vector<8x108xf32>,
    %545 = vector.extract_strided_slice %505 {offsets = [0, 1], sizes = [8, 107], strides = [1, 1]} : vector<8x108xf32> to vector<8x107xf32>
    %c160_462 = arith.constant 160 : index
    %c0_463 = arith.constant 0 : index
    %546 = vector.load %arg16[%c160_462, %c0_463] : memref<312x108xf32, #tpu.memory_space<vmem>>, vector<8x107xf32>
    tpu.vector_store %arg16[%c160_462, %c0_463], %545 {strides = array<i32>} : memref<312x108xf32, #tpu.memory_space<vmem>>, vector<8x107xf32>,
    %547 = vector.extract_strided_slice %505 {offsets = [0, 2], sizes = [8, 106], strides = [1, 1]} : vector<8x108xf32> to vector<8x106xf32>
    %c168_464 = arith.constant 168 : index
    %c0_465 = arith.constant 0 : index
    %548 = vector.load %arg16[%c168_464, %c0_465] : memref<312x108xf32, #tpu.memory_space<vmem>>, vector<8x106xf32>
    tpu.vector_store %arg16[%c168_464, %c0_465], %547 {strides = array<i32>} : memref<312x108xf32, #tpu.memory_space<vmem>>, vector<8x106xf32>,
    %549 = vector.extract_strided_slice %505 {offsets = [0, 3], sizes = [8, 105], strides = [1, 1]} : vector<8x108xf32> to vector<8x105xf32>
    %c176_466 = arith.constant 176 : index
    %c0_467 = arith.constant 0 : index
    %550 = vector.load %arg16[%c176_466, %c0_467] : memref<312x108xf32, #tpu.memory_space<vmem>>, vector<8x105xf32>
    tpu.vector_store %arg16[%c176_466, %c0_467], %549 {strides = array<i32>} : memref<312x108xf32, #tpu.memory_space<vmem>>, vector<8x105xf32>,
    %551 = vector.extract_strided_slice %505 {offsets = [0, 4], sizes = [8, 104], strides = [1, 1]} : vector<8x108xf32> to vector<8x104xf32>
    %c184_468 = arith.constant 184 : index
    %c0_469 = arith.constant 0 : index
    %552 = vector.load %arg16[%c184_468, %c0_469] : memref<312x108xf32, #tpu.memory_space<vmem>>, vector<8x104xf32>
    tpu.vector_store %arg16[%c184_468, %c0_469], %551 {strides = array<i32>} : memref<312x108xf32, #tpu.memory_space<vmem>>, vector<8x104xf32>,
    %553 = vector.extract_strided_slice %505 {offsets = [0, 5], sizes = [8, 103], strides = [1, 1]} : vector<8x108xf32> to vector<8x103xf32>
    %c192_470 = arith.constant 192 : index
    %c0_471 = arith.constant 0 : index
    %554 = vector.load %arg16[%c192_470, %c0_471] : memref<312x108xf32, #tpu.memory_space<vmem>>, vector<8x103xf32>
    tpu.vector_store %arg16[%c192_470, %c0_471], %553 {strides = array<i32>} : memref<312x108xf32, #tpu.memory_space<vmem>>, vector<8x103xf32>,
    %555 = vector.extract_strided_slice %505 {offsets = [0, 6], sizes = [8, 102], strides = [1, 1]} : vector<8x108xf32> to vector<8x102xf32>
    %c200_472 = arith.constant 200 : index
    %c0_473 = arith.constant 0 : index
    %556 = vector.load %arg16[%c200_472, %c0_473] : memref<312x108xf32, #tpu.memory_space<vmem>>, vector<8x102xf32>
    tpu.vector_store %arg16[%c200_472, %c0_473], %555 {strides = array<i32>} : memref<312x108xf32, #tpu.memory_space<vmem>>, vector<8x102xf32>,
    %557 = vector.extract_strided_slice %505 {offsets = [0, 7], sizes = [8, 101], strides = [1, 1]} : vector<8x108xf32> to vector<8x101xf32>
    %c208_474 = arith.constant 208 : index
    %c0_475 = arith.constant 0 : index
    %558 = vector.load %arg16[%c208_474, %c0_475] : memref<312x108xf32, #tpu.memory_space<vmem>>, vector<8x101xf32>
    tpu.vector_store %arg16[%c208_474, %c0_475], %557 {strides = array<i32>} : memref<312x108xf32, #tpu.memory_space<vmem>>, vector<8x101xf32>,
    %559 = vector.extract_strided_slice %505 {offsets = [0, 8], sizes = [8, 100], strides = [1, 1]} : vector<8x108xf32> to vector<8x100xf32>
    %c216_476 = arith.constant 216 : index
    %c0_477 = arith.constant 0 : index
    %560 = vector.load %arg16[%c216_476, %c0_477] : memref<312x108xf32, #tpu.memory_space<vmem>>, vector<8x100xf32>
    tpu.vector_store %arg16[%c216_476, %c0_477], %559 {strides = array<i32>} : memref<312x108xf32, #tpu.memory_space<vmem>>, vector<8x100xf32>,
    %561 = vector.extract_strided_slice %505 {offsets = [0, 9], sizes = [8, 99], strides = [1, 1]} : vector<8x108xf32> to vector<8x99xf32>
    %c224_478 = arith.constant 224 : index
    %c0_479 = arith.constant 0 : index
    %562 = vector.load %arg16[%c224_478, %c0_479] : memref<312x108xf32, #tpu.memory_space<vmem>>, vector<8x99xf32>
    tpu.vector_store %arg16[%c224_478, %c0_479], %561 {strides = array<i32>} : memref<312x108xf32, #tpu.memory_space<vmem>>, vector<8x99xf32>,
    %563 = vector.extract_strided_slice %505 {offsets = [0, 10], sizes = [8, 98], strides = [1, 1]} : vector<8x108xf32> to vector<8x98xf32>
    %c232_480 = arith.constant 232 : index
    %c0_481 = arith.constant 0 : index
    %564 = vector.load %arg16[%c232_480, %c0_481] : memref<312x108xf32, #tpu.memory_space<vmem>>, vector<8x98xf32>
    tpu.vector_store %arg16[%c232_480, %c0_481], %563 {strides = array<i32>} : memref<312x108xf32, #tpu.memory_space<vmem>>, vector<8x98xf32>,
    %565 = vector.extract_strided_slice %505 {offsets = [0, 11], sizes = [8, 97], strides = [1, 1]} : vector<8x108xf32> to vector<8x97xf32>
    %c240_482 = arith.constant 240 : index
    %c0_483 = arith.constant 0 : index
    %566 = vector.load %arg16[%c240_482, %c0_483] : memref<312x108xf32, #tpu.memory_space<vmem>>, vector<8x97xf32>
    tpu.vector_store %arg16[%c240_482, %c0_483], %565 {strides = array<i32>} : memref<312x108xf32, #tpu.memory_space<vmem>>, vector<8x97xf32>,
    %567 = vector.extract_strided_slice %505 {offsets = [0, 12], sizes = [8, 96], strides = [1, 1]} : vector<8x108xf32> to vector<8x96xf32>
    %c248_484 = arith.constant 248 : index
    %c0_485 = arith.constant 0 : index
    %568 = vector.load %arg16[%c248_484, %c0_485] : memref<312x108xf32, #tpu.memory_space<vmem>>, vector<8x96xf32>
    tpu.vector_store %arg16[%c248_484, %c0_485], %567 {strides = array<i32>} : memref<312x108xf32, #tpu.memory_space<vmem>>, vector<8x96xf32>,
    %569 = vector.extract_strided_slice %505 {offsets = [0, 13], sizes = [8, 95], strides = [1, 1]} : vector<8x108xf32> to vector<8x95xf32>
    %c256_486 = arith.constant 256 : index
    %c0_487 = arith.constant 0 : index
    %570 = vector.load %arg16[%c256_486, %c0_487] : memref<312x108xf32, #tpu.memory_space<vmem>>, vector<8x95xf32>
    tpu.vector_store %arg16[%c256_486, %c0_487], %569 {strides = array<i32>} : memref<312x108xf32, #tpu.memory_space<vmem>>, vector<8x95xf32>,
    %571 = vector.extract_strided_slice %505 {offsets = [0, 14], sizes = [8, 94], strides = [1, 1]} : vector<8x108xf32> to vector<8x94xf32>
    %c264_488 = arith.constant 264 : index
    %c0_489 = arith.constant 0 : index
    %572 = vector.load %arg16[%c264_488, %c0_489] : memref<312x108xf32, #tpu.memory_space<vmem>>, vector<8x94xf32>
    tpu.vector_store %arg16[%c264_488, %c0_489], %571 {strides = array<i32>} : memref<312x108xf32, #tpu.memory_space<vmem>>, vector<8x94xf32>,
    %573 = vector.extract_strided_slice %505 {offsets = [0, 15], sizes = [8, 93], strides = [1, 1]} : vector<8x108xf32> to vector<8x93xf32>
    %c272_490 = arith.constant 272 : index
    %c0_491 = arith.constant 0 : index
    %574 = vector.load %arg16[%c272_490, %c0_491] : memref<312x108xf32, #tpu.memory_space<vmem>>, vector<8x93xf32>
    tpu.vector_store %arg16[%c272_490, %c0_491], %573 {strides = array<i32>} : memref<312x108xf32, #tpu.memory_space<vmem>>, vector<8x93xf32>,
    %575 = vector.extract_strided_slice %505 {offsets = [0, 16], sizes = [8, 92], strides = [1, 1]} : vector<8x108xf32> to vector<8x92xf32>
    %c280_492 = arith.constant 280 : index
    %c0_493 = arith.constant 0 : index
    %576 = vector.load %arg16[%c280_492, %c0_493] : memref<312x108xf32, #tpu.memory_space<vmem>>, vector<8x92xf32>
    tpu.vector_store %arg16[%c280_492, %c0_493], %575 {strides = array<i32>} : memref<312x108xf32, #tpu.memory_space<vmem>>, vector<8x92xf32>,
    %577 = vector.extract_strided_slice %505 {offsets = [0, 17], sizes = [8, 91], strides = [1, 1]} : vector<8x108xf32> to vector<8x91xf32>
    %c288_494 = arith.constant 288 : index
    %c0_495 = arith.constant 0 : index
    %578 = vector.load %arg16[%c288_494, %c0_495] : memref<312x108xf32, #tpu.memory_space<vmem>>, vector<8x91xf32>
    tpu.vector_store %arg16[%c288_494, %c0_495], %577 {strides = array<i32>} : memref<312x108xf32, #tpu.memory_space<vmem>>, vector<8x91xf32>,
    %579 = vector.extract_strided_slice %505 {offsets = [0, 18], sizes = [8, 90], strides = [1, 1]} : vector<8x108xf32> to vector<8x90xf32>
    %c296_496 = arith.constant 296 : index
    %c0_497 = arith.constant 0 : index
    %580 = vector.load %arg16[%c296_496, %c0_497] : memref<312x108xf32, #tpu.memory_space<vmem>>, vector<8x90xf32>
    tpu.vector_store %arg16[%c296_496, %c0_497], %579 {strides = array<i32>} : memref<312x108xf32, #tpu.memory_space<vmem>>, vector<8x90xf32>,
    %581 = vector.extract_strided_slice %505 {offsets = [0, 19], sizes = [8, 89], strides = [1, 1]} : vector<8x108xf32> to vector<8x89xf32>
    %c304_498 = arith.constant 304 : index
    %c0_499 = arith.constant 0 : index
    %582 = vector.load %arg16[%c304_498, %c0_499] : memref<312x108xf32, #tpu.memory_space<vmem>>, vector<8x89xf32>
    tpu.vector_store %arg16[%c304_498, %c0_499], %581 {strides = array<i32>} : memref<312x108xf32, #tpu.memory_space<vmem>>, vector<8x89xf32>,
    %c4_500 = arith.constant 4 : index
    %c0_501 = arith.constant 0 : index
    %c0_502 = arith.constant 0 : index
    %583 = vector.load %arg3[%c4_500, %c0_501, %c0_502] : memref<6x24x312xf32, #tpu.memory_space<vmem>>, vector<1x24x312xf32>
    %584 = vector.shape_cast %583 : vector<1x24x312xf32> to vector<24x312xf32>
    %c0_503 = arith.constant 0 : index
    %c0_504 = arith.constant 0 : index
    %585 = vector.load %arg16[%c0_503, %c0_504] : memref<312x108xf32, #tpu.memory_space<vmem>>, vector<312x108xf32>
    %cst_505 = arith.constant dense<0.000000e+00> : vector<24x108xf32>
    %586 = tpu.matmul %584, %585, %cst_505 {dimension_numbers = #tpu.dot_dimension_numbers<[1], [0], [0], [1], [0, 0, 1, 1], [], []>} : vector<24x312xf32>, vector<312x108xf32>, vector<24x108xf32> -> vector<24x108xf32>
    %cst_506 = arith.constant -1.000000e+30 : f32
    %587 = vector.shape_cast %11 : vector<1x108xi1> to vector<1x108xi1>
    %588 = vector.broadcast %587 : vector<1x108xi1> to vector<32x108xi1>
    %589 = vector.broadcast %cst_506 : f32 to vector<32x108xf32>
    %590 = arith.select %588, %502, %589 : vector<32x108xi1>, vector<32x108xf32>
    %591 = vector.extract_strided_slice %590 {offsets = [0, 0], sizes = [32, 107], strides = [1, 1]} : vector<32x108xf32> to vector<32x107xf32>
    %c0_507 = arith.constant 0 : index
    %c1_508 = arith.constant 1 : index
    %592 = vector.load %arg16[%c0_507, %c1_508] : memref<312x108xf32, #tpu.memory_space<vmem>>, vector<32x107xf32>
    tpu.vector_store %arg16[%c0_507, %c1_508], %591 {strides = array<i32>} : memref<312x108xf32, #tpu.memory_space<vmem>>, vector<32x107xf32>,
    %593 = vector.extract_strided_slice %590 {offsets = [0, 1], sizes = [32, 107], strides = [1, 1]} : vector<32x108xf32> to vector<32x107xf32>
    %c32_509 = arith.constant 32 : index
    %c0_510 = arith.constant 0 : index
    %594 = vector.load %arg16[%c32_509, %c0_510] : memref<312x108xf32, #tpu.memory_space<vmem>>, vector<32x107xf32>
    tpu.vector_store %arg16[%c32_509, %c0_510], %593 {strides = array<i32>} : memref<312x108xf32, #tpu.memory_space<vmem>>, vector<32x107xf32>,
    %c0_511 = arith.constant 0 : index
    %c0_512 = arith.constant 0 : index
    %595 = vector.load %arg16[%c0_511, %c0_512] : memref<312x108xf32, #tpu.memory_space<vmem>>, vector<32x108xf32>
    %596 = arith.maximumf %590, %595 : vector<32x108xf32>
    %c32_513 = arith.constant 32 : index
    %c0_514 = arith.constant 0 : index
    %597 = vector.load %arg16[%c32_513, %c0_514] : memref<312x108xf32, #tpu.memory_space<vmem>>, vector<32x108xf32>
    %598 = arith.maximumf %596, %597 : vector<32x108xf32>
    %cst_515 = arith.constant 0.000000e+00 : f32
    %599 = vector.shape_cast %11 : vector<1x108xi1> to vector<1x108xi1>
    %600 = vector.broadcast %599 : vector<1x108xi1> to vector<32x108xi1>
    %601 = vector.broadcast %cst_515 : f32 to vector<32x108xf32>
    %602 = arith.select %600, %598, %601 : vector<32x108xi1>, vector<32x108xf32>
    %c4_516 = arith.constant 4 : index
    %c0_517 = arith.constant 0 : index
    %c0_518 = arith.constant 0 : index
    %603 = vector.load %arg4[%c4_516, %c0_517, %c0_518] : memref<6x8x32xf32, #tpu.memory_space<vmem>>, vector<1x8x32xf32>
    %604 = vector.shape_cast %603 : vector<1x8x32xf32> to vector<8x32xf32>
    %cst_519 = arith.constant dense<0.000000e+00> : vector<8x108xf32>
    %605 = tpu.matmul %604, %602, %cst_519 {dimension_numbers = #tpu.dot_dimension_numbers<[1], [0], [0], [1], [0, 0, 1, 1], [], []>} : vector<8x32xf32>, vector<32x108xf32>, vector<8x108xf32> -> vector<8x108xf32>
    %606 = tpu.concatenate %586, %605 in 0 : vector<24x108xf32>, vector<8x108xf32> -> vector<32x108xf32>
    %c4_520 = arith.constant 4 : index
    %c0_521 = arith.constant 0 : index
    %c0_522 = arith.constant 0 : index
    %607 = vector.load %arg5[%c4_520, %c0_521, %c0_522] : memref<6x32x1xf32, #tpu.memory_space<vmem>>, vector<1x32x1xf32>
    %608 = vector.shape_cast %607 : vector<1x32x1xf32> to vector<32x1xf32>
    %609 = vector.broadcast %608 : vector<32x1xf32> to vector<32x108xf32>
    %610 = arith.addf %606, %609 : vector<32x108xf32>
    %cst_523 = arith.constant 0.000000e+00 : f32
    %611 = vector.broadcast %cst_523 : f32 to vector<32x108xf32>
    %612 = arith.maximumf %610, %611 : vector<32x108xf32>
    %cst_524 = arith.constant 0.000000e+00 : f32
    %613 = vector.shape_cast %11 : vector<1x108xi1> to vector<1x108xi1>
    %614 = vector.broadcast %613 : vector<1x108xi1> to vector<32x108xi1>
    %615 = vector.broadcast %cst_524 : f32 to vector<32x108xf32>
    %616 = arith.select %614, %612, %615 : vector<32x108xi1>, vector<32x108xf32>
    %c0_525 = arith.constant 0 : index
    %c0_526 = arith.constant 0 : index
    %617 = vector.load %arg14[%c0_525, %c0_526] : memref<32x108xf32, #tpu.memory_space<vmem>>, vector<32x108xf32>
    tpu.vector_store %arg14[%c0_525, %c0_526], %616 {strides = array<i32>} : memref<32x108xf32, #tpu.memory_space<vmem>>, vector<32x108xf32>,
    %c0_527 = arith.constant 0 : index
    %c0_528 = arith.constant 0 : index
    %618 = vector.load %arg14[%c0_527, %c0_528] : memref<32x108xf32, #tpu.memory_space<vmem>>, vector<32x108xf32>
    %c5_529 = arith.constant 5 : index
    %c0_530 = arith.constant 0 : index
    %c0_531 = arith.constant 0 : index
    %619 = vector.load %arg2[%c5_529, %c0_530, %c0_531] : memref<6x8x32xf32, #tpu.memory_space<vmem>>, vector<1x8x32xf32>
    %620 = vector.shape_cast %619 : vector<1x8x32xf32> to vector<8x32xf32>
    %cst_532 = arith.constant dense<0.000000e+00> : vector<8x108xf32>
    %621 = tpu.matmul %620, %618, %cst_532 {dimension_numbers = #tpu.dot_dimension_numbers<[1], [0], [0], [1], [0, 0, 1, 1], [], []>} : vector<8x32xf32>, vector<32x108xf32>, vector<8x108xf32> -> vector<8x108xf32>
    %622 = vector.extract_strided_slice %621 {offsets = [0, 0], sizes = [8, 89], strides = [1, 1]} : vector<8x108xf32> to vector<8x89xf32>
    %c0_533 = arith.constant 0 : index
    %c19_534 = arith.constant 19 : index
    %623 = vector.load %arg16[%c0_533, %c19_534] : memref<312x108xf32, #tpu.memory_space<vmem>>, vector<8x89xf32>
    tpu.vector_store %arg16[%c0_533, %c19_534], %622 {strides = array<i32>} : memref<312x108xf32, #tpu.memory_space<vmem>>, vector<8x89xf32>,
    %624 = vector.extract_strided_slice %621 {offsets = [0, 0], sizes = [8, 90], strides = [1, 1]} : vector<8x108xf32> to vector<8x90xf32>
    %c8_535 = arith.constant 8 : index
    %c18_536 = arith.constant 18 : index
    %625 = vector.load %arg16[%c8_535, %c18_536] : memref<312x108xf32, #tpu.memory_space<vmem>>, vector<8x90xf32>
    tpu.vector_store %arg16[%c8_535, %c18_536], %624 {strides = array<i32>} : memref<312x108xf32, #tpu.memory_space<vmem>>, vector<8x90xf32>,
    %626 = vector.extract_strided_slice %621 {offsets = [0, 0], sizes = [8, 91], strides = [1, 1]} : vector<8x108xf32> to vector<8x91xf32>
    %c16_537 = arith.constant 16 : index
    %c17_538 = arith.constant 17 : index
    %627 = vector.load %arg16[%c16_537, %c17_538] : memref<312x108xf32, #tpu.memory_space<vmem>>, vector<8x91xf32>
    tpu.vector_store %arg16[%c16_537, %c17_538], %626 {strides = array<i32>} : memref<312x108xf32, #tpu.memory_space<vmem>>, vector<8x91xf32>,
    %628 = vector.extract_strided_slice %621 {offsets = [0, 0], sizes = [8, 92], strides = [1, 1]} : vector<8x108xf32> to vector<8x92xf32>
    %c24_539 = arith.constant 24 : index
    %c16_540 = arith.constant 16 : index
    %629 = vector.load %arg16[%c24_539, %c16_540] : memref<312x108xf32, #tpu.memory_space<vmem>>, vector<8x92xf32>
    tpu.vector_store %arg16[%c24_539, %c16_540], %628 {strides = array<i32>} : memref<312x108xf32, #tpu.memory_space<vmem>>, vector<8x92xf32>,
    %630 = vector.extract_strided_slice %621 {offsets = [0, 0], sizes = [8, 93], strides = [1, 1]} : vector<8x108xf32> to vector<8x93xf32>
    %c32_541 = arith.constant 32 : index
    %c15_542 = arith.constant 15 : index
    %631 = vector.load %arg16[%c32_541, %c15_542] : memref<312x108xf32, #tpu.memory_space<vmem>>, vector<8x93xf32>
    tpu.vector_store %arg16[%c32_541, %c15_542], %630 {strides = array<i32>} : memref<312x108xf32, #tpu.memory_space<vmem>>, vector<8x93xf32>,
    %632 = vector.extract_strided_slice %621 {offsets = [0, 0], sizes = [8, 94], strides = [1, 1]} : vector<8x108xf32> to vector<8x94xf32>
    %c40_543 = arith.constant 40 : index
    %c14_544 = arith.constant 14 : index
    %633 = vector.load %arg16[%c40_543, %c14_544] : memref<312x108xf32, #tpu.memory_space<vmem>>, vector<8x94xf32>
    tpu.vector_store %arg16[%c40_543, %c14_544], %632 {strides = array<i32>} : memref<312x108xf32, #tpu.memory_space<vmem>>, vector<8x94xf32>,
    %634 = vector.extract_strided_slice %621 {offsets = [0, 0], sizes = [8, 95], strides = [1, 1]} : vector<8x108xf32> to vector<8x95xf32>
    %c48_545 = arith.constant 48 : index
    %c13_546 = arith.constant 13 : index
    %635 = vector.load %arg16[%c48_545, %c13_546] : memref<312x108xf32, #tpu.memory_space<vmem>>, vector<8x95xf32>
    tpu.vector_store %arg16[%c48_545, %c13_546], %634 {strides = array<i32>} : memref<312x108xf32, #tpu.memory_space<vmem>>, vector<8x95xf32>,
    %636 = vector.extract_strided_slice %621 {offsets = [0, 0], sizes = [8, 96], strides = [1, 1]} : vector<8x108xf32> to vector<8x96xf32>
    %c56_547 = arith.constant 56 : index
    %c12_548 = arith.constant 12 : index
    %637 = vector.load %arg16[%c56_547, %c12_548] : memref<312x108xf32, #tpu.memory_space<vmem>>, vector<8x96xf32>
    tpu.vector_store %arg16[%c56_547, %c12_548], %636 {strides = array<i32>} : memref<312x108xf32, #tpu.memory_space<vmem>>, vector<8x96xf32>,
    %638 = vector.extract_strided_slice %621 {offsets = [0, 0], sizes = [8, 97], strides = [1, 1]} : vector<8x108xf32> to vector<8x97xf32>
    %c64_549 = arith.constant 64 : index
    %c11_550 = arith.constant 11 : index
    %639 = vector.load %arg16[%c64_549, %c11_550] : memref<312x108xf32, #tpu.memory_space<vmem>>, vector<8x97xf32>
    tpu.vector_store %arg16[%c64_549, %c11_550], %638 {strides = array<i32>} : memref<312x108xf32, #tpu.memory_space<vmem>>, vector<8x97xf32>,
    %640 = vector.extract_strided_slice %621 {offsets = [0, 0], sizes = [8, 98], strides = [1, 1]} : vector<8x108xf32> to vector<8x98xf32>
    %c72_551 = arith.constant 72 : index
    %c10_552 = arith.constant 10 : index
    %641 = vector.load %arg16[%c72_551, %c10_552] : memref<312x108xf32, #tpu.memory_space<vmem>>, vector<8x98xf32>
    tpu.vector_store %arg16[%c72_551, %c10_552], %640 {strides = array<i32>} : memref<312x108xf32, #tpu.memory_space<vmem>>, vector<8x98xf32>,
    %642 = vector.extract_strided_slice %621 {offsets = [0, 0], sizes = [8, 99], strides = [1, 1]} : vector<8x108xf32> to vector<8x99xf32>
    %c80_553 = arith.constant 80 : index
    %c9_554 = arith.constant 9 : index
    %643 = vector.load %arg16[%c80_553, %c9_554] : memref<312x108xf32, #tpu.memory_space<vmem>>, vector<8x99xf32>
    tpu.vector_store %arg16[%c80_553, %c9_554], %642 {strides = array<i32>} : memref<312x108xf32, #tpu.memory_space<vmem>>, vector<8x99xf32>,
    %644 = vector.extract_strided_slice %621 {offsets = [0, 0], sizes = [8, 100], strides = [1, 1]} : vector<8x108xf32> to vector<8x100xf32>
    %c88_555 = arith.constant 88 : index
    %c8_556 = arith.constant 8 : index
    %645 = vector.load %arg16[%c88_555, %c8_556] : memref<312x108xf32, #tpu.memory_space<vmem>>, vector<8x100xf32>
    tpu.vector_store %arg16[%c88_555, %c8_556], %644 {strides = array<i32>} : memref<312x108xf32, #tpu.memory_space<vmem>>, vector<8x100xf32>,
    %646 = vector.extract_strided_slice %621 {offsets = [0, 0], sizes = [8, 101], strides = [1, 1]} : vector<8x108xf32> to vector<8x101xf32>
    %c96_557 = arith.constant 96 : index
    %c7_558 = arith.constant 7 : index
    %647 = vector.load %arg16[%c96_557, %c7_558] : memref<312x108xf32, #tpu.memory_space<vmem>>, vector<8x101xf32>
    tpu.vector_store %arg16[%c96_557, %c7_558], %646 {strides = array<i32>} : memref<312x108xf32, #tpu.memory_space<vmem>>, vector<8x101xf32>,
    %648 = vector.extract_strided_slice %621 {offsets = [0, 0], sizes = [8, 102], strides = [1, 1]} : vector<8x108xf32> to vector<8x102xf32>
    %c104_559 = arith.constant 104 : index
    %c6_560 = arith.constant 6 : index
    %649 = vector.load %arg16[%c104_559, %c6_560] : memref<312x108xf32, #tpu.memory_space<vmem>>, vector<8x102xf32>
    tpu.vector_store %arg16[%c104_559, %c6_560], %648 {strides = array<i32>} : memref<312x108xf32, #tpu.memory_space<vmem>>, vector<8x102xf32>,
    %650 = vector.extract_strided_slice %621 {offsets = [0, 0], sizes = [8, 103], strides = [1, 1]} : vector<8x108xf32> to vector<8x103xf32>
    %c112_561 = arith.constant 112 : index
    %c5_562 = arith.constant 5 : index
    %651 = vector.load %arg16[%c112_561, %c5_562] : memref<312x108xf32, #tpu.memory_space<vmem>>, vector<8x103xf32>
    tpu.vector_store %arg16[%c112_561, %c5_562], %650 {strides = array<i32>} : memref<312x108xf32, #tpu.memory_space<vmem>>, vector<8x103xf32>,
    %652 = vector.extract_strided_slice %621 {offsets = [0, 0], sizes = [8, 104], strides = [1, 1]} : vector<8x108xf32> to vector<8x104xf32>
    %c120_563 = arith.constant 120 : index
    %c4_564 = arith.constant 4 : index
    %653 = vector.load %arg16[%c120_563, %c4_564] : memref<312x108xf32, #tpu.memory_space<vmem>>, vector<8x104xf32>
    tpu.vector_store %arg16[%c120_563, %c4_564], %652 {strides = array<i32>} : memref<312x108xf32, #tpu.memory_space<vmem>>, vector<8x104xf32>,
    %654 = vector.extract_strided_slice %621 {offsets = [0, 0], sizes = [8, 105], strides = [1, 1]} : vector<8x108xf32> to vector<8x105xf32>
    %c128_565 = arith.constant 128 : index
    %c3_566 = arith.constant 3 : index
    %655 = vector.load %arg16[%c128_565, %c3_566] : memref<312x108xf32, #tpu.memory_space<vmem>>, vector<8x105xf32>
    tpu.vector_store %arg16[%c128_565, %c3_566], %654 {strides = array<i32>} : memref<312x108xf32, #tpu.memory_space<vmem>>, vector<8x105xf32>,
    %656 = vector.extract_strided_slice %621 {offsets = [0, 0], sizes = [8, 106], strides = [1, 1]} : vector<8x108xf32> to vector<8x106xf32>
    %c136_567 = arith.constant 136 : index
    %c2_568 = arith.constant 2 : index
    %657 = vector.load %arg16[%c136_567, %c2_568] : memref<312x108xf32, #tpu.memory_space<vmem>>, vector<8x106xf32>
    tpu.vector_store %arg16[%c136_567, %c2_568], %656 {strides = array<i32>} : memref<312x108xf32, #tpu.memory_space<vmem>>, vector<8x106xf32>,
    %658 = vector.extract_strided_slice %621 {offsets = [0, 0], sizes = [8, 107], strides = [1, 1]} : vector<8x108xf32> to vector<8x107xf32>
    %c144_569 = arith.constant 144 : index
    %c1_570 = arith.constant 1 : index
    %659 = vector.load %arg16[%c144_569, %c1_570] : memref<312x108xf32, #tpu.memory_space<vmem>>, vector<8x107xf32>
    tpu.vector_store %arg16[%c144_569, %c1_570], %658 {strides = array<i32>} : memref<312x108xf32, #tpu.memory_space<vmem>>, vector<8x107xf32>,
    %c152_571 = arith.constant 152 : index
    %c0_572 = arith.constant 0 : index
    %660 = vector.load %arg16[%c152_571, %c0_572] : memref<312x108xf32, #tpu.memory_space<vmem>>, vector<8x108xf32>
    tpu.vector_store %arg16[%c152_571, %c0_572], %621 {strides = array<i32>} : memref<312x108xf32, #tpu.memory_space<vmem>>, vector<8x108xf32>,
    %661 = vector.extract_strided_slice %621 {offsets = [0, 1], sizes = [8, 107], strides = [1, 1]} : vector<8x108xf32> to vector<8x107xf32>
    %c160_573 = arith.constant 160 : index
    %c0_574 = arith.constant 0 : index
    %662 = vector.load %arg16[%c160_573, %c0_574] : memref<312x108xf32, #tpu.memory_space<vmem>>, vector<8x107xf32>
    tpu.vector_store %arg16[%c160_573, %c0_574], %661 {strides = array<i32>} : memref<312x108xf32, #tpu.memory_space<vmem>>, vector<8x107xf32>,
    %663 = vector.extract_strided_slice %621 {offsets = [0, 2], sizes = [8, 106], strides = [1, 1]} : vector<8x108xf32> to vector<8x106xf32>
    %c168_575 = arith.constant 168 : index
    %c0_576 = arith.constant 0 : index
    %664 = vector.load %arg16[%c168_575, %c0_576] : memref<312x108xf32, #tpu.memory_space<vmem>>, vector<8x106xf32>
    tpu.vector_store %arg16[%c168_575, %c0_576], %663 {strides = array<i32>} : memref<312x108xf32, #tpu.memory_space<vmem>>, vector<8x106xf32>,
    %665 = vector.extract_strided_slice %621 {offsets = [0, 3], sizes = [8, 105], strides = [1, 1]} : vector<8x108xf32> to vector<8x105xf32>
    %c176_577 = arith.constant 176 : index
    %c0_578 = arith.constant 0 : index
    %666 = vector.load %arg16[%c176_577, %c0_578] : memref<312x108xf32, #tpu.memory_space<vmem>>, vector<8x105xf32>
    tpu.vector_store %arg16[%c176_577, %c0_578], %665 {strides = array<i32>} : memref<312x108xf32, #tpu.memory_space<vmem>>, vector<8x105xf32>,
    %667 = vector.extract_strided_slice %621 {offsets = [0, 4], sizes = [8, 104], strides = [1, 1]} : vector<8x108xf32> to vector<8x104xf32>
    %c184_579 = arith.constant 184 : index
    %c0_580 = arith.constant 0 : index
    %668 = vector.load %arg16[%c184_579, %c0_580] : memref<312x108xf32, #tpu.memory_space<vmem>>, vector<8x104xf32>
    tpu.vector_store %arg16[%c184_579, %c0_580], %667 {strides = array<i32>} : memref<312x108xf32, #tpu.memory_space<vmem>>, vector<8x104xf32>,
    %669 = vector.extract_strided_slice %621 {offsets = [0, 5], sizes = [8, 103], strides = [1, 1]} : vector<8x108xf32> to vector<8x103xf32>
    %c192_581 = arith.constant 192 : index
    %c0_582 = arith.constant 0 : index
    %670 = vector.load %arg16[%c192_581, %c0_582] : memref<312x108xf32, #tpu.memory_space<vmem>>, vector<8x103xf32>
    tpu.vector_store %arg16[%c192_581, %c0_582], %669 {strides = array<i32>} : memref<312x108xf32, #tpu.memory_space<vmem>>, vector<8x103xf32>,
    %671 = vector.extract_strided_slice %621 {offsets = [0, 6], sizes = [8, 102], strides = [1, 1]} : vector<8x108xf32> to vector<8x102xf32>
    %c200_583 = arith.constant 200 : index
    %c0_584 = arith.constant 0 : index
    %672 = vector.load %arg16[%c200_583, %c0_584] : memref<312x108xf32, #tpu.memory_space<vmem>>, vector<8x102xf32>
    tpu.vector_store %arg16[%c200_583, %c0_584], %671 {strides = array<i32>} : memref<312x108xf32, #tpu.memory_space<vmem>>, vector<8x102xf32>,
    %673 = vector.extract_strided_slice %621 {offsets = [0, 7], sizes = [8, 101], strides = [1, 1]} : vector<8x108xf32> to vector<8x101xf32>
    %c208_585 = arith.constant 208 : index
    %c0_586 = arith.constant 0 : index
    %674 = vector.load %arg16[%c208_585, %c0_586] : memref<312x108xf32, #tpu.memory_space<vmem>>, vector<8x101xf32>
    tpu.vector_store %arg16[%c208_585, %c0_586], %673 {strides = array<i32>} : memref<312x108xf32, #tpu.memory_space<vmem>>, vector<8x101xf32>,
    %675 = vector.extract_strided_slice %621 {offsets = [0, 8], sizes = [8, 100], strides = [1, 1]} : vector<8x108xf32> to vector<8x100xf32>
    %c216_587 = arith.constant 216 : index
    %c0_588 = arith.constant 0 : index
    %676 = vector.load %arg16[%c216_587, %c0_588] : memref<312x108xf32, #tpu.memory_space<vmem>>, vector<8x100xf32>
    tpu.vector_store %arg16[%c216_587, %c0_588], %675 {strides = array<i32>} : memref<312x108xf32, #tpu.memory_space<vmem>>, vector<8x100xf32>,
    %677 = vector.extract_strided_slice %621 {offsets = [0, 9], sizes = [8, 99], strides = [1, 1]} : vector<8x108xf32> to vector<8x99xf32>
    %c224_589 = arith.constant 224 : index
    %c0_590 = arith.constant 0 : index
    %678 = vector.load %arg16[%c224_589, %c0_590] : memref<312x108xf32, #tpu.memory_space<vmem>>, vector<8x99xf32>
    tpu.vector_store %arg16[%c224_589, %c0_590], %677 {strides = array<i32>} : memref<312x108xf32, #tpu.memory_space<vmem>>, vector<8x99xf32>,
    %679 = vector.extract_strided_slice %621 {offsets = [0, 10], sizes = [8, 98], strides = [1, 1]} : vector<8x108xf32> to vector<8x98xf32>
    %c232_591 = arith.constant 232 : index
    %c0_592 = arith.constant 0 : index
    %680 = vector.load %arg16[%c232_591, %c0_592] : memref<312x108xf32, #tpu.memory_space<vmem>>, vector<8x98xf32>
    tpu.vector_store %arg16[%c232_591, %c0_592], %679 {strides = array<i32>} : memref<312x108xf32, #tpu.memory_space<vmem>>, vector<8x98xf32>,
    %681 = vector.extract_strided_slice %621 {offsets = [0, 11], sizes = [8, 97], strides = [1, 1]} : vector<8x108xf32> to vector<8x97xf32>
    %c240_593 = arith.constant 240 : index
    %c0_594 = arith.constant 0 : index
    %682 = vector.load %arg16[%c240_593, %c0_594] : memref<312x108xf32, #tpu.memory_space<vmem>>, vector<8x97xf32>
    tpu.vector_store %arg16[%c240_593, %c0_594], %681 {strides = array<i32>} : memref<312x108xf32, #tpu.memory_space<vmem>>, vector<8x97xf32>,
    %683 = vector.extract_strided_slice %621 {offsets = [0, 12], sizes = [8, 96], strides = [1, 1]} : vector<8x108xf32> to vector<8x96xf32>
    %c248_595 = arith.constant 248 : index
    %c0_596 = arith.constant 0 : index
    %684 = vector.load %arg16[%c248_595, %c0_596] : memref<312x108xf32, #tpu.memory_space<vmem>>, vector<8x96xf32>
    tpu.vector_store %arg16[%c248_595, %c0_596], %683 {strides = array<i32>} : memref<312x108xf32, #tpu.memory_space<vmem>>, vector<8x96xf32>,
    %685 = vector.extract_strided_slice %621 {offsets = [0, 13], sizes = [8, 95], strides = [1, 1]} : vector<8x108xf32> to vector<8x95xf32>
    %c256_597 = arith.constant 256 : index
    %c0_598 = arith.constant 0 : index
    %686 = vector.load %arg16[%c256_597, %c0_598] : memref<312x108xf32, #tpu.memory_space<vmem>>, vector<8x95xf32>
    tpu.vector_store %arg16[%c256_597, %c0_598], %685 {strides = array<i32>} : memref<312x108xf32, #tpu.memory_space<vmem>>, vector<8x95xf32>,
    %687 = vector.extract_strided_slice %621 {offsets = [0, 14], sizes = [8, 94], strides = [1, 1]} : vector<8x108xf32> to vector<8x94xf32>
    %c264_599 = arith.constant 264 : index
    %c0_600 = arith.constant 0 : index
    %688 = vector.load %arg16[%c264_599, %c0_600] : memref<312x108xf32, #tpu.memory_space<vmem>>, vector<8x94xf32>
    tpu.vector_store %arg16[%c264_599, %c0_600], %687 {strides = array<i32>} : memref<312x108xf32, #tpu.memory_space<vmem>>, vector<8x94xf32>,
    %689 = vector.extract_strided_slice %621 {offsets = [0, 15], sizes = [8, 93], strides = [1, 1]} : vector<8x108xf32> to vector<8x93xf32>
    %c272_601 = arith.constant 272 : index
    %c0_602 = arith.constant 0 : index
    %690 = vector.load %arg16[%c272_601, %c0_602] : memref<312x108xf32, #tpu.memory_space<vmem>>, vector<8x93xf32>
    tpu.vector_store %arg16[%c272_601, %c0_602], %689 {strides = array<i32>} : memref<312x108xf32, #tpu.memory_space<vmem>>, vector<8x93xf32>,
    %691 = vector.extract_strided_slice %621 {offsets = [0, 16], sizes = [8, 92], strides = [1, 1]} : vector<8x108xf32> to vector<8x92xf32>
    %c280_603 = arith.constant 280 : index
    %c0_604 = arith.constant 0 : index
    %692 = vector.load %arg16[%c280_603, %c0_604] : memref<312x108xf32, #tpu.memory_space<vmem>>, vector<8x92xf32>
    tpu.vector_store %arg16[%c280_603, %c0_604], %691 {strides = array<i32>} : memref<312x108xf32, #tpu.memory_space<vmem>>, vector<8x92xf32>,
    %693 = vector.extract_strided_slice %621 {offsets = [0, 17], sizes = [8, 91], strides = [1, 1]} : vector<8x108xf32> to vector<8x91xf32>
    %c288_605 = arith.constant 288 : index
    %c0_606 = arith.constant 0 : index
    %694 = vector.load %arg16[%c288_605, %c0_606] : memref<312x108xf32, #tpu.memory_space<vmem>>, vector<8x91xf32>
    tpu.vector_store %arg16[%c288_605, %c0_606], %693 {strides = array<i32>} : memref<312x108xf32, #tpu.memory_space<vmem>>, vector<8x91xf32>,
    %695 = vector.extract_strided_slice %621 {offsets = [0, 18], sizes = [8, 90], strides = [1, 1]} : vector<8x108xf32> to vector<8x90xf32>
    %c296_607 = arith.constant 296 : index
    %c0_608 = arith.constant 0 : index
    %696 = vector.load %arg16[%c296_607, %c0_608] : memref<312x108xf32, #tpu.memory_space<vmem>>, vector<8x90xf32>
    tpu.vector_store %arg16[%c296_607, %c0_608], %695 {strides = array<i32>} : memref<312x108xf32, #tpu.memory_space<vmem>>, vector<8x90xf32>,
    %697 = vector.extract_strided_slice %621 {offsets = [0, 19], sizes = [8, 89], strides = [1, 1]} : vector<8x108xf32> to vector<8x89xf32>
    %c304_609 = arith.constant 304 : index
    %c0_610 = arith.constant 0 : index
    %698 = vector.load %arg16[%c304_609, %c0_610] : memref<312x108xf32, #tpu.memory_space<vmem>>, vector<8x89xf32>
    tpu.vector_store %arg16[%c304_609, %c0_610], %697 {strides = array<i32>} : memref<312x108xf32, #tpu.memory_space<vmem>>, vector<8x89xf32>,
    %c5_611 = arith.constant 5 : index
    %c0_612 = arith.constant 0 : index
    %c0_613 = arith.constant 0 : index
    %699 = vector.load %arg3[%c5_611, %c0_612, %c0_613] : memref<6x24x312xf32, #tpu.memory_space<vmem>>, vector<1x24x312xf32>
    %700 = vector.shape_cast %699 : vector<1x24x312xf32> to vector<24x312xf32>
    %c0_614 = arith.constant 0 : index
    %c0_615 = arith.constant 0 : index
    %701 = vector.load %arg16[%c0_614, %c0_615] : memref<312x108xf32, #tpu.memory_space<vmem>>, vector<312x108xf32>
    %cst_616 = arith.constant dense<0.000000e+00> : vector<24x108xf32>
    %702 = tpu.matmul %700, %701, %cst_616 {dimension_numbers = #tpu.dot_dimension_numbers<[1], [0], [0], [1], [0, 0, 1, 1], [], []>} : vector<24x312xf32>, vector<312x108xf32>, vector<24x108xf32> -> vector<24x108xf32>
    %cst_617 = arith.constant -1.000000e+30 : f32
    %703 = vector.shape_cast %11 : vector<1x108xi1> to vector<1x108xi1>
    %704 = vector.broadcast %703 : vector<1x108xi1> to vector<32x108xi1>
    %705 = vector.broadcast %cst_617 : f32 to vector<32x108xf32>
    %706 = arith.select %704, %618, %705 : vector<32x108xi1>, vector<32x108xf32>
    %707 = vector.extract_strided_slice %706 {offsets = [0, 0], sizes = [32, 107], strides = [1, 1]} : vector<32x108xf32> to vector<32x107xf32>
    %c0_618 = arith.constant 0 : index
    %c1_619 = arith.constant 1 : index
    %708 = vector.load %arg16[%c0_618, %c1_619] : memref<312x108xf32, #tpu.memory_space<vmem>>, vector<32x107xf32>
    tpu.vector_store %arg16[%c0_618, %c1_619], %707 {strides = array<i32>} : memref<312x108xf32, #tpu.memory_space<vmem>>, vector<32x107xf32>,
    %709 = vector.extract_strided_slice %706 {offsets = [0, 1], sizes = [32, 107], strides = [1, 1]} : vector<32x108xf32> to vector<32x107xf32>
    %c32_620 = arith.constant 32 : index
    %c0_621 = arith.constant 0 : index
    %710 = vector.load %arg16[%c32_620, %c0_621] : memref<312x108xf32, #tpu.memory_space<vmem>>, vector<32x107xf32>
    tpu.vector_store %arg16[%c32_620, %c0_621], %709 {strides = array<i32>} : memref<312x108xf32, #tpu.memory_space<vmem>>, vector<32x107xf32>,
    %c0_622 = arith.constant 0 : index
    %c0_623 = arith.constant 0 : index
    %711 = vector.load %arg16[%c0_622, %c0_623] : memref<312x108xf32, #tpu.memory_space<vmem>>, vector<32x108xf32>
    %712 = arith.maximumf %706, %711 : vector<32x108xf32>
    %c32_624 = arith.constant 32 : index
    %c0_625 = arith.constant 0 : index
    %713 = vector.load %arg16[%c32_624, %c0_625] : memref<312x108xf32, #tpu.memory_space<vmem>>, vector<32x108xf32>
    %714 = arith.maximumf %712, %713 : vector<32x108xf32>
    %cst_626 = arith.constant 0.000000e+00 : f32
    %715 = vector.shape_cast %11 : vector<1x108xi1> to vector<1x108xi1>
    %716 = vector.broadcast %715 : vector<1x108xi1> to vector<32x108xi1>
    %717 = vector.broadcast %cst_626 : f32 to vector<32x108xf32>
    %718 = arith.select %716, %714, %717 : vector<32x108xi1>, vector<32x108xf32>
    %c5_627 = arith.constant 5 : index
    %c0_628 = arith.constant 0 : index
    %c0_629 = arith.constant 0 : index
    %719 = vector.load %arg4[%c5_627, %c0_628, %c0_629] : memref<6x8x32xf32, #tpu.memory_space<vmem>>, vector<1x8x32xf32>
    %720 = vector.shape_cast %719 : vector<1x8x32xf32> to vector<8x32xf32>
    %cst_630 = arith.constant dense<0.000000e+00> : vector<8x108xf32>
    %721 = tpu.matmul %720, %718, %cst_630 {dimension_numbers = #tpu.dot_dimension_numbers<[1], [0], [0], [1], [0, 0, 1, 1], [], []>} : vector<8x32xf32>, vector<32x108xf32>, vector<8x108xf32> -> vector<8x108xf32>
    %722 = tpu.concatenate %702, %721 in 0 : vector<24x108xf32>, vector<8x108xf32> -> vector<32x108xf32>
    %c5_631 = arith.constant 5 : index
    %c0_632 = arith.constant 0 : index
    %c0_633 = arith.constant 0 : index
    %723 = vector.load %arg5[%c5_631, %c0_632, %c0_633] : memref<6x32x1xf32, #tpu.memory_space<vmem>>, vector<1x32x1xf32>
    %724 = vector.shape_cast %723 : vector<1x32x1xf32> to vector<32x1xf32>
    %725 = vector.broadcast %724 : vector<32x1xf32> to vector<32x108xf32>
    %726 = arith.addf %722, %725 : vector<32x108xf32>
    %cst_634 = arith.constant 0.000000e+00 : f32
    %727 = vector.broadcast %cst_634 : f32 to vector<32x108xf32>
    %728 = arith.maximumf %726, %727 : vector<32x108xf32>
    %c1_635 = arith.constant 1 : index
    %c0_636 = arith.constant 0 : index
    %c0_637 = arith.constant 0 : index
    %729 = vector.load %arg6[%c1_635, %c0_636, %c0_637] : memref<2x32x32xf32, #tpu.memory_space<vmem>>, vector<1x32x32xf32>
    %730 = vector.shape_cast %729 : vector<1x32x32xf32> to vector<32x32xf32>
    %c0_638 = arith.constant 0 : index
    %c0_639 = arith.constant 0 : index
    %731 = vector.load %arg15[%c0_638, %c0_639] : memref<32x108xf32, #tpu.memory_space<vmem>>, vector<32x108xf32>
    %cst_640 = arith.constant dense<0.000000e+00> : vector<32x108xf32>
    %732 = tpu.matmul %730, %731, %cst_640 {dimension_numbers = #tpu.dot_dimension_numbers<[1], [0], [0], [1], [0, 0, 1, 1], [], []>} : vector<32x32xf32>, vector<32x108xf32>, vector<32x108xf32> -> vector<32x108xf32>
    %733 = arith.addf %728, %732 : vector<32x108xf32>
    %c1_641 = arith.constant 1 : index
    %c0_642 = arith.constant 0 : index
    %c0_643 = arith.constant 0 : index
    %734 = vector.load %arg7[%c1_641, %c0_642, %c0_643] : memref<2x32x1xf32, #tpu.memory_space<vmem>>, vector<1x32x1xf32>
    %735 = vector.shape_cast %734 : vector<1x32x1xf32> to vector<32x1xf32>
    %736 = vector.broadcast %735 : vector<32x1xf32> to vector<32x108xf32>
    %737 = arith.addf %733, %736 : vector<32x108xf32>
    %cst_644 = arith.constant 0.000000e+00 : f32
    %738 = vector.broadcast %cst_644 : f32 to vector<32x108xf32>
    %739 = arith.maximumf %737, %738 : vector<32x108xf32>
    %cst_645 = arith.constant 0.000000e+00 : f32
    %740 = vector.shape_cast %11 : vector<1x108xi1> to vector<1x108xi1>
    %741 = vector.broadcast %740 : vector<1x108xi1> to vector<32x108xi1>
    %742 = vector.broadcast %cst_645 : f32 to vector<32x108xf32>
    %743 = arith.select %741, %739, %742 : vector<32x108xi1>, vector<32x108xf32>
    %c0_646 = arith.constant 0 : index
    %c0_647 = arith.constant 0 : index
    %744 = vector.load %arg14[%c0_646, %c0_647] : memref<32x108xf32, #tpu.memory_space<vmem>>, vector<32x108xf32>
    tpu.vector_store %arg14[%c0_646, %c0_647], %743 {strides = array<i32>} : memref<32x108xf32, #tpu.memory_space<vmem>>, vector<32x108xf32>,
    %cst_648 = arith.constant 0.000000e+00 : f32
    %745 = vector.shape_cast %11 : vector<1x108xi1> to vector<1x108xi1>
    %746 = vector.broadcast %745 : vector<1x108xi1> to vector<32x108xi1>
    %747 = vector.broadcast %cst_648 : f32 to vector<32x108xf32>
    %748 = arith.select %746, %739, %747 : vector<32x108xi1>, vector<32x108xf32>
    %c0_649 = arith.constant 0 : index
    %c0_650 = arith.constant 0 : index
    %749 = vector.load %arg15[%c0_649, %c0_650] : memref<32x108xf32, #tpu.memory_space<vmem>>, vector<32x108xf32>
    tpu.vector_store %arg15[%c0_649, %c0_650], %748 {strides = array<i32>} : memref<32x108xf32, #tpu.memory_space<vmem>>, vector<32x108xf32>,
    %c0_651 = arith.constant 0 : index
    %c0_652 = arith.constant 0 : index
    %750 = vector.load %arg8[%c0_651, %c0_652] : memref<16x32xf32, #tpu.memory_space<vmem>>, vector<16x32xf32>
    %c0_653 = arith.constant 0 : index
    %c0_654 = arith.constant 0 : index
    %751 = vector.load %arg10[%c0_653, %c0_654] : memref<1x32xf32, #tpu.memory_space<vmem>>, vector<1x32xf32>
    %c0_655 = arith.constant 0 : index
    %c19_656 = arith.constant 19 : index
    %752 = vector.load %arg14[%c0_655, %c19_656] : memref<32x108xf32, #tpu.memory_space<vmem>>, vector<32x16xf32>
    %cst_657 = arith.constant dense<0.000000e+00> : vector<32x32xf32>
    %753 = tpu.matmul %752, %750, %cst_657 {dimension_numbers = #tpu.dot_dimension_numbers<[1], [0], [0], [1], [0, 0, 1, 1], [], []>} : vector<32x16xf32>, vector<16x32xf32>, vector<32x32xf32> -> vector<32x32xf32>
    %754 = vector.broadcast %751 : vector<1x32xf32> to vector<32x32xf32>
    %755 = arith.addf %753, %754 : vector<32x32xf32>
    %c0_658 = arith.constant 0 : index
    %c0_659 = arith.constant 0 : index
    %756 = vector.load %arg17[%c0_658, %c0_659] : memref<32x64xf32, #tpu.memory_space<vmem>>, vector<32x32xf32>
    tpu.vector_store %arg17[%c0_658, %c0_659], %755 {strides = array<i32>} : memref<32x64xf32, #tpu.memory_space<vmem>>, vector<32x32xf32>,
    %c0_660 = arith.constant 0 : index
    %c73_661 = arith.constant 73 : index
    %757 = vector.load %arg14[%c0_660, %c73_661] : memref<32x108xf32, #tpu.memory_space<vmem>>, vector<32x16xf32>
    %cst_662 = arith.constant dense<0.000000e+00> : vector<32x32xf32>
    %758 = tpu.matmul %757, %750, %cst_662 {dimension_numbers = #tpu.dot_dimension_numbers<[1], [0], [0], [1], [0, 0, 1, 1], [], []>} : vector<32x16xf32>, vector<16x32xf32>, vector<32x32xf32> -> vector<32x32xf32>
    %759 = vector.broadcast %751 : vector<1x32xf32> to vector<32x32xf32>
    %760 = arith.addf %758, %759 : vector<32x32xf32>
    %c0_663 = arith.constant 0 : index
    %c32_664 = arith.constant 32 : index
    %761 = vector.load %arg17[%c0_663, %c32_664] : memref<32x64xf32, #tpu.memory_space<vmem>>, vector<32x32xf32>
    tpu.vector_store %arg17[%c0_663, %c32_664], %760 {strides = array<i32>} : memref<32x64xf32, #tpu.memory_space<vmem>>, vector<32x32xf32>,
    %c0_665 = arith.constant 0 : index
    %c0_666 = arith.constant 0 : index
    %762 = vector.load %arg9[%c0_665, %c0_666] : memref<64x64xf32, #tpu.memory_space<vmem>>, vector<64x64xf32>
    %cst_667 = arith.constant 0.000000e+00 : f32
    %763 = vector.broadcast %cst_667 : f32 to vector<1x64xf32>
    %c0_i32 = arith.constant 0 : i32
    %c32_i32 = arith.constant 32 : i32
    %764 = arith.addi %c0_i32, %c32_i32 : i32
    %c1_i32 = arith.constant 1 : i32
    %765 = scf.for %arg18 = %c0_i32 to %764 step %c1_i32 iter_args(%arg19 = %763) -> (vector<1x64xf32>)  : i32 {
      %773 = arith.index_cast %arg18 : i32 to index
      %c0_677 = arith.constant 0 : index
      %774 = vector.load %arg17[%773, %c0_677] : memref<32x64xf32, #tpu.memory_space<vmem>>, vector<1x64xf32>
      %cst_678 = arith.constant dense<0.000000e+00> : vector<1x64xf32>
      %775 = tpu.matmul %arg19, %762, %cst_678 {dimension_numbers = #tpu.dot_dimension_numbers<[1], [0], [0], [1], [0, 0, 1, 1], [], []>} : vector<1x64xf32>, vector<64x64xf32>, vector<1x64xf32> -> vector<1x64xf32>
      %776 = arith.addf %774, %775 : vector<1x64xf32>
      %777 = math.tanh %776 : vector<1x64xf32>
      scf.yield %777 : vector<1x64xf32>
    }
    %c32_i32_668 = arith.constant 32 : i32
    %c0_669 = arith.constant 0 : index
    %c0_670 = arith.constant 0 : index
    %766 = vector.load %arg11[%c0_669, %c0_670] : memref<64x6xf32, #tpu.memory_space<vmem>>, vector<64x6xf32>
    %cst_671 = arith.constant dense<0.000000e+00> : vector<1x6xf32>
    %767 = tpu.matmul %765, %766, %cst_671 {dimension_numbers = #tpu.dot_dimension_numbers<[1], [0], [0], [1], [0, 0, 1, 1], [], []>} : vector<1x64xf32>, vector<64x6xf32>, vector<1x6xf32> -> vector<1x6xf32>
    %c0_672 = arith.constant 0 : index
    %c0_673 = arith.constant 0 : index
    %768 = vector.load %arg12[%c0_672, %c0_673] : memref<1x6xf32, #tpu.memory_space<vmem>>, vector<1x6xf32>
    %769 = arith.addf %767, %768 : vector<1x6xf32>
    %c0_674 = arith.constant 0 : index
    %c0_675 = arith.constant 0 : index
    %c0_676 = arith.constant 0 : index
    %770 = vector.load %arg13[%c0_674, %c0_675, %c0_676] : memref<1x1x6xf32, #tpu.memory_space<vmem>>, vector<1x1x6xf32>
    %771 = vector.shape_cast %770 : vector<1x1x6xf32> to vector<1x6xf32>
    %772 = vector.shape_cast %769 : vector<1x6xf32> to vector<1x1x6xf32>
    tpu.vector_store %arg13[%c0_674, %c0_675, %c0_676], %772 {strides = array<i32>} : memref<1x1x6xf32, #tpu.memory_space<vmem>>, vector<1x1x6xf32>,
    return
  }
  func.func @transform_0(%arg0: i32) -> (i32, i32, i32) {
    %c0_i32 = arith.constant 0 : i32
    %c0_i32_0 = arith.constant 0 : i32
    %c0_i32_1 = arith.constant 0 : i32
    return %arg0, %c0_i32, %c0_i32_0 : i32, i32, i32
  }
  func.func @transform_1(%arg0: i32) -> (i32, i32, i32) {
    %c0_i32 = arith.constant 0 : i32
    %c0_i32_0 = arith.constant 0 : i32
    %c0_i32_1 = arith.constant 0 : i32
    %c0_i32_2 = arith.constant 0 : i32
    return %c0_i32, %c0_i32_0, %c0_i32_1 : i32, i32, i32
  }
  func.func @transform_2(%arg0: i32) -> (i32, i32, i32) {
    %c0_i32 = arith.constant 0 : i32
    %c0_i32_0 = arith.constant 0 : i32
    %c0_i32_1 = arith.constant 0 : i32
    %c0_i32_2 = arith.constant 0 : i32
    return %c0_i32, %c0_i32_0, %c0_i32_1 : i32, i32, i32
  }
  func.func @transform_3(%arg0: i32) -> (i32, i32, i32) {
    %c0_i32 = arith.constant 0 : i32
    %c0_i32_0 = arith.constant 0 : i32
    %c0_i32_1 = arith.constant 0 : i32
    %c0_i32_2 = arith.constant 0 : i32
    return %c0_i32, %c0_i32_0, %c0_i32_1 : i32, i32, i32
  }
  func.func @transform_4(%arg0: i32) -> (i32, i32, i32) {
    %c0_i32 = arith.constant 0 : i32
    %c0_i32_0 = arith.constant 0 : i32
    %c0_i32_1 = arith.constant 0 : i32
    %c0_i32_2 = arith.constant 0 : i32
    return %c0_i32, %c0_i32_0, %c0_i32_1 : i32, i32, i32
  }
  func.func @transform_5(%arg0: i32) -> (i32, i32, i32) {
    %c0_i32 = arith.constant 0 : i32
    %c0_i32_0 = arith.constant 0 : i32
    %c0_i32_1 = arith.constant 0 : i32
    %c0_i32_2 = arith.constant 0 : i32
    return %c0_i32, %c0_i32_0, %c0_i32_1 : i32, i32, i32
  }
  func.func @transform_6(%arg0: i32) -> (i32, i32, i32) {
    %c0_i32 = arith.constant 0 : i32
    %c0_i32_0 = arith.constant 0 : i32
    %c0_i32_1 = arith.constant 0 : i32
    %c0_i32_2 = arith.constant 0 : i32
    return %c0_i32, %c0_i32_0, %c0_i32_1 : i32, i32, i32
  }
  func.func @transform_7(%arg0: i32) -> (i32, i32) {
    %c0_i32 = arith.constant 0 : i32
    %c0_i32_0 = arith.constant 0 : i32
    %c0_i32_1 = arith.constant 0 : i32
    return %c0_i32, %c0_i32_0 : i32, i32
  }
  func.func @transform_8(%arg0: i32) -> (i32, i32) {
    %c0_i32 = arith.constant 0 : i32
    %c0_i32_0 = arith.constant 0 : i32
    %c0_i32_1 = arith.constant 0 : i32
    return %c0_i32, %c0_i32_0 : i32, i32
  }
  func.func @transform_9(%arg0: i32) -> (i32, i32) {
    %c0_i32 = arith.constant 0 : i32
    %c0_i32_0 = arith.constant 0 : i32
    %c0_i32_1 = arith.constant 0 : i32
    return %c0_i32, %c0_i32_0 : i32, i32
  }
  func.func @transform_10(%arg0: i32) -> (i32, i32) {
    %c0_i32 = arith.constant 0 : i32
    %c0_i32_0 = arith.constant 0 : i32
    %c0_i32_1 = arith.constant 0 : i32
    return %c0_i32, %c0_i32_0 : i32, i32
  }
  func.func @transform_11(%arg0: i32) -> (i32, i32) {
    %c0_i32 = arith.constant 0 : i32
    %c0_i32_0 = arith.constant 0 : i32
    %c0_i32_1 = arith.constant 0 : i32
    return %c0_i32, %c0_i32_0 : i32, i32
  }
  func.func @transform_12(%arg0: i32) -> (i32, i32, i32) {
    %c0_i32 = arith.constant 0 : i32
    %c0_i32_0 = arith.constant 0 : i32
    %c0_i32_1 = arith.constant 0 : i32
    return %arg0, %c0_i32, %c0_i32_0 : i32, i32, i32
  }
}

</mosaic_0001>

<llo_original>
// kernel: forward.1
$region0: #{forward.1}
  #allocation0 [shape = 'u32[]', space=smem, size = 0x4, offset = 0x4, fixed_abs, tag = 'smem constant byte address 0x4 - core index']
  #allocation1 [shape = 'u32[144,128]{1,0:T(1,128)}', space=vmem, size = 0x12000, scoped, tag = 'internal scratch']
  #allocation2 [shape = 'f32[32,108]{1,0:T(8,128)}', space=vmem, size = 0x4000, scoped, tag = 'scratch operand']
  #allocation3 [shape = 'f32[32,108]{1,0:T(8,128)}', space=vmem, size = 0x4000, scoped, tag = 'scratch operand']
  #allocation4 [shape = 'f32[312,108]{1,0:T(8,128)}', space=vmem, size = 0x27000, scoped, tag = 'scratch operand']
  #allocation5 [shape = 'f32[32,64]{1,0:T(8,128)}', space=vmem, size = 0x4000, scoped, tag = 'scratch operand']
  %s0 = inlined_call_operand.vmem [shape: f32[2,4,16], index: 0, kind: input, shape index: {}]
  %s1 = inlined_call_operand.vmem [shape: f32[6,8,32], index: 1, kind: input, shape index: {}]
  %s2 = inlined_call_operand.vmem [shape: f32[6,24,312], index: 2, kind: input, shape index: {}]
  %s3 = inlined_call_operand.vmem [shape: f32[6,8,32], index: 3, kind: input, shape index: {}]
  %s4 = inlined_call_operand.vmem [shape: f32[6,32,1], index: 4, kind: input, shape index: {}]
  %s5 = inlined_call_operand.vmem [shape: f32[2,32,32], index: 5, kind: input, shape index: {}]
  %s6 = inlined_call_operand.vmem [shape: f32[2,32,1], index: 6, kind: input, shape index: {}]
  %s7 = inlined_call_operand.vmem [shape: f32[16,32], index: 7, kind: input, shape index: {}]
  %s8 = inlined_call_operand.vmem [shape: f32[64,64], index: 8, kind: input, shape index: {}]
  %s9 = inlined_call_operand.vmem [shape: f32[1,32], index: 9, kind: input, shape index: {}]
  %s10 = inlined_call_operand.vmem [shape: f32[64,6], index: 10, kind: input, shape index: {}]
  %s11 = inlined_call_operand.vmem [shape: f32[1,6], index: 11, kind: input, shape index: {}]
  %s12 = inlined_call_operand.vmem [shape: f32[1,1,6], index: 12, kind: output, shape index: {}]
  %s13 = sld [smem:[#allocation0]]
  $region65: #{forward.1} parent=0
    _
  %s15 = ssub.s32 1, %s13
  %s16 = scalar_select 0, %s15, %s13
  // Predicated region
  $region2: #{forward.1} parent=0 // pred_check
    _
  $region3: #{forward.1} parent=0 // pred_check_branch
    %18 = sbr.rel (0) target = $region5
  $region4: #{forward.1} parent=0 // pred_region
    _
  $region5: #{forward.1} parent=0 // pred_fallthru
    _
  // Predicated region
  $region6: #{forward.1} parent=0 // pred_check
    _
  $region7: #{forward.1} parent=0 // pred_check_branch
    %20 = sbr.rel (0) target = $region9
  $region8: #{forward.1} parent=0 // pred_region
    _
  $region9: #{forward.1} parent=0 // pred_fallthru
    _
  // Predicated region
  $region10: #{forward.1} parent=0 // pred_check
    _
  $region11: #{forward.1} parent=0 // pred_check_branch
    %22 = sbr.rel (0) target = $region13
  $region12: #{forward.1} parent=0 // pred_region
    _
  $region13: #{forward.1} parent=0 // pred_fallthru
    _
  // Predicated region
  $region14: #{forward.1} parent=0 // pred_check
    _
  $region15: #{forward.1} parent=0 // pred_check_branch
    %24 = sbr.rel (0) target = $region17
  $region16: #{forward.1} parent=0 // pred_region
    _
  $region17: #{forward.1} parent=0 // pred_fallthru
    _
  // Predicated region
  $region18: #{forward.1} parent=0 // pred_check
    _
  $region19: #{forward.1} parent=0 // pred_check_branch
    %26 = sbr.rel (0) target = $region21
  $region20: #{forward.1} parent=0 // pred_region
    _
  $region21: #{forward.1} parent=0 // pred_fallthru
    _
  // Predicated region
  $region22: #{forward.1} parent=0 // pred_check
    _
  $region23: #{forward.1} parent=0 // pred_check_branch
    %28 = sbr.rel (0) target = $region25
  $region24: #{forward.1} parent=0 // pred_region
    _
  $region25: #{forward.1} parent=0 // pred_fallthru
    _
  // Predicated region
  $region26: #{forward.1} parent=0 // pred_check
    _
  $region27: #{forward.1} parent=0 // pred_check_branch
    %30 = sbr.rel (0) target = $region29
  $region28: #{forward.1} parent=0 // pred_region
    _
  $region29: #{forward.1} parent=0 // pred_fallthru
    _
  // Predicated region
  $region30: #{forward.1} parent=0 // pred_check
    _
  $region31: #{forward.1} parent=0 // pred_check_branch
    %32 = sbr.rel (0) target = $region33
  $region32: #{forward.1} parent=0 // pred_region
    _
  $region33: #{forward.1} parent=0 // pred_fallthru
    _
  // Predicated region
  $region34: #{forward.1} parent=0 // pred_check
    _
  $region35: #{forward.1} parent=0 // pred_check_branch
    %34 = sbr.rel (0) target = $region37
  $region36: #{forward.1} parent=0 // pred_region
    _
  $region37: #{forward.1} parent=0 // pred_fallthru
    _
  // Predicated region
  $region38: #{forward.1} parent=0 // pred_check
    _
  $region39: #{forward.1} parent=0 // pred_check_branch
    %36 = sbr.rel (0) target = $region41
  $region40: #{forward.1} parent=0 // pred_region
    _
  $region41: #{forward.1} parent=0 // pred_fallthru
    _
  // Predicated region
  $region42: #{forward.1} parent=0 // pred_check
    _
  $region43: #{forward.1} parent=0 // pred_check_branch
    %38 = sbr.rel (0) target = $region45
  $region44: #{forward.1} parent=0 // pred_region
    _
  $region45: #{forward.1} parent=0 // pred_fallthru
    _
  // Predicated region
  $region46: #{forward.1} parent=0 // pred_check
    _
  $region47: #{forward.1} parent=0 // pred_check_branch
    %40 = sbr.rel (0) target = $region49
  $region48: #{forward.1} parent=0 // pred_region
    _
  $region49: #{forward.1} parent=0 // pred_fallthru
    _
  %v41 = vlaneseq
  %v42 = vand.u32 %v41, 127
  %vm43 = vcmp.ge.s32.totalorder %v42, 19
  %vm44 = vcmp.lt.s32.totalorder %v42, 35
  %vm45 = vmand %vm43, %vm44
  %vm46 = vcmp.ge.s32.totalorder %v42, 73
  %vm47 = vcmp.lt.s32.totalorder %v42, 89
  %vm48 = vmand %vm46, %vm47
  %vm49 = vmor %vm45, %vm48
  %vm50 = vcmask 883712
  %51 = vst.msk [vmem:[#allocation2] sm:$0xff] %vm50, 0.0
  %52 = vst.msk [vmem:[#allocation2 + $0x8] sm:$0xff] %vm50, 0.0
  %53 = vst.msk [vmem:[#allocation2 + $0x10] sm:$0xff] %vm50, 0.0
  %54 = vst.msk [vmem:[#allocation2 + $0x18] sm:$0xff] %vm50, 0.0
  %v55 = vld [vmem:[%s0] sm:$0xf]
  %57 = vrot.lane.b32.xlu0 %v55, 19
  %v58 = vpop.permute.xlu0 %57
  %vm60 = vcmask 281752
  %61 = vst.msk [vmem:[#allocation2] sm:$0xf] %vm60, %v58
  %s62 = scalar_lea.vmem %s0, 4
  %v63 = vld [vmem:[%s62] sm:$0xf]
  %65 = vrot.lane.b32.xlu0 %v63, 73
  %v66 = vpop.permute.xlu0 %65
  %vm68 = vcmask 724552
  %69 = vst.msk [vmem:[#allocation2] sm:$0xf] %vm68, %v66
  %v70 = vld [vmem:[#allocation2] sm:$0xff]
  %v71 = vld [vmem:[#allocation2 + $0x8] sm:$0xff]
  %v72 = vld [vmem:[#allocation2 + $0x10] sm:$0xff]
  %v73 = vld [vmem:[#allocation2 + $0x18] sm:$0xff]
  %74 = vst.msk [vmem:[#allocation3] sm:$0xff] %vm50, %v70
  %75 = vst.msk [vmem:[#allocation3 + $0x8] sm:$0xff] %vm50, %v71
  %76 = vst.msk [vmem:[#allocation3 + $0x10] sm:$0xff] %vm50, %v72
  %77 = vst.msk [vmem:[#allocation3 + $0x18] sm:$0xff] %vm50, %v73
  %v78 = vld [vmem:[#allocation2] sm:$0xff]
  %v79 = vld [vmem:[#allocation2 + $0x8] sm:$0xff]
  %v80 = vld [vmem:[#allocation2 + $0x10] sm:$0xff]
  %v81 = vld [vmem:[#allocation2 + $0x18] sm:$0xff]
  %v82 = vld [vmem:[%s1] sm:$0xff]
  %vm83 = vcmask 261120
  %v85 = vsel %vm83, %v82, 0
  %87 = vmatprep.subr.mxu0 0.0
  %88 = vmatpush1.msra.mxu0 %v78
  %89 = vmatprep.subr.mxu0 0.0
  %90 = vmatpush1.msra.mxu0 %v79
  %91 = vmatprep.subr.mxu0 0.0
  %92 = vmatpush1.msra.mxu0 %v80
  %93 = vmatprep.subr.mxu0 0.0
  %94 = vmatpush1.msra.mxu0 %v81
  %95 = vmatprep.subr.mxu0 0.0
  %96 = vmatpush1.msra.mxu0 0.0
  %97 = vmatprep.subr.mxu0 0.0
  %98 = vmatpush1.msra.mxu0 0.0
  %99 = vmatprep.subr.mxu0 0.0
  %100 = vmatpush1.msra.mxu0 0.0
  %101 = vmatprep.subr.mxu0 0.0
  %102 = vmatpush1.msra.mxu0 0.0
  %103 = vmatprep.subr.mxu0 0.0
  %104 = vmatpush1.msra.mxu0 0.0
  %105 = vmatprep.subr.mxu0 0.0
  %106 = vmatpush1.msra.mxu0 0.0
  %107 = vmatprep.subr.mxu0 0.0
  %108 = vmatpush1.msra.mxu0 0.0
  %109 = vmatprep.subr.mxu0 0.0
  %110 = vmatpush1.msra.mxu0 0.0
  %111 = vmatprep.subr.mxu0 0.0
  %112 = vmatpush1.msra.mxu0 0.0
  %113 = vmatprep.subr.mxu0 0.0
  %114 = vmatpush1.msra.mxu0 0.0
  %115 = vmatprep.subr.mxu0 0.0
  %116 = vmatpush1.msra.mxu0 0.0
  %117 = vmatprep.subr.mxu0 0.0
  %118 = vmatpush1.msra.mxu0 0.0
  %119 = vmatprep.subr.mxu0 0.0
  %120 = vmatpush1.msra.mxu0 0.0
  %121 = vmatprep.subr.mxu0 0.0
  %122 = vmatpush1.msra.mxu0 0.0
  %123 = vmatprep.subr.mxu0 0.0
  %124 = vmatpush1.msra.mxu0 0.0
  %125 = vmatprep.subr.mxu0 0.0
  %126 = vmatpush1.msra.mxu0 0.0
  %127 = vmatprep.subr.mxu0 0.0
  %128 = vmatpush1.msra.mxu0 0.0
  %129 = vmatprep.subr.mxu0 0.0
  %130 = vmatpush1.msra.mxu0 0.0
  %131 = vmatprep.subr.mxu0 0.0
  %132 = vmatpush1.msra.mxu0 0.0
  %133 = vmatprep.subr.mxu0 0.0
  %134 = vmatpush1.msra.mxu0 0.0
  %135 = vmatprep.subr.mxu0 0.0
  %136 = vmatpush1.msra.mxu0 0.0
  %137 = vmatprep.subr.mxu0 0.0
  %138 = vmatpush1.msra.mxu0 0.0
  %139 = vmatprep.subr.mxu0 0.0
  %140 = vmatpush1.msra.mxu0 0.0
  %141 = vmatprep.subr.mxu0 0.0
  %142 = vmatpush1.msra.mxu0 0.0
  %143 = vmatprep.subr.mxu0 0.0
  %144 = vmatpush1.msra.mxu0 0.0
  %145 = vmatprep.subr.mxu0 0.0
  %146 = vmatpush1.msra.mxu0 0.0
  %147 = vmatprep.subr.mxu0 0.0
  %148 = vmatpush1.msra.mxu0 0.0
  %149 = vmatprep.subr.mxu0 0.0
  %150 = vmatpush1.msra.mxu0 0.0
  %151 = vmatprep.mubr.f32.mxu0 0.0
  %152 = vmatmul.mubr.f32.gmra.mrb[0].mxu0 %v85
  %v153 = vpop.f32.mrb[0].mxu0
  %v154 = vadd.f32 0.0, %v153
  %v155 = vpop.f32.mrb[0].mxu0
  %156 = vdwg.mxu0
  %158 = vrot.lane.b32.xlu0 %v154, 19
  %v159 = vpop.permute.xlu0 %158
  %vm161 = vcmask 883864
  %162 = vst.msk [vmem:[#allocation4] sm:$0xff] %vm161, %v159
  %163 = vrot.lane.b32.xlu0 %v154, 18
  %v164 = vpop.permute.xlu0 %163
  %vm166 = vcmask 883856
  %167 = vst.msk [vmem:[#allocation4 + $0x8] sm:$0xff] %vm166, %v164
  %168 = vrot.lane.b32.xlu0 %v154, 17
  %v169 = vpop.permute.xlu0 %168
  %vm171 = vcmask 883848
  %172 = vst.msk [vmem:[#allocation4 + $0x10] sm:$0xff] %vm171, %v169
  %173 = vrot.lane.b32.xlu0 %v154, 16
  %v174 = vpop.permute.xlu0 %173
  %vm176 = vcmask 883840
  %177 = vst.msk [vmem:[#allocation4 + $0x18] sm:$0xff] %vm176, %v174
  %178 = vrot.lane.b32.xlu0 %v154, 15
  %v179 = vpop.permute.xlu0 %178
  %vm181 = vcmask 883832
  %182 = vst.msk [vmem:[#allocation4 + $0x20] sm:$0xff] %vm181, %v179
  %183 = vrot.lane.b32.xlu0 %v154, 14
  %v184 = vpop.permute.xlu0 %183
  %vm186 = vcmask 883824
  %187 = vst.msk [vmem:[#allocation4 + $0x28] sm:$0xff] %vm186, %v184
  %188 = vrot.lane.b32.xlu0 %v154, 13
  %v189 = vpop.permute.xlu0 %188
  %vm191 = vcmask 883816
  %192 = vst.msk [vmem:[#allocation4 + $0x30] sm:$0xff] %vm191, %v189
  %193 = vrot.lane.b32.xlu0 %v154, 12
  %v194 = vpop.permute.xlu0 %193
  %vm196 = vcmask 883808
  %197 = vst.msk [vmem:[#allocation4 + $0x38] sm:$0xff] %vm196, %v194
  %198 = vrot.lane.b32.xlu0 %v154, 11
  %v199 = vpop.permute.xlu0 %198
  %vm201 = vcmask 883800
  %202 = vst.msk [vmem:[#allocation4 + $0x40] sm:$0xff] %vm201, %v199
  %203 = vrot.lane.b32.xlu0 %v154, 10
  %v204 = vpop.permute.xlu0 %203
  %vm206 = vcmask 883792
  %207 = vst.msk [vmem:[#allocation4 + $0x48] sm:$0xff] %vm206, %v204
  %208 = vrot.lane.b32.xlu0 %v154, 9
  %v209 = vpop.permute.xlu0 %208
  %vm211 = vcmask 883784
  %212 = vst.msk [vmem:[#allocation4 + $0x50] sm:$0xff] %vm211, %v209
  %213 = vrot.lane.b32.xlu0 %v154, 8
  %v214 = vpop.permute.xlu0 %213
  %vm216 = vcmask 883776
  %217 = vst.msk [vmem:[#allocation4 + $0x58] sm:$0xff] %vm216, %v214
  %218 = vrot.lane.b32.xlu0 %v154, 7
  %v219 = vpop.permute.xlu0 %218
  %vm221 = vcmask 883768
  %222 = vst.msk [vmem:[#allocation4 + $0x60] sm:$0xff] %vm221, %v219
  %223 = vrot.lane.b32.xlu0 %v154, 6
  %v224 = vpop.permute.xlu0 %223
  %vm226 = vcmask 883760
  %227 = vst.msk [vmem:[#allocation4 + $0x68] sm:$0xff] %vm226, %v224
  %228 = vrot.lane.b32.xlu0 %v154, 5
  %v229 = vpop.permute.xlu0 %228
  %vm231 = vcmask 883752
  %232 = vst.msk [vmem:[#allocation4 + $0x70] sm:$0xff] %vm231, %v229
  %233 = vrot.lane.b32.xlu0 %v154, 4
  %v234 = vpop.permute.xlu0 %233
  %vm236 = vcmask 883744
  %237 = vst.msk [vmem:[#allocation4 + $0x78] sm:$0xff] %vm236, %v234
  %238 = vrot.lane.b32.xlu0 %v154, 3
  %v239 = vpop.permute.xlu0 %238
  %vm241 = vcmask 883736
  %242 = vst.msk [vmem:[#allocation4 + $0x80] sm:$0xff] %vm241, %v239
  %243 = vrot.lane.b32.xlu0 %v154, 2
  %v244 = vpop.permute.xlu0 %243
  %vm246 = vcmask 883728
  %247 = vst.msk [vmem:[#allocation4 + $0x88] sm:$0xff] %vm246, %v244
  %248 = vrot.lane.b32.xlu0 %v154, 1
  %v249 = vpop.permute.xlu0 %248
  %vm251 = vcmask 883720
  %252 = vst.msk [vmem:[#allocation4 + $0x90] sm:$0xff] %vm251, %v249
  %253 = vst.msk [vmem:[#allocation4 + $0x98] sm:$0xff] %vm50, %v154
  %254 = vrot.lane.b32.xlu0 %v154, 127
  %v255 = vpop.permute.xlu0 %254
  %vm257 = vcmask 875520
  %258 = vst.msk [vmem:[#allocation4 + $0xa0] sm:$0xff] %vm257, %v255
  %259 = vrot.lane.b32.xlu0 %v154, 126
  %v260 = vpop.permute.xlu0 %259
  %vm262 = vcmask 867328
  %263 = vst.msk [vmem:[#allocation4 + $0xa8] sm:$0xff] %vm262, %v260
  %264 = vrot.lane.b32.xlu0 %v154, 125
  %v265 = vpop.permute.xlu0 %264
  %vm267 = vcmask 859136
  %268 = vst.msk [vmem:[#allocation4 + $0xb0] sm:$0xff] %vm267, %v265
  %269 = vrot.lane.b32.xlu0 %v154, 124
  %v270 = vpop.permute.xlu0 %269
  %vm272 = vcmask 850944
  %273 = vst.msk [vmem:[#allocation4 + $0xb8] sm:$0xff] %vm272, %v270
  %274 = vrot.lane.b32.xlu0 %v154, 123
  %v275 = vpop.permute.xlu0 %274
  %vm277 = vcmask 842752
  %278 = vst.msk [vmem:[#allocation4 + $0xc0] sm:$0xff] %vm277, %v275
  %279 = vrot.lane.b32.xlu0 %v154, 122
  %v280 = vpop.permute.xlu0 %279
  %vm282 = vcmask 834560
  %283 = vst.msk [vmem:[#allocation4 + $0xc8] sm:$0xff] %vm282, %v280
  %284 = vrot.lane.b32.xlu0 %v154, 121
  %v285 = vpop.permute.xlu0 %284
  %vm287 = vcmask 826368
  %288 = vst.msk [vmem:[#allocation4 + $0xd0] sm:$0xff] %vm287, %v285
  %289 = vrot.lane.b32.xlu0 %v154, 120
  %v290 = vpop.permute.xlu0 %289
  %vm292 = vcmask 818176
  %293 = vst.msk [vmem:[#allocation4 + $0xd8] sm:$0xff] %vm292, %v290
  %294 = vrot.lane.b32.xlu0 %v154, 119
  %v295 = vpop.permute.xlu0 %294
  %vm297 = vcmask 809984
  %298 = vst.msk [vmem:[#allocation4 + $0xe0] sm:$0xff] %vm297, %v295
  %299 = vrot.lane.b32.xlu0 %v154, 118
  %v300 = vpop.permute.xlu0 %299
  %vm302 = vcmask 801792
  %303 = vst.msk [vmem:[#allocation4 + $0xe8] sm:$0xff] %vm302, %v300
  %304 = vrot.lane.b32.xlu0 %v154, 117
  %v305 = vpop.permute.xlu0 %304
  %vm307 = vcmask 793600
  %308 = vst.msk [vmem:[#allocation4 + $0xf0] sm:$0xff] %vm307, %v305
  %309 = vrot.lane.b32.xlu0 %v154, 116
  %v310 = vpop.permute.xlu0 %309
  %vm312 = vcmask 785408
  %313 = vst.msk [vmem:[#allocation4 + $0xf8] sm:$0xff] %vm312, %v310
  %314 = vrot.lane.b32.xlu0 %v154, 115
  %v315 = vpop.permute.xlu0 %314
  %vm317 = vcmask 777216
  %318 = vst.msk [vmem:[#allocation4 + $0x100] sm:$0xff] %vm317, %v315
  %319 = vrot.lane.b32.xlu0 %v154, 114
  %v320 = vpop.permute.xlu0 %319
  %vm322 = vcmask 769024
  %323 = vst.msk [vmem:[#allocation4 + $0x108] sm:$0xff] %vm322, %v320
  %324 = vrot.lane.b32.xlu0 %v154, 113
  %v325 = vpop.permute.xlu0 %324
  %vm327 = vcmask 760832
  %328 = vst.msk [vmem:[#allocation4 + $0x110] sm:$0xff] %vm327, %v325
  %329 = vrot.lane.b32.xlu0 %v154, 112
  %v330 = vpop.permute.xlu0 %329
  %vm332 = vcmask 752640
  %333 = vst.msk [vmem:[#allocation4 + $0x118] sm:$0xff] %vm332, %v330
  %334 = vrot.lane.b32.xlu0 %v154, 111
  %v335 = vpop.permute.xlu0 %334
  %vm337 = vcmask 744448
  %338 = vst.msk [vmem:[#allocation4 + $0x120] sm:$0xff] %vm337, %v335
  %339 = vrot.lane.b32.xlu0 %v154, 110
  %v340 = vpop.permute.xlu0 %339
  %vm342 = vcmask 736256
  %343 = vst.msk [vmem:[#allocation4 + $0x128] sm:$0xff] %vm342, %v340
  %344 = vrot.lane.b32.xlu0 %v154, 109
  %v345 = vpop.permute.xlu0 %344
  %vm347 = vcmask 728064
  %348 = vst.msk [vmem:[#allocation4 + $0x130] sm:$0xff] %vm347, %v345
  %v349 = vld [vmem:[%s2] sm:$0xff]
  %v350 = vld [vmem:[%s2 + $0x8] sm:$0xff]
  %v351 = vld [vmem:[%s2 + $0x10] sm:$0xff]
  %v352 = vld [vmem:[%s2 + $0x18] sm:$0xff]
  %v353 = vld [vmem:[%s2 + $0x20] sm:$0xff]
  %v354 = vld [vmem:[%s2 + $0x28] sm:$0xff]
  %v355 = vld [vmem:[%s2 + $0x30] sm:$0xff]
  %v356 = vld [vmem:[%s2 + $0x38] sm:$0xff]
  %v357 = vld [vmem:[%s2 + $0x40] sm:$0xff]
  %v358 = vld [vmem:[#allocation4] sm:$0xff]
  %v359 = vld [vmem:[#allocation4 + $0x8] sm:$0xff]
  %v360 = vld [vmem:[#allocation4 + $0x10] sm:$0xff]
  %v361 = vld [vmem:[#allocation4 + $0x18] sm:$0xff]
  %v362 = vld [vmem:[#allocation4 + $0x20] sm:$0xff]
  %v363 = vld [vmem:[#allocation4 + $0x28] sm:$0xff]
  %v364 = vld [vmem:[#allocation4 + $0x30] sm:$0xff]
  %v365 = vld [vmem:[#allocation4 + $0x38] sm:$0xff]
  %v366 = vld [vmem:[#allocation4 + $0x40] sm:$0xff]
  %v367 = vld [vmem:[#allocation4 + $0x48] sm:$0xff]
  %v368 = vld [vmem:[#allocation4 + $0x50] sm:$0xff]
  %v369 = vld [vmem:[#allocation4 + $0x58] sm:$0xff]
  %v370 = vld [vmem:[#allocation4 + $0x60] sm:$0xff]
  %v371 = vld [vmem:[#allocation4 + $0x68] sm:$0xff]
  %v372 = vld [vmem:[#allocation4 + $0x70] sm:$0xff]
  %v373 = vld [vmem:[#allocation4 + $0x78] sm:$0xff]
  %v374 = vld [vmem:[#allocation4 + $0x80] sm:$0xff]
  %v375 = vld [vmem:[#allocation4 + $0x88] sm:$0xff]
  %v376 = vld [vmem:[#allocation4 + $0x90] sm:$0xff]
  %v377 = vld [vmem:[#allocation4 + $0x98] sm:$0xff]
  %v378 = vld [vmem:[#allocation4 + $0xa0] sm:$0xff]
  %v379 = vld [vmem:[#allocation4 + $0xa8] sm:$0xff]
  %v380 = vld [vmem:[#allocation4 + $0xb0] sm:$0xff]
  %v381 = vld [vmem:[#allocation4 + $0xb8] sm:$0xff]
  %v382 = vld [vmem:[#allocation4 + $0xc0] sm:$0xff]
  %v383 = vld [vmem:[#allocation4 + $0xc8] sm:$0xff]
  %v384 = vld [vmem:[#allocation4 + $0xd0] sm:$0xff]
  %v385 = vld [vmem:[#allocation4 + $0xd8] sm:$0xff]
  %v386 = vld [vmem:[#allocation4 + $0xe0] sm:$0xff]
  %v387 = vld [vmem:[#allocation4 + $0xe8] sm:$0xff]
  %v388 = vld [vmem:[#allocation4 + $0xf0] sm:$0xff]
  %v389 = vld [vmem:[#allocation4 + $0xf8] sm:$0xff]
  %v390 = vld [vmem:[#allocation4 + $0x100] sm:$0xff]
  %v391 = vld [vmem:[#allocation4 + $0x108] sm:$0xff]
  %v392 = vld [vmem:[#allocation4 + $0x110] sm:$0xff]
  %v393 = vld [vmem:[#allocation4 + $0x118] sm:$0xff]
  %v394 = vld [vmem:[#allocation4 + $0x120] sm:$0xff]
  %v395 = vld [vmem:[#allocation4 + $0x128] sm:$0xff]
  %v396 = vld [vmem:[#allocation4 + $0x130] sm:$0xff]
  %vm397 = vcmask 457728
  %v399 = vsel %vm397, %v351, 0
  %v402 = vsel %vm397, %v354, 0
  %v405 = vsel %vm397, %v357, 0
  %407 = vmatprep.subr.mxu0 0.0
  %408 = vmatpush1.msra.mxu0 %v358
  %409 = vmatprep.subr.mxu0 0.0
  %410 = vmatpush1.msra.mxu0 %v359
  %411 = vmatprep.subr.mxu0 0.0
  %412 = vmatpush1.msra.mxu0 %v360
  %413 = vmatprep.subr.mxu0 0.0
  %414 = vmatpush1.msra.mxu0 %v361
  %415 = vmatprep.subr.mxu0 0.0
  %416 = vmatpush1.msra.mxu0 %v362
  %417 = vmatprep.subr.mxu0 0.0
  %418 = vmatpush1.msra.mxu0 %v363
  %419 = vmatprep.subr.mxu0 0.0
  %420 = vmatpush1.msra.mxu0 %v364
  %421 = vmatprep.subr.mxu0 0.0
  %422 = vmatpush1.msra.mxu0 %v365
  %423 = vmatprep.subr.mxu0 0.0
  %424 = vmatpush1.msra.mxu0 %v366
  %425 = vmatprep.subr.mxu0 0.0
  %426 = vmatpush1.msra.mxu0 %v367
  %427 = vmatprep.subr.mxu0 0.0
  %428 = vmatpush1.msra.mxu0 %v368
  %429 = vmatprep.subr.mxu0 0.0
  %430 = vmatpush1.msra.mxu0 %v369
  %431 = vmatprep.subr.mxu0 0.0
  %432 = vmatpush1.msra.mxu0 %v370
  %433 = vmatprep.subr.mxu0 0.0
  %434 = vmatpush1.msra.mxu0 %v371
  %435 = vmatprep.subr.mxu0 0.0
  %436 = vmatpush1.msra.mxu0 %v372
  %437 = vmatprep.subr.mxu0 0.0
  %438 = vmatpush1.msra.mxu0 %v373
  %439 = vmatprep.subr.mxu0 0.0
  %440 = vmatpush1.msra.mxu0 %v374
  %441 = vmatprep.subr.mxu0 0.0
  %442 = vmatpush1.msra.mxu0 %v375
  %443 = vmatprep.subr.mxu0 0.0
  %444 = vmatpush1.msra.mxu0 %v376
  %445 = vmatprep.subr.mxu0 0.0
  %446 = vmatpush1.msra.mxu0 %v377
  %447 = vmatprep.subr.mxu0 0.0
  %448 = vmatpush1.msra.mxu0 %v378
  %449 = vmatprep.subr.mxu0 0.0
  %450 = vmatpush1.msra.mxu0 %v379
  %451 = vmatprep.subr.mxu0 0.0
  %452 = vmatpush1.msra.mxu0 %v380
  %453 = vmatprep.subr.mxu0 0.0
  %454 = vmatpush1.msra.mxu0 %v381
  %455 = vmatprep.subr.mxu0 0.0
  %456 = vmatpush1.msra.mxu0 %v382
  %457 = vmatprep.subr.mxu0 0.0
  %458 = vmatpush1.msra.mxu0 %v383
  %459 = vmatprep.subr.mxu0 0.0
  %460 = vmatpush1.msra.mxu0 %v384
  %461 = vmatprep.subr.mxu0 0.0
  %462 = vmatpush1.msra.mxu0 %v385
  %463 = vmatprep.subr.mxu0 0.0
  %464 = vmatpush1.msra.mxu0 %v386
  %465 = vmatprep.subr.mxu0 0.0
  %466 = vmatpush1.msra.mxu0 %v387
  %467 = vmatprep.subr.mxu0 0.0
  %468 = vmatpush1.msra.mxu0 %v388
  %469 = vmatprep.subr.mxu0 0.0
  %470 = vmatpush1.msra.mxu0 %v389
  %471 = vmatprep.mubr.f32.mxu0 %v350
  %472 = vmatmul.mubr.f32.gmra.mrb[0].mxu0 %v349
  %v473 = vpop.f32.mrb[0].mxu0
  %v474 = vadd.f32 0.0, %v473
  %v475 = vpop.f32.mrb[0].mxu0
  %476 = vmatprep.mubr.f32.mxu0 %v353
  %477 = vmatmul.mubr.f32.gmra.mrb[0].mxu0 %v352
  %v478 = vpop.f32.mrb[0].mxu0
  %v479 = vadd.f32 0.0, %v478
  %v480 = vpop.f32.mrb[0].mxu0
  %481 = vmatprep.mubr.f32.mxu0 %v356
  %482 = vmatmul.mubr.f32.gmra.mrb[0].mxu0 %v355
  %v483 = vpop.f32.mrb[0].mxu0
  %v484 = vadd.f32 0.0, %v483
  %v485 = vpop.f32.mrb[0].mxu0
  %486 = vdwg.mxu0
  %487 = vmatprep.subr.mxu0 0.0
  %488 = vmatpush1.msra.mxu0 %v390
  %489 = vmatprep.subr.mxu0 0.0
  %490 = vmatpush1.msra.mxu0 %v391
  %491 = vmatprep.subr.mxu0 0.0
  %492 = vmatpush1.msra.mxu0 %v392
  %493 = vmatprep.subr.mxu0 0.0
  %494 = vmatpush1.msra.mxu0 %v393
  %495 = vmatprep.subr.mxu0 0.0
  %496 = vmatpush1.msra.mxu0 %v394
  %497 = vmatprep.subr.mxu0 0.0
  %498 = vmatpush1.msra.mxu0 %v395
  %499 = vmatprep.subr.mxu0 0.0
  %500 = vmatpush1.msra.mxu0 %v396
  %501 = vmatprep.subr.mxu0 0.0
  %502 = vmatpush1.msra.mxu0 0.0
  %503 = vmatprep.subr.mxu0 0.0
  %504 = vmatpush1.msra.mxu0 0.0
  %505 = vmatprep.subr.mxu0 0.0
  %506 = vmatpush1.msra.mxu0 0.0
  %507 = vmatprep.subr.mxu0 0.0
  %508 = vmatpush1.msra.mxu0 0.0
  %509 = vmatprep.subr.mxu0 0.0
  %510 = vmatpush1.msra.mxu0 0.0
  %511 = vmatprep.subr.mxu0 0.0
  %512 = vmatpush1.msra.mxu0 0.0
  %513 = vmatprep.subr.mxu0 0.0
  %514 = vmatpush1.msra.mxu0 0.0
  %515 = vmatprep.subr.mxu0 0.0
  %516 = vmatpush1.msra.mxu0 0.0
  %517 = vmatprep.subr.mxu0 0.0
  %518 = vmatpush1.msra.mxu0 0.0
  %519 = vmatprep.subr.mxu0 0.0
  %520 = vmatpush1.msra.mxu0 0.0
  %521 = vmatprep.subr.mxu0 0.0
  %522 = vmatpush1.msra.mxu0 0.0
  %523 = vmatprep.subr.mxu0 0.0
  %524 = vmatpush1.msra.mxu0 0.0
  %525 = vmatprep.subr.mxu0 0.0
  %526 = vmatpush1.msra.mxu0 0.0
  %527 = vmatprep.subr.mxu0 0.0
  %528 = vmatpush1.msra.mxu0 0.0
  %529 = vmatprep.subr.mxu0 0.0
  %530 = vmatpush1.msra.mxu0 0.0
  %531 = vmatprep.subr.mxu0 0.0
  %532 = vmatpush1.msra.mxu0 0.0
  %533 = vmatprep.subr.mxu0 0.0
  %534 = vmatpush1.msra.mxu0 0.0
  %535 = vmatprep.subr.mxu0 0.0
  %536 = vmatpush1.msra.mxu0 0.0
  %537 = vmatprep.subr.mxu0 0.0
  %538 = vmatpush1.msra.mxu0 0.0
  %539 = vmatprep.subr.mxu0 0.0
  %540 = vmatpush1.msra.mxu0 0.0
  %541 = vmatprep.subr.mxu0 0.0
  %542 = vmatpush1.msra.mxu0 0.0
  %543 = vmatprep.subr.mxu0 0.0
  %544 = vmatpush1.msra.mxu0 0.0
  %545 = vmatprep.subr.mxu0 0.0
  %546 = vmatpush1.msra.mxu0 0.0
  %547 = vmatprep.subr.mxu0 0.0
  %548 = vmatpush1.msra.mxu0 0.0
  %549 = vmatprep.subr.mxu0 0.0
  %550 = vmatpush1.msra.mxu0 0.0
  %551 = vmatprep.mubr.f32.mxu0 0.0
  %552 = vmatmul.mubr.f32.gmra.mrb[0].mxu0 %v399
  %v553 = vpop.f32.mrb[0].mxu0
  %v554 = vadd.f32 %v474, %v553
  %v555 = vpop.f32.mrb[0].mxu0
  %556 = vmatprep.mubr.f32.mxu0 0.0
  %557 = vmatmul.mubr.f32.gmra.mrb[0].mxu0 %v402
  %v558 = vpop.f32.mrb[0].mxu0
  %v559 = vadd.f32 %v479, %v558
  %v560 = vpop.f32.mrb[0].mxu0
  %561 = vmatprep.mubr.f32.mxu0 0.0
  %562 = vmatmul.mubr.f32.gmra.mrb[0].mxu0 %v405
  %v563 = vpop.f32.mrb[0].mxu0
  %v564 = vadd.f32 %v484, %v563
  %v565 = vpop.f32.mrb[0].mxu0
  %566 = vdwg.mxu0
  %v567 = vsel %vm49, 1, 0
  %vm568 = vcmp.eq.s32.totalorder %v567, 1
  %v569 = vsel %vm568, %v78, -1e+30
  %v570 = vsel %vm568, %v79, -1e+30
  %v571 = vsel %vm568, %v80, -1e+30
  %v572 = vsel %vm568, %v81, -1e+30
  %577 = vrot.lane.b32.xlu0 %v569, 1
  %v578 = vpop.permute.xlu0 %577
  %579 = vrot.lane.b32.xlu0 %v570, 1
  %v580 = vpop.permute.xlu0 %579
  %581 = vrot.lane.b32.xlu0 %v571, 1
  %v582 = vpop.permute.xlu0 %581
  %583 = vrot.lane.b32.xlu0 %v572, 1
  %v584 = vpop.permute.xlu0 %583
  %589 = vst.msk [vmem:[#allocation4] sm:$0xff] %vm251, %v578
  %590 = vst.msk [vmem:[#allocation4 + $0x8] sm:$0xff] %vm251, %v580
  %591 = vst.msk [vmem:[#allocation4 + $0x10] sm:$0xff] %vm251, %v582
  %592 = vst.msk [vmem:[#allocation4 + $0x18] sm:$0xff] %vm251, %v584
  %593 = vrot.lane.b32.xlu0 %v569, 127
  %v594 = vpop.permute.xlu0 %593
  %595 = vrot.lane.b32.xlu0 %v570, 127
  %v596 = vpop.permute.xlu0 %595
  %597 = vrot.lane.b32.xlu0 %v571, 127
  %v598 = vpop.permute.xlu0 %597
  %599 = vrot.lane.b32.xlu0 %v572, 127
  %v600 = vpop.permute.xlu0 %599
  %605 = vst.msk [vmem:[#allocation4 + $0x20] sm:$0xff] %vm257, %v594
  %606 = vst.msk [vmem:[#allocation4 + $0x28] sm:$0xff] %vm257, %v596
  %607 = vst.msk [vmem:[#allocation4 + $0x30] sm:$0xff] %vm257, %v598
  %608 = vst.msk [vmem:[#allocation4 + $0x38] sm:$0xff] %vm257, %v600
  %v609 = vld [vmem:[#allocation4] sm:$0xff]
  %v610 = vld [vmem:[#allocation4 + $0x8] sm:$0xff]
  %v611 = vld [vmem:[#allocation4 + $0x10] sm:$0xff]
  %v612 = vld [vmem:[#allocation4 + $0x18] sm:$0xff]
  %v613 = vmax.f32 %v569, %v609
  %v614 = vmax.f32 %v570, %v610
  %v615 = vmax.f32 %v571, %v611
  %v616 = vmax.f32 %v572, %v612
  %v617 = vld [vmem:[#allocation4 + $0x20] sm:$0xff]
  %v618 = vld [vmem:[#allocation4 + $0x28] sm:$0xff]
  %v619 = vld [vmem:[#allocation4 + $0x30] sm:$0xff]
  %v620 = vld [vmem:[#allocation4 + $0x38] sm:$0xff]
  %v621 = vmax.f32 %v613, %v617
  %v622 = vmax.f32 %v614, %v618
  %v623 = vmax.f32 %v615, %v619
  %v624 = vmax.f32 %v616, %v620
  %v625 = vsel %vm568, %v621, 0.0
  %v626 = vsel %vm568, %v622, 0.0
  %v627 = vsel %vm568, %v623, 0.0
  %v628 = vsel %vm568, %v624, 0.0
  %v629 = vld [vmem:[%s3] sm:$0xff]
  %v631 = vsel %vm83, %v629, 0
  %633 = vmatprep.subr.mxu0 0.0
  %634 = vmatpush1.msra.mxu0 %v625
  %635 = vmatprep.subr.mxu0 0.0
  %636 = vmatpush1.msra.mxu0 %v626
  %637 = vmatprep.subr.mxu0 0.0
  %638 = vmatpush1.msra.mxu0 %v627
  %639 = vmatprep.subr.mxu0 0.0
  %640 = vmatpush1.msra.mxu0 %v628
  %641 = vmatprep.subr.mxu0 0.0
  %642 = vmatpush1.msra.mxu0 0.0
  %643 = vmatprep.subr.mxu0 0.0
  %644 = vmatpush1.msra.mxu0 0.0
  %645 = vmatprep.subr.mxu0 0.0
  %646 = vmatpush1.msra.mxu0 0.0
  %647 = vmatprep.subr.mxu0 0.0
  %648 = vmatpush1.msra.mxu0 0.0
  %649 = vmatprep.subr.mxu0 0.0
  %650 = vmatpush1.msra.mxu0 0.0
  %651 = vmatprep.subr.mxu0 0.0
  %652 = vmatpush1.msra.mxu0 0.0
  %653 = vmatprep.subr.mxu0 0.0
  %654 = vmatpush1.msra.mxu0 0.0
  %655 = vmatprep.subr.mxu0 0.0
  %656 = vmatpush1.msra.mxu0 0.0
  %657 = vmatprep.subr.mxu0 0.0
  %658 = vmatpush1.msra.mxu0 0.0
  %659 = vmatprep.subr.mxu0 0.0
  %660 = vmatpush1.msra.mxu0 0.0
  %661 = vmatprep.subr.mxu0 0.0
  %662 = vmatpush1.msra.mxu0 0.0
  %663 = vmatprep.subr.mxu0 0.0
  %664 = vmatpush1.msra.mxu0 0.0
  %665 = vmatprep.subr.mxu0 0.0
  %666 = vmatpush1.msra.mxu0 0.0
  %667 = vmatprep.subr.mxu0 0.0
  %668 = vmatpush1.msra.mxu0 0.0
  %669 = vmatprep.subr.mxu0 0.0
  %670 = vmatpush1.msra.mxu0 0.0
  %671 = vmatprep.subr.mxu0 0.0
  %672 = vmatpush1.msra.mxu0 0.0
  %673 = vmatprep.subr.mxu0 0.0
  %674 = vmatpush1.msra.mxu0 0.0
  %675 = vmatprep.subr.mxu0 0.0
  %676 = vmatpush1.msra.mxu0 0.0
  %677 = vmatprep.subr.mxu0 0.0
  %678 = vmatpush1.msra.mxu0 0.0
  %679 = vmatprep.subr.mxu0 0.0
  %680 = vmatpush1.msra.mxu0 0.0
  %681 = vmatprep.subr.mxu0 0.0
  %682 = vmatpush1.msra.mxu0 0.0
  %683 = vmatprep.subr.mxu0 0.0
  %684 = vmatpush1.msra.mxu0 0.0
  %685 = vmatprep.subr.mxu0 0.0
  %686 = vmatpush1.msra.mxu0 0.0
  %687 = vmatprep.subr.mxu0 0.0
  %688 = vmatpush1.msra.mxu0 0.0
  %689 = vmatprep.subr.mxu0 0.0
  %690 = vmatpush1.msra.mxu0 0.0
  %691 = vmatprep.subr.mxu0 0.0
  %692 = vmatpush1.msra.mxu0 0.0
  %693 = vmatprep.subr.mxu0 0.0
  %694 = vmatpush1.msra.mxu0 0.0
  %695 = vmatprep.subr.mxu0 0.0
  %696 = vmatpush1.msra.mxu0 0.0
  %697 = vmatprep.mubr.f32.mxu0 0.0
  %698 = vmatmul.mubr.f32.gmra.mrb[0].mxu0 %v631
  %v699 = vpop.f32.mrb[0].mxu0
  %v700 = vadd.f32 0.0, %v699
  %v701 = vpop.f32.mrb[0].mxu0
  %702 = vdwg.mxu0
  %v703 = vld [vmem:[%s4] sm:$0xff]
  %v704 = vld [vmem:[%s4 + $0x8] sm:$0xff]
  %v705 = vld [vmem:[%s4 + $0x10] sm:$0xff]
  %v706 = vld [vmem:[%s4 + $0x18] sm:$0xff]
  %708 = vset.pattern.permute.xlu0 0
  %709 = vperm.xlu0 %708, %v703
  %v710 = vpop.permute.xlu0 %709
  %713 = vset.pattern.permute.xlu0 0
  %714 = vperm.xlu0 %713, %v704
  %v715 = vpop.permute.xlu0 %714
  %718 = vset.pattern.permute.xlu0 0
  %719 = vperm.xlu0 %718, %v705
  %v720 = vpop.permute.xlu0 %719
  %723 = vset.pattern.permute.xlu0 0
  %724 = vperm.xlu0 %723, %v706
  %v725 = vpop.permute.xlu0 %724
  %v727 = vadd.f32 %v554, %v710
  %v728 = vadd.f32 %v559, %v715
  %v729 = vadd.f32 %v564, %v720
  %v730 = vadd.f32 %v700, %v725
  %v731 = vmax.f32 %v727, 0.0
  %v732 = vmax.f32 %v728, 0.0
  %v733 = vmax.f32 %v729, 0.0
  %v734 = vmax.f32 %v730, 0.0
  %v735 = vsel %vm568, %v731, 0.0
  %v736 = vsel %vm568, %v732, 0.0
  %v737 = vsel %vm568, %v733, 0.0
  %v738 = vsel %vm568, %v734, 0.0
  %739 = vst.msk [vmem:[#allocation2] sm:$0xff] %vm50, %v735
  %740 = vst.msk [vmem:[#allocation2 + $0x8] sm:$0xff] %vm50, %v736
  %741 = vst.msk [vmem:[#allocation2 + $0x10] sm:$0xff] %vm50, %v737
  %742 = vst.msk [vmem:[#allocation2 + $0x18] sm:$0xff] %vm50, %v738
  %v743 = vld [vmem:[#allocation2] sm:$0xff]
  %v744 = vld [vmem:[#allocation2 + $0x8] sm:$0xff]
  %v745 = vld [vmem:[#allocation2 + $0x10] sm:$0xff]
  %v746 = vld [vmem:[#allocation2 + $0x18] sm:$0xff]
  %s747 = scalar_lea.vmem %s1, 8
  %v748 = vld [vmem:[%s747] sm:$0xff]
  %v750 = vsel %vm83, %v748, 0
  %752 = vmatprep.subr.mxu0 0.0
  %753 = vmatpush1.msra.mxu0 %v743
  %754 = vmatprep.subr.mxu0 0.0
  %755 = vmatpush1.msra.mxu0 %v744
  %756 = vmatprep.subr.mxu0 0.0
  %757 = vmatpush1.msra.mxu0 %v745
  %758 = vmatprep.subr.mxu0 0.0
  %759 = vmatpush1.msra.mxu0 %v746
  %760 = vmatprep.subr.mxu0 0.0
  %761 = vmatpush1.msra.mxu0 0.0
  %762 = vmatprep.subr.mxu0 0.0
  %763 = vmatpush1.msra.mxu0 0.0
  %764 = vmatprep.subr.mxu0 0.0
  %765 = vmatpush1.msra.mxu0 0.0
  %766 = vmatprep.subr.mxu0 0.0
  %767 = vmatpush1.msra.mxu0 0.0
  %768 = vmatprep.subr.mxu0 0.0
  %769 = vmatpush1.msra.mxu0 0.0
  %770 = vmatprep.subr.mxu0 0.0
  %771 = vmatpush1.msra.mxu0 0.0
  %772 = vmatprep.subr.mxu0 0.0
  %773 = vmatpush1.msra.mxu0 0.0
  %774 = vmatprep.subr.mxu0 0.0
  %775 = vmatpush1.msra.mxu0 0.0
  %776 = vmatprep.subr.mxu0 0.0
  %777 = vmatpush1.msra.mxu0 0.0
  %778 = vmatprep.subr.mxu0 0.0
  %779 = vmatpush1.msra.mxu0 0.0
  %780 = vmatprep.subr.mxu0 0.0
  %781 = vmatpush1.msra.mxu0 0.0
  %782 = vmatprep.subr.mxu0 0.0
  %783 = vmatpush1.msra.mxu0 0.0
  %784 = vmatprep.subr.mxu0 0.0
  %785 = vmatpush1.msra.mxu0 0.0
  %786 = vmatprep.subr.mxu0 0.0
  %787 = vmatpush1.msra.mxu0 0.0
  %788 = vmatprep.subr.mxu0 0.0
  %789 = vmatpush1.msra.mxu0 0.0
  %790 = vmatprep.subr.mxu0 0.0
  %791 = vmatpush1.msra.mxu0 0.0
  %792 = vmatprep.subr.mxu0 0.0
  %793 = vmatpush1.msra.mxu0 0.0
  %794 = vmatprep.subr.mxu0 0.0
  %795 = vmatpush1.msra.mxu0 0.0
  %796 = vmatprep.subr.mxu0 0.0
  %797 = vmatpush1.msra.mxu0 0.0
  %798 = vmatprep.subr.mxu0 0.0
  %799 = vmatpush1.msra.mxu0 0.0
  %800 = vmatprep.subr.mxu0 0.0
  %801 = vmatpush1.msra.mxu0 0.0
  %802 = vmatprep.subr.mxu0 0.0
  %803 = vmatpush1.msra.mxu0 0.0
  %804 = vmatprep.subr.mxu0 0.0
  %805 = vmatpush1.msra.mxu0 0.0
  %806 = vmatprep.subr.mxu0 0.0
  %807 = vmatpush1.msra.mxu0 0.0
  %808 = vmatprep.subr.mxu0 0.0
  %809 = vmatpush1.msra.mxu0 0.0
  %810 = vmatprep.subr.mxu0 0.0
  %811 = vmatpush1.msra.mxu0 0.0
  %812 = vmatprep.subr.mxu0 0.0
  %813 = vmatpush1.msra.mxu0 0.0
  %814 = vmatprep.subr.mxu0 0.0
  %815 = vmatpush1.msra.mxu0 0.0
  %816 = vmatprep.mubr.f32.mxu0 0.0
  %817 = vmatmul.mubr.f32.gmra.mrb[0].mxu0 %v750
  %v818 = vpop.f32.mrb[0].mxu0
  %v819 = vadd.f32 0.0, %v818
  %v820 = vpop.f32.mrb[0].mxu0
  %821 = vdwg.mxu0
  %823 = vrot.lane.b32.xlu0 %v819, 19
  %v824 = vpop.permute.xlu0 %823
  %826 = vst.msk [vmem:[#allocation4] sm:$0xff] %vm161, %v824
  %827 = vrot.lane.b32.xlu0 %v819, 18
  %v828 = vpop.permute.xlu0 %827
  %830 = vst.msk [vmem:[#allocation4 + $0x8] sm:$0xff] %vm166, %v828
  %831 = vrot.lane.b32.xlu0 %v819, 17
  %v832 = vpop.permute.xlu0 %831
  %834 = vst.msk [vmem:[#allocation4 + $0x10] sm:$0xff] %vm171, %v832
  %835 = vrot.lane.b32.xlu0 %v819, 16
  %v836 = vpop.permute.xlu0 %835
  %838 = vst.msk [vmem:[#allocation4 + $0x18] sm:$0xff] %vm176, %v836
  %839 = vrot.lane.b32.xlu0 %v819, 15
  %v840 = vpop.permute.xlu0 %839
  %842 = vst.msk [vmem:[#allocation4 + $0x20] sm:$0xff] %vm181, %v840
  %843 = vrot.lane.b32.xlu0 %v819, 14
  %v844 = vpop.permute.xlu0 %843
  %846 = vst.msk [vmem:[#allocation4 + $0x28] sm:$0xff] %vm186, %v844
  %847 = vrot.lane.b32.xlu0 %v819, 13
  %v848 = vpop.permute.xlu0 %847
  %850 = vst.msk [vmem:[#allocation4 + $0x30] sm:$0xff] %vm191, %v848
  %851 = vrot.lane.b32.xlu0 %v819, 12
  %v852 = vpop.permute.xlu0 %851
  %854 = vst.msk [vmem:[#allocation4 + $0x38] sm:$0xff] %vm196, %v852
  %855 = vrot.lane.b32.xlu0 %v819, 11
  %v856 = vpop.permute.xlu0 %855
  %858 = vst.msk [vmem:[#allocation4 + $0x40] sm:$0xff] %vm201, %v856
  %859 = vrot.lane.b32.xlu0 %v819, 10
  %v860 = vpop.permute.xlu0 %859
  %862 = vst.msk [vmem:[#allocation4 + $0x48] sm:$0xff] %vm206, %v860
  %863 = vrot.lane.b32.xlu0 %v819, 9
  %v864 = vpop.permute.xlu0 %863
  %866 = vst.msk [vmem:[#allocation4 + $0x50] sm:$0xff] %vm211, %v864
  %867 = vrot.lane.b32.xlu0 %v819, 8
  %v868 = vpop.permute.xlu0 %867
  %870 = vst.msk [vmem:[#allocation4 + $0x58] sm:$0xff] %vm216, %v868
  %871 = vrot.lane.b32.xlu0 %v819, 7
  %v872 = vpop.permute.xlu0 %871
  %874 = vst.msk [vmem:[#allocation4 + $0x60] sm:$0xff] %vm221, %v872
  %875 = vrot.lane.b32.xlu0 %v819, 6
  %v876 = vpop.permute.xlu0 %875
  %878 = vst.msk [vmem:[#allocation4 + $0x68] sm:$0xff] %vm226, %v876
  %879 = vrot.lane.b32.xlu0 %v819, 5
  %v880 = vpop.permute.xlu0 %879
  %882 = vst.msk [vmem:[#allocation4 + $0x70] sm:$0xff] %vm231, %v880
  %883 = vrot.lane.b32.xlu0 %v819, 4
  %v884 = vpop.permute.xlu0 %883
  %886 = vst.msk [vmem:[#allocation4 + $0x78] sm:$0xff] %vm236, %v884
  %887 = vrot.lane.b32.xlu0 %v819, 3
  %v888 = vpop.permute.xlu0 %887
  %890 = vst.msk [vmem:[#allocation4 + $0x80] sm:$0xff] %vm241, %v888
  %891 = vrot.lane.b32.xlu0 %v819, 2
  %v892 = vpop.permute.xlu0 %891
  %894 = vst.msk [vmem:[#allocation4 + $0x88] sm:$0xff] %vm246, %v892
  %895 = vrot.lane.b32.xlu0 %v819, 1
  %v896 = vpop.permute.xlu0 %895
  %898 = vst.msk [vmem:[#allocation4 + $0x90] sm:$0xff] %vm251, %v896
  %899 = vst.msk [vmem:[#allocation4 + $0x98] sm:$0xff] %vm50, %v819
  %900 = vrot.lane.b32.xlu0 %v819, 127
  %v901 = vpop.permute.xlu0 %900
  %903 = vst.msk [vmem:[#allocation4 + $0xa0] sm:$0xff] %vm257, %v901
  %904 = vrot.lane.b32.xlu0 %v819, 126
  %v905 = vpop.permute.xlu0 %904
  %907 = vst.msk [vmem:[#allocation4 + $0xa8] sm:$0xff] %vm262, %v905
  %908 = vrot.lane.b32.xlu0 %v819, 125
  %v909 = vpop.permute.xlu0 %908
  %911 = vst.msk [vmem:[#allocation4 + $0xb0] sm:$0xff] %vm267, %v909
  %912 = vrot.lane.b32.xlu0 %v819, 124
  %v913 = vpop.permute.xlu0 %912
  %915 = vst.msk [vmem:[#allocation4 + $0xb8] sm:$0xff] %vm272, %v913
  %916 = vrot.lane.b32.xlu0 %v819, 123
  %v917 = vpop.permute.xlu0 %916
  %919 = vst.msk [vmem:[#allocation4 + $0xc0] sm:$0xff] %vm277, %v917
  %920 = vrot.lane.b32.xlu0 %v819, 122
  %v921 = vpop.permute.xlu0 %920
  %923 = vst.msk [vmem:[#allocation4 + $0xc8] sm:$0xff] %vm282, %v921
  %924 = vrot.lane.b32.xlu0 %v819, 121
  %v925 = vpop.permute.xlu0 %924
  %927 = vst.msk [vmem:[#allocation4 + $0xd0] sm:$0xff] %vm287, %v925
  %928 = vrot.lane.b32.xlu0 %v819, 120
  %v929 = vpop.permute.xlu0 %928
  %931 = vst.msk [vmem:[#allocation4 + $0xd8] sm:$0xff] %vm292, %v929
  %932 = vrot.lane.b32.xlu0 %v819, 119
  %v933 = vpop.permute.xlu0 %932
  %935 = vst.msk [vmem:[#allocation4 + $0xe0] sm:$0xff] %vm297, %v933
  %936 = vrot.lane.b32.xlu0 %v819, 118
  %v937 = vpop.permute.xlu0 %936
  %939 = vst.msk [vmem:[#allocation4 + $0xe8] sm:$0xff] %vm302, %v937
  %940 = vrot.lane.b32.xlu0 %v819, 117
  %v941 = vpop.permute.xlu0 %940
  %943 = vst.msk [vmem:[#allocation4 + $0xf0] sm:$0xff] %vm307, %v941
  %944 = vrot.lane.b32.xlu0 %v819, 116
  %v945 = vpop.permute.xlu0 %944
  %947 = vst.msk [vmem:[#allocation4 + $0xf8] sm:$0xff] %vm312, %v945
  %948 = vrot.lane.b32.xlu0 %v819, 115
  %v949 = vpop.permute.xlu0 %948
  %951 = vst.msk [vmem:[#allocation4 + $0x100] sm:$0xff] %vm317, %v949
  %952 = vrot.lane.b32.xlu0 %v819, 114
  %v953 = vpop.permute.xlu0 %952
  %955 = vst.msk [vmem:[#allocation4 + $0x108] sm:$0xff] %vm322, %v953
  %956 = vrot.lane.b32.xlu0 %v819, 113
  %v957 = vpop.permute.xlu0 %956
  %959 = vst.msk [vmem:[#allocation4 + $0x110] sm:$0xff] %vm327, %v957
  %960 = vrot.lane.b32.xlu0 %v819, 112
  %v961 = vpop.permute.xlu0 %960
  %963 = vst.msk [vmem:[#allocation4 + $0x118] sm:$0xff] %vm332, %v961
  %964 = vrot.lane.b32.xlu0 %v819, 111
  %v965 = vpop.permute.xlu0 %964
  %967 = vst.msk [vmem:[#allocation4 + $0x120] sm:$0xff] %vm337, %v965
  %968 = vrot.lane.b32.xlu0 %v819, 110
  %v969 = vpop.permute.xlu0 %968
  %971 = vst.msk [vmem:[#allocation4 + $0x128] sm:$0xff] %vm342, %v969
  %972 = vrot.lane.b32.xlu0 %v819, 109
  %v973 = vpop.permute.xlu0 %972
  %975 = vst.msk [vmem:[#allocation4 + $0x130] sm:$0xff] %vm347, %v973
  %s976 = scalar_lea.vmem %s2, 72
  %v977 = vld [vmem:[%s976] sm:$0xff]
  %v978 = vld [vmem:[%s976 + $0x8] sm:$0xff]
  %v979 = vld [vmem:[%s976 + $0x10] sm:$0xff]
  %v980 = vld [vmem:[%s976 + $0x18] sm:$0xff]
  %v981 = vld [vmem:[%s976 + $0x20] sm:$0xff]
  %v982 = vld [vmem:[%s976 + $0x28] sm:$0xff]
  %v983 = vld [vmem:[%s976 + $0x30] sm:$0xff]
  %v984 = vld [vmem:[%s976 + $0x38] sm:$0xff]
  %v985 = vld [vmem:[%s976 + $0x40] sm:$0xff]
  %v986 = vld [vmem:[#allocation4] sm:$0xff]
  %v987 = vld [vmem:[#allocation4 + $0x8] sm:$0xff]
  %v988 = vld [vmem:[#allocation4 + $0x10] sm:$0xff]
  %v989 = vld [vmem:[#allocation4 + $0x18] sm:$0xff]
  %v990 = vld [vmem:[#allocation4 + $0x20] sm:$0xff]
  %v991 = vld [vmem:[#allocation4 + $0x28] sm:$0xff]
  %v992 = vld [vmem:[#allocation4 + $0x30] sm:$0xff]
  %v993 = vld [vmem:[#allocation4 + $0x38] sm:$0xff]
  %v994 = vld [vmem:[#allocation4 + $0x40] sm:$0xff]
  %v995 = vld [vmem:[#allocation4 + $0x48] sm:$0xff]
  %v996 = vld [vmem:[#allocation4 + $0x50] sm:$0xff]
  %v997 = vld [vmem:[#allocation4 + $0x58] sm:$0xff]
  %v998 = vld [vmem:[#allocation4 + $0x60] sm:$0xff]
  %v999 = vld [vmem:[#allocation4 + $0x68] sm:$0xff]
  %v1000 = vld [vmem:[#allocation4 + $0x70] sm:$0xff]
  %v1001 = vld [vmem:[#allocation4 + $0x78] sm:$0xff]
  %v1002 = vld [vmem:[#allocation4 + $0x80] sm:$0xff]
  %v1003 = vld [vmem:[#allocation4 + $0x88] sm:$0xff]
  %v1004 = vld [vmem:[#allocation4 + $0x90] sm:$0xff]
  %v1005 = vld [vmem:[#allocation4 + $0x98] sm:$0xff]
  %v1006 = vld [vmem:[#allocation4 + $0xa0] sm:$0xff]
  %v1007 = vld [vmem:[#allocation4 + $0xa8] sm:$0xff]
  %v1008 = vld [vmem:[#allocation4 + $0xb0] sm:$0xff]
  %v1009 = vld [vmem:[#allocation4 + $0xb8] sm:$0xff]
  %v1010 = vld [vmem:[#allocation4 + $0xc0] sm:$0xff]
  %v1011 = vld [vmem:[#allocation4 + $0xc8] sm:$0xff]
  %v1012 = vld [vmem:[#allocation4 + $0xd0] sm:$0xff]
  %v1013 = vld [vmem:[#allocation4 + $0xd8] sm:$0xff]
  %v1014 = vld [vmem:[#allocation4 + $0xe0] sm:$0xff]
  %v1015 = vld [vmem:[#allocation4 + $0xe8] sm:$0xff]
  %v1016 = vld [vmem:[#allocation4 + $0xf0] sm:$0xff]
  %v1017 = vld [vmem:[#allocation4 + $0xf8] sm:$0xff]
  %v1018 = vld [vmem:[#allocation4 + $0x100] sm:$0xff]
  %v1019 = vld [vmem:[#allocation4 + $0x108] sm:$0xff]
  %v1020 = vld [vmem:[#allocation4 + $0x110] sm:$0xff]
  %v1021 = vld [vmem:[#allocation4 + $0x118] sm:$0xff]
  %v1022 = vld [vmem:[#allocation4 + $0x120] sm:$0xff]
  %v1023 = vld [vmem:[#allocation4 + $0x128] sm:$0xff]
  %v1024 = vld [vmem:[#allocation4 + $0x130] sm:$0xff]
  %v1026 = vsel %vm397, %v979, 0
  %v1029 = vsel %vm397, %v982, 0
  %v1032 = vsel %vm397, %v985, 0
  %1034 = vmatprep.subr.mxu0 0.0
  %1035 = vmatpush1.msra.mxu0 %v986
  %1036 = vmatprep.subr.mxu0 0.0
  %1037 = vmatpush1.msra.mxu0 %v987
  %1038 = vmatprep.subr.mxu0 0.0
  %1039 = vmatpush1.msra.mxu0 %v988
  %1040 = vmatprep.subr.mxu0 0.0
  %1041 = vmatpush1.msra.mxu0 %v989
  %1042 = vmatprep.subr.mxu0 0.0
  %1043 = vmatpush1.msra.mxu0 %v990
  %1044 = vmatprep.subr.mxu0 0.0
  %1045 = vmatpush1.msra.mxu0 %v991
  %1046 = vmatprep.subr.mxu0 0.0
  %1047 = vmatpush1.msra.mxu0 %v992
  %1048 = vmatprep.subr.mxu0 0.0
  %1049 = vmatpush1.msra.mxu0 %v993
  %1050 = vmatprep.subr.mxu0 0.0
  %1051 = vmatpush1.msra.mxu0 %v994
  %1052 = vmatprep.subr.mxu0 0.0
  %1053 = vmatpush1.msra.mxu0 %v995
  %1054 = vmatprep.subr.mxu0 0.0
  %1055 = vmatpush1.msra.mxu0 %v996
  %1056 = vmatprep.subr.mxu0 0.0
  %1057 = vmatpush1.msra.mxu0 %v997
  %1058 = vmatprep.subr.mxu0 0.0
  %1059 = vmatpush1.msra.mxu0 %v998
  %1060 = vmatprep.subr.mxu0 0.0
  %1061 = vmatpush1.msra.mxu0 %v999
  %1062 = vmatprep.subr.mxu0 0.0
  %1063 = vmatpush1.msra.mxu0 %v1000
  %1064 = vmatprep.subr.mxu0 0.0
  %1065 = vmatpush1.msra.mxu0 %v1001
  %1066 = vmatprep.subr.mxu0 0.0
  %1067 = vmatpush1.msra.mxu0 %v1002
  %1068 = vmatprep.subr.mxu0 0.0
  %1069 = vmatpush1.msra.mxu0 %v1003
  %1070 = vmatprep.subr.mxu0 0.0
  %1071 = vmatpush1.msra.mxu0 %v1004
  %1072 = vmatprep.subr.mxu0 0.0
  %1073 = vmatpush1.msra.mxu0 %v1005
  %1074 = vmatprep.subr.mxu0 0.0
  %1075 = vmatpush1.msra.mxu0 %v1006
  %1076 = vmatprep.subr.mxu0 0.0
  %1077 = vmatpush1.msra.mxu0 %v1007
  %1078 = vmatprep.subr.mxu0 0.0
  %1079 = vmatpush1.msra.mxu0 %v1008
  %1080 = vmatprep.subr.mxu0 0.0
  %1081 = vmatpush1.msra.mxu0 %v1009
  %1082 = vmatprep.subr.mxu0 0.0
  %1083 = vmatpush1.msra.mxu0 %v1010
  %1084 = vmatprep.subr.mxu0 0.0
  %1085 = vmatpush1.msra.mxu0 %v1011
  %1086 = vmatprep.subr.mxu0 0.0
  %1087 = vmatpush1.msra.mxu0 %v1012
  %1088 = vmatprep.subr.mxu0 0.0
  %1089 = vmatpush1.msra.mxu0 %v1013
  %1090 = vmatprep.subr.mxu0 0.0
  %1091 = vmatpush1.msra.mxu0 %v1014
  %1092 = vmatprep.subr.mxu0 0.0
  %1093 = vmatpush1.msra.mxu0 %v1015
  %1094 = vmatprep.subr.mxu0 0.0
  %1095 = vmatpush1.msra.mxu0 %v1016
  %1096 = vmatprep.subr.mxu0 0.0
  %1097 = vmatpush1.msra.mxu0 %v1017
  %1098 = vmatprep.mubr.f32.mxu0 %v978
  %1099 = vmatmul.mubr.f32.gmra.mrb[0].mxu0 %v977
  %v1100 = vpop.f32.mrb[0].mxu0
  %v1101 = vadd.f32 0.0, %v1100
  %v1102 = vpop.f32.mrb[0].mxu0
  %1103 = vmatprep.mubr.f32.mxu0 %v981
  %1104 = vmatmul.mubr.f32.gmra.mrb[0].mxu0 %v980
  %v1105 = vpop.f32.mrb[0].mxu0
  %v1106 = vadd.f32 0.0, %v1105
  %v1107 = vpop.f32.mrb[0].mxu0
  %1108 = vmatprep.mubr.f32.mxu0 %v984
  %1109 = vmatmul.mubr.f32.gmra.mrb[0].mxu0 %v983
  %v1110 = vpop.f32.mrb[0].mxu0
  %v1111 = vadd.f32 0.0, %v1110
  %v1112 = vpop.f32.mrb[0].mxu0
  %1113 = vdwg.mxu0
  %1114 = vmatprep.subr.mxu0 0.0
  %1115 = vmatpush1.msra.mxu0 %v1018
  %1116 = vmatprep.subr.mxu0 0.0
  %1117 = vmatpush1.msra.mxu0 %v1019
  %1118 = vmatprep.subr.mxu0 0.0
  %1119 = vmatpush1.msra.mxu0 %v1020
  %1120 = vmatprep.subr.mxu0 0.0
  %1121 = vmatpush1.msra.mxu0 %v1021
  %1122 = vmatprep.subr.mxu0 0.0
  %1123 = vmatpush1.msra.mxu0 %v1022
  %1124 = vmatprep.subr.mxu0 0.0
  %1125 = vmatpush1.msra.mxu0 %v1023
  %1126 = vmatprep.subr.mxu0 0.0
  %1127 = vmatpush1.msra.mxu0 %v1024
  %1128 = vmatprep.subr.mxu0 0.0
  %1129 = vmatpush1.msra.mxu0 0.0
  %1130 = vmatprep.subr.mxu0 0.0
  %1131 = vmatpush1.msra.mxu0 0.0
  %1132 = vmatprep.subr.mxu0 0.0
  %1133 = vmatpush1.msra.mxu0 0.0
  %1134 = vmatprep.subr.mxu0 0.0
  %1135 = vmatpush1.msra.mxu0 0.0
  %1136 = vmatprep.subr.mxu0 0.0
  %1137 = vmatpush1.msra.mxu0 0.0
  %1138 = vmatprep.subr.mxu0 0.0
  %1139 = vmatpush1.msra.mxu0 0.0
  %1140 = vmatprep.subr.mxu0 0.0
  %1141 = vmatpush1.msra.mxu0 0.0
  %1142 = vmatprep.subr.mxu0 0.0
  %1143 = vmatpush1.msra.mxu0 0.0
  %1144 = vmatprep.subr.mxu0 0.0
  %1145 = vmatpush1.msra.mxu0 0.0
  %1146 = vmatprep.subr.mxu0 0.0
  %1147 = vmatpush1.msra.mxu0 0.0
  %1148 = vmatprep.subr.mxu0 0.0
  %1149 = vmatpush1.msra.mxu0 0.0
  %1150 = vmatprep.subr.mxu0 0.0
  %1151 = vmatpush1.msra.mxu0 0.0
  %1152 = vmatprep.subr.mxu0 0.0
  %1153 = vmatpush1.msra.mxu0 0.0
  %1154 = vmatprep.subr.mxu0 0.0
  %1155 = vmatpush1.msra.mxu0 0.0
  %1156 = vmatprep.subr.mxu0 0.0
  %1157 = vmatpush1.msra.mxu0 0.0
  %1158 = vmatprep.subr.mxu0 0.0
  %1159 = vmatpush1.msra.mxu0 0.0
  %1160 = vmatprep.subr.mxu0 0.0
  %1161 = vmatpush1.msra.mxu0 0.0
  %1162 = vmatprep.subr.mxu0 0.0
  %1163 = vmatpush1.msra.mxu0 0.0
  %1164 = vmatprep.subr.mxu0 0.0
  %1165 = vmatpush1.msra.mxu0 0.0
  %1166 = vmatprep.subr.mxu0 0.0
  %1167 = vmatpush1.msra.mxu0 0.0
  %1168 = vmatprep.subr.mxu0 0.0
  %1169 = vmatpush1.msra.mxu0 0.0
  %1170 = vmatprep.subr.mxu0 0.0
  %1171 = vmatpush1.msra.mxu0 0.0
  %1172 = vmatprep.subr.mxu0 0.0
  %1173 = vmatpush1.msra.mxu0 0.0
  %1174 = vmatprep.subr.mxu0 0.0
  %1175 = vmatpush1.msra.mxu0 0.0
  %1176 = vmatprep.subr.mxu0 0.0
  %1177 = vmatpush1.msra.mxu0 0.0
  %1178 = vmatprep.mubr.f32.mxu0 0.0
  %1179 = vmatmul.mubr.f32.gmra.mrb[0].mxu0 %v1026
  %v1180 = vpop.f32.mrb[0].mxu0
  %v1181 = vadd.f32 %v1101, %v1180
  %v1182 = vpop.f32.mrb[0].mxu0
  %1183 = vmatprep.mubr.f32.mxu0 0.0
  %1184 = vmatmul.mubr.f32.gmra.mrb[0].mxu0 %v1029
  %v1185 = vpop.f32.mrb[0].mxu0
  %v1186 = vadd.f32 %v1106, %v1185
  %v1187 = vpop.f32.mrb[0].mxu0
  %1188 = vmatprep.mubr.f32.mxu0 0.0
  %1189 = vmatmul.mubr.f32.gmra.mrb[0].mxu0 %v1032
  %v1190 = vpop.f32.mrb[0].mxu0
  %v1191 = vadd.f32 %v1111, %v1190
  %v1192 = vpop.f32.mrb[0].mxu0
  %1193 = vdwg.mxu0
  %v1194 = vsel %vm568, %v743, -1e+30
  %v1195 = vsel %vm568, %v744, -1e+30
  %v1196 = vsel %vm568, %v745, -1e+30
  %v1197 = vsel %vm568, %v746, -1e+30
  %1202 = vrot.lane.b32.xlu0 %v1194, 1
  %v1203 = vpop.permute.xlu0 %1202
  %1204 = vrot.lane.b32.xlu0 %v1195, 1
  %v1205 = vpop.permute.xlu0 %1204
  %1206 = vrot.lane.b32.xlu0 %v1196, 1
  %v1207 = vpop.permute.xlu0 %1206
  %1208 = vrot.lane.b32.xlu0 %v1197, 1
  %v1209 = vpop.permute.xlu0 %1208
  %1214 = vst.msk [vmem:[#allocation4] sm:$0xff] %vm251, %v1203
  %1215 = vst.msk [vmem:[#allocation4 + $0x8] sm:$0xff] %vm251, %v1205
  %1216 = vst.msk [vmem:[#allocation4 + $0x10] sm:$0xff] %vm251, %v1207
  %1217 = vst.msk [vmem:[#allocation4 + $0x18] sm:$0xff] %vm251, %v1209
  %1218 = vrot.lane.b32.xlu0 %v1194, 127
  %v1219 = vpop.permute.xlu0 %1218
  %1220 = vrot.lane.b32.xlu0 %v1195, 127
  %v1221 = vpop.permute.xlu0 %1220
  %1222 = vrot.lane.b32.xlu0 %v1196, 127
  %v1223 = vpop.permute.xlu0 %1222
  %1224 = vrot.lane.b32.xlu0 %v1197, 127
  %v1225 = vpop.permute.xlu0 %1224
  %1230 = vst.msk [vmem:[#allocation4 + $0x20] sm:$0xff] %vm257, %v1219
  %1231 = vst.msk [vmem:[#allocation4 + $0x28] sm:$0xff] %vm257, %v1221
  %1232 = vst.msk [vmem:[#allocation4 + $0x30] sm:$0xff] %vm257, %v1223
  %1233 = vst.msk [vmem:[#allocation4 + $0x38] sm:$0xff] %vm257, %v1225
  %v1234 = vld [vmem:[#allocation4] sm:$0xff]
  %v1235 = vld [vmem:[#allocation4 + $0x8] sm:$0xff]
  %v1236 = vld [vmem:[#allocation4 + $0x10] sm:$0xff]
  %v1237 = vld [vmem:[#allocation4 + $0x18] sm:$0xff]
  %v1238 = vmax.f32 %v1194, %v1234
  %v1239 = vmax.f32 %v1195, %v1235
  %v1240 = vmax.f32 %v1196, %v1236
  %v1241 = vmax.f32 %v1197, %v1237
  %v1242 = vld [vmem:[#allocation4 + $0x20] sm:$0xff]
  %v1243 = vld [vmem:[#allocation4 + $0x28] sm:$0xff]
  %v1244 = vld [vmem:[#allocation4 + $0x30] sm:$0xff]
  %v1245 = vld [vmem:[#allocation4 + $0x38] sm:$0xff]
  %v1246 = vmax.f32 %v1238, %v1242
  %v1247 = vmax.f32 %v1239, %v1243
  %v1248 = vmax.f32 %v1240, %v1244
  %v1249 = vmax.f32 %v1241, %v1245
  %v1250 = vsel %vm568, %v1246, 0.0
  %v1251 = vsel %vm568, %v1247, 0.0
  %v1252 = vsel %vm568, %v1248, 0.0
  %v1253 = vsel %vm568, %v1249, 0.0
  %s1254 = scalar_lea.vmem %s3, 8
  %v1255 = vld [vmem:[%s1254] sm:$0xff]
  %v1257 = vsel %vm83, %v1255, 0
  %1259 = vmatprep.subr.mxu0 0.0
  %1260 = vmatpush1.msra.mxu0 %v1250
  %1261 = vmatprep.subr.mxu0 0.0
  %1262 = vmatpush1.msra.mxu0 %v1251
  %1263 = vmatprep.subr.mxu0 0.0
  %1264 = vmatpush1.msra.mxu0 %v1252
  %1265 = vmatprep.subr.mxu0 0.0
  %1266 = vmatpush1.msra.mxu0 %v1253
  %1267 = vmatprep.subr.mxu0 0.0
  %1268 = vmatpush1.msra.mxu0 0.0
  %1269 = vmatprep.subr.mxu0 0.0
  %1270 = vmatpush1.msra.mxu0 0.0
  %1271 = vmatprep.subr.mxu0 0.0
  %1272 = vmatpush1.msra.mxu0 0.0
  %1273 = vmatprep.subr.mxu0 0.0
  %1274 = vmatpush1.msra.mxu0 0.0
  %1275 = vmatprep.subr.mxu0 0.0
  %1276 = vmatpush1.msra.mxu0 0.0
  %1277 = vmatprep.subr.mxu0 0.0
  %1278 = vmatpush1.msra.mxu0 0.0
  %1279 = vmatprep.subr.mxu0 0.0
  %1280 = vmatpush1.msra.mxu0 0.0
  %1281 = vmatprep.subr.mxu0 0.0
  %1282 = vmatpush1.msra.mxu0 0.0
  %1283 = vmatprep.subr.mxu0 0.0
  %1284 = vmatpush1.msra.mxu0 0.0
  %1285 = vmatprep.subr.mxu0 0.0
  %1286 = vmatpush1.msra.mxu0 0.0
  %1287 = vmatprep.subr.mxu0 0.0
  %1288 = vmatpush1.msra.mxu0 0.0
  %1289 = vmatprep.subr.mxu0 0.0
  %1290 = vmatpush1.msra.mxu0 0.0
  %1291 = vmatprep.subr.mxu0 0.0
  %1292 = vmatpush1.msra.mxu0 0.0
  %1293 = vmatprep.subr.mxu0 0.0
  %1294 = vmatpush1.msra.mxu0 0.0
  %1295 = vmatprep.subr.mxu0 0.0
  %1296 = vmatpush1.msra.mxu0 0.0
  %1297 = vmatprep.subr.mxu0 0.0
  %1298 = vmatpush1.msra.mxu0 0.0
  %1299 = vmatprep.subr.mxu0 0.0
  %1300 = vmatpush1.msra.mxu0 0.0
  %1301 = vmatprep.subr.mxu0 0.0
  %1302 = vmatpush1.msra.mxu0 0.0
  %1303 = vmatprep.subr.mxu0 0.0
  %1304 = vmatpush1.msra.mxu0 0.0
  %1305 = vmatprep.subr.mxu0 0.0
  %1306 = vmatpush1.msra.mxu0 0.0
  %1307 = vmatprep.subr.mxu0 0.0
  %1308 = vmatpush1.msra.mxu0 0.0
  %1309 = vmatprep.subr.mxu0 0.0
  %1310 = vmatpush1.msra.mxu0 0.0
  %1311 = vmatprep.subr.mxu0 0.0
  %1312 = vmatpush1.msra.mxu0 0.0
  %1313 = vmatprep.subr.mxu0 0.0
  %1314 = vmatpush1.msra.mxu0 0.0
  %1315 = vmatprep.subr.mxu0 0.0
  %1316 = vmatpush1.msra.mxu0 0.0
  %1317 = vmatprep.subr.mxu0 0.0
  %1318 = vmatpush1.msra.mxu0 0.0
  %1319 = vmatprep.subr.mxu0 0.0
  %1320 = vmatpush1.msra.mxu0 0.0
  %1321 = vmatprep.subr.mxu0 0.0
  %1322 = vmatpush1.msra.mxu0 0.0
  %1323 = vmatprep.mubr.f32.mxu0 0.0
  %1324 = vmatmul.mubr.f32.gmra.mrb[0].mxu0 %v1257
  %v1325 = vpop.f32.mrb[0].mxu0
  %v1326 = vadd.f32 0.0, %v1325
  %v1327 = vpop.f32.mrb[0].mxu0
  %1328 = vdwg.mxu0
  %s1329 = scalar_lea.vmem %s4, 32
  %v1330 = vld [vmem:[%s1329] sm:$0xff]
  %v1331 = vld [vmem:[%s1329 + $0x8] sm:$0xff]
  %v1332 = vld [vmem:[%s1329 + $0x10] sm:$0xff]
  %v1333 = vld [vmem:[%s1329 + $0x18] sm:$0xff]
  %1335 = vset.pattern.permute.xlu0 0
  %1336 = vperm.xlu0 %1335, %v1330
  %v1337 = vpop.permute.xlu0 %1336
  %1340 = vset.pattern.permute.xlu0 0
  %1341 = vperm.xlu0 %1340, %v1331
  %v1342 = vpop.permute.xlu0 %1341
  %1345 = vset.pattern.permute.xlu0 0
  %1346 = vperm.xlu0 %1345, %v1332
  %v1347 = vpop.permute.xlu0 %1346
  %1350 = vset.pattern.permute.xlu0 0
  %1351 = vperm.xlu0 %1350, %v1333
  %v1352 = vpop.permute.xlu0 %1351
  %v1354 = vadd.f32 %v1181, %v1337
  %v1355 = vadd.f32 %v1186, %v1342
  %v1356 = vadd.f32 %v1191, %v1347
  %v1357 = vadd.f32 %v1326, %v1352
  %v1358 = vmax.f32 %v1354, 0.0
  %v1359 = vmax.f32 %v1355, 0.0
  %v1360 = vmax.f32 %v1356, 0.0
  %v1361 = vmax.f32 %v1357, 0.0
  %v1362 = vsel %vm568, %v1358, 0.0
  %v1363 = vsel %vm568, %v1359, 0.0
  %v1364 = vsel %vm568, %v1360, 0.0
  %v1365 = vsel %vm568, %v1361, 0.0
  %1366 = vst.msk [vmem:[#allocation2] sm:$0xff] %vm50, %v1362
  %1367 = vst.msk [vmem:[#allocation2 + $0x8] sm:$0xff] %vm50, %v1363
  %1368 = vst.msk [vmem:[#allocation2 + $0x10] sm:$0xff] %vm50, %v1364
  %1369 = vst.msk [vmem:[#allocation2 + $0x18] sm:$0xff] %vm50, %v1365
  %v1370 = vld [vmem:[#allocation2] sm:$0xff]
  %v1371 = vld [vmem:[#allocation2 + $0x8] sm:$0xff]
  %v1372 = vld [vmem:[#allocation2 + $0x10] sm:$0xff]
  %v1373 = vld [vmem:[#allocation2 + $0x18] sm:$0xff]
  %s1374 = scalar_lea.vmem %s1, 16
  %v1375 = vld [vmem:[%s1374] sm:$0xff]
  %v1377 = vsel %vm83, %v1375, 0
  %1379 = vmatprep.subr.mxu0 0.0
  %1380 = vmatpush1.msra.mxu0 %v1370
  %1381 = vmatprep.subr.mxu0 0.0
  %1382 = vmatpush1.msra.mxu0 %v1371
  %1383 = vmatprep.subr.mxu0 0.0
  %1384 = vmatpush1.msra.mxu0 %v1372
  %1385 = vmatprep.subr.mxu0 0.0
  %1386 = vmatpush1.msra.mxu0 %v1373
  %1387 = vmatprep.subr.mxu0 0.0
  %1388 = vmatpush1.msra.mxu0 0.0
  %1389 = vmatprep.subr.mxu0 0.0
  %1390 = vmatpush1.msra.mxu0 0.0
  %1391 = vmatprep.subr.mxu0 0.0
  %1392 = vmatpush1.msra.mxu0 0.0
  %1393 = vmatprep.subr.mxu0 0.0
  %1394 = vmatpush1.msra.mxu0 0.0
  %1395 = vmatprep.subr.mxu0 0.0
  %1396 = vmatpush1.msra.mxu0 0.0
  %1397 = vmatprep.subr.mxu0 0.0
  %1398 = vmatpush1.msra.mxu0 0.0
  %1399 = vmatprep.subr.mxu0 0.0
  %1400 = vmatpush1.msra.mxu0 0.0
  %1401 = vmatprep.subr.mxu0 0.0
  %1402 = vmatpush1.msra.mxu0 0.0
  %1403 = vmatprep.subr.mxu0 0.0
  %1404 = vmatpush1.msra.mxu0 0.0
  %1405 = vmatprep.subr.mxu0 0.0
  %1406 = vmatpush1.msra.mxu0 0.0
  %1407 = vmatprep.subr.mxu0 0.0
  %1408 = vmatpush1.msra.mxu0 0.0
  %1409 = vmatprep.subr.mxu0 0.0
  %1410 = vmatpush1.msra.mxu0 0.0
  %1411 = vmatprep.subr.mxu0 0.0
  %1412 = vmatpush1.msra.mxu0 0.0
  %1413 = vmatprep.subr.mxu0 0.0
  %1414 = vmatpush1.msra.mxu0 0.0
  %1415 = vmatprep.subr.mxu0 0.0
  %1416 = vmatpush1.msra.mxu0 0.0
  %1417 = vmatprep.subr.mxu0 0.0
  %1418 = vmatpush1.msra.mxu0 0.0
  %1419 = vmatprep.subr.mxu0 0.0
  %1420 = vmatpush1.msra.mxu0 0.0
  %1421 = vmatprep.subr.mxu0 0.0
  %1422 = vmatpush1.msra.mxu0 0.0
  %1423 = vmatprep.subr.mxu0 0.0
  %1424 = vmatpush1.msra.mxu0 0.0
  %1425 = vmatprep.subr.mxu0 0.0
  %1426 = vmatpush1.msra.mxu0 0.0
  %1427 = vmatprep.subr.mxu0 0.0
  %1428 = vmatpush1.msra.mxu0 0.0
  %1429 = vmatprep.subr.mxu0 0.0
  %1430 = vmatpush1.msra.mxu0 0.0
  %1431 = vmatprep.subr.mxu0 0.0
  %1432 = vmatpush1.msra.mxu0 0.0
  %1433 = vmatprep.subr.mxu0 0.0
  %1434 = vmatpush1.msra.mxu0 0.0
  %1435 = vmatprep.subr.mxu0 0.0
  %1436 = vmatpush1.msra.mxu0 0.0
  %1437 = vmatprep.subr.mxu0 0.0
  %1438 = vmatpush1.msra.mxu0 0.0
  %1439 = vmatprep.subr.mxu0 0.0
  %1440 = vmatpush1.msra.mxu0 0.0
  %1441 = vmatprep.subr.mxu0 0.0
  %1442 = vmatpush1.msra.mxu0 0.0
  %1443 = vmatprep.mubr.f32.mxu0 0.0
  %1444 = vmatmul.mubr.f32.gmra.mrb[0].mxu0 %v1377
  %v1445 = vpop.f32.mrb[0].mxu0
  %v1446 = vadd.f32 0.0, %v1445
  %v1447 = vpop.f32.mrb[0].mxu0
  %1448 = vdwg.mxu0
  %1450 = vrot.lane.b32.xlu0 %v1446, 19
  %v1451 = vpop.permute.xlu0 %1450
  %1453 = vst.msk [vmem:[#allocation4] sm:$0xff] %vm161, %v1451
  %1454 = vrot.lane.b32.xlu0 %v1446, 18
  %v1455 = vpop.permute.xlu0 %1454
  %1457 = vst.msk [vmem:[#allocation4 + $0x8] sm:$0xff] %vm166, %v1455
  %1458 = vrot.lane.b32.xlu0 %v1446, 17
  %v1459 = vpop.permute.xlu0 %1458
  %1461 = vst.msk [vmem:[#allocation4 + $0x10] sm:$0xff] %vm171, %v1459
  %1462 = vrot.lane.b32.xlu0 %v1446, 16
  %v1463 = vpop.permute.xlu0 %1462
  %1465 = vst.msk [vmem:[#allocation4 + $0x18] sm:$0xff] %vm176, %v1463
  %1466 = vrot.lane.b32.xlu0 %v1446, 15
  %v1467 = vpop.permute.xlu0 %1466
  %1469 = vst.msk [vmem:[#allocation4 + $0x20] sm:$0xff] %vm181, %v1467
  %1470 = vrot.lane.b32.xlu0 %v1446, 14
  %v1471 = vpop.permute.xlu0 %1470
  %1473 = vst.msk [vmem:[#allocation4 + $0x28] sm:$0xff] %vm186, %v1471
  %1474 = vrot.lane.b32.xlu0 %v1446, 13
  %v1475 = vpop.permute.xlu0 %1474
  %1477 = vst.msk [vmem:[#allocation4 + $0x30] sm:$0xff] %vm191, %v1475
  %1478 = vrot.lane.b32.xlu0 %v1446, 12
  %v1479 = vpop.permute.xlu0 %1478
  %1481 = vst.msk [vmem:[#allocation4 + $0x38] sm:$0xff] %vm196, %v1479
  %1482 = vrot.lane.b32.xlu0 %v1446, 11
  %v1483 = vpop.permute.xlu0 %1482
  %1485 = vst.msk [vmem:[#allocation4 + $0x40] sm:$0xff] %vm201, %v1483
  %1486 = vrot.lane.b32.xlu0 %v1446, 10
  %v1487 = vpop.permute.xlu0 %1486
  %1489 = vst.msk [vmem:[#allocation4 + $0x48] sm:$0xff] %vm206, %v1487
  %1490 = vrot.lane.b32.xlu0 %v1446, 9
  %v1491 = vpop.permute.xlu0 %1490
  %1493 = vst.msk [vmem:[#allocation4 + $0x50] sm:$0xff] %vm211, %v1491
  %1494 = vrot.lane.b32.xlu0 %v1446, 8
  %v1495 = vpop.permute.xlu0 %1494
  %1497 = vst.msk [vmem:[#allocation4 + $0x58] sm:$0xff] %vm216, %v1495
  %1498 = vrot.lane.b32.xlu0 %v1446, 7
  %v1499 = vpop.permute.xlu0 %1498
  %1501 = vst.msk [vmem:[#allocation4 + $0x60] sm:$0xff] %vm221, %v1499
  %1502 = vrot.lane.b32.xlu0 %v1446, 6
  %v1503 = vpop.permute.xlu0 %1502
  %1505 = vst.msk [vmem:[#allocation4 + $0x68] sm:$0xff] %vm226, %v1503
  %1506 = vrot.lane.b32.xlu0 %v1446, 5
  %v1507 = vpop.permute.xlu0 %1506
  %1509 = vst.msk [vmem:[#allocation4 + $0x70] sm:$0xff] %vm231, %v1507
  %1510 = vrot.lane.b32.xlu0 %v1446, 4
  %v1511 = vpop.permute.xlu0 %1510
  %1513 = vst.msk [vmem:[#allocation4 + $0x78] sm:$0xff] %vm236, %v1511
  %1514 = vrot.lane.b32.xlu0 %v1446, 3
  %v1515 = vpop.permute.xlu0 %1514
  %1517 = vst.msk [vmem:[#allocation4 + $0x80] sm:$0xff] %vm241, %v1515
  %1518 = vrot.lane.b32.xlu0 %v1446, 2
  %v1519 = vpop.permute.xlu0 %1518
  %1521 = vst.msk [vmem:[#allocation4 + $0x88] sm:$0xff] %vm246, %v1519
  %1522 = vrot.lane.b32.xlu0 %v1446, 1
  %v1523 = vpop.permute.xlu0 %1522
  %1525 = vst.msk [vmem:[#allocation4 + $0x90] sm:$0xff] %vm251, %v1523
  %1526 = vst.msk [vmem:[#allocation4 + $0x98] sm:$0xff] %vm50, %v1446
  %1527 = vrot.lane.b32.xlu0 %v1446, 127
  %v1528 = vpop.permute.xlu0 %1527
  %1530 = vst.msk [vmem:[#allocation4 + $0xa0] sm:$0xff] %vm257, %v1528
  %1531 = vrot.lane.b32.xlu0 %v1446, 126
  %v1532 = vpop.permute.xlu0 %1531
  %1534 = vst.msk [vmem:[#allocation4 + $0xa8] sm:$0xff] %vm262, %v1532
  %1535 = vrot.lane.b32.xlu0 %v1446, 125
  %v1536 = vpop.permute.xlu0 %1535
  %1538 = vst.msk [vmem:[#allocation4 + $0xb0] sm:$0xff] %vm267, %v1536
  %1539 = vrot.lane.b32.xlu0 %v1446, 124
  %v1540 = vpop.permute.xlu0 %1539
  %1542 = vst.msk [vmem:[#allocation4 + $0xb8] sm:$0xff] %vm272, %v1540
  %1543 = vrot.lane.b32.xlu0 %v1446, 123
  %v1544 = vpop.permute.xlu0 %1543
  %1546 = vst.msk [vmem:[#allocation4 + $0xc0] sm:$0xff] %vm277, %v1544
  %1547 = vrot.lane.b32.xlu0 %v1446, 122
  %v1548 = vpop.permute.xlu0 %1547
  %1550 = vst.msk [vmem:[#allocation4 + $0xc8] sm:$0xff] %vm282, %v1548
  %1551 = vrot.lane.b32.xlu0 %v1446, 121
  %v1552 = vpop.permute.xlu0 %1551
  %1554 = vst.msk [vmem:[#allocation4 + $0xd0] sm:$0xff] %vm287, %v1552
  %1555 = vrot.lane.b32.xlu0 %v1446, 120
  %v1556 = vpop.permute.xlu0 %1555
  %1558 = vst.msk [vmem:[#allocation4 + $0xd8] sm:$0xff] %vm292, %v1556
  %1559 = vrot.lane.b32.xlu0 %v1446, 119
  %v1560 = vpop.permute.xlu0 %1559
  %1562 = vst.msk [vmem:[#allocation4 + $0xe0] sm:$0xff] %vm297, %v1560
  %1563 = vrot.lane.b32.xlu0 %v1446, 118
  %v1564 = vpop.permute.xlu0 %1563
  %1566 = vst.msk [vmem:[#allocation4 + $0xe8] sm:$0xff] %vm302, %v1564
  %1567 = vrot.lane.b32.xlu0 %v1446, 117
  %v1568 = vpop.permute.xlu0 %1567
  %1570 = vst.msk [vmem:[#allocation4 + $0xf0] sm:$0xff] %vm307, %v1568
  %1571 = vrot.lane.b32.xlu0 %v1446, 116
  %v1572 = vpop.permute.xlu0 %1571
  %1574 = vst.msk [vmem:[#allocation4 + $0xf8] sm:$0xff] %vm312, %v1572
  %1575 = vrot.lane.b32.xlu0 %v1446, 115
  %v1576 = vpop.permute.xlu0 %1575
  %1578 = vst.msk [vmem:[#allocation4 + $0x100] sm:$0xff] %vm317, %v1576
  %1579 = vrot.lane.b32.xlu0 %v1446, 114
  %v1580 = vpop.permute.xlu0 %1579
  %1582 = vst.msk [vmem:[#allocation4 + $0x108] sm:$0xff] %vm322, %v1580
  %1583 = vrot.lane.b32.xlu0 %v1446, 113
  %v1584 = vpop.permute.xlu0 %1583
  %1586 = vst.msk [vmem:[#allocation4 + $0x110] sm:$0xff] %vm327, %v1584
  %1587 = vrot.lane.b32.xlu0 %v1446, 112
  %v1588 = vpop.permute.xlu0 %1587
  %1590 = vst.msk [vmem:[#allocation4 + $0x118] sm:$0xff] %vm332, %v1588
  %1591 = vrot.lane.b32.xlu0 %v1446, 111
  %v1592 = vpop.permute.xlu0 %1591
  %1594 = vst.msk [vmem:[#allocation4 + $0x120] sm:$0xff] %vm337, %v1592
  %1595 = vrot.lane.b32.xlu0 %v1446, 110
  %v1596 = vpop.permute.xlu0 %1595
  %1598 = vst.msk [vmem:[#allocation4 + $0x128] sm:$0xff] %vm342, %v1596
  %1599 = vrot.lane.b32.xlu0 %v1446, 109
  %v1600 = vpop.permute.xlu0 %1599
  %1602 = vst.msk [vmem:[#allocation4 + $0x130] sm:$0xff] %vm347, %v1600
  %s1603 = scalar_lea.vmem %s2, 144
  %v1604 = vld [vmem:[%s1603] sm:$0xff]
  %v1605 = vld [vmem:[%s1603 + $0x8] sm:$0xff]
  %v1606 = vld [vmem:[%s1603 + $0x10] sm:$0xff]
  %v1607 = vld [vmem:[%s1603 + $0x18] sm:$0xff]
  %v1608 = vld [vmem:[%s1603 + $0x20] sm:$0xff]
  %v1609 = vld [vmem:[%s1603 + $0x28] sm:$0xff]
  %v1610 = vld [vmem:[%s1603 + $0x30] sm:$0xff]
  %v1611 = vld [vmem:[%s1603 + $0x38] sm:$0xff]
  %v1612 = vld [vmem:[%s1603 + $0x40] sm:$0xff]
  %v1613 = vld [vmem:[#allocation4] sm:$0xff]
  %v1614 = vld [vmem:[#allocation4 + $0x8] sm:$0xff]
  %v1615 = vld [vmem:[#allocation4 + $0x10] sm:$0xff]
  %v1616 = vld [vmem:[#allocation4 + $0x18] sm:$0xff]
  %v1617 = vld [vmem:[#allocation4 + $0x20] sm:$0xff]
  %v1618 = vld [vmem:[#allocation4 + $0x28] sm:$0xff]
  %v1619 = vld [vmem:[#allocation4 + $0x30] sm:$0xff]
  %v1620 = vld [vmem:[#allocation4 + $0x38] sm:$0xff]
  %v1621 = vld [vmem:[#allocation4 + $0x40] sm:$0xff]
  %v1622 = vld [vmem:[#allocation4 + $0x48] sm:$0xff]
  %v1623 = vld [vmem:[#allocation4 + $0x50] sm:$0xff]
  %v1624 = vld [vmem:[#allocation4 + $0x58] sm:$0xff]
  %v1625 = vld [vmem:[#allocation4 + $0x60] sm:$0xff]
  %v1626 = vld [vmem:[#allocation4 + $0x68] sm:$0xff]
  %v1627 = vld [vmem:[#allocation4 + $0x70] sm:$0xff]
  %v1628 = vld [vmem:[#allocation4 + $0x78] sm:$0xff]
  %v1629 = vld [vmem:[#allocation4 + $0x80] sm:$0xff]
  %v1630 = vld [vmem:[#allocation4 + $0x88] sm:$0xff]
  %v1631 = vld [vmem:[#allocation4 + $0x90] sm:$0xff]
  %v1632 = vld [vmem:[#allocation4 + $0x98] sm:$0xff]
  %v1633 = vld [vmem:[#allocation4 + $0xa0] sm:$0xff]
  %v1634 = vld [vmem:[#allocation4 + $0xa8] sm:$0xff]
  %v1635 = vld [vmem:[#allocation4 + $0xb0] sm:$0xff]
  %v1636 = vld [vmem:[#allocation4 + $0xb8] sm:$0xff]
  %v1637 = vld [vmem:[#allocation4 + $0xc0] sm:$0xff]
  %v1638 = vld [vmem:[#allocation4 + $0xc8] sm:$0xff]
  %v1639 = vld [vmem:[#allocation4 + $0xd0] sm:$0xff]
  %v1640 = vld [vmem:[#allocation4 + $0xd8] sm:$0xff]
  %v1641 = vld [vmem:[#allocation4 + $0xe0] sm:$0xff]
  %v1642 = vld [vmem:[#allocation4 + $0xe8] sm:$0xff]
  %v1643 = vld [vmem:[#allocation4 + $0xf0] sm:$0xff]
  %v1644 = vld [vmem:[#allocation4 + $0xf8] sm:$0xff]
  %v1645 = vld [vmem:[#allocation4 + $0x100] sm:$0xff]
  %v1646 = vld [vmem:[#allocation4 + $0x108] sm:$0xff]
  %v1647 = vld [vmem:[#allocation4 + $0x110] sm:$0xff]
  %v1648 = vld [vmem:[#allocation4 + $0x118] sm:$0xff]
  %v1649 = vld [vmem:[#allocation4 + $0x120] sm:$0xff]
  %v1650 = vld [vmem:[#allocation4 + $0x128] sm:$0xff]
  %v1651 = vld [vmem:[#allocation4 + $0x130] sm:$0xff]
  %v1653 = vsel %vm397, %v1606, 0
  %v1656 = vsel %vm397, %v1609, 0
  %v1659 = vsel %vm397, %v1612, 0
  %1661 = vmatprep.subr.mxu0 0.0
  %1662 = vmatpush1.msra.mxu0 %v1613
  %1663 = vmatprep.subr.mxu0 0.0
  %1664 = vmatpush1.msra.mxu0 %v1614
  %1665 = vmatprep.subr.mxu0 0.0
  %1666 = vmatpush1.msra.mxu0 %v1615
  %1667 = vmatprep.subr.mxu0 0.0
  %1668 = vmatpush1.msra.mxu0 %v1616
  %1669 = vmatprep.subr.mxu0 0.0
  %1670 = vmatpush1.msra.mxu0 %v1617
  %1671 = vmatprep.subr.mxu0 0.0
  %1672 = vmatpush1.msra.mxu0 %v1618
  %1673 = vmatprep.subr.mxu0 0.0
  %1674 = vmatpush1.msra.mxu0 %v1619
  %1675 = vmatprep.subr.mxu0 0.0
  %1676 = vmatpush1.msra.mxu0 %v1620
  %1677 = vmatprep.subr.mxu0 0.0
  %1678 = vmatpush1.msra.mxu0 %v1621
  %1679 = vmatprep.subr.mxu0 0.0
  %1680 = vmatpush1.msra.mxu0 %v1622
  %1681 = vmatprep.subr.mxu0 0.0
  %1682 = vmatpush1.msra.mxu0 %v1623
  %1683 = vmatprep.subr.mxu0 0.0
  %1684 = vmatpush1.msra.mxu0 %v1624
  %1685 = vmatprep.subr.mxu0 0.0
  %1686 = vmatpush1.msra.mxu0 %v1625
  %1687 = vmatprep.subr.mxu0 0.0
  %1688 = vmatpush1.msra.mxu0 %v1626
  %1689 = vmatprep.subr.mxu0 0.0
  %1690 = vmatpush1.msra.mxu0 %v1627
  %1691 = vmatprep.subr.mxu0 0.0
  %1692 = vmatpush1.msra.mxu0 %v1628
  %1693 = vmatprep.subr.mxu0 0.0
  %1694 = vmatpush1.msra.mxu0 %v1629
  %1695 = vmatprep.subr.mxu0 0.0
  %1696 = vmatpush1.msra.mxu0 %v1630
  %1697 = vmatprep.subr.mxu0 0.0
  %1698 = vmatpush1.msra.mxu0 %v1631
  %1699 = vmatprep.subr.mxu0 0.0
  %1700 = vmatpush1.msra.mxu0 %v1632
  %1701 = vmatprep.subr.mxu0 0.0
  %1702 = vmatpush1.msra.mxu0 %v1633
  %1703 = vmatprep.subr.mxu0 0.0
  %1704 = vmatpush1.msra.mxu0 %v1634
  %1705 = vmatprep.subr.mxu0 0.0
  %1706 = vmatpush1.msra.mxu0 %v1635
  %1707 = vmatprep.subr.mxu0 0.0
  %1708 = vmatpush1.msra.mxu0 %v1636
  %1709 = vmatprep.subr.mxu0 0.0
  %1710 = vmatpush1.msra.mxu0 %v1637
  %1711 = vmatprep.subr.mxu0 0.0
  %1712 = vmatpush1.msra.mxu0 %v1638
  %1713 = vmatprep.subr.mxu0 0.0
  %1714 = vmatpush1.msra.mxu0 %v1639
  %1715 = vmatprep.subr.mxu0 0.0
  %1716 = vmatpush1.msra.mxu0 %v1640
  %1717 = vmatprep.subr.mxu0 0.0
  %1718 = vmatpush1.msra.mxu0 %v1641
  %1719 = vmatprep.subr.mxu0 0.0
  %1720 = vmatpush1.msra.mxu0 %v1642
  %1721 = vmatprep.subr.mxu0 0.0
  %1722 = vmatpush1.msra.mxu0 %v1643
  %1723 = vmatprep.subr.mxu0 0.0
  %1724 = vmatpush1.msra.mxu0 %v1644
  %1725 = vmatprep.mubr.f32.mxu0 %v1605
  %1726 = vmatmul.mubr.f32.gmra.mrb[0].mxu0 %v1604
  %v1727 = vpop.f32.mrb[0].mxu0
  %v1728 = vadd.f32 0.0, %v1727
  %v1729 = vpop.f32.mrb[0].mxu0
  %1730 = vmatprep.mubr.f32.mxu0 %v1608
  %1731 = vmatmul.mubr.f32.gmra.mrb[0].mxu0 %v1607
  %v1732 = vpop.f32.mrb[0].mxu0
  %v1733 = vadd.f32 0.0, %v1732
  %v1734 = vpop.f32.mrb[0].mxu0
  %1735 = vmatprep.mubr.f32.mxu0 %v1611
  %1736 = vmatmul.mubr.f32.gmra.mrb[0].mxu0 %v1610
  %v1737 = vpop.f32.mrb[0].mxu0
  %v1738 = vadd.f32 0.0, %v1737
  %v1739 = vpop.f32.mrb[0].mxu0
  %1740 = vdwg.mxu0
  %1741 = vmatprep.subr.mxu0 0.0
  %1742 = vmatpush1.msra.mxu0 %v1645
  %1743 = vmatprep.subr.mxu0 0.0
  %1744 = vmatpush1.msra.mxu0 %v1646
  %1745 = vmatprep.subr.mxu0 0.0
  %1746 = vmatpush1.msra.mxu0 %v1647
  %1747 = vmatprep.subr.mxu0 0.0
  %1748 = vmatpush1.msra.mxu0 %v1648
  %1749 = vmatprep.subr.mxu0 0.0
  %1750 = vmatpush1.msra.mxu0 %v1649
  %1751 = vmatprep.subr.mxu0 0.0
  %1752 = vmatpush1.msra.mxu0 %v1650
  %1753 = vmatprep.subr.mxu0 0.0
  %1754 = vmatpush1.msra.mxu0 %v1651
  %1755 = vmatprep.subr.mxu0 0.0
  %1756 = vmatpush1.msra.mxu0 0.0
  %1757 = vmatprep.subr.mxu0 0.0
  %1758 = vmatpush1.msra.mxu0 0.0
  %1759 = vmatprep.subr.mxu0 0.0
  %1760 = vmatpush1.msra.mxu0 0.0
  %1761 = vmatprep.subr.mxu0 0.0
  %1762 = vmatpush1.msra.mxu0 0.0
  %1763 = vmatprep.subr.mxu0 0.0
  %1764 = vmatpush1.msra.mxu0 0.0
  %1765 = vmatprep.subr.mxu0 0.0
  %1766 = vmatpush1.msra.mxu0 0.0
  %1767 = vmatprep.subr.mxu0 0.0
  %1768 = vmatpush1.msra.mxu0 0.0
  %1769 = vmatprep.subr.mxu0 0.0
  %1770 = vmatpush1.msra.mxu0 0.0
  %1771 = vmatprep.subr.mxu0 0.0
  %1772 = vmatpush1.msra.mxu0 0.0
  %1773 = vmatprep.subr.mxu0 0.0
  %1774 = vmatpush1.msra.mxu0 0.0
  %1775 = vmatprep.subr.mxu0 0.0
  %1776 = vmatpush1.msra.mxu0 0.0
  %1777 = vmatprep.subr.mxu0 0.0
  %1778 = vmatpush1.msra.mxu0 0.0
  %1779 = vmatprep.subr.mxu0 0.0
  %1780 = vmatpush1.msra.mxu0 0.0
  %1781 = vmatprep.subr.mxu0 0.0
  %1782 = vmatpush1.msra.mxu0 0.0
  %1783 = vmatprep.subr.mxu0 0.0
  %1784 = vmatpush1.msra.mxu0 0.0
  %1785 = vmatprep.subr.mxu0 0.0
  %1786 = vmatpush1.msra.mxu0 0.0
  %1787 = vmatprep.subr.mxu0 0.0
  %1788 = vmatpush1.msra.mxu0 0.0
  %1789 = vmatprep.subr.mxu0 0.0
  %1790 = vmatpush1.msra.mxu0 0.0
  %1791 = vmatprep.subr.mxu0 0.0
  %1792 = vmatpush1.msra.mxu0 0.0
  %1793 = vmatprep.subr.mxu0 0.0
  %1794 = vmatpush1.msra.mxu0 0.0
  %1795 = vmatprep.subr.mxu0 0.0
  %1796 = vmatpush1.msra.mxu0 0.0
  %1797 = vmatprep.subr.mxu0 0.0
  %1798 = vmatpush1.msra.mxu0 0.0
  %1799 = vmatprep.subr.mxu0 0.0
  %1800 = vmatpush1.msra.mxu0 0.0
  %1801 = vmatprep.subr.mxu0 0.0
  %1802 = vmatpush1.msra.mxu0 0.0
  %1803 = vmatprep.subr.mxu0 0.0
  %1804 = vmatpush1.msra.mxu0 0.0
  %1805 = vmatprep.mubr.f32.mxu0 0.0
  %1806 = vmatmul.mubr.f32.gmra.mrb[0].mxu0 %v1653
  %v1807 = vpop.f32.mrb[0].mxu0
  %v1808 = vadd.f32 %v1728, %v1807
  %v1809 = vpop.f32.mrb[0].mxu0
  %1810 = vmatprep.mubr.f32.mxu0 0.0
  %1811 = vmatmul.mubr.f32.gmra.mrb[0].mxu0 %v1656
  %v1812 = vpop.f32.mrb[0].mxu0
  %v1813 = vadd.f32 %v1733, %v1812
  %v1814 = vpop.f32.mrb[0].mxu0
  %1815 = vmatprep.mubr.f32.mxu0 0.0
  %1816 = vmatmul.mubr.f32.gmra.mrb[0].mxu0 %v1659
  %v1817 = vpop.f32.mrb[0].mxu0
  %v1818 = vadd.f32 %v1738, %v1817
  %v1819 = vpop.f32.mrb[0].mxu0
  %1820 = vdwg.mxu0
  %v1821 = vsel %vm568, %v1370, -1e+30
  %v1822 = vsel %vm568, %v1371, -1e+30
  %v1823 = vsel %vm568, %v1372, -1e+30
  %v1824 = vsel %vm568, %v1373, -1e+30
  %1829 = vrot.lane.b32.xlu0 %v1821, 1
  %v1830 = vpop.permute.xlu0 %1829
  %1831 = vrot.lane.b32.xlu0 %v1822, 1
  %v1832 = vpop.permute.xlu0 %1831
  %1833 = vrot.lane.b32.xlu0 %v1823, 1
  %v1834 = vpop.permute.xlu0 %1833
  %1835 = vrot.lane.b32.xlu0 %v1824, 1
  %v1836 = vpop.permute.xlu0 %1835
  %1841 = vst.msk [vmem:[#allocation4] sm:$0xff] %vm251, %v1830
  %1842 = vst.msk [vmem:[#allocation4 + $0x8] sm:$0xff] %vm251, %v1832
  %1843 = vst.msk [vmem:[#allocation4 + $0x10] sm:$0xff] %vm251, %v1834
  %1844 = vst.msk [vmem:[#allocation4 + $0x18] sm:$0xff] %vm251, %v1836
  %1845 = vrot.lane.b32.xlu0 %v1821, 127
  %v1846 = vpop.permute.xlu0 %1845
  %1847 = vrot.lane.b32.xlu0 %v1822, 127
  %v1848 = vpop.permute.xlu0 %1847
  %1849 = vrot.lane.b32.xlu0 %v1823, 127
  %v1850 = vpop.permute.xlu0 %1849
  %1851 = vrot.lane.b32.xlu0 %v1824, 127
  %v1852 = vpop.permute.xlu0 %1851
  %1857 = vst.msk [vmem:[#allocation4 + $0x20] sm:$0xff] %vm257, %v1846
  %1858 = vst.msk [vmem:[#allocation4 + $0x28] sm:$0xff] %vm257, %v1848
  %1859 = vst.msk [vmem:[#allocation4 + $0x30] sm:$0xff] %vm257, %v1850
  %1860 = vst.msk [vmem:[#allocation4 + $0x38] sm:$0xff] %vm257, %v1852
  %v1861 = vld [vmem:[#allocation4] sm:$0xff]
  %v1862 = vld [vmem:[#allocation4 + $0x8] sm:$0xff]
  %v1863 = vld [vmem:[#allocation4 + $0x10] sm:$0xff]
  %v1864 = vld [vmem:[#allocation4 + $0x18] sm:$0xff]
  %v1865 = vmax.f32 %v1821, %v1861
  %v1866 = vmax.f32 %v1822, %v1862
  %v1867 = vmax.f32 %v1823, %v1863
  %v1868 = vmax.f32 %v1824, %v1864
  %v1869 = vld [vmem:[#allocation4 + $0x20] sm:$0xff]
  %v1870 = vld [vmem:[#allocation4 + $0x28] sm:$0xff]
  %v1871 = vld [vmem:[#allocation4 + $0x30] sm:$0xff]
  %v1872 = vld [vmem:[#allocation4 + $0x38] sm:$0xff]
  %v1873 = vmax.f32 %v1865, %v1869
  %v1874 = vmax.f32 %v1866, %v1870
  %v1875 = vmax.f32 %v1867, %v1871
  %v1876 = vmax.f32 %v1868, %v1872
  %v1877 = vsel %vm568, %v1873, 0.0
  %v1878 = vsel %vm568, %v1874, 0.0
  %v1879 = vsel %vm568, %v1875, 0.0
  %v1880 = vsel %vm568, %v1876, 0.0
  %s1881 = scalar_lea.vmem %s3, 16
  %v1882 = vld [vmem:[%s1881] sm:$0xff]
  %v1884 = vsel %vm83, %v1882, 0
  %1886 = vmatprep.subr.mxu0 0.0
  %1887 = vmatpush1.msra.mxu0 %v1877
  %1888 = vmatprep.subr.mxu0 0.0
  %1889 = vmatpush1.msra.mxu0 %v1878
  %1890 = vmatprep.subr.mxu0 0.0
  %1891 = vmatpush1.msra.mxu0 %v1879
  %1892 = vmatprep.subr.mxu0 0.0
  %1893 = vmatpush1.msra.mxu0 %v1880
  %1894 = vmatprep.subr.mxu0 0.0
  %1895 = vmatpush1.msra.mxu0 0.0
  %1896 = vmatprep.subr.mxu0 0.0
  %1897 = vmatpush1.msra.mxu0 0.0
  %1898 = vmatprep.subr.mxu0 0.0
  %1899 = vmatpush1.msra.mxu0 0.0
  %1900 = vmatprep.subr.mxu0 0.0
  %1901 = vmatpush1.msra.mxu0 0.0
  %1902 = vmatprep.subr.mxu0 0.0
  %1903 = vmatpush1.msra.mxu0 0.0
  %1904 = vmatprep.subr.mxu0 0.0
  %1905 = vmatpush1.msra.mxu0 0.0
  %1906 = vmatprep.subr.mxu0 0.0
  %1907 = vmatpush1.msra.mxu0 0.0
  %1908 = vmatprep.subr.mxu0 0.0
  %1909 = vmatpush1.msra.mxu0 0.0
  %1910 = vmatprep.subr.mxu0 0.0
  %1911 = vmatpush1.msra.mxu0 0.0
  %1912 = vmatprep.subr.mxu0 0.0
  %1913 = vmatpush1.msra.mxu0 0.0
  %1914 = vmatprep.subr.mxu0 0.0
  %1915 = vmatpush1.msra.mxu0 0.0
  %1916 = vmatprep.subr.mxu0 0.0
  %1917 = vmatpush1.msra.mxu0 0.0
  %1918 = vmatprep.subr.mxu0 0.0
  %1919 = vmatpush1.msra.mxu0 0.0
  %1920 = vmatprep.subr.mxu0 0.0
  %1921 = vmatpush1.msra.mxu0 0.0
  %1922 = vmatprep.subr.mxu0 0.0
  %1923 = vmatpush1.msra.mxu0 0.0
  %1924 = vmatprep.subr.mxu0 0.0
  %1925 = vmatpush1.msra.mxu0 0.0
  %1926 = vmatprep.subr.mxu0 0.0
  %1927 = vmatpush1.msra.mxu0 0.0
  %1928 = vmatprep.subr.mxu0 0.0
  %1929 = vmatpush1.msra.mxu0 0.0
  %1930 = vmatprep.subr.mxu0 0.0
  %1931 = vmatpush1.msra.mxu0 0.0
  %1932 = vmatprep.subr.mxu0 0.0
  %1933 = vmatpush1.msra.mxu0 0.0
  %1934 = vmatprep.subr.mxu0 0.0
  %1935 = vmatpush1.msra.mxu0 0.0
  %1936 = vmatprep.subr.mxu0 0.0
  %1937 = vmatpush1.msra.mxu0 0.0
  %1938 = vmatprep.subr.mxu0 0.0
  %1939 = vmatpush1.msra.mxu0 0.0
  %1940 = vmatprep.subr.mxu0 0.0
  %1941 = vmatpush1.msra.mxu0 0.0
  %1942 = vmatprep.subr.mxu0 0.0
  %1943 = vmatpush1.msra.mxu0 0.0
  %1944 = vmatprep.subr.mxu0 0.0
  %1945 = vmatpush1.msra.mxu0 0.0
  %1946 = vmatprep.subr.mxu0 0.0
  %1947 = vmatpush1.msra.mxu0 0.0
  %1948 = vmatprep.subr.mxu0 0.0
  %1949 = vmatpush1.msra.mxu0 0.0
  %1950 = vmatprep.mubr.f32.mxu0 0.0
  %1951 = vmatmul.mubr.f32.gmra.mrb[0].mxu0 %v1884
  %v1952 = vpop.f32.mrb[0].mxu0
  %v1953 = vadd.f32 0.0, %v1952
  %v1954 = vpop.f32.mrb[0].mxu0
  %1955 = vdwg.mxu0
  %s1956 = scalar_lea.vmem %s4, 64
  %v1957 = vld [vmem:[%s1956] sm:$0xff]
  %v1958 = vld [vmem:[%s1956 + $0x8] sm:$0xff]
  %v1959 = vld [vmem:[%s1956 + $0x10] sm:$0xff]
  %v1960 = vld [vmem:[%s1956 + $0x18] sm:$0xff]
  %1962 = vset.pattern.permute.xlu0 0
  %1963 = vperm.xlu0 %1962, %v1957
  %v1964 = vpop.permute.xlu0 %1963
  %1967 = vset.pattern.permute.xlu0 0
  %1968 = vperm.xlu0 %1967, %v1958
  %v1969 = vpop.permute.xlu0 %1968
  %1972 = vset.pattern.permute.xlu0 0
  %1973 = vperm.xlu0 %1972, %v1959
  %v1974 = vpop.permute.xlu0 %1973
  %1977 = vset.pattern.permute.xlu0 0
  %1978 = vperm.xlu0 %1977, %v1960
  %v1979 = vpop.permute.xlu0 %1978
  %v1981 = vadd.f32 %v1808, %v1964
  %v1982 = vadd.f32 %v1813, %v1969
  %v1983 = vadd.f32 %v1818, %v1974
  %v1984 = vadd.f32 %v1953, %v1979
  %v1985 = vmax.f32 %v1981, 0.0
  %v1986 = vmax.f32 %v1982, 0.0
  %v1987 = vmax.f32 %v1983, 0.0
  %v1988 = vmax.f32 %v1984, 0.0
  %v1989 = vld [vmem:[%s5] sm:$0xff]
  %v1990 = vld [vmem:[%s5 + $0x8] sm:$0xff]
  %v1991 = vld [vmem:[%s5 + $0x10] sm:$0xff]
  %v1992 = vld [vmem:[%s5 + $0x18] sm:$0xff]
  %v1993 = vld [vmem:[#allocation3] sm:$0xff]
  %v1994 = vld [vmem:[#allocation3 + $0x8] sm:$0xff]
  %v1995 = vld [vmem:[#allocation3 + $0x10] sm:$0xff]
  %v1996 = vld [vmem:[#allocation3 + $0x18] sm:$0xff]
  %v1998 = vsel %vm83, %v1989, 0
  %v2001 = vsel %vm83, %v1990, 0
  %v2004 = vsel %vm83, %v1991, 0
  %v2007 = vsel %vm83, %v1992, 0
  %2009 = vmatprep.subr.mxu0 0.0
  %2010 = vmatpush1.msra.mxu0 %v1993
  %2011 = vmatprep.subr.mxu0 0.0
  %2012 = vmatpush1.msra.mxu0 %v1994
  %2013 = vmatprep.subr.mxu0 0.0
  %2014 = vmatpush1.msra.mxu0 %v1995
  %2015 = vmatprep.subr.mxu0 0.0
  %2016 = vmatpush1.msra.mxu0 %v1996
  %2017 = vmatprep.subr.mxu0 0.0
  %2018 = vmatpush1.msra.mxu0 0.0
  %2019 = vmatprep.subr.mxu0 0.0
  %2020 = vmatpush1.msra.mxu0 0.0
  %2021 = vmatprep.subr.mxu0 0.0
  %2022 = vmatpush1.msra.mxu0 0.0
  %2023 = vmatprep.subr.mxu0 0.0
  %2024 = vmatpush1.msra.mxu0 0.0
  %2025 = vmatprep.subr.mxu0 0.0
  %2026 = vmatpush1.msra.mxu0 0.0
  %2027 = vmatprep.subr.mxu0 0.0
  %2028 = vmatpush1.msra.mxu0 0.0
  %2029 = vmatprep.subr.mxu0 0.0
  %2030 = vmatpush1.msra.mxu0 0.0
  %2031 = vmatprep.subr.mxu0 0.0
  %2032 = vmatpush1.msra.mxu0 0.0
  %2033 = vmatprep.subr.mxu0 0.0
  %2034 = vmatpush1.msra.mxu0 0.0
  %2035 = vmatprep.subr.mxu0 0.0
  %2036 = vmatpush1.msra.mxu0 0.0
  %2037 = vmatprep.subr.mxu0 0.0
  %2038 = vmatpush1.msra.mxu0 0.0
  %2039 = vmatprep.subr.mxu0 0.0
  %2040 = vmatpush1.msra.mxu0 0.0
  %2041 = vmatprep.subr.mxu0 0.0
  %2042 = vmatpush1.msra.mxu0 0.0
  %2043 = vmatprep.subr.mxu0 0.0
  %2044 = vmatpush1.msra.mxu0 0.0
  %2045 = vmatprep.subr.mxu0 0.0
  %2046 = vmatpush1.msra.mxu0 0.0
  %2047 = vmatprep.subr.mxu0 0.0
  %2048 = vmatpush1.msra.mxu0 0.0
  %2049 = vmatprep.subr.mxu0 0.0
  %2050 = vmatpush1.msra.mxu0 0.0
  %2051 = vmatprep.subr.mxu0 0.0
  %2052 = vmatpush1.msra.mxu0 0.0
  %2053 = vmatprep.subr.mxu0 0.0
  %2054 = vmatpush1.msra.mxu0 0.0
  %2055 = vmatprep.subr.mxu0 0.0
  %2056 = vmatpush1.msra.mxu0 0.0
  %2057 = vmatprep.subr.mxu0 0.0
  %2058 = vmatpush1.msra.mxu0 0.0
  %2059 = vmatprep.subr.mxu0 0.0
  %2060 = vmatpush1.msra.mxu0 0.0
  %2061 = vmatprep.subr.mxu0 0.0
  %2062 = vmatpush1.msra.mxu0 0.0
  %2063 = vmatprep.subr.mxu0 0.0
  %2064 = vmatpush1.msra.mxu0 0.0
  %2065 = vmatprep.subr.mxu0 0.0
  %2066 = vmatpush1.msra.mxu0 0.0
  %2067 = vmatprep.subr.mxu0 0.0
  %2068 = vmatpush1.msra.mxu0 0.0
  %2069 = vmatprep.subr.mxu0 0.0
  %2070 = vmatpush1.msra.mxu0 0.0
  %2071 = vmatprep.subr.mxu0 0.0
  %2072 = vmatpush1.msra.mxu0 0.0
  %2073 = vmatprep.mubr.f32.mxu0 0.0
  %2074 = vmatmul.mubr.f32.gmra.mrb[0].mxu0 %v1998
  %v2075 = vpop.f32.mrb[0].mxu0
  %v2076 = vadd.f32 0.0, %v2075
  %v2077 = vpop.f32.mrb[0].mxu0
  %2078 = vmatprep.mubr.f32.mxu0 0.0
  %2079 = vmatmul.mubr.f32.gmra.mrb[0].mxu0 %v2001
  %v2080 = vpop.f32.mrb[0].mxu0
  %v2081 = vadd.f32 0.0, %v2080
  %v2082 = vpop.f32.mrb[0].mxu0
  %2083 = vmatprep.mubr.f32.mxu0 0.0
  %2084 = vmatmul.mubr.f32.gmra.mrb[0].mxu0 %v2004
  %v2085 = vpop.f32.mrb[0].mxu0
  %v2086 = vadd.f32 0.0, %v2085
  %v2087 = vpop.f32.mrb[0].mxu0
  %2088 = vmatprep.mubr.f32.mxu0 0.0
  %2089 = vmatmul.mubr.f32.gmra.mrb[0].mxu0 %v2007
  %v2090 = vpop.f32.mrb[0].mxu0
  %v2091 = vadd.f32 0.0, %v2090
  %v2092 = vpop.f32.mrb[0].mxu0
  %2093 = vdwg.mxu0
  %v2094 = vadd.f32 %v1985, %v2076
  %v2095 = vadd.f32 %v1986, %v2081
  %v2096 = vadd.f32 %v1987, %v2086
  %v2097 = vadd.f32 %v1988, %v2091
  %v2098 = vld [vmem:[%s6] sm:$0xff]
  %v2099 = vld [vmem:[%s6 + $0x8] sm:$0xff]
  %v2100 = vld [vmem:[%s6 + $0x10] sm:$0xff]
  %v2101 = vld [vmem:[%s6 + $0x18] sm:$0xff]
  %2103 = vset.pattern.permute.xlu0 0
  %2104 = vperm.xlu0 %2103, %v2098
  %v2105 = vpop.permute.xlu0 %2104
  %2108 = vset.pattern.permute.xlu0 0
  %2109 = vperm.xlu0 %2108, %v2099
  %v2110 = vpop.permute.xlu0 %2109
  %2113 = vset.pattern.permute.xlu0 0
  %2114 = vperm.xlu0 %2113, %v2100
  %v2115 = vpop.permute.xlu0 %2114
  %2118 = vset.pattern.permute.xlu0 0
  %2119 = vperm.xlu0 %2118, %v2101
  %v2120 = vpop.permute.xlu0 %2119
  %v2122 = vadd.f32 %v2094, %v2105
  %v2123 = vadd.f32 %v2095, %v2110
  %v2124 = vadd.f32 %v2096, %v2115
  %v2125 = vadd.f32 %v2097, %v2120
  %v2126 = vmax.f32 %v2122, 0.0
  %v2127 = vmax.f32 %v2123, 0.0
  %v2128 = vmax.f32 %v2124, 0.0
  %v2129 = vmax.f32 %v2125, 0.0
  %v2130 = vsel %vm568, %v2126, 0.0
  %v2131 = vsel %vm568, %v2127, 0.0
  %v2132 = vsel %vm568, %v2128, 0.0
  %v2133 = vsel %vm568, %v2129, 0.0
  %2134 = vst.msk [vmem:[#allocation2] sm:$0xff] %vm50, %v2130
  %2135 = vst.msk [vmem:[#allocation2 + $0x8] sm:$0xff] %vm50, %v2131
  %2136 = vst.msk [vmem:[#allocation2 + $0x10] sm:$0xff] %vm50, %v2132
  %2137 = vst.msk [vmem:[#allocation2 + $0x18] sm:$0xff] %vm50, %v2133
  %2138 = vst.msk [vmem:[#allocation3] sm:$0xff] %vm50, %v2130
  %2139 = vst.msk [vmem:[#allocation3 + $0x8] sm:$0xff] %vm50, %v2131
  %2140 = vst.msk [vmem:[#allocation3 + $0x10] sm:$0xff] %vm50, %v2132
  %2141 = vst.msk [vmem:[#allocation3 + $0x18] sm:$0xff] %vm50, %v2133
  %v2142 = vld [vmem:[#allocation2] sm:$0xff]
  %v2143 = vld [vmem:[#allocation2 + $0x8] sm:$0xff]
  %v2144 = vld [vmem:[#allocation2 + $0x10] sm:$0xff]
  %v2145 = vld [vmem:[#allocation2 + $0x18] sm:$0xff]
  %s2146 = scalar_lea.vmem %s1, 24
  %v2147 = vld [vmem:[%s2146] sm:$0xff]
  %v2149 = vsel %vm83, %v2147, 0
  %2151 = vmatprep.subr.mxu0 0.0
  %2152 = vmatpush1.msra.mxu0 %v2142
  %2153 = vmatprep.subr.mxu0 0.0
  %2154 = vmatpush1.msra.mxu0 %v2143
  %2155 = vmatprep.subr.mxu0 0.0
  %2156 = vmatpush1.msra.mxu0 %v2144
  %2157 = vmatprep.subr.mxu0 0.0
  %2158 = vmatpush1.msra.mxu0 %v2145
  %2159 = vmatprep.subr.mxu0 0.0
  %2160 = vmatpush1.msra.mxu0 0.0
  %2161 = vmatprep.subr.mxu0 0.0
  %2162 = vmatpush1.msra.mxu0 0.0
  %2163 = vmatprep.subr.mxu0 0.0
  %2164 = vmatpush1.msra.mxu0 0.0
  %2165 = vmatprep.subr.mxu0 0.0
  %2166 = vmatpush1.msra.mxu0 0.0
  %2167 = vmatprep.subr.mxu0 0.0
  %2168 = vmatpush1.msra.mxu0 0.0
  %2169 = vmatprep.subr.mxu0 0.0
  %2170 = vmatpush1.msra.mxu0 0.0
  %2171 = vmatprep.subr.mxu0 0.0
  %2172 = vmatpush1.msra.mxu0 0.0
  %2173 = vmatprep.subr.mxu0 0.0
  %2174 = vmatpush1.msra.mxu0 0.0
  %2175 = vmatprep.subr.mxu0 0.0
  %2176 = vmatpush1.msra.mxu0 0.0
  %2177 = vmatprep.subr.mxu0 0.0
  %2178 = vmatpush1.msra.mxu0 0.0
  %2179 = vmatprep.subr.mxu0 0.0
  %2180 = vmatpush1.msra.mxu0 0.0
  %2181 = vmatprep.subr.mxu0 0.0
  %2182 = vmatpush1.msra.mxu0 0.0
  %2183 = vmatprep.subr.mxu0 0.0
  %2184 = vmatpush1.msra.mxu0 0.0
  %2185 = vmatprep.subr.mxu0 0.0
  %2186 = vmatpush1.msra.mxu0 0.0
  %2187 = vmatprep.subr.mxu0 0.0
  %2188 = vmatpush1.msra.mxu0 0.0
  %2189 = vmatprep.subr.mxu0 0.0
  %2190 = vmatpush1.msra.mxu0 0.0
  %2191 = vmatprep.subr.mxu0 0.0
  %2192 = vmatpush1.msra.mxu0 0.0
  %2193 = vmatprep.subr.mxu0 0.0
  %2194 = vmatpush1.msra.mxu0 0.0
  %2195 = vmatprep.subr.mxu0 0.0
  %2196 = vmatpush1.msra.mxu0 0.0
  %2197 = vmatprep.subr.mxu0 0.0
  %2198 = vmatpush1.msra.mxu0 0.0
  %2199 = vmatprep.subr.mxu0 0.0
  %2200 = vmatpush1.msra.mxu0 0.0
  %2201 = vmatprep.subr.mxu0 0.0
  %2202 = vmatpush1.msra.mxu0 0.0
  %2203 = vmatprep.subr.mxu0 0.0
  %2204 = vmatpush1.msra.mxu0 0.0
  %2205 = vmatprep.subr.mxu0 0.0
  %2206 = vmatpush1.msra.mxu0 0.0
  %2207 = vmatprep.subr.mxu0 0.0
  %2208 = vmatpush1.msra.mxu0 0.0
  %2209 = vmatprep.subr.mxu0 0.0
  %2210 = vmatpush1.msra.mxu0 0.0
  %2211 = vmatprep.subr.mxu0 0.0
  %2212 = vmatpush1.msra.mxu0 0.0
  %2213 = vmatprep.subr.mxu0 0.0
  %2214 = vmatpush1.msra.mxu0 0.0
  %2215 = vmatprep.mubr.f32.mxu0 0.0
  %2216 = vmatmul.mubr.f32.gmra.mrb[0].mxu0 %v2149
  %v2217 = vpop.f32.mrb[0].mxu0
  %v2218 = vadd.f32 0.0, %v2217
  %v2219 = vpop.f32.mrb[0].mxu0
  %2220 = vdwg.mxu0
  %2222 = vrot.lane.b32.xlu0 %v2218, 19
  %v2223 = vpop.permute.xlu0 %2222
  %2225 = vst.msk [vmem:[#allocation4] sm:$0xff] %vm161, %v2223
  %2226 = vrot.lane.b32.xlu0 %v2218, 18
  %v2227 = vpop.permute.xlu0 %2226
  %2229 = vst.msk [vmem:[#allocation4 + $0x8] sm:$0xff] %vm166, %v2227
  %2230 = vrot.lane.b32.xlu0 %v2218, 17
  %v2231 = vpop.permute.xlu0 %2230
  %2233 = vst.msk [vmem:[#allocation4 + $0x10] sm:$0xff] %vm171, %v2231
  %2234 = vrot.lane.b32.xlu0 %v2218, 16
  %v2235 = vpop.permute.xlu0 %2234
  %2237 = vst.msk [vmem:[#allocation4 + $0x18] sm:$0xff] %vm176, %v2235
  %2238 = vrot.lane.b32.xlu0 %v2218, 15
  %v2239 = vpop.permute.xlu0 %2238
  %2241 = vst.msk [vmem:[#allocation4 + $0x20] sm:$0xff] %vm181, %v2239
  %2242 = vrot.lane.b32.xlu0 %v2218, 14
  %v2243 = vpop.permute.xlu0 %2242
  %2245 = vst.msk [vmem:[#allocation4 + $0x28] sm:$0xff] %vm186, %v2243
  %2246 = vrot.lane.b32.xlu0 %v2218, 13
  %v2247 = vpop.permute.xlu0 %2246
  %2249 = vst.msk [vmem:[#allocation4 + $0x30] sm:$0xff] %vm191, %v2247
  %2250 = vrot.lane.b32.xlu0 %v2218, 12
  %v2251 = vpop.permute.xlu0 %2250
  %2253 = vst.msk [vmem:[#allocation4 + $0x38] sm:$0xff] %vm196, %v2251
  %2254 = vrot.lane.b32.xlu0 %v2218, 11
  %v2255 = vpop.permute.xlu0 %2254
  %2257 = vst.msk [vmem:[#allocation4 + $0x40] sm:$0xff] %vm201, %v2255
  %2258 = vrot.lane.b32.xlu0 %v2218, 10
  %v2259 = vpop.permute.xlu0 %2258
  %2261 = vst.msk [vmem:[#allocation4 + $0x48] sm:$0xff] %vm206, %v2259
  %2262 = vrot.lane.b32.xlu0 %v2218, 9
  %v2263 = vpop.permute.xlu0 %2262
  %2265 = vst.msk [vmem:[#allocation4 + $0x50] sm:$0xff] %vm211, %v2263
  %2266 = vrot.lane.b32.xlu0 %v2218, 8
  %v2267 = vpop.permute.xlu0 %2266
  %2269 = vst.msk [vmem:[#allocation4 + $0x58] sm:$0xff] %vm216, %v2267
  %2270 = vrot.lane.b32.xlu0 %v2218, 7
  %v2271 = vpop.permute.xlu0 %2270
  %2273 = vst.msk [vmem:[#allocation4 + $0x60] sm:$0xff] %vm221, %v2271
  %2274 = vrot.lane.b32.xlu0 %v2218, 6
  %v2275 = vpop.permute.xlu0 %2274
  %2277 = vst.msk [vmem:[#allocation4 + $0x68] sm:$0xff] %vm226, %v2275
  %2278 = vrot.lane.b32.xlu0 %v2218, 5
  %v2279 = vpop.permute.xlu0 %2278
  %2281 = vst.msk [vmem:[#allocation4 + $0x70] sm:$0xff] %vm231, %v2279
  %2282 = vrot.lane.b32.xlu0 %v2218, 4
  %v2283 = vpop.permute.xlu0 %2282
  %2285 = vst.msk [vmem:[#allocation4 + $0x78] sm:$0xff] %vm236, %v2283
  %2286 = vrot.lane.b32.xlu0 %v2218, 3
  %v2287 = vpop.permute.xlu0 %2286
  %2289 = vst.msk [vmem:[#allocation4 + $0x80] sm:$0xff] %vm241, %v2287
  %2290 = vrot.lane.b32.xlu0 %v2218, 2
  %v2291 = vpop.permute.xlu0 %2290
  %2293 = vst.msk [vmem:[#allocation4 + $0x88] sm:$0xff] %vm246, %v2291
  %2294 = vrot.lane.b32.xlu0 %v2218, 1
  %v2295 = vpop.permute.xlu0 %2294
  %2297 = vst.msk [vmem:[#allocation4 + $0x90] sm:$0xff] %vm251, %v2295
  %2298 = vst.msk [vmem:[#allocation4 + $0x98] sm:$0xff] %vm50, %v2218
  %2299 = vrot.lane.b32.xlu0 %v2218, 127
  %v2300 = vpop.permute.xlu0 %2299
  %2302 = vst.msk [vmem:[#allocation4 + $0xa0] sm:$0xff] %vm257, %v2300
  %2303 = vrot.lane.b32.xlu0 %v2218, 126
  %v2304 = vpop.permute.xlu0 %2303
  %2306 = vst.msk [vmem:[#allocation4 + $0xa8] sm:$0xff] %vm262, %v2304
  %2307 = vrot.lane.b32.xlu0 %v2218, 125
  %v2308 = vpop.permute.xlu0 %2307
  %2310 = vst.msk [vmem:[#allocation4 + $0xb0] sm:$0xff] %vm267, %v2308
  %2311 = vrot.lane.b32.xlu0 %v2218, 124
  %v2312 = vpop.permute.xlu0 %2311
  %2314 = vst.msk [vmem:[#allocation4 + $0xb8] sm:$0xff] %vm272, %v2312
  %2315 = vrot.lane.b32.xlu0 %v2218, 123
  %v2316 = vpop.permute.xlu0 %2315
  %2318 = vst.msk [vmem:[#allocation4 + $0xc0] sm:$0xff] %vm277, %v2316
  %2319 = vrot.lane.b32.xlu0 %v2218, 122
  %v2320 = vpop.permute.xlu0 %2319
  %2322 = vst.msk [vmem:[#allocation4 + $0xc8] sm:$0xff] %vm282, %v2320
  %2323 = vrot.lane.b32.xlu0 %v2218, 121
  %v2324 = vpop.permute.xlu0 %2323
  %2326 = vst.msk [vmem:[#allocation4 + $0xd0] sm:$0xff] %vm287, %v2324
  %2327 = vrot.lane.b32.xlu0 %v2218, 120
  %v2328 = vpop.permute.xlu0 %2327
  %2330 = vst.msk [vmem:[#allocation4 + $0xd8] sm:$0xff] %vm292, %v2328
  %2331 = vrot.lane.b32.xlu0 %v2218, 119
  %v2332 = vpop.permute.xlu0 %2331
  %2334 = vst.msk [vmem:[#allocation4 + $0xe0] sm:$0xff] %vm297, %v2332
  %2335 = vrot.lane.b32.xlu0 %v2218, 118
  %v2336 = vpop.permute.xlu0 %2335
  %2338 = vst.msk [vmem:[#allocation4 + $0xe8] sm:$0xff] %vm302, %v2336
  %2339 = vrot.lane.b32.xlu0 %v2218, 117
  %v2340 = vpop.permute.xlu0 %2339
  %2342 = vst.msk [vmem:[#allocation4 + $0xf0] sm:$0xff] %vm307, %v2340
  %2343 = vrot.lane.b32.xlu0 %v2218, 116
  %v2344 = vpop.permute.xlu0 %2343
  %2346 = vst.msk [vmem:[#allocation4 + $0xf8] sm:$0xff] %vm312, %v2344
  %2347 = vrot.lane.b32.xlu0 %v2218, 115
  %v2348 = vpop.permute.xlu0 %2347
  %2350 = vst.msk [vmem:[#allocation4 + $0x100] sm:$0xff] %vm317, %v2348
  %2351 = vrot.lane.b32.xlu0 %v2218, 114
  %v2352 = vpop.permute.xlu0 %2351
  %2354 = vst.msk [vmem:[#allocation4 + $0x108] sm:$0xff] %vm322, %v2352
  %2355 = vrot.lane.b32.xlu0 %v2218, 113
  %v2356 = vpop.permute.xlu0 %2355
  %2358 = vst.msk [vmem:[#allocation4 + $0x110] sm:$0xff] %vm327, %v2356
  %2359 = vrot.lane.b32.xlu0 %v2218, 112
  %v2360 = vpop.permute.xlu0 %2359
  %2362 = vst.msk [vmem:[#allocation4 + $0x118] sm:$0xff] %vm332, %v2360
  %2363 = vrot.lane.b32.xlu0 %v2218, 111
  %v2364 = vpop.permute.xlu0 %2363
  %2366 = vst.msk [vmem:[#allocation4 + $0x120] sm:$0xff] %vm337, %v2364
  %2367 = vrot.lane.b32.xlu0 %v2218, 110
  %v2368 = vpop.permute.xlu0 %2367
  %2370 = vst.msk [vmem:[#allocation4 + $0x128] sm:$0xff] %vm342, %v2368
  %2371 = vrot.lane.b32.xlu0 %v2218, 109
  %v2372 = vpop.permute.xlu0 %2371
  %2374 = vst.msk [vmem:[#allocation4 + $0x130] sm:$0xff] %vm347, %v2372
  %s2375 = scalar_lea.vmem %s2, 216
  %v2376 = vld [vmem:[%s2375] sm:$0xff]
  %v2377 = vld [vmem:[%s2375 + $0x8] sm:$0xff]
  %v2378 = vld [vmem:[%s2375 + $0x10] sm:$0xff]
  %v2379 = vld [vmem:[%s2375 + $0x18] sm:$0xff]
  %v2380 = vld [vmem:[%s2375 + $0x20] sm:$0xff]
  %v2381 = vld [vmem:[%s2375 + $0x28] sm:$0xff]
  %v2382 = vld [vmem:[%s2375 + $0x30] sm:$0xff]
  %v2383 = vld [vmem:[%s2375 + $0x38] sm:$0xff]
  %v2384 = vld [vmem:[%s2375 + $0x40] sm:$0xff]
  %v2385 = vld [vmem:[#allocation4] sm:$0xff]
  %v2386 = vld [vmem:[#allocation4 + $0x8] sm:$0xff]
  %v2387 = vld [vmem:[#allocation4 + $0x10] sm:$0xff]
  %v2388 = vld [vmem:[#allocation4 + $0x18] sm:$0xff]
  %v2389 = vld [vmem:[#allocation4 + $0x20] sm:$0xff]
  %v2390 = vld [vmem:[#allocation4 + $0x28] sm:$0xff]
  %v2391 = vld [vmem:[#allocation4 + $0x30] sm:$0xff]
  %v2392 = vld [vmem:[#allocation4 + $0x38] sm:$0xff]
  %v2393 = vld [vmem:[#allocation4 + $0x40] sm:$0xff]
  %v2394 = vld [vmem:[#allocation4 + $0x48] sm:$0xff]
  %v2395 = vld [vmem:[#allocation4 + $0x50] sm:$0xff]
  %v2396 = vld [vmem:[#allocation4 + $0x58] sm:$0xff]
  %v2397 = vld [vmem:[#allocation4 + $0x60] sm:$0xff]
  %v2398 = vld [vmem:[#allocation4 + $0x68] sm:$0xff]
  %v2399 = vld [vmem:[#allocation4 + $0x70] sm:$0xff]
  %v2400 = vld [vmem:[#allocation4 + $0x78] sm:$0xff]
  %v2401 = vld [vmem:[#allocation4 + $0x80] sm:$0xff]
  %v2402 = vld [vmem:[#allocation4 + $0x88] sm:$0xff]
  %v2403 = vld [vmem:[#allocation4 + $0x90] sm:$0xff]
  %v2404 = vld [vmem:[#allocation4 + $0x98] sm:$0xff]
  %v2405 = vld [vmem:[#allocation4 + $0xa0] sm:$0xff]
  %v2406 = vld [vmem:[#allocation4 + $0xa8] sm:$0xff]
  %v2407 = vld [vmem:[#allocation4 + $0xb0] sm:$0xff]
  %v2408 = vld [vmem:[#allocation4 + $0xb8] sm:$0xff]
  %v2409 = vld [vmem:[#allocation4 + $0xc0] sm:$0xff]
  %v2410 = vld [vmem:[#allocation4 + $0xc8] sm:$0xff]
  %v2411 = vld [vmem:[#allocation4 + $0xd0] sm:$0xff]
  %v2412 = vld [vmem:[#allocation4 + $0xd8] sm:$0xff]
  %v2413 = vld [vmem:[#allocation4 + $0xe0] sm:$0xff]
  %v2414 = vld [vmem:[#allocation4 + $0xe8] sm:$0xff]
  %v2415 = vld [vmem:[#allocation4 + $0xf0] sm:$0xff]
  %v2416 = vld [vmem:[#allocation4 + $0xf8] sm:$0xff]
  %v2417 = vld [vmem:[#allocation4 + $0x100] sm:$0xff]
  %v2418 = vld [vmem:[#allocation4 + $0x108] sm:$0xff]
  %v2419 = vld [vmem:[#allocation4 + $0x110] sm:$0xff]
  %v2420 = vld [vmem:[#allocation4 + $0x118] sm:$0xff]
  %v2421 = vld [vmem:[#allocation4 + $0x120] sm:$0xff]
  %v2422 = vld [vmem:[#allocation4 + $0x128] sm:$0xff]
  %v2423 = vld [vmem:[#allocation4 + $0x130] sm:$0xff]
  %v2425 = vsel %vm397, %v2378, 0
  %v2428 = vsel %vm397, %v2381, 0
  %v2431 = vsel %vm397, %v2384, 0
  %2433 = vmatprep.subr.mxu0 0.0
  %2434 = vmatpush1.msra.mxu0 %v2385
  %2435 = vmatprep.subr.mxu0 0.0
  %2436 = vmatpush1.msra.mxu0 %v2386
  %2437 = vmatprep.subr.mxu0 0.0
  %2438 = vmatpush1.msra.mxu0 %v2387
  %2439 = vmatprep.subr.mxu0 0.0
  %2440 = vmatpush1.msra.mxu0 %v2388
  %2441 = vmatprep.subr.mxu0 0.0
  %2442 = vmatpush1.msra.mxu0 %v2389
  %2443 = vmatprep.subr.mxu0 0.0
  %2444 = vmatpush1.msra.mxu0 %v2390
  %2445 = vmatprep.subr.mxu0 0.0
  %2446 = vmatpush1.msra.mxu0 %v2391
  %2447 = vmatprep.subr.mxu0 0.0
  %2448 = vmatpush1.msra.mxu0 %v2392
  %2449 = vmatprep.subr.mxu0 0.0
  %2450 = vmatpush1.msra.mxu0 %v2393
  %2451 = vmatprep.subr.mxu0 0.0
  %2452 = vmatpush1.msra.mxu0 %v2394
  %2453 = vmatprep.subr.mxu0 0.0
  %2454 = vmatpush1.msra.mxu0 %v2395
  %2455 = vmatprep.subr.mxu0 0.0
  %2456 = vmatpush1.msra.mxu0 %v2396
  %2457 = vmatprep.subr.mxu0 0.0
  %2458 = vmatpush1.msra.mxu0 %v2397
  %2459 = vmatprep.subr.mxu0 0.0
  %2460 = vmatpush1.msra.mxu0 %v2398
  %2461 = vmatprep.subr.mxu0 0.0
  %2462 = vmatpush1.msra.mxu0 %v2399
  %2463 = vmatprep.subr.mxu0 0.0
  %2464 = vmatpush1.msra.mxu0 %v2400
  %2465 = vmatprep.subr.mxu0 0.0
  %2466 = vmatpush1.msra.mxu0 %v2401
  %2467 = vmatprep.subr.mxu0 0.0
  %2468 = vmatpush1.msra.mxu0 %v2402
  %2469 = vmatprep.subr.mxu0 0.0
  %2470 = vmatpush1.msra.mxu0 %v2403
  %2471 = vmatprep.subr.mxu0 0.0
  %2472 = vmatpush1.msra.mxu0 %v2404
  %2473 = vmatprep.subr.mxu0 0.0
  %2474 = vmatpush1.msra.mxu0 %v2405
  %2475 = vmatprep.subr.mxu0 0.0
  %2476 = vmatpush1.msra.mxu0 %v2406
  %2477 = vmatprep.subr.mxu0 0.0
  %2478 = vmatpush1.msra.mxu0 %v2407
  %2479 = vmatprep.subr.mxu0 0.0
  %2480 = vmatpush1.msra.mxu0 %v2408
  %2481 = vmatprep.subr.mxu0 0.0
  %2482 = vmatpush1.msra.mxu0 %v2409
  %2483 = vmatprep.subr.mxu0 0.0
  %2484 = vmatpush1.msra.mxu0 %v2410
  %2485 = vmatprep.subr.mxu0 0.0
  %2486 = vmatpush1.msra.mxu0 %v2411
  %2487 = vmatprep.subr.mxu0 0.0
  %2488 = vmatpush1.msra.mxu0 %v2412
  %2489 = vmatprep.subr.mxu0 0.0
  %2490 = vmatpush1.msra.mxu0 %v2413
  %2491 = vmatprep.subr.mxu0 0.0
  %2492 = vmatpush1.msra.mxu0 %v2414
  %2493 = vmatprep.subr.mxu0 0.0
  %2494 = vmatpush1.msra.mxu0 %v2415
  %2495 = vmatprep.subr.mxu0 0.0
  %2496 = vmatpush1.msra.mxu0 %v2416
  %2497 = vmatprep.mubr.f32.mxu0 %v2377
  %2498 = vmatmul.mubr.f32.gmra.mrb[0].mxu0 %v2376
  %v2499 = vpop.f32.mrb[0].mxu0
  %v2500 = vadd.f32 0.0, %v2499
  %v2501 = vpop.f32.mrb[0].mxu0
  %2502 = vmatprep.mubr.f32.mxu0 %v2380
  %2503 = vmatmul.mubr.f32.gmra.mrb[0].mxu0 %v2379
  %v2504 = vpop.f32.mrb[0].mxu0
  %v2505 = vadd.f32 0.0, %v2504
  %v2506 = vpop.f32.mrb[0].mxu0
  %2507 = vmatprep.mubr.f32.mxu0 %v2383
  %2508 = vmatmul.mubr.f32.gmra.mrb[0].mxu0 %v2382
  %v2509 = vpop.f32.mrb[0].mxu0
  %v2510 = vadd.f32 0.0, %v2509
  %v2511 = vpop.f32.mrb[0].mxu0
  %2512 = vdwg.mxu0
  %2513 = vmatprep.subr.mxu0 0.0
  %2514 = vmatpush1.msra.mxu0 %v2417
  %2515 = vmatprep.subr.mxu0 0.0
  %2516 = vmatpush1.msra.mxu0 %v2418
  %2517 = vmatprep.subr.mxu0 0.0
  %2518 = vmatpush1.msra.mxu0 %v2419
  %2519 = vmatprep.subr.mxu0 0.0
  %2520 = vmatpush1.msra.mxu0 %v2420
  %2521 = vmatprep.subr.mxu0 0.0
  %2522 = vmatpush1.msra.mxu0 %v2421
  %2523 = vmatprep.subr.mxu0 0.0
  %2524 = vmatpush1.msra.mxu0 %v2422
  %2525 = vmatprep.subr.mxu0 0.0
  %2526 = vmatpush1.msra.mxu0 %v2423
  %2527 = vmatprep.subr.mxu0 0.0
  %2528 = vmatpush1.msra.mxu0 0.0
  %2529 = vmatprep.subr.mxu0 0.0
  %2530 = vmatpush1.msra.mxu0 0.0
  %2531 = vmatprep.subr.mxu0 0.0
  %2532 = vmatpush1.msra.mxu0 0.0
  %2533 = vmatprep.subr.mxu0 0.0
  %2534 = vmatpush1.msra.mxu0 0.0
  %2535 = vmatprep.subr.mxu0 0.0
  %2536 = vmatpush1.msra.mxu0 0.0
  %2537 = vmatprep.subr.mxu0 0.0
  %2538 = vmatpush1.msra.mxu0 0.0
  %2539 = vmatprep.subr.mxu0 0.0
  %2540 = vmatpush1.msra.mxu0 0.0
  %2541 = vmatprep.subr.mxu0 0.0
  %2542 = vmatpush1.msra.mxu0 0.0
  %2543 = vmatprep.subr.mxu0 0.0
  %2544 = vmatpush1.msra.mxu0 0.0
  %2545 = vmatprep.subr.mxu0 0.0
  %2546 = vmatpush1.msra.mxu0 0.0
  %2547 = vmatprep.subr.mxu0 0.0
  %2548 = vmatpush1.msra.mxu0 0.0
  %2549 = vmatprep.subr.mxu0 0.0
  %2550 = vmatpush1.msra.mxu0 0.0
  %2551 = vmatprep.subr.mxu0 0.0
  %2552 = vmatpush1.msra.mxu0 0.0
  %2553 = vmatprep.subr.mxu0 0.0
  %2554 = vmatpush1.msra.mxu0 0.0
  %2555 = vmatprep.subr.mxu0 0.0
  %2556 = vmatpush1.msra.mxu0 0.0
  %2557 = vmatprep.subr.mxu0 0.0
  %2558 = vmatpush1.msra.mxu0 0.0
  %2559 = vmatprep.subr.mxu0 0.0
  %2560 = vmatpush1.msra.mxu0 0.0
  %2561 = vmatprep.subr.mxu0 0.0
  %2562 = vmatpush1.msra.mxu0 0.0
  %2563 = vmatprep.subr.mxu0 0.0
  %2564 = vmatpush1.msra.mxu0 0.0
  %2565 = vmatprep.subr.mxu0 0.0
  %2566 = vmatpush1.msra.mxu0 0.0
  %2567 = vmatprep.subr.mxu0 0.0
  %2568 = vmatpush1.msra.mxu0 0.0
  %2569 = vmatprep.subr.mxu0 0.0
  %2570 = vmatpush1.msra.mxu0 0.0
  %2571 = vmatprep.subr.mxu0 0.0
  %2572 = vmatpush1.msra.mxu0 0.0
  %2573 = vmatprep.subr.mxu0 0.0
  %2574 = vmatpush1.msra.mxu0 0.0
  %2575 = vmatprep.subr.mxu0 0.0
  %2576 = vmatpush1.msra.mxu0 0.0
  %2577 = vmatprep.mubr.f32.mxu0 0.0
  %2578 = vmatmul.mubr.f32.gmra.mrb[0].mxu0 %v2425
  %v2579 = vpop.f32.mrb[0].mxu0
  %v2580 = vadd.f32 %v2500, %v2579
  %v2581 = vpop.f32.mrb[0].mxu0
  %2582 = vmatprep.mubr.f32.mxu0 0.0
  %2583 = vmatmul.mubr.f32.gmra.mrb[0].mxu0 %v2428
  %v2584 = vpop.f32.mrb[0].mxu0
  %v2585 = vadd.f32 %v2505, %v2584
  %v2586 = vpop.f32.mrb[0].mxu0
  %2587 = vmatprep.mubr.f32.mxu0 0.0
  %2588 = vmatmul.mubr.f32.gmra.mrb[0].mxu0 %v2431
  %v2589 = vpop.f32.mrb[0].mxu0
  %v2590 = vadd.f32 %v2510, %v2589
  %v2591 = vpop.f32.mrb[0].mxu0
  %2592 = vdwg.mxu0
  %v2593 = vsel %vm568, %v2142, -1e+30
  %v2594 = vsel %vm568, %v2143, -1e+30
  %v2595 = vsel %vm568, %v2144, -1e+30
  %v2596 = vsel %vm568, %v2145, -1e+30
  %2601 = vrot.lane.b32.xlu0 %v2593, 1
  %v2602 = vpop.permute.xlu0 %2601
  %2603 = vrot.lane.b32.xlu0 %v2594, 1
  %v2604 = vpop.permute.xlu0 %2603
  %2605 = vrot.lane.b32.xlu0 %v2595, 1
  %v2606 = vpop.permute.xlu0 %2605
  %2607 = vrot.lane.b32.xlu0 %v2596, 1
  %v2608 = vpop.permute.xlu0 %2607
  %2613 = vst.msk [vmem:[#allocation4] sm:$0xff] %vm251, %v2602
  %2614 = vst.msk [vmem:[#allocation4 + $0x8] sm:$0xff] %vm251, %v2604
  %2615 = vst.msk [vmem:[#allocation4 + $0x10] sm:$0xff] %vm251, %v2606
  %2616 = vst.msk [vmem:[#allocation4 + $0x18] sm:$0xff] %vm251, %v2608
  %2617 = vrot.lane.b32.xlu0 %v2593, 127
  %v2618 = vpop.permute.xlu0 %2617
  %2619 = vrot.lane.b32.xlu0 %v2594, 127
  %v2620 = vpop.permute.xlu0 %2619
  %2621 = vrot.lane.b32.xlu0 %v2595, 127
  %v2622 = vpop.permute.xlu0 %2621
  %2623 = vrot.lane.b32.xlu0 %v2596, 127
  %v2624 = vpop.permute.xlu0 %2623
  %2629 = vst.msk [vmem:[#allocation4 + $0x20] sm:$0xff] %vm257, %v2618
  %2630 = vst.msk [vmem:[#allocation4 + $0x28] sm:$0xff] %vm257, %v2620
  %2631 = vst.msk [vmem:[#allocation4 + $0x30] sm:$0xff] %vm257, %v2622
  %2632 = vst.msk [vmem:[#allocation4 + $0x38] sm:$0xff] %vm257, %v2624
  %v2633 = vld [vmem:[#allocation4] sm:$0xff]
  %v2634 = vld [vmem:[#allocation4 + $0x8] sm:$0xff]
  %v2635 = vld [vmem:[#allocation4 + $0x10] sm:$0xff]
  %v2636 = vld [vmem:[#allocation4 + $0x18] sm:$0xff]
  %v2637 = vmax.f32 %v2593, %v2633
  %v2638 = vmax.f32 %v2594, %v2634
  %v2639 = vmax.f32 %v2595, %v2635
  %v2640 = vmax.f32 %v2596, %v2636
  %v2641 = vld [vmem:[#allocation4 + $0x20] sm:$0xff]
  %v2642 = vld [vmem:[#allocation4 + $0x28] sm:$0xff]
  %v2643 = vld [vmem:[#allocation4 + $0x30] sm:$0xff]
  %v2644 = vld [vmem:[#allocation4 + $0x38] sm:$0xff]
  %v2645 = vmax.f32 %v2637, %v2641
  %v2646 = vmax.f32 %v2638, %v2642
  %v2647 = vmax.f32 %v2639, %v2643
  %v2648 = vmax.f32 %v2640, %v2644
  %v2649 = vsel %vm568, %v2645, 0.0
  %v2650 = vsel %vm568, %v2646, 0.0
  %v2651 = vsel %vm568, %v2647, 0.0
  %v2652 = vsel %vm568, %v2648, 0.0
  %s2653 = scalar_lea.vmem %s3, 24
  %v2654 = vld [vmem:[%s2653] sm:$0xff]
  %v2656 = vsel %vm83, %v2654, 0
  %2658 = vmatprep.subr.mxu0 0.0
  %2659 = vmatpush1.msra.mxu0 %v2649
  %2660 = vmatprep.subr.mxu0 0.0
  %2661 = vmatpush1.msra.mxu0 %v2650
  %2662 = vmatprep.subr.mxu0 0.0
  %2663 = vmatpush1.msra.mxu0 %v2651
  %2664 = vmatprep.subr.mxu0 0.0
  %2665 = vmatpush1.msra.mxu0 %v2652
  %2666 = vmatprep.subr.mxu0 0.0
  %2667 = vmatpush1.msra.mxu0 0.0
  %2668 = vmatprep.subr.mxu0 0.0
  %2669 = vmatpush1.msra.mxu0 0.0
  %2670 = vmatprep.subr.mxu0 0.0
  %2671 = vmatpush1.msra.mxu0 0.0
  %2672 = vmatprep.subr.mxu0 0.0
  %2673 = vmatpush1.msra.mxu0 0.0
  %2674 = vmatprep.subr.mxu0 0.0
  %2675 = vmatpush1.msra.mxu0 0.0
  %2676 = vmatprep.subr.mxu0 0.0
  %2677 = vmatpush1.msra.mxu0 0.0
  %2678 = vmatprep.subr.mxu0 0.0
  %2679 = vmatpush1.msra.mxu0 0.0
  %2680 = vmatprep.subr.mxu0 0.0
  %2681 = vmatpush1.msra.mxu0 0.0
  %2682 = vmatprep.subr.mxu0 0.0
  %2683 = vmatpush1.msra.mxu0 0.0
  %2684 = vmatprep.subr.mxu0 0.0
  %2685 = vmatpush1.msra.mxu0 0.0
  %2686 = vmatprep.subr.mxu0 0.0
  %2687 = vmatpush1.msra.mxu0 0.0
  %2688 = vmatprep.subr.mxu0 0.0
  %2689 = vmatpush1.msra.mxu0 0.0
  %2690 = vmatprep.subr.mxu0 0.0
  %2691 = vmatpush1.msra.mxu0 0.0
  %2692 = vmatprep.subr.mxu0 0.0
  %2693 = vmatpush1.msra.mxu0 0.0
  %2694 = vmatprep.subr.mxu0 0.0
  %2695 = vmatpush1.msra.mxu0 0.0
  %2696 = vmatprep.subr.mxu0 0.0
  %2697 = vmatpush1.msra.mxu0 0.0
  %2698 = vmatprep.subr.mxu0 0.0
  %2699 = vmatpush1.msra.mxu0 0.0
  %2700 = vmatprep.subr.mxu0 0.0
  %2701 = vmatpush1.msra.mxu0 0.0
  %2702 = vmatprep.subr.mxu0 0.0
  %2703 = vmatpush1.msra.mxu0 0.0
  %2704 = vmatprep.subr.mxu0 0.0
  %2705 = vmatpush1.msra.mxu0 0.0
  %2706 = vmatprep.subr.mxu0 0.0
  %2707 = vmatpush1.msra.mxu0 0.0
  %2708 = vmatprep.subr.mxu0 0.0
  %2709 = vmatpush1.msra.mxu0 0.0
  %2710 = vmatprep.subr.mxu0 0.0
  %2711 = vmatpush1.msra.mxu0 0.0
  %2712 = vmatprep.subr.mxu0 0.0
  %2713 = vmatpush1.msra.mxu0 0.0
  %2714 = vmatprep.subr.mxu0 0.0
  %2715 = vmatpush1.msra.mxu0 0.0
  %2716 = vmatprep.subr.mxu0 0.0
  %2717 = vmatpush1.msra.mxu0 0.0
  %2718 = vmatprep.subr.mxu0 0.0
  %2719 = vmatpush1.msra.mxu0 0.0
  %2720 = vmatprep.subr.mxu0 0.0
  %2721 = vmatpush1.msra.mxu0 0.0
  %2722 = vmatprep.mubr.f32.mxu0 0.0
  %2723 = vmatmul.mubr.f32.gmra.mrb[0].mxu0 %v2656
  %v2724 = vpop.f32.mrb[0].mxu0
  %v2725 = vadd.f32 0.0, %v2724
  %v2726 = vpop.f32.mrb[0].mxu0
  %2727 = vdwg.mxu0
  %s2728 = scalar_lea.vmem %s4, 96
  %v2729 = vld [vmem:[%s2728] sm:$0xff]
  %v2730 = vld [vmem:[%s2728 + $0x8] sm:$0xff]
  %v2731 = vld [vmem:[%s2728 + $0x10] sm:$0xff]
  %v2732 = vld [vmem:[%s2728 + $0x18] sm:$0xff]
  %2734 = vset.pattern.permute.xlu0 0
  %2735 = vperm.xlu0 %2734, %v2729
  %v2736 = vpop.permute.xlu0 %2735
  %2739 = vset.pattern.permute.xlu0 0
  %2740 = vperm.xlu0 %2739, %v2730
  %v2741 = vpop.permute.xlu0 %2740
  %2744 = vset.pattern.permute.xlu0 0
  %2745 = vperm.xlu0 %2744, %v2731
  %v2746 = vpop.permute.xlu0 %2745
  %2749 = vset.pattern.permute.xlu0 0
  %2750 = vperm.xlu0 %2749, %v2732
  %v2751 = vpop.permute.xlu0 %2750
  %v2753 = vadd.f32 %v2580, %v2736
  %v2754 = vadd.f32 %v2585, %v2741
  %v2755 = vadd.f32 %v2590, %v2746
  %v2756 = vadd.f32 %v2725, %v2751
  %v2757 = vmax.f32 %v2753, 0.0
  %v2758 = vmax.f32 %v2754, 0.0
  %v2759 = vmax.f32 %v2755, 0.0
  %v2760 = vmax.f32 %v2756, 0.0
  %v2761 = vsel %vm568, %v2757, 0.0
  %v2762 = vsel %vm568, %v2758, 0.0
  %v2763 = vsel %vm568, %v2759, 0.0
  %v2764 = vsel %vm568, %v2760, 0.0
  %2765 = vst.msk [vmem:[#allocation2] sm:$0xff] %vm50, %v2761
  %2766 = vst.msk [vmem:[#allocation2 + $0x8] sm:$0xff] %vm50, %v2762
  %2767 = vst.msk [vmem:[#allocation2 + $0x10] sm:$0xff] %vm50, %v2763
  %2768 = vst.msk [vmem:[#allocation2 + $0x18] sm:$0xff] %vm50, %v2764
  %v2769 = vld [vmem:[#allocation2] sm:$0xff]
  %v2770 = vld [vmem:[#allocation2 + $0x8] sm:$0xff]
  %v2771 = vld [vmem:[#allocation2 + $0x10] sm:$0xff]
  %v2772 = vld [vmem:[#allocation2 + $0x18] sm:$0xff]
  %s2773 = scalar_lea.vmem %s1, 32
  %v2774 = vld [vmem:[%s2773] sm:$0xff]
  %v2776 = vsel %vm83, %v2774, 0
  %2778 = vmatprep.subr.mxu0 0.0
  %2779 = vmatpush1.msra.mxu0 %v2769
  %2780 = vmatprep.subr.mxu0 0.0
  %2781 = vmatpush1.msra.mxu0 %v2770
  %2782 = vmatprep.subr.mxu0 0.0
  %2783 = vmatpush1.msra.mxu0 %v2771
  %2784 = vmatprep.subr.mxu0 0.0
  %2785 = vmatpush1.msra.mxu0 %v2772
  %2786 = vmatprep.subr.mxu0 0.0
  %2787 = vmatpush1.msra.mxu0 0.0
  %2788 = vmatprep.subr.mxu0 0.0
  %2789 = vmatpush1.msra.mxu0 0.0
  %2790 = vmatprep.subr.mxu0 0.0
  %2791 = vmatpush1.msra.mxu0 0.0
  %2792 = vmatprep.subr.mxu0 0.0
  %2793 = vmatpush1.msra.mxu0 0.0
  %2794 = vmatprep.subr.mxu0 0.0
  %2795 = vmatpush1.msra.mxu0 0.0
  %2796 = vmatprep.subr.mxu0 0.0
  %2797 = vmatpush1.msra.mxu0 0.0
  %2798 = vmatprep.subr.mxu0 0.0
  %2799 = vmatpush1.msra.mxu0 0.0
  %2800 = vmatprep.subr.mxu0 0.0
  %2801 = vmatpush1.msra.mxu0 0.0
  %2802 = vmatprep.subr.mxu0 0.0
  %2803 = vmatpush1.msra.mxu0 0.0
  %2804 = vmatprep.subr.mxu0 0.0
  %2805 = vmatpush1.msra.mxu0 0.0
  %2806 = vmatprep.subr.mxu0 0.0
  %2807 = vmatpush1.msra.mxu0 0.0
  %2808 = vmatprep.subr.mxu0 0.0
  %2809 = vmatpush1.msra.mxu0 0.0
  %2810 = vmatprep.subr.mxu0 0.0
  %2811 = vmatpush1.msra.mxu0 0.0
  %2812 = vmatprep.subr.mxu0 0.0
  %2813 = vmatpush1.msra.mxu0 0.0
  %2814 = vmatprep.subr.mxu0 0.0
  %2815 = vmatpush1.msra.mxu0 0.0
  %2816 = vmatprep.subr.mxu0 0.0
  %2817 = vmatpush1.msra.mxu0 0.0
  %2818 = vmatprep.subr.mxu0 0.0
  %2819 = vmatpush1.msra.mxu0 0.0
  %2820 = vmatprep.subr.mxu0 0.0
  %2821 = vmatpush1.msra.mxu0 0.0
  %2822 = vmatprep.subr.mxu0 0.0
  %2823 = vmatpush1.msra.mxu0 0.0
  %2824 = vmatprep.subr.mxu0 0.0
  %2825 = vmatpush1.msra.mxu0 0.0
  %2826 = vmatprep.subr.mxu0 0.0
  %2827 = vmatpush1.msra.mxu0 0.0
  %2828 = vmatprep.subr.mxu0 0.0
  %2829 = vmatpush1.msra.mxu0 0.0
  %2830 = vmatprep.subr.mxu0 0.0
  %2831 = vmatpush1.msra.mxu0 0.0
  %2832 = vmatprep.subr.mxu0 0.0
  %2833 = vmatpush1.msra.mxu0 0.0
  %2834 = vmatprep.subr.mxu0 0.0
  %2835 = vmatpush1.msra.mxu0 0.0
  %2836 = vmatprep.subr.mxu0 0.0
  %2837 = vmatpush1.msra.mxu0 0.0
  %2838 = vmatprep.subr.mxu0 0.0
  %2839 = vmatpush1.msra.mxu0 0.0
  %2840 = vmatprep.subr.mxu0 0.0
  %2841 = vmatpush1.msra.mxu0 0.0
  %2842 = vmatprep.mubr.f32.mxu0 0.0
  %2843 = vmatmul.mubr.f32.gmra.mrb[0].mxu0 %v2776
  %v2844 = vpop.f32.mrb[0].mxu0
  %v2845 = vadd.f32 0.0, %v2844
  %v2846 = vpop.f32.mrb[0].mxu0
  %2847 = vdwg.mxu0
  %2849 = vrot.lane.b32.xlu0 %v2845, 19
  %v2850 = vpop.permute.xlu0 %2849
  %2852 = vst.msk [vmem:[#allocation4] sm:$0xff] %vm161, %v2850
  %2853 = vrot.lane.b32.xlu0 %v2845, 18
  %v2854 = vpop.permute.xlu0 %2853
  %2856 = vst.msk [vmem:[#allocation4 + $0x8] sm:$0xff] %vm166, %v2854
  %2857 = vrot.lane.b32.xlu0 %v2845, 17
  %v2858 = vpop.permute.xlu0 %2857
  %2860 = vst.msk [vmem:[#allocation4 + $0x10] sm:$0xff] %vm171, %v2858
  %2861 = vrot.lane.b32.xlu0 %v2845, 16
  %v2862 = vpop.permute.xlu0 %2861
  %2864 = vst.msk [vmem:[#allocation4 + $0x18] sm:$0xff] %vm176, %v2862
  %2865 = vrot.lane.b32.xlu0 %v2845, 15
  %v2866 = vpop.permute.xlu0 %2865
  %2868 = vst.msk [vmem:[#allocation4 + $0x20] sm:$0xff] %vm181, %v2866
  %2869 = vrot.lane.b32.xlu0 %v2845, 14
  %v2870 = vpop.permute.xlu0 %2869
  %2872 = vst.msk [vmem:[#allocation4 + $0x28] sm:$0xff] %vm186, %v2870
  %2873 = vrot.lane.b32.xlu0 %v2845, 13
  %v2874 = vpop.permute.xlu0 %2873
  %2876 = vst.msk [vmem:[#allocation4 + $0x30] sm:$0xff] %vm191, %v2874
  %2877 = vrot.lane.b32.xlu0 %v2845, 12
  %v2878 = vpop.permute.xlu0 %2877
  %2880 = vst.msk [vmem:[#allocation4 + $0x38] sm:$0xff] %vm196, %v2878
  %2881 = vrot.lane.b32.xlu0 %v2845, 11
  %v2882 = vpop.permute.xlu0 %2881
  %2884 = vst.msk [vmem:[#allocation4 + $0x40] sm:$0xff] %vm201, %v2882
  %2885 = vrot.lane.b32.xlu0 %v2845, 10
  %v2886 = vpop.permute.xlu0 %2885
  %2888 = vst.msk [vmem:[#allocation4 + $0x48] sm:$0xff] %vm206, %v2886
  %2889 = vrot.lane.b32.xlu0 %v2845, 9
  %v2890 = vpop.permute.xlu0 %2889
  %2892 = vst.msk [vmem:[#allocation4 + $0x50] sm:$0xff] %vm211, %v2890
  %2893 = vrot.lane.b32.xlu0 %v2845, 8
  %v2894 = vpop.permute.xlu0 %2893
  %2896 = vst.msk [vmem:[#allocation4 + $0x58] sm:$0xff] %vm216, %v2894
  %2897 = vrot.lane.b32.xlu0 %v2845, 7
  %v2898 = vpop.permute.xlu0 %2897
  %2900 = vst.msk [vmem:[#allocation4 + $0x60] sm:$0xff] %vm221, %v2898
  %2901 = vrot.lane.b32.xlu0 %v2845, 6
  %v2902 = vpop.permute.xlu0 %2901
  %2904 = vst.msk [vmem:[#allocation4 + $0x68] sm:$0xff] %vm226, %v2902
  %2905 = vrot.lane.b32.xlu0 %v2845, 5
  %v2906 = vpop.permute.xlu0 %2905
  %2908 = vst.msk [vmem:[#allocation4 + $0x70] sm:$0xff] %vm231, %v2906
  %2909 = vrot.lane.b32.xlu0 %v2845, 4
  %v2910 = vpop.permute.xlu0 %2909
  %2912 = vst.msk [vmem:[#allocation4 + $0x78] sm:$0xff] %vm236, %v2910
  %2913 = vrot.lane.b32.xlu0 %v2845, 3
  %v2914 = vpop.permute.xlu0 %2913
  %2916 = vst.msk [vmem:[#allocation4 + $0x80] sm:$0xff] %vm241, %v2914
  %2917 = vrot.lane.b32.xlu0 %v2845, 2
  %v2918 = vpop.permute.xlu0 %2917
  %2920 = vst.msk [vmem:[#allocation4 + $0x88] sm:$0xff] %vm246, %v2918
  %2921 = vrot.lane.b32.xlu0 %v2845, 1
  %v2922 = vpop.permute.xlu0 %2921
  %2924 = vst.msk [vmem:[#allocation4 + $0x90] sm:$0xff] %vm251, %v2922
  %2925 = vst.msk [vmem:[#allocation4 + $0x98] sm:$0xff] %vm50, %v2845
  %2926 = vrot.lane.b32.xlu0 %v2845, 127
  %v2927 = vpop.permute.xlu0 %2926
  %2929 = vst.msk [vmem:[#allocation4 + $0xa0] sm:$0xff] %vm257, %v2927
  %2930 = vrot.lane.b32.xlu0 %v2845, 126
  %v2931 = vpop.permute.xlu0 %2930
  %2933 = vst.msk [vmem:[#allocation4 + $0xa8] sm:$0xff] %vm262, %v2931
  %2934 = vrot.lane.b32.xlu0 %v2845, 125
  %v2935 = vpop.permute.xlu0 %2934
  %2937 = vst.msk [vmem:[#allocation4 + $0xb0] sm:$0xff] %vm267, %v2935
  %2938 = vrot.lane.b32.xlu0 %v2845, 124
  %v2939 = vpop.permute.xlu0 %2938
  %2941 = vst.msk [vmem:[#allocation4 + $0xb8] sm:$0xff] %vm272, %v2939
  %2942 = vrot.lane.b32.xlu0 %v2845, 123
  %v2943 = vpop.permute.xlu0 %2942
  %2945 = vst.msk [vmem:[#allocation4 + $0xc0] sm:$0xff] %vm277, %v2943
  %2946 = vrot.lane.b32.xlu0 %v2845, 122
  %v2947 = vpop.permute.xlu0 %2946
  %2949 = vst.msk [vmem:[#allocation4 + $0xc8] sm:$0xff] %vm282, %v2947
  %2950 = vrot.lane.b32.xlu0 %v2845, 121
  %v2951 = vpop.permute.xlu0 %2950
  %2953 = vst.msk [vmem:[#allocation4 + $0xd0] sm:$0xff] %vm287, %v2951
  %2954 = vrot.lane.b32.xlu0 %v2845, 120
  %v2955 = vpop.permute.xlu0 %2954
  %2957 = vst.msk [vmem:[#allocation4 + $0xd8] sm:$0xff] %vm292, %v2955
  %2958 = vrot.lane.b32.xlu0 %v2845, 119
  %v2959 = vpop.permute.xlu0 %2958
  %2961 = vst.msk [vmem:[#allocation4 + $0xe0] sm:$0xff] %vm297, %v2959
  %2962 = vrot.lane.b32.xlu0 %v2845, 118
  %v2963 = vpop.permute.xlu0 %2962
  %2965 = vst.msk [vmem:[#allocation4 + $0xe8] sm:$0xff] %vm302, %v2963
  %2966 = vrot.lane.b32.xlu0 %v2845, 117
  %v2967 = vpop.permute.xlu0 %2966
  %2969 = vst.msk [vmem:[#allocation4 + $0xf0] sm:$0xff] %vm307, %v2967
  %2970 = vrot.lane.b32.xlu0 %v2845, 116
  %v2971 = vpop.permute.xlu0 %2970
  %2973 = vst.msk [vmem:[#allocation4 + $0xf8] sm:$0xff] %vm312, %v2971
  %2974 = vrot.lane.b32.xlu0 %v2845, 115
  %v2975 = vpop.permute.xlu0 %2974
  %2977 = vst.msk [vmem:[#allocation4 + $0x100] sm:$0xff] %vm317, %v2975
  %2978 = vrot.lane.b32.xlu0 %v2845, 114
  %v2979 = vpop.permute.xlu0 %2978
  %2981 = vst.msk [vmem:[#allocation4 + $0x108] sm:$0xff] %vm322, %v2979
  %2982 = vrot.lane.b32.xlu0 %v2845, 113
  %v2983 = vpop.permute.xlu0 %2982
  %2985 = vst.msk [vmem:[#allocation4 + $0x110] sm:$0xff] %vm327, %v2983
  %2986 = vrot.lane.b32.xlu0 %v2845, 112
  %v2987 = vpop.permute.xlu0 %2986
  %2989 = vst.msk [vmem:[#allocation4 + $0x118] sm:$0xff] %vm332, %v2987
  %2990 = vrot.lane.b32.xlu0 %v2845, 111
  %v2991 = vpop.permute.xlu0 %2990
  %2993 = vst.msk [vmem:[#allocation4 + $0x120] sm:$0xff] %vm337, %v2991
  %2994 = vrot.lane.b32.xlu0 %v2845, 110
  %v2995 = vpop.permute.xlu0 %2994
  %2997 = vst.msk [vmem:[#allocation4 + $0x128] sm:$0xff] %vm342, %v2995
  %2998 = vrot.lane.b32.xlu0 %v2845, 109
  %v2999 = vpop.permute.xlu0 %2998
  %3001 = vst.msk [vmem:[#allocation4 + $0x130] sm:$0xff] %vm347, %v2999
  %s3002 = scalar_lea.vmem %s2, 288
  %v3003 = vld [vmem:[%s3002] sm:$0xff]
  %v3004 = vld [vmem:[%s3002 + $0x8] sm:$0xff]
  %v3005 = vld [vmem:[%s3002 + $0x10] sm:$0xff]
  %v3006 = vld [vmem:[%s3002 + $0x18] sm:$0xff]
  %v3007 = vld [vmem:[%s3002 + $0x20] sm:$0xff]
  %v3008 = vld [vmem:[%s3002 + $0x28] sm:$0xff]
  %v3009 = vld [vmem:[%s3002 + $0x30] sm:$0xff]
  %v3010 = vld [vmem:[%s3002 + $0x38] sm:$0xff]
  %v3011 = vld [vmem:[%s3002 + $0x40] sm:$0xff]
  %v3012 = vld [vmem:[#allocation4] sm:$0xff]
  %v3013 = vld [vmem:[#allocation4 + $0x8] sm:$0xff]
  %v3014 = vld [vmem:[#allocation4 + $0x10] sm:$0xff]
  %v3015 = vld [vmem:[#allocation4 + $0x18] sm:$0xff]
  %v3016 = vld [vmem:[#allocation4 + $0x20] sm:$0xff]
  %v3017 = vld [vmem:[#allocation4 + $0x28] sm:$0xff]
  %v3018 = vld [vmem:[#allocation4 + $0x30] sm:$0xff]
  %v3019 = vld [vmem:[#allocation4 + $0x38] sm:$0xff]
  %v3020 = vld [vmem:[#allocation4 + $0x40] sm:$0xff]
  %v3021 = vld [vmem:[#allocation4 + $0x48] sm:$0xff]
  %v3022 = vld [vmem:[#allocation4 + $0x50] sm:$0xff]
  %v3023 = vld [vmem:[#allocation4 + $0x58] sm:$0xff]
  %v3024 = vld [vmem:[#allocation4 + $0x60] sm:$0xff]
  %v3025 = vld [vmem:[#allocation4 + $0x68] sm:$0xff]
  %v3026 = vld [vmem:[#allocation4 + $0x70] sm:$0xff]
  %v3027 = vld [vmem:[#allocation4 + $0x78] sm:$0xff]
  %v3028 = vld [vmem:[#allocation4 + $0x80] sm:$0xff]
  %v3029 = vld [vmem:[#allocation4 + $0x88] sm:$0xff]
  %v3030 = vld [vmem:[#allocation4 + $0x90] sm:$0xff]
  %v3031 = vld [vmem:[#allocation4 + $0x98] sm:$0xff]
  %v3032 = vld [vmem:[#allocation4 + $0xa0] sm:$0xff]
  %v3033 = vld [vmem:[#allocation4 + $0xa8] sm:$0xff]
  %v3034 = vld [vmem:[#allocation4 + $0xb0] sm:$0xff]
  %v3035 = vld [vmem:[#allocation4 + $0xb8] sm:$0xff]
  %v3036 = vld [vmem:[#allocation4 + $0xc0] sm:$0xff]
  %v3037 = vld [vmem:[#allocation4 + $0xc8] sm:$0xff]
  %v3038 = vld [vmem:[#allocation4 + $0xd0] sm:$0xff]
  %v3039 = vld [vmem:[#allocation4 + $0xd8] sm:$0xff]
  %v3040 = vld [vmem:[#allocation4 + $0xe0] sm:$0xff]
  %v3041 = vld [vmem:[#allocation4 + $0xe8] sm:$0xff]
  %v3042 = vld [vmem:[#allocation4 + $0xf0] sm:$0xff]
  %v3043 = vld [vmem:[#allocation4 + $0xf8] sm:$0xff]
  %v3044 = vld [vmem:[#allocation4 + $0x100] sm:$0xff]
  %v3045 = vld [vmem:[#allocation4 + $0x108] sm:$0xff]
  %v3046 = vld [vmem:[#allocation4 + $0x110] sm:$0xff]
  %v3047 = vld [vmem:[#allocation4 + $0x118] sm:$0xff]
  %v3048 = vld [vmem:[#allocation4 + $0x120] sm:$0xff]
  %v3049 = vld [vmem:[#allocation4 + $0x128] sm:$0xff]
  %v3050 = vld [vmem:[#allocation4 + $0x130] sm:$0xff]
  %v3052 = vsel %vm397, %v3005, 0
  %v3055 = vsel %vm397, %v3008, 0
  %v3058 = vsel %vm397, %v3011, 0
  %3060 = vmatprep.subr.mxu0 0.0
  %3061 = vmatpush1.msra.mxu0 %v3012
  %3062 = vmatprep.subr.mxu0 0.0
  %3063 = vmatpush1.msra.mxu0 %v3013
  %3064 = vmatprep.subr.mxu0 0.0
  %3065 = vmatpush1.msra.mxu0 %v3014
  %3066 = vmatprep.subr.mxu0 0.0
  %3067 = vmatpush1.msra.mxu0 %v3015
  %3068 = vmatprep.subr.mxu0 0.0
  %3069 = vmatpush1.msra.mxu0 %v3016
  %3070 = vmatprep.subr.mxu0 0.0
  %3071 = vmatpush1.msra.mxu0 %v3017
  %3072 = vmatprep.subr.mxu0 0.0
  %3073 = vmatpush1.msra.mxu0 %v3018
  %3074 = vmatprep.subr.mxu0 0.0
  %3075 = vmatpush1.msra.mxu0 %v3019
  %3076 = vmatprep.subr.mxu0 0.0
  %3077 = vmatpush1.msra.mxu0 %v3020
  %3078 = vmatprep.subr.mxu0 0.0
  %3079 = vmatpush1.msra.mxu0 %v3021
  %3080 = vmatprep.subr.mxu0 0.0
  %3081 = vmatpush1.msra.mxu0 %v3022
  %3082 = vmatprep.subr.mxu0 0.0
  %3083 = vmatpush1.msra.mxu0 %v3023
  %3084 = vmatprep.subr.mxu0 0.0
  %3085 = vmatpush1.msra.mxu0 %v3024
  %3086 = vmatprep.subr.mxu0 0.0
  %3087 = vmatpush1.msra.mxu0 %v3025
  %3088 = vmatprep.subr.mxu0 0.0
  %3089 = vmatpush1.msra.mxu0 %v3026
  %3090 = vmatprep.subr.mxu0 0.0
  %3091 = vmatpush1.msra.mxu0 %v3027
  %3092 = vmatprep.subr.mxu0 0.0
  %3093 = vmatpush1.msra.mxu0 %v3028
  %3094 = vmatprep.subr.mxu0 0.0
  %3095 = vmatpush1.msra.mxu0 %v3029
  %3096 = vmatprep.subr.mxu0 0.0
  %3097 = vmatpush1.msra.mxu0 %v3030
  %3098 = vmatprep.subr.mxu0 0.0
  %3099 = vmatpush1.msra.mxu0 %v3031
  %3100 = vmatprep.subr.mxu0 0.0
  %3101 = vmatpush1.msra.mxu0 %v3032
  %3102 = vmatprep.subr.mxu0 0.0
  %3103 = vmatpush1.msra.mxu0 %v3033
  %3104 = vmatprep.subr.mxu0 0.0
  %3105 = vmatpush1.msra.mxu0 %v3034
  %3106 = vmatprep.subr.mxu0 0.0
  %3107 = vmatpush1.msra.mxu0 %v3035
  %3108 = vmatprep.subr.mxu0 0.0
  %3109 = vmatpush1.msra.mxu0 %v3036
  %3110 = vmatprep.subr.mxu0 0.0
  %3111 = vmatpush1.msra.mxu0 %v3037
  %3112 = vmatprep.subr.mxu0 0.0
  %3113 = vmatpush1.msra.mxu0 %v3038
  %3114 = vmatprep.subr.mxu0 0.0
  %3115 = vmatpush1.msra.mxu0 %v3039
  %3116 = vmatprep.subr.mxu0 0.0
  %3117 = vmatpush1.msra.mxu0 %v3040
  %3118 = vmatprep.subr.mxu0 0.0
  %3119 = vmatpush1.msra.mxu0 %v3041
  %3120 = vmatprep.subr.mxu0 0.0
  %3121 = vmatpush1.msra.mxu0 %v3042
  %3122 = vmatprep.subr.mxu0 0.0
  %3123 = vmatpush1.msra.mxu0 %v3043
  %3124 = vmatprep.mubr.f32.mxu0 %v3004
  %3125 = vmatmul.mubr.f32.gmra.mrb[0].mxu0 %v3003
  %v3126 = vpop.f32.mrb[0].mxu0
  %v3127 = vadd.f32 0.0, %v3126
  %v3128 = vpop.f32.mrb[0].mxu0
  %3129 = vmatprep.mubr.f32.mxu0 %v3007
  %3130 = vmatmul.mubr.f32.gmra.mrb[0].mxu0 %v3006
  %v3131 = vpop.f32.mrb[0].mxu0
  %v3132 = vadd.f32 0.0, %v3131
  %v3133 = vpop.f32.mrb[0].mxu0
  %3134 = vmatprep.mubr.f32.mxu0 %v3010
  %3135 = vmatmul.mubr.f32.gmra.mrb[0].mxu0 %v3009
  %v3136 = vpop.f32.mrb[0].mxu0
  %v3137 = vadd.f32 0.0, %v3136
  %v3138 = vpop.f32.mrb[0].mxu0
  %3139 = vdwg.mxu0
  %3140 = vmatprep.subr.mxu0 0.0
  %3141 = vmatpush1.msra.mxu0 %v3044
  %3142 = vmatprep.subr.mxu0 0.0
  %3143 = vmatpush1.msra.mxu0 %v3045
  %3144 = vmatprep.subr.mxu0 0.0
  %3145 = vmatpush1.msra.mxu0 %v3046
  %3146 = vmatprep.subr.mxu0 0.0
  %3147 = vmatpush1.msra.mxu0 %v3047
  %3148 = vmatprep.subr.mxu0 0.0
  %3149 = vmatpush1.msra.mxu0 %v3048
  %3150 = vmatprep.subr.mxu0 0.0
  %3151 = vmatpush1.msra.mxu0 %v3049
  %3152 = vmatprep.subr.mxu0 0.0
  %3153 = vmatpush1.msra.mxu0 %v3050
  %3154 = vmatprep.subr.mxu0 0.0
  %3155 = vmatpush1.msra.mxu0 0.0
  %3156 = vmatprep.subr.mxu0 0.0
  %3157 = vmatpush1.msra.mxu0 0.0
  %3158 = vmatprep.subr.mxu0 0.0
  %3159 = vmatpush1.msra.mxu0 0.0
  %3160 = vmatprep.subr.mxu0 0.0
  %3161 = vmatpush1.msra.mxu0 0.0
  %3162 = vmatprep.subr.mxu0 0.0
  %3163 = vmatpush1.msra.mxu0 0.0
  %3164 = vmatprep.subr.mxu0 0.0
  %3165 = vmatpush1.msra.mxu0 0.0
  %3166 = vmatprep.subr.mxu0 0.0
  %3167 = vmatpush1.msra.mxu0 0.0
  %3168 = vmatprep.subr.mxu0 0.0
  %3169 = vmatpush1.msra.mxu0 0.0
  %3170 = vmatprep.subr.mxu0 0.0
  %3171 = vmatpush1.msra.mxu0 0.0
  %3172 = vmatprep.subr.mxu0 0.0
  %3173 = vmatpush1.msra.mxu0 0.0
  %3174 = vmatprep.subr.mxu0 0.0
  %3175 = vmatpush1.msra.mxu0 0.0
  %3176 = vmatprep.subr.mxu0 0.0
  %3177 = vmatpush1.msra.mxu0 0.0
  %3178 = vmatprep.subr.mxu0 0.0
  %3179 = vmatpush1.msra.mxu0 0.0
  %3180 = vmatprep.subr.mxu0 0.0
  %3181 = vmatpush1.msra.mxu0 0.0
  %3182 = vmatprep.subr.mxu0 0.0
  %3183 = vmatpush1.msra.mxu0 0.0
  %3184 = vmatprep.subr.mxu0 0.0
  %3185 = vmatpush1.msra.mxu0 0.0
  %3186 = vmatprep.subr.mxu0 0.0
  %3187 = vmatpush1.msra.mxu0 0.0
  %3188 = vmatprep.subr.mxu0 0.0
  %3189 = vmatpush1.msra.mxu0 0.0
  %3190 = vmatprep.subr.mxu0 0.0
  %3191 = vmatpush1.msra.mxu0 0.0
  %3192 = vmatprep.subr.mxu0 0.0
  %3193 = vmatpush1.msra.mxu0 0.0
  %3194 = vmatprep.subr.mxu0 0.0
  %3195 = vmatpush1.msra.mxu0 0.0
  %3196 = vmatprep.subr.mxu0 0.0
  %3197 = vmatpush1.msra.mxu0 0.0
  %3198 = vmatprep.subr.mxu0 0.0
  %3199 = vmatpush1.msra.mxu0 0.0
  %3200 = vmatprep.subr.mxu0 0.0
  %3201 = vmatpush1.msra.mxu0 0.0
  %3202 = vmatprep.subr.mxu0 0.0
  %3203 = vmatpush1.msra.mxu0 0.0
  %3204 = vmatprep.mubr.f32.mxu0 0.0
  %3205 = vmatmul.mubr.f32.gmra.mrb[0].mxu0 %v3052
  %v3206 = vpop.f32.mrb[0].mxu0
  %v3207 = vadd.f32 %v3127, %v3206
  %v3208 = vpop.f32.mrb[0].mxu0
  %3209 = vmatprep.mubr.f32.mxu0 0.0
  %3210 = vmatmul.mubr.f32.gmra.mrb[0].mxu0 %v3055
  %v3211 = vpop.f32.mrb[0].mxu0
  %v3212 = vadd.f32 %v3132, %v3211
  %v3213 = vpop.f32.mrb[0].mxu0
  %3214 = vmatprep.mubr.f32.mxu0 0.0
  %3215 = vmatmul.mubr.f32.gmra.mrb[0].mxu0 %v3058
  %v3216 = vpop.f32.mrb[0].mxu0
  %v3217 = vadd.f32 %v3137, %v3216
  %v3218 = vpop.f32.mrb[0].mxu0
  %3219 = vdwg.mxu0
  %v3220 = vsel %vm568, %v2769, -1e+30
  %v3221 = vsel %vm568, %v2770, -1e+30
  %v3222 = vsel %vm568, %v2771, -1e+30
  %v3223 = vsel %vm568, %v2772, -1e+30
  %3228 = vrot.lane.b32.xlu0 %v3220, 1
  %v3229 = vpop.permute.xlu0 %3228
  %3230 = vrot.lane.b32.xlu0 %v3221, 1
  %v3231 = vpop.permute.xlu0 %3230
  %3232 = vrot.lane.b32.xlu0 %v3222, 1
  %v3233 = vpop.permute.xlu0 %3232
  %3234 = vrot.lane.b32.xlu0 %v3223, 1
  %v3235 = vpop.permute.xlu0 %3234
  %3240 = vst.msk [vmem:[#allocation4] sm:$0xff] %vm251, %v3229
  %3241 = vst.msk [vmem:[#allocation4 + $0x8] sm:$0xff] %vm251, %v3231
  %3242 = vst.msk [vmem:[#allocation4 + $0x10] sm:$0xff] %vm251, %v3233
  %3243 = vst.msk [vmem:[#allocation4 + $0x18] sm:$0xff] %vm251, %v3235
  %3244 = vrot.lane.b32.xlu0 %v3220, 127
  %v3245 = vpop.permute.xlu0 %3244
  %3246 = vrot.lane.b32.xlu0 %v3221, 127
  %v3247 = vpop.permute.xlu0 %3246
  %3248 = vrot.lane.b32.xlu0 %v3222, 127
  %v3249 = vpop.permute.xlu0 %3248
  %3250 = vrot.lane.b32.xlu0 %v3223, 127
  %v3251 = vpop.permute.xlu0 %3250
  %3256 = vst.msk [vmem:[#allocation4 + $0x20] sm:$0xff] %vm257, %v3245
  %3257 = vst.msk [vmem:[#allocation4 + $0x28] sm:$0xff] %vm257, %v3247
  %3258 = vst.msk [vmem:[#allocation4 + $0x30] sm:$0xff] %vm257, %v3249
  %3259 = vst.msk [vmem:[#allocation4 + $0x38] sm:$0xff] %vm257, %v3251
  %v3260 = vld [vmem:[#allocation4] sm:$0xff]
  %v3261 = vld [vmem:[#allocation4 + $0x8] sm:$0xff]
  %v3262 = vld [vmem:[#allocation4 + $0x10] sm:$0xff]
  %v3263 = vld [vmem:[#allocation4 + $0x18] sm:$0xff]
  %v3264 = vmax.f32 %v3220, %v3260
  %v3265 = vmax.f32 %v3221, %v3261
  %v3266 = vmax.f32 %v3222, %v3262
  %v3267 = vmax.f32 %v3223, %v3263
  %v3268 = vld [vmem:[#allocation4 + $0x20] sm:$0xff]
  %v3269 = vld [vmem:[#allocation4 + $0x28] sm:$0xff]
  %v3270 = vld [vmem:[#allocation4 + $0x30] sm:$0xff]
  %v3271 = vld [vmem:[#allocation4 + $0x38] sm:$0xff]
  %v3272 = vmax.f32 %v3264, %v3268
  %v3273 = vmax.f32 %v3265, %v3269
  %v3274 = vmax.f32 %v3266, %v3270
  %v3275 = vmax.f32 %v3267, %v3271
  %v3276 = vsel %vm568, %v3272, 0.0
  %v3277 = vsel %vm568, %v3273, 0.0
  %v3278 = vsel %vm568, %v3274, 0.0
  %v3279 = vsel %vm568, %v3275, 0.0
  %s3280 = scalar_lea.vmem %s3, 32
  %v3281 = vld [vmem:[%s3280] sm:$0xff]
  %v3283 = vsel %vm83, %v3281, 0
  %3285 = vmatprep.subr.mxu0 0.0
  %3286 = vmatpush1.msra.mxu0 %v3276
  %3287 = vmatprep.subr.mxu0 0.0
  %3288 = vmatpush1.msra.mxu0 %v3277
  %3289 = vmatprep.subr.mxu0 0.0
  %3290 = vmatpush1.msra.mxu0 %v3278
  %3291 = vmatprep.subr.mxu0 0.0
  %3292 = vmatpush1.msra.mxu0 %v3279
  %3293 = vmatprep.subr.mxu0 0.0
  %3294 = vmatpush1.msra.mxu0 0.0
  %3295 = vmatprep.subr.mxu0 0.0
  %3296 = vmatpush1.msra.mxu0 0.0
  %3297 = vmatprep.subr.mxu0 0.0
  %3298 = vmatpush1.msra.mxu0 0.0
  %3299 = vmatprep.subr.mxu0 0.0
  %3300 = vmatpush1.msra.mxu0 0.0
  %3301 = vmatprep.subr.mxu0 0.0
  %3302 = vmatpush1.msra.mxu0 0.0
  %3303 = vmatprep.subr.mxu0 0.0
  %3304 = vmatpush1.msra.mxu0 0.0
  %3305 = vmatprep.subr.mxu0 0.0
  %3306 = vmatpush1.msra.mxu0 0.0
  %3307 = vmatprep.subr.mxu0 0.0
  %3308 = vmatpush1.msra.mxu0 0.0
  %3309 = vmatprep.subr.mxu0 0.0
  %3310 = vmatpush1.msra.mxu0 0.0
  %3311 = vmatprep.subr.mxu0 0.0
  %3312 = vmatpush1.msra.mxu0 0.0
  %3313 = vmatprep.subr.mxu0 0.0
  %3314 = vmatpush1.msra.mxu0 0.0
  %3315 = vmatprep.subr.mxu0 0.0
  %3316 = vmatpush1.msra.mxu0 0.0
  %3317 = vmatprep.subr.mxu0 0.0
  %3318 = vmatpush1.msra.mxu0 0.0
  %3319 = vmatprep.subr.mxu0 0.0
  %3320 = vmatpush1.msra.mxu0 0.0
  %3321 = vmatprep.subr.mxu0 0.0
  %3322 = vmatpush1.msra.mxu0 0.0
  %3323 = vmatprep.subr.mxu0 0.0
  %3324 = vmatpush1.msra.mxu0 0.0
  %3325 = vmatprep.subr.mxu0 0.0
  %3326 = vmatpush1.msra.mxu0 0.0
  %3327 = vmatprep.subr.mxu0 0.0
  %3328 = vmatpush1.msra.mxu0 0.0
  %3329 = vmatprep.subr.mxu0 0.0
  %3330 = vmatpush1.msra.mxu0 0.0
  %3331 = vmatprep.subr.mxu0 0.0
  %3332 = vmatpush1.msra.mxu0 0.0
  %3333 = vmatprep.subr.mxu0 0.0
  %3334 = vmatpush1.msra.mxu0 0.0
  %3335 = vmatprep.subr.mxu0 0.0
  %3336 = vmatpush1.msra.mxu0 0.0
  %3337 = vmatprep.subr.mxu0 0.0
  %3338 = vmatpush1.msra.mxu0 0.0
  %3339 = vmatprep.subr.mxu0 0.0
  %3340 = vmatpush1.msra.mxu0 0.0
  %3341 = vmatprep.subr.mxu0 0.0
  %3342 = vmatpush1.msra.mxu0 0.0
  %3343 = vmatprep.subr.mxu0 0.0
  %3344 = vmatpush1.msra.mxu0 0.0
  %3345 = vmatprep.subr.mxu0 0.0
  %3346 = vmatpush1.msra.mxu0 0.0
  %3347 = vmatprep.subr.mxu0 0.0
  %3348 = vmatpush1.msra.mxu0 0.0
  %3349 = vmatprep.mubr.f32.mxu0 0.0
  %3350 = vmatmul.mubr.f32.gmra.mrb[0].mxu0 %v3283
  %v3351 = vpop.f32.mrb[0].mxu0
  %v3352 = vadd.f32 0.0, %v3351
  %v3353 = vpop.f32.mrb[0].mxu0
  %3354 = vdwg.mxu0
  %s3355 = scalar_lea.vmem %s4, 128
  %v3356 = vld [vmem:[%s3355] sm:$0xff]
  %v3357 = vld [vmem:[%s3355 + $0x8] sm:$0xff]
  %v3358 = vld [vmem:[%s3355 + $0x10] sm:$0xff]
  %v3359 = vld [vmem:[%s3355 + $0x18] sm:$0xff]
  %3361 = vset.pattern.permute.xlu0 0
  %3362 = vperm.xlu0 %3361, %v3356
  %v3363 = vpop.permute.xlu0 %3362
  %3366 = vset.pattern.permute.xlu0 0
  %3367 = vperm.xlu0 %3366, %v3357
  %v3368 = vpop.permute.xlu0 %3367
  %3371 = vset.pattern.permute.xlu0 0
  %3372 = vperm.xlu0 %3371, %v3358
  %v3373 = vpop.permute.xlu0 %3372
  %3376 = vset.pattern.permute.xlu0 0
  %3377 = vperm.xlu0 %3376, %v3359
  %v3378 = vpop.permute.xlu0 %3377
  %v3380 = vadd.f32 %v3207, %v3363
  %v3381 = vadd.f32 %v3212, %v3368
  %v3382 = vadd.f32 %v3217, %v3373
  %v3383 = vadd.f32 %v3352, %v3378
  %v3384 = vmax.f32 %v3380, 0.0
  %v3385 = vmax.f32 %v3381, 0.0
  %v3386 = vmax.f32 %v3382, 0.0
  %v3387 = vmax.f32 %v3383, 0.0
  %v3388 = vsel %vm568, %v3384, 0.0
  %v3389 = vsel %vm568, %v3385, 0.0
  %v3390 = vsel %vm568, %v3386, 0.0
  %v3391 = vsel %vm568, %v3387, 0.0
  %3392 = vst.msk [vmem:[#allocation2] sm:$0xff] %vm50, %v3388
  %3393 = vst.msk [vmem:[#allocation2 + $0x8] sm:$0xff] %vm50, %v3389
  %3394 = vst.msk [vmem:[#allocation2 + $0x10] sm:$0xff] %vm50, %v3390
  %3395 = vst.msk [vmem:[#allocation2 + $0x18] sm:$0xff] %vm50, %v3391
  %v3396 = vld [vmem:[#allocation2] sm:$0xff]
  %v3397 = vld [vmem:[#allocation2 + $0x8] sm:$0xff]
  %v3398 = vld [vmem:[#allocation2 + $0x10] sm:$0xff]
  %v3399 = vld [vmem:[#allocation2 + $0x18] sm:$0xff]
  %s3400 = scalar_lea.vmem %s1, 40
  %v3401 = vld [vmem:[%s3400] sm:$0xff]
  %v3403 = vsel %vm83, %v3401, 0
  %3405 = vmatprep.subr.mxu0 0.0
  %3406 = vmatpush1.msra.mxu0 %v3396
  %3407 = vmatprep.subr.mxu0 0.0
  %3408 = vmatpush1.msra.mxu0 %v3397
  %3409 = vmatprep.subr.mxu0 0.0
  %3410 = vmatpush1.msra.mxu0 %v3398
  %3411 = vmatprep.subr.mxu0 0.0
  %3412 = vmatpush1.msra.mxu0 %v3399
  %3413 = vmatprep.subr.mxu0 0.0
  %3414 = vmatpush1.msra.mxu0 0.0
  %3415 = vmatprep.subr.mxu0 0.0
  %3416 = vmatpush1.msra.mxu0 0.0
  %3417 = vmatprep.subr.mxu0 0.0
  %3418 = vmatpush1.msra.mxu0 0.0
  %3419 = vmatprep.subr.mxu0 0.0
  %3420 = vmatpush1.msra.mxu0 0.0
  %3421 = vmatprep.subr.mxu0 0.0
  %3422 = vmatpush1.msra.mxu0 0.0
  %3423 = vmatprep.subr.mxu0 0.0
  %3424 = vmatpush1.msra.mxu0 0.0
  %3425 = vmatprep.subr.mxu0 0.0
  %3426 = vmatpush1.msra.mxu0 0.0
  %3427 = vmatprep.subr.mxu0 0.0
  %3428 = vmatpush1.msra.mxu0 0.0
  %3429 = vmatprep.subr.mxu0 0.0
  %3430 = vmatpush1.msra.mxu0 0.0
  %3431 = vmatprep.subr.mxu0 0.0
  %3432 = vmatpush1.msra.mxu0 0.0
  %3433 = vmatprep.subr.mxu0 0.0
  %3434 = vmatpush1.msra.mxu0 0.0
  %3435 = vmatprep.subr.mxu0 0.0
  %3436 = vmatpush1.msra.mxu0 0.0
  %3437 = vmatprep.subr.mxu0 0.0
  %3438 = vmatpush1.msra.mxu0 0.0
  %3439 = vmatprep.subr.mxu0 0.0
  %3440 = vmatpush1.msra.mxu0 0.0
  %3441 = vmatprep.subr.mxu0 0.0
  %3442 = vmatpush1.msra.mxu0 0.0
  %3443 = vmatprep.subr.mxu0 0.0
  %3444 = vmatpush1.msra.mxu0 0.0
  %3445 = vmatprep.subr.mxu0 0.0
  %3446 = vmatpush1.msra.mxu0 0.0
  %3447 = vmatprep.subr.mxu0 0.0
  %3448 = vmatpush1.msra.mxu0 0.0
  %3449 = vmatprep.subr.mxu0 0.0
  %3450 = vmatpush1.msra.mxu0 0.0
  %3451 = vmatprep.subr.mxu0 0.0
  %3452 = vmatpush1.msra.mxu0 0.0
  %3453 = vmatprep.subr.mxu0 0.0
  %3454 = vmatpush1.msra.mxu0 0.0
  %3455 = vmatprep.subr.mxu0 0.0
  %3456 = vmatpush1.msra.mxu0 0.0
  %3457 = vmatprep.subr.mxu0 0.0
  %3458 = vmatpush1.msra.mxu0 0.0
  %3459 = vmatprep.subr.mxu0 0.0
  %3460 = vmatpush1.msra.mxu0 0.0
  %3461 = vmatprep.subr.mxu0 0.0
  %3462 = vmatpush1.msra.mxu0 0.0
  %3463 = vmatprep.subr.mxu0 0.0
  %3464 = vmatpush1.msra.mxu0 0.0
  %3465 = vmatprep.subr.mxu0 0.0
  %3466 = vmatpush1.msra.mxu0 0.0
  %3467 = vmatprep.subr.mxu0 0.0
  %3468 = vmatpush1.msra.mxu0 0.0
  %3469 = vmatprep.mubr.f32.mxu0 0.0
  %3470 = vmatmul.mubr.f32.gmra.mrb[0].mxu0 %v3403
  %v3471 = vpop.f32.mrb[0].mxu0
  %v3472 = vadd.f32 0.0, %v3471
  %v3473 = vpop.f32.mrb[0].mxu0
  %3474 = vdwg.mxu0
  %3476 = vrot.lane.b32.xlu0 %v3472, 19
  %v3477 = vpop.permute.xlu0 %3476
  %3479 = vst.msk [vmem:[#allocation4] sm:$0xff] %vm161, %v3477
  %3480 = vrot.lane.b32.xlu0 %v3472, 18
  %v3481 = vpop.permute.xlu0 %3480
  %3483 = vst.msk [vmem:[#allocation4 + $0x8] sm:$0xff] %vm166, %v3481
  %3484 = vrot.lane.b32.xlu0 %v3472, 17
  %v3485 = vpop.permute.xlu0 %3484
  %3487 = vst.msk [vmem:[#allocation4 + $0x10] sm:$0xff] %vm171, %v3485
  %3488 = vrot.lane.b32.xlu0 %v3472, 16
  %v3489 = vpop.permute.xlu0 %3488
  %3491 = vst.msk [vmem:[#allocation4 + $0x18] sm:$0xff] %vm176, %v3489
  %3492 = vrot.lane.b32.xlu0 %v3472, 15
  %v3493 = vpop.permute.xlu0 %3492
  %3495 = vst.msk [vmem:[#allocation4 + $0x20] sm:$0xff] %vm181, %v3493
  %3496 = vrot.lane.b32.xlu0 %v3472, 14
  %v3497 = vpop.permute.xlu0 %3496
  %3499 = vst.msk [vmem:[#allocation4 + $0x28] sm:$0xff] %vm186, %v3497
  %3500 = vrot.lane.b32.xlu0 %v3472, 13
  %v3501 = vpop.permute.xlu0 %3500
  %3503 = vst.msk [vmem:[#allocation4 + $0x30] sm:$0xff] %vm191, %v3501
  %3504 = vrot.lane.b32.xlu0 %v3472, 12
  %v3505 = vpop.permute.xlu0 %3504
  %3507 = vst.msk [vmem:[#allocation4 + $0x38] sm:$0xff] %vm196, %v3505
  %3508 = vrot.lane.b32.xlu0 %v3472, 11
  %v3509 = vpop.permute.xlu0 %3508
  %3511 = vst.msk [vmem:[#allocation4 + $0x40] sm:$0xff] %vm201, %v3509
  %3512 = vrot.lane.b32.xlu0 %v3472, 10
  %v3513 = vpop.permute.xlu0 %3512
  %3515 = vst.msk [vmem:[#allocation4 + $0x48] sm:$0xff] %vm206, %v3513
  %3516 = vrot.lane.b32.xlu0 %v3472, 9
  %v3517 = vpop.permute.xlu0 %3516
  %3519 = vst.msk [vmem:[#allocation4 + $0x50] sm:$0xff] %vm211, %v3517
  %3520 = vrot.lane.b32.xlu0 %v3472, 8
  %v3521 = vpop.permute.xlu0 %3520
  %3523 = vst.msk [vmem:[#allocation4 + $0x58] sm:$0xff] %vm216, %v3521
  %3524 = vrot.lane.b32.xlu0 %v3472, 7
  %v3525 = vpop.permute.xlu0 %3524
  %3527 = vst.msk [vmem:[#allocation4 + $0x60] sm:$0xff] %vm221, %v3525
  %3528 = vrot.lane.b32.xlu0 %v3472, 6
  %v3529 = vpop.permute.xlu0 %3528
  %3531 = vst.msk [vmem:[#allocation4 + $0x68] sm:$0xff] %vm226, %v3529
  %3532 = vrot.lane.b32.xlu0 %v3472, 5
  %v3533 = vpop.permute.xlu0 %3532
  %3535 = vst.msk [vmem:[#allocation4 + $0x70] sm:$0xff] %vm231, %v3533
  %3536 = vrot.lane.b32.xlu0 %v3472, 4
  %v3537 = vpop.permute.xlu0 %3536
  %3539 = vst.msk [vmem:[#allocation4 + $0x78] sm:$0xff] %vm236, %v3537
  %3540 = vrot.lane.b32.xlu0 %v3472, 3
  %v3541 = vpop.permute.xlu0 %3540
  %3543 = vst.msk [vmem:[#allocation4 + $0x80] sm:$0xff] %vm241, %v3541
  %3544 = vrot.lane.b32.xlu0 %v3472, 2
  %v3545 = vpop.permute.xlu0 %3544
  %3547 = vst.msk [vmem:[#allocation4 + $0x88] sm:$0xff] %vm246, %v3545
  %3548 = vrot.lane.b32.xlu0 %v3472, 1
  %v3549 = vpop.permute.xlu0 %3548
  %3551 = vst.msk [vmem:[#allocation4 + $0x90] sm:$0xff] %vm251, %v3549
  %3552 = vst.msk [vmem:[#allocation4 + $0x98] sm:$0xff] %vm50, %v3472
  %3553 = vrot.lane.b32.xlu0 %v3472, 127
  %v3554 = vpop.permute.xlu0 %3553
  %3556 = vst.msk [vmem:[#allocation4 + $0xa0] sm:$0xff] %vm257, %v3554
  %3557 = vrot.lane.b32.xlu0 %v3472, 126
  %v3558 = vpop.permute.xlu0 %3557
  %3560 = vst.msk [vmem:[#allocation4 + $0xa8] sm:$0xff] %vm262, %v3558
  %3561 = vrot.lane.b32.xlu0 %v3472, 125
  %v3562 = vpop.permute.xlu0 %3561
  %3564 = vst.msk [vmem:[#allocation4 + $0xb0] sm:$0xff] %vm267, %v3562
  %3565 = vrot.lane.b32.xlu0 %v3472, 124
  %v3566 = vpop.permute.xlu0 %3565
  %3568 = vst.msk [vmem:[#allocation4 + $0xb8] sm:$0xff] %vm272, %v3566
  %3569 = vrot.lane.b32.xlu0 %v3472, 123
  %v3570 = vpop.permute.xlu0 %3569
  %3572 = vst.msk [vmem:[#allocation4 + $0xc0] sm:$0xff] %vm277, %v3570
  %3573 = vrot.lane.b32.xlu0 %v3472, 122
  %v3574 = vpop.permute.xlu0 %3573
  %3576 = vst.msk [vmem:[#allocation4 + $0xc8] sm:$0xff] %vm282, %v3574
  %3577 = vrot.lane.b32.xlu0 %v3472, 121
  %v3578 = vpop.permute.xlu0 %3577
  %3580 = vst.msk [vmem:[#allocation4 + $0xd0] sm:$0xff] %vm287, %v3578
  %3581 = vrot.lane.b32.xlu0 %v3472, 120
  %v3582 = vpop.permute.xlu0 %3581
  %3584 = vst.msk [vmem:[#allocation4 + $0xd8] sm:$0xff] %vm292, %v3582
  %3585 = vrot.lane.b32.xlu0 %v3472, 119
  %v3586 = vpop.permute.xlu0 %3585
  %3588 = vst.msk [vmem:[#allocation4 + $0xe0] sm:$0xff] %vm297, %v3586
  %3589 = vrot.lane.b32.xlu0 %v3472, 118
  %v3590 = vpop.permute.xlu0 %3589
  %3592 = vst.msk [vmem:[#allocation4 + $0xe8] sm:$0xff] %vm302, %v3590
  %3593 = vrot.lane.b32.xlu0 %v3472, 117
  %v3594 = vpop.permute.xlu0 %3593
  %3596 = vst.msk [vmem:[#allocation4 + $0xf0] sm:$0xff] %vm307, %v3594
  %3597 = vrot.lane.b32.xlu0 %v3472, 116
  %v3598 = vpop.permute.xlu0 %3597
  %3600 = vst.msk [vmem:[#allocation4 + $0xf8] sm:$0xff] %vm312, %v3598
  %3601 = vrot.lane.b32.xlu0 %v3472, 115
  %v3602 = vpop.permute.xlu0 %3601
  %3604 = vst.msk [vmem:[#allocation4 + $0x100] sm:$0xff] %vm317, %v3602
  %3605 = vrot.lane.b32.xlu0 %v3472, 114
  %v3606 = vpop.permute.xlu0 %3605
  %3608 = vst.msk [vmem:[#allocation4 + $0x108] sm:$0xff] %vm322, %v3606
  %3609 = vrot.lane.b32.xlu0 %v3472, 113
  %v3610 = vpop.permute.xlu0 %3609
  %3612 = vst.msk [vmem:[#allocation4 + $0x110] sm:$0xff] %vm327, %v3610
  %3613 = vrot.lane.b32.xlu0 %v3472, 112
  %v3614 = vpop.permute.xlu0 %3613
  %3616 = vst.msk [vmem:[#allocation4 + $0x118] sm:$0xff] %vm332, %v3614
  %3617 = vrot.lane.b32.xlu0 %v3472, 111
  %v3618 = vpop.permute.xlu0 %3617
  %3620 = vst.msk [vmem:[#allocation4 + $0x120] sm:$0xff] %vm337, %v3618
  %3621 = vrot.lane.b32.xlu0 %v3472, 110
  %v3622 = vpop.permute.xlu0 %3621
  %3624 = vst.msk [vmem:[#allocation4 + $0x128] sm:$0xff] %vm342, %v3622
  %3625 = vrot.lane.b32.xlu0 %v3472, 109
  %v3626 = vpop.permute.xlu0 %3625
  %3628 = vst.msk [vmem:[#allocation4 + $0x130] sm:$0xff] %vm347, %v3626
  %s3629 = scalar_lea.vmem %s2, 360
  %v3630 = vld [vmem:[%s3629] sm:$0xff]
  %v3631 = vld [vmem:[%s3629 + $0x8] sm:$0xff]
  %v3632 = vld [vmem:[%s3629 + $0x10] sm:$0xff]
  %v3633 = vld [vmem:[%s3629 + $0x18] sm:$0xff]
  %v3634 = vld [vmem:[%s3629 + $0x20] sm:$0xff]
  %v3635 = vld [vmem:[%s3629 + $0x28] sm:$0xff]
  %v3636 = vld [vmem:[%s3629 + $0x30] sm:$0xff]
  %v3637 = vld [vmem:[%s3629 + $0x38] sm:$0xff]
  %v3638 = vld [vmem:[%s3629 + $0x40] sm:$0xff]
  %v3639 = vld [vmem:[#allocation4] sm:$0xff]
  %v3640 = vld [vmem:[#allocation4 + $0x8] sm:$0xff]
  %v3641 = vld [vmem:[#allocation4 + $0x10] sm:$0xff]
  %v3642 = vld [vmem:[#allocation4 + $0x18] sm:$0xff]
  %v3643 = vld [vmem:[#allocation4 + $0x20] sm:$0xff]
  %v3644 = vld [vmem:[#allocation4 + $0x28] sm:$0xff]
  %v3645 = vld [vmem:[#allocation4 + $0x30] sm:$0xff]
  %v3646 = vld [vmem:[#allocation4 + $0x38] sm:$0xff]
  %v3647 = vld [vmem:[#allocation4 + $0x40] sm:$0xff]
  %v3648 = vld [vmem:[#allocation4 + $0x48] sm:$0xff]
  %v3649 = vld [vmem:[#allocation4 + $0x50] sm:$0xff]
  %v3650 = vld [vmem:[#allocation4 + $0x58] sm:$0xff]
  %v3651 = vld [vmem:[#allocation4 + $0x60] sm:$0xff]
  %v3652 = vld [vmem:[#allocation4 + $0x68] sm:$0xff]
  %v3653 = vld [vmem:[#allocation4 + $0x70] sm:$0xff]
  %v3654 = vld [vmem:[#allocation4 + $0x78] sm:$0xff]
  %v3655 = vld [vmem:[#allocation4 + $0x80] sm:$0xff]
  %v3656 = vld [vmem:[#allocation4 + $0x88] sm:$0xff]
  %v3657 = vld [vmem:[#allocation4 + $0x90] sm:$0xff]
  %v3658 = vld [vmem:[#allocation4 + $0x98] sm:$0xff]
  %v3659 = vld [vmem:[#allocation4 + $0xa0] sm:$0xff]
  %v3660 = vld [vmem:[#allocation4 + $0xa8] sm:$0xff]
  %v3661 = vld [vmem:[#allocation4 + $0xb0] sm:$0xff]
  %v3662 = vld [vmem:[#allocation4 + $0xb8] sm:$0xff]
  %v3663 = vld [vmem:[#allocation4 + $0xc0] sm:$0xff]
  %v3664 = vld [vmem:[#allocation4 + $0xc8] sm:$0xff]
  %v3665 = vld [vmem:[#allocation4 + $0xd0] sm:$0xff]
  %v3666 = vld [vmem:[#allocation4 + $0xd8] sm:$0xff]
  %v3667 = vld [vmem:[#allocation4 + $0xe0] sm:$0xff]
  %v3668 = vld [vmem:[#allocation4 + $0xe8] sm:$0xff]
  %v3669 = vld [vmem:[#allocation4 + $0xf0] sm:$0xff]
  %v3670 = vld [vmem:[#allocation4 + $0xf8] sm:$0xff]
  %v3671 = vld [vmem:[#allocation4 + $0x100] sm:$0xff]
  %v3672 = vld [vmem:[#allocation4 + $0x108] sm:$0xff]
  %v3673 = vld [vmem:[#allocation4 + $0x110] sm:$0xff]
  %v3674 = vld [vmem:[#allocation4 + $0x118] sm:$0xff]
  %v3675 = vld [vmem:[#allocation4 + $0x120] sm:$0xff]
  %v3676 = vld [vmem:[#allocation4 + $0x128] sm:$0xff]
  %v3677 = vld [vmem:[#allocation4 + $0x130] sm:$0xff]
  %v3679 = vsel %vm397, %v3632, 0
  %v3682 = vsel %vm397, %v3635, 0
  %v3685 = vsel %vm397, %v3638, 0
  %3687 = vmatprep.subr.mxu0 0.0
  %3688 = vmatpush1.msra.mxu0 %v3639
  %3689 = vmatprep.subr.mxu0 0.0
  %3690 = vmatpush1.msra.mxu0 %v3640
  %3691 = vmatprep.subr.mxu0 0.0
  %3692 = vmatpush1.msra.mxu0 %v3641
  %3693 = vmatprep.subr.mxu0 0.0
  %3694 = vmatpush1.msra.mxu0 %v3642
  %3695 = vmatprep.subr.mxu0 0.0
  %3696 = vmatpush1.msra.mxu0 %v3643
  %3697 = vmatprep.subr.mxu0 0.0
  %3698 = vmatpush1.msra.mxu0 %v3644
  %3699 = vmatprep.subr.mxu0 0.0
  %3700 = vmatpush1.msra.mxu0 %v3645
  %3701 = vmatprep.subr.mxu0 0.0
  %3702 = vmatpush1.msra.mxu0 %v3646
  %3703 = vmatprep.subr.mxu0 0.0
  %3704 = vmatpush1.msra.mxu0 %v3647
  %3705 = vmatprep.subr.mxu0 0.0
  %3706 = vmatpush1.msra.mxu0 %v3648
  %3707 = vmatprep.subr.mxu0 0.0
  %3708 = vmatpush1.msra.mxu0 %v3649
  %3709 = vmatprep.subr.mxu0 0.0
  %3710 = vmatpush1.msra.mxu0 %v3650
  %3711 = vmatprep.subr.mxu0 0.0
  %3712 = vmatpush1.msra.mxu0 %v3651
  %3713 = vmatprep.subr.mxu0 0.0
  %3714 = vmatpush1.msra.mxu0 %v3652
  %3715 = vmatprep.subr.mxu0 0.0
  %3716 = vmatpush1.msra.mxu0 %v3653
  %3717 = vmatprep.subr.mxu0 0.0
  %3718 = vmatpush1.msra.mxu0 %v3654
  %3719 = vmatprep.subr.mxu0 0.0
  %3720 = vmatpush1.msra.mxu0 %v3655
  %3721 = vmatprep.subr.mxu0 0.0
  %3722 = vmatpush1.msra.mxu0 %v3656
  %3723 = vmatprep.subr.mxu0 0.0
  %3724 = vmatpush1.msra.mxu0 %v3657
  %3725 = vmatprep.subr.mxu0 0.0
  %3726 = vmatpush1.msra.mxu0 %v3658
  %3727 = vmatprep.subr.mxu0 0.0
  %3728 = vmatpush1.msra.mxu0 %v3659
  %3729 = vmatprep.subr.mxu0 0.0
  %3730 = vmatpush1.msra.mxu0 %v3660
  %3731 = vmatprep.subr.mxu0 0.0
  %3732 = vmatpush1.msra.mxu0 %v3661
  %3733 = vmatprep.subr.mxu0 0.0
  %3734 = vmatpush1.msra.mxu0 %v3662
  %3735 = vmatprep.subr.mxu0 0.0
  %3736 = vmatpush1.msra.mxu0 %v3663
  %3737 = vmatprep.subr.mxu0 0.0
  %3738 = vmatpush1.msra.mxu0 %v3664
  %3739 = vmatprep.subr.mxu0 0.0
  %3740 = vmatpush1.msra.mxu0 %v3665
  %3741 = vmatprep.subr.mxu0 0.0
  %3742 = vmatpush1.msra.mxu0 %v3666
  %3743 = vmatprep.subr.mxu0 0.0
  %3744 = vmatpush1.msra.mxu0 %v3667
  %3745 = vmatprep.subr.mxu0 0.0
  %3746 = vmatpush1.msra.mxu0 %v3668
  %3747 = vmatprep.subr.mxu0 0.0
  %3748 = vmatpush1.msra.mxu0 %v3669
  %3749 = vmatprep.subr.mxu0 0.0
  %3750 = vmatpush1.msra.mxu0 %v3670
  %3751 = vmatprep.mubr.f32.mxu0 %v3631
  %3752 = vmatmul.mubr.f32.gmra.mrb[0].mxu0 %v3630
  %v3753 = vpop.f32.mrb[0].mxu0
  %v3754 = vadd.f32 0.0, %v3753
  %v3755 = vpop.f32.mrb[0].mxu0
  %3756 = vmatprep.mubr.f32.mxu0 %v3634
  %3757 = vmatmul.mubr.f32.gmra.mrb[0].mxu0 %v3633
  %v3758 = vpop.f32.mrb[0].mxu0
  %v3759 = vadd.f32 0.0, %v3758
  %v3760 = vpop.f32.mrb[0].mxu0
  %3761 = vmatprep.mubr.f32.mxu0 %v3637
  %3762 = vmatmul.mubr.f32.gmra.mrb[0].mxu0 %v3636
  %v3763 = vpop.f32.mrb[0].mxu0
  %v3764 = vadd.f32 0.0, %v3763
  %v3765 = vpop.f32.mrb[0].mxu0
  %3766 = vdwg.mxu0
  %3767 = vmatprep.subr.mxu0 0.0
  %3768 = vmatpush1.msra.mxu0 %v3671
  %3769 = vmatprep.subr.mxu0 0.0
  %3770 = vmatpush1.msra.mxu0 %v3672
  %3771 = vmatprep.subr.mxu0 0.0
  %3772 = vmatpush1.msra.mxu0 %v3673
  %3773 = vmatprep.subr.mxu0 0.0
  %3774 = vmatpush1.msra.mxu0 %v3674
  %3775 = vmatprep.subr.mxu0 0.0
  %3776 = vmatpush1.msra.mxu0 %v3675
  %3777 = vmatprep.subr.mxu0 0.0
  %3778 = vmatpush1.msra.mxu0 %v3676
  %3779 = vmatprep.subr.mxu0 0.0
  %3780 = vmatpush1.msra.mxu0 %v3677
  %3781 = vmatprep.subr.mxu0 0.0
  %3782 = vmatpush1.msra.mxu0 0.0
  %3783 = vmatprep.subr.mxu0 0.0
  %3784 = vmatpush1.msra.mxu0 0.0
  %3785 = vmatprep.subr.mxu0 0.0
  %3786 = vmatpush1.msra.mxu0 0.0
  %3787 = vmatprep.subr.mxu0 0.0
  %3788 = vmatpush1.msra.mxu0 0.0
  %3789 = vmatprep.subr.mxu0 0.0
  %3790 = vmatpush1.msra.mxu0 0.0
  %3791 = vmatprep.subr.mxu0 0.0
  %3792 = vmatpush1.msra.mxu0 0.0
  %3793 = vmatprep.subr.mxu0 0.0
  %3794 = vmatpush1.msra.mxu0 0.0
  %3795 = vmatprep.subr.mxu0 0.0
  %3796 = vmatpush1.msra.mxu0 0.0
  %3797 = vmatprep.subr.mxu0 0.0
  %3798 = vmatpush1.msra.mxu0 0.0
  %3799 = vmatprep.subr.mxu0 0.0
  %3800 = vmatpush1.msra.mxu0 0.0
  %3801 = vmatprep.subr.mxu0 0.0
  %3802 = vmatpush1.msra.mxu0 0.0
  %3803 = vmatprep.subr.mxu0 0.0
  %3804 = vmatpush1.msra.mxu0 0.0
  %3805 = vmatprep.subr.mxu0 0.0
  %3806 = vmatpush1.msra.mxu0 0.0
  %3807 = vmatprep.subr.mxu0 0.0
  %3808 = vmatpush1.msra.mxu0 0.0
  %3809 = vmatprep.subr.mxu0 0.0
  %3810 = vmatpush1.msra.mxu0 0.0
  %3811 = vmatprep.subr.mxu0 0.0
  %3812 = vmatpush1.msra.mxu0 0.0
  %3813 = vmatprep.subr.mxu0 0.0
  %3814 = vmatpush1.msra.mxu0 0.0
  %3815 = vmatprep.subr.mxu0 0.0
  %3816 = vmatpush1.msra.mxu0 0.0
  %3817 = vmatprep.subr.mxu0 0.0
  %3818 = vmatpush1.msra.mxu0 0.0
  %3819 = vmatprep.subr.mxu0 0.0
  %3820 = vmatpush1.msra.mxu0 0.0
  %3821 = vmatprep.subr.mxu0 0.0
  %3822 = vmatpush1.msra.mxu0 0.0
  %3823 = vmatprep.subr.mxu0 0.0
  %3824 = vmatpush1.msra.mxu0 0.0
  %3825 = vmatprep.subr.mxu0 0.0
  %3826 = vmatpush1.msra.mxu0 0.0
  %3827 = vmatprep.subr.mxu0 0.0
  %3828 = vmatpush1.msra.mxu0 0.0
  %3829 = vmatprep.subr.mxu0 0.0
  %3830 = vmatpush1.msra.mxu0 0.0
  %3831 = vmatprep.mubr.f32.mxu0 0.0
  %3832 = vmatmul.mubr.f32.gmra.mrb[0].mxu0 %v3679
  %v3833 = vpop.f32.mrb[0].mxu0
  %v3834 = vadd.f32 %v3754, %v3833
  %v3835 = vpop.f32.mrb[0].mxu0
  %3836 = vmatprep.mubr.f32.mxu0 0.0
  %3837 = vmatmul.mubr.f32.gmra.mrb[0].mxu0 %v3682
  %v3838 = vpop.f32.mrb[0].mxu0
  %v3839 = vadd.f32 %v3759, %v3838
  %v3840 = vpop.f32.mrb[0].mxu0
  %3841 = vmatprep.mubr.f32.mxu0 0.0
  %3842 = vmatmul.mubr.f32.gmra.mrb[0].mxu0 %v3685
  %v3843 = vpop.f32.mrb[0].mxu0
  %v3844 = vadd.f32 %v3764, %v3843
  %v3845 = vpop.f32.mrb[0].mxu0
  %3846 = vdwg.mxu0
  %v3847 = vsel %vm568, %v3396, -1e+30
  %v3848 = vsel %vm568, %v3397, -1e+30
  %v3849 = vsel %vm568, %v3398, -1e+30
  %v3850 = vsel %vm568, %v3399, -1e+30
  %3855 = vrot.lane.b32.xlu0 %v3847, 1
  %v3856 = vpop.permute.xlu0 %3855
  %3857 = vrot.lane.b32.xlu0 %v3848, 1
  %v3858 = vpop.permute.xlu0 %3857
  %3859 = vrot.lane.b32.xlu0 %v3849, 1
  %v3860 = vpop.permute.xlu0 %3859
  %3861 = vrot.lane.b32.xlu0 %v3850, 1
  %v3862 = vpop.permute.xlu0 %3861
  %3867 = vst.msk [vmem:[#allocation4] sm:$0xff] %vm251, %v3856
  %3868 = vst.msk [vmem:[#allocation4 + $0x8] sm:$0xff] %vm251, %v3858
  %3869 = vst.msk [vmem:[#allocation4 + $0x10] sm:$0xff] %vm251, %v3860
  %3870 = vst.msk [vmem:[#allocation4 + $0x18] sm:$0xff] %vm251, %v3862
  %3871 = vrot.lane.b32.xlu0 %v3847, 127
  %v3872 = vpop.permute.xlu0 %3871
  %3873 = vrot.lane.b32.xlu0 %v3848, 127
  %v3874 = vpop.permute.xlu0 %3873
  %3875 = vrot.lane.b32.xlu0 %v3849, 127
  %v3876 = vpop.permute.xlu0 %3875
  %3877 = vrot.lane.b32.xlu0 %v3850, 127
  %v3878 = vpop.permute.xlu0 %3877
  %3883 = vst.msk [vmem:[#allocation4 + $0x20] sm:$0xff] %vm257, %v3872
  %3884 = vst.msk [vmem:[#allocation4 + $0x28] sm:$0xff] %vm257, %v3874
  %3885 = vst.msk [vmem:[#allocation4 + $0x30] sm:$0xff] %vm257, %v3876
  %3886 = vst.msk [vmem:[#allocation4 + $0x38] sm:$0xff] %vm257, %v3878
  %v3887 = vld [vmem:[#allocation4] sm:$0xff]
  %v3888 = vld [vmem:[#allocation4 + $0x8] sm:$0xff]
  %v3889 = vld [vmem:[#allocation4 + $0x10] sm:$0xff]
  %v3890 = vld [vmem:[#allocation4 + $0x18] sm:$0xff]
  %v3891 = vmax.f32 %v3847, %v3887
  %v3892 = vmax.f32 %v3848, %v3888
  %v3893 = vmax.f32 %v3849, %v3889
  %v3894 = vmax.f32 %v3850, %v3890
  %v3895 = vld [vmem:[#allocation4 + $0x20] sm:$0xff]
  %v3896 = vld [vmem:[#allocation4 + $0x28] sm:$0xff]
  %v3897 = vld [vmem:[#allocation4 + $0x30] sm:$0xff]
  %v3898 = vld [vmem:[#allocation4 + $0x38] sm:$0xff]
  %v3899 = vmax.f32 %v3891, %v3895
  %v3900 = vmax.f32 %v3892, %v3896
  %v3901 = vmax.f32 %v3893, %v3897
  %v3902 = vmax.f32 %v3894, %v3898
  %v3903 = vsel %vm568, %v3899, 0.0
  %v3904 = vsel %vm568, %v3900, 0.0
  %v3905 = vsel %vm568, %v3901, 0.0
  %v3906 = vsel %vm568, %v3902, 0.0
  %s3907 = scalar_lea.vmem %s3, 40
  %v3908 = vld [vmem:[%s3907] sm:$0xff]
  %v3910 = vsel %vm83, %v3908, 0
  %3912 = vmatprep.subr.mxu0 0.0
  %3913 = vmatpush1.msra.mxu0 %v3903
  %3914 = vmatprep.subr.mxu0 0.0
  %3915 = vmatpush1.msra.mxu0 %v3904
  %3916 = vmatprep.subr.mxu0 0.0
  %3917 = vmatpush1.msra.mxu0 %v3905
  %3918 = vmatprep.subr.mxu0 0.0
  %3919 = vmatpush1.msra.mxu0 %v3906
  %3920 = vmatprep.subr.mxu0 0.0
  %3921 = vmatpush1.msra.mxu0 0.0
  %3922 = vmatprep.subr.mxu0 0.0
  %3923 = vmatpush1.msra.mxu0 0.0
  %3924 = vmatprep.subr.mxu0 0.0
  %3925 = vmatpush1.msra.mxu0 0.0
  %3926 = vmatprep.subr.mxu0 0.0
  %3927 = vmatpush1.msra.mxu0 0.0
  %3928 = vmatprep.subr.mxu0 0.0
  %3929 = vmatpush1.msra.mxu0 0.0
  %3930 = vmatprep.subr.mxu0 0.0
  %3931 = vmatpush1.msra.mxu0 0.0
  %3932 = vmatprep.subr.mxu0 0.0
  %3933 = vmatpush1.msra.mxu0 0.0
  %3934 = vmatprep.subr.mxu0 0.0
  %3935 = vmatpush1.msra.mxu0 0.0
  %3936 = vmatprep.subr.mxu0 0.0
  %3937 = vmatpush1.msra.mxu0 0.0
  %3938 = vmatprep.subr.mxu0 0.0
  %3939 = vmatpush1.msra.mxu0 0.0
  %3940 = vmatprep.subr.mxu0 0.0
  %3941 = vmatpush1.msra.mxu0 0.0
  %3942 = vmatprep.subr.mxu0 0.0
  %3943 = vmatpush1.msra.mxu0 0.0
  %3944 = vmatprep.subr.mxu0 0.0
  %3945 = vmatpush1.msra.mxu0 0.0
  %3946 = vmatprep.subr.mxu0 0.0
  %3947 = vmatpush1.msra.mxu0 0.0
  %3948 = vmatprep.subr.mxu0 0.0
  %3949 = vmatpush1.msra.mxu0 0.0
  %3950 = vmatprep.subr.mxu0 0.0
  %3951 = vmatpush1.msra.mxu0 0.0
  %3952 = vmatprep.subr.mxu0 0.0
  %3953 = vmatpush1.msra.mxu0 0.0
  %3954 = vmatprep.subr.mxu0 0.0
  %3955 = vmatpush1.msra.mxu0 0.0
  %3956 = vmatprep.subr.mxu0 0.0
  %3957 = vmatpush1.msra.mxu0 0.0
  %3958 = vmatprep.subr.mxu0 0.0
  %3959 = vmatpush1.msra.mxu0 0.0
  %3960 = vmatprep.subr.mxu0 0.0
  %3961 = vmatpush1.msra.mxu0 0.0
  %3962 = vmatprep.subr.mxu0 0.0
  %3963 = vmatpush1.msra.mxu0 0.0
  %3964 = vmatprep.subr.mxu0 0.0
  %3965 = vmatpush1.msra.mxu0 0.0
  %3966 = vmatprep.subr.mxu0 0.0
  %3967 = vmatpush1.msra.mxu0 0.0
  %3968 = vmatprep.subr.mxu0 0.0
  %3969 = vmatpush1.msra.mxu0 0.0
  %3970 = vmatprep.subr.mxu0 0.0
  %3971 = vmatpush1.msra.mxu0 0.0
  %3972 = vmatprep.subr.mxu0 0.0
  %3973 = vmatpush1.msra.mxu0 0.0
  %3974 = vmatprep.subr.mxu0 0.0
  %3975 = vmatpush1.msra.mxu0 0.0
  %3976 = vmatprep.mubr.f32.mxu0 0.0
  %3977 = vmatmul.mubr.f32.gmra.mrb[0].mxu0 %v3910
  %v3978 = vpop.f32.mrb[0].mxu0
  %v3979 = vadd.f32 0.0, %v3978
  %v3980 = vpop.f32.mrb[0].mxu0
  %3981 = vdwg.mxu0
  %s3982 = scalar_lea.vmem %s4, 160
  %v3983 = vld [vmem:[%s3982] sm:$0xff]
  %v3984 = vld [vmem:[%s3982 + $0x8] sm:$0xff]
  %v3985 = vld [vmem:[%s3982 + $0x10] sm:$0xff]
  %v3986 = vld [vmem:[%s3982 + $0x18] sm:$0xff]
  %3988 = vset.pattern.permute.xlu0 0
  %3989 = vperm.xlu0 %3988, %v3983
  %v3990 = vpop.permute.xlu0 %3989
  %3993 = vset.pattern.permute.xlu0 0
  %3994 = vperm.xlu0 %3993, %v3984
  %v3995 = vpop.permute.xlu0 %3994
  %3998 = vset.pattern.permute.xlu0 0
  %3999 = vperm.xlu0 %3998, %v3985
  %v4000 = vpop.permute.xlu0 %3999
  %4003 = vset.pattern.permute.xlu0 0
  %4004 = vperm.xlu0 %4003, %v3986
  %v4005 = vpop.permute.xlu0 %4004
  %v4007 = vadd.f32 %v3834, %v3990
  %v4008 = vadd.f32 %v3839, %v3995
  %v4009 = vadd.f32 %v3844, %v4000
  %v4010 = vadd.f32 %v3979, %v4005
  %v4011 = vmax.f32 %v4007, 0.0
  %v4012 = vmax.f32 %v4008, 0.0
  %v4013 = vmax.f32 %v4009, 0.0
  %v4014 = vmax.f32 %v4010, 0.0
  %s4015 = scalar_lea.vmem %s5, 32
  %v4016 = vld [vmem:[%s4015] sm:$0xff]
  %v4017 = vld [vmem:[%s4015 + $0x8] sm:$0xff]
  %v4018 = vld [vmem:[%s4015 + $0x10] sm:$0xff]
  %v4019 = vld [vmem:[%s4015 + $0x18] sm:$0xff]
  %v4020 = vld [vmem:[#allocation3] sm:$0xff]
  %v4021 = vld [vmem:[#allocation3 + $0x8] sm:$0xff]
  %v4022 = vld [vmem:[#allocation3 + $0x10] sm:$0xff]
  %v4023 = vld [vmem:[#allocation3 + $0x18] sm:$0xff]
  %v4025 = vsel %vm83, %v4016, 0
  %v4028 = vsel %vm83, %v4017, 0
  %v4031 = vsel %vm83, %v4018, 0
  %v4034 = vsel %vm83, %v4019, 0
  %4036 = vmatprep.subr.mxu0 0.0
  %4037 = vmatpush1.msra.mxu0 %v4020
  %4038 = vmatprep.subr.mxu0 0.0
  %4039 = vmatpush1.msra.mxu0 %v4021
  %4040 = vmatprep.subr.mxu0 0.0
  %4041 = vmatpush1.msra.mxu0 %v4022
  %4042 = vmatprep.subr.mxu0 0.0
  %4043 = vmatpush1.msra.mxu0 %v4023
  %4044 = vmatprep.subr.mxu0 0.0
  %4045 = vmatpush1.msra.mxu0 0.0
  %4046 = vmatprep.subr.mxu0 0.0
  %4047 = vmatpush1.msra.mxu0 0.0
  %4048 = vmatprep.subr.mxu0 0.0
  %4049 = vmatpush1.msra.mxu0 0.0
  %4050 = vmatprep.subr.mxu0 0.0
  %4051 = vmatpush1.msra.mxu0 0.0
  %4052 = vmatprep.subr.mxu0 0.0
  %4053 = vmatpush1.msra.mxu0 0.0
  %4054 = vmatprep.subr.mxu0 0.0
  %4055 = vmatpush1.msra.mxu0 0.0
  %4056 = vmatprep.subr.mxu0 0.0
  %4057 = vmatpush1.msra.mxu0 0.0
  %4058 = vmatprep.subr.mxu0 0.0
  %4059 = vmatpush1.msra.mxu0 0.0
  %4060 = vmatprep.subr.mxu0 0.0
  %4061 = vmatpush1.msra.mxu0 0.0
  %4062 = vmatprep.subr.mxu0 0.0
  %4063 = vmatpush1.msra.mxu0 0.0
  %4064 = vmatprep.subr.mxu0 0.0
  %4065 = vmatpush1.msra.mxu0 0.0
  %4066 = vmatprep.subr.mxu0 0.0
  %4067 = vmatpush1.msra.mxu0 0.0
  %4068 = vmatprep.subr.mxu0 0.0
  %4069 = vmatpush1.msra.mxu0 0.0
  %4070 = vmatprep.subr.mxu0 0.0
  %4071 = vmatpush1.msra.mxu0 0.0
  %4072 = vmatprep.subr.mxu0 0.0
  %4073 = vmatpush1.msra.mxu0 0.0
  %4074 = vmatprep.subr.mxu0 0.0
  %4075 = vmatpush1.msra.mxu0 0.0
  %4076 = vmatprep.subr.mxu0 0.0
  %4077 = vmatpush1.msra.mxu0 0.0
  %4078 = vmatprep.subr.mxu0 0.0
  %4079 = vmatpush1.msra.mxu0 0.0
  %4080 = vmatprep.subr.mxu0 0.0
  %4081 = vmatpush1.msra.mxu0 0.0
  %4082 = vmatprep.subr.mxu0 0.0
  %4083 = vmatpush1.msra.mxu0 0.0
  %4084 = vmatprep.subr.mxu0 0.0
  %4085 = vmatpush1.msra.mxu0 0.0
  %4086 = vmatprep.subr.mxu0 0.0
  %4087 = vmatpush1.msra.mxu0 0.0
  %4088 = vmatprep.subr.mxu0 0.0
  %4089 = vmatpush1.msra.mxu0 0.0
  %4090 = vmatprep.subr.mxu0 0.0
  %4091 = vmatpush1.msra.mxu0 0.0
  %4092 = vmatprep.subr.mxu0 0.0
  %4093 = vmatpush1.msra.mxu0 0.0
  %4094 = vmatprep.subr.mxu0 0.0
  %4095 = vmatpush1.msra.mxu0 0.0
  %4096 = vmatprep.subr.mxu0 0.0
  %4097 = vmatpush1.msra.mxu0 0.0
  %4098 = vmatprep.subr.mxu0 0.0
  %4099 = vmatpush1.msra.mxu0 0.0
  %4100 = vmatprep.mubr.f32.mxu0 0.0
  %4101 = vmatmul.mubr.f32.gmra.mrb[0].mxu0 %v4025
  %v4102 = vpop.f32.mrb[0].mxu0
  %v4103 = vadd.f32 0.0, %v4102
  %v4104 = vpop.f32.mrb[0].mxu0
  %4105 = vmatprep.mubr.f32.mxu0 0.0
  %4106 = vmatmul.mubr.f32.gmra.mrb[0].mxu0 %v4028
  %v4107 = vpop.f32.mrb[0].mxu0
  %v4108 = vadd.f32 0.0, %v4107
  %v4109 = vpop.f32.mrb[0].mxu0
  %4110 = vmatprep.mubr.f32.mxu0 0.0
  %4111 = vmatmul.mubr.f32.gmra.mrb[0].mxu0 %v4031
  %v4112 = vpop.f32.mrb[0].mxu0
  %v4113 = vadd.f32 0.0, %v4112
  %v4114 = vpop.f32.mrb[0].mxu0
  %4115 = vmatprep.mubr.f32.mxu0 0.0
  %4116 = vmatmul.mubr.f32.gmra.mrb[0].mxu0 %v4034
  %v4117 = vpop.f32.mrb[0].mxu0
  %v4118 = vadd.f32 0.0, %v4117
  %v4119 = vpop.f32.mrb[0].mxu0
  %4120 = vdwg.mxu0
  %v4121 = vadd.f32 %v4011, %v4103
  %v4122 = vadd.f32 %v4012, %v4108
  %v4123 = vadd.f32 %v4013, %v4113
  %v4124 = vadd.f32 %v4014, %v4118
  %s4125 = scalar_lea.vmem %s6, 32
  %v4126 = vld [vmem:[%s4125] sm:$0xff]
  %v4127 = vld [vmem:[%s4125 + $0x8] sm:$0xff]
  %v4128 = vld [vmem:[%s4125 + $0x10] sm:$0xff]
  %v4129 = vld [vmem:[%s4125 + $0x18] sm:$0xff]
  %4131 = vset.pattern.permute.xlu0 0
  %4132 = vperm.xlu0 %4131, %v4126
  %v4133 = vpop.permute.xlu0 %4132
  %4136 = vset.pattern.permute.xlu0 0
  %4137 = vperm.xlu0 %4136, %v4127
  %v4138 = vpop.permute.xlu0 %4137
  %4141 = vset.pattern.permute.xlu0 0
  %4142 = vperm.xlu0 %4141, %v4128
  %v4143 = vpop.permute.xlu0 %4142
  %4146 = vset.pattern.permute.xlu0 0
  %4147 = vperm.xlu0 %4146, %v4129
  %v4148 = vpop.permute.xlu0 %4147
  %v4150 = vadd.f32 %v4121, %v4133
  %v4151 = vadd.f32 %v4122, %v4138
  %v4152 = vadd.f32 %v4123, %v4143
  %v4153 = vadd.f32 %v4124, %v4148
  %v4154 = vmax.f32 %v4150, 0.0
  %v4155 = vmax.f32 %v4151, 0.0
  %v4156 = vmax.f32 %v4152, 0.0
  %v4157 = vmax.f32 %v4153, 0.0
  %v4158 = vsel %vm568, %v4154, 0.0
  %v4159 = vsel %vm568, %v4155, 0.0
  %v4160 = vsel %vm568, %v4156, 0.0
  %v4161 = vsel %vm568, %v4157, 0.0
  %4162 = vst.msk [vmem:[#allocation2] sm:$0xff] %vm50, %v4158
  %4163 = vst.msk [vmem:[#allocation2 + $0x8] sm:$0xff] %vm50, %v4159
  %4164 = vst.msk [vmem:[#allocation2 + $0x10] sm:$0xff] %vm50, %v4160
  %4165 = vst.msk [vmem:[#allocation2 + $0x18] sm:$0xff] %vm50, %v4161
  %4166 = vst.msk [vmem:[#allocation3] sm:$0xff] %vm50, %v4158
  %4167 = vst.msk [vmem:[#allocation3 + $0x8] sm:$0xff] %vm50, %v4159
  %4168 = vst.msk [vmem:[#allocation3 + $0x10] sm:$0xff] %vm50, %v4160
  %4169 = vst.msk [vmem:[#allocation3 + $0x18] sm:$0xff] %vm50, %v4161
  %v4170 = vld [vmem:[%s7] sm:$0xff]
  %v4171 = vld [vmem:[%s7 + $0x8] sm:$0xff]
  %v4172 = vld [vmem:[%s9] sm:$0x1]
  %v4173 = vld [vmem:[#allocation2] sm:$0xff]
  %v4174 = vld [vmem:[#allocation2 + $0x8] sm:$0xff]
  %v4175 = vld [vmem:[#allocation2 + $0x10] sm:$0xff]
  %v4176 = vld [vmem:[#allocation2 + $0x18] sm:$0xff]
  %v4178 = vlaneseq
  %v4179 = vshrl.u32 %v4178, 7
  %v4180 = vsub.s32 0, %v4179
  %v4181 = vrot.slane %v4172, %v4180
  %4187 = vrot.lane.b32.xlu0 %v4173, 109
  %v4188 = vpop.permute.xlu0 %4187
  %4189 = vrot.lane.b32.xlu0 %v4174, 109
  %v4190 = vpop.permute.xlu0 %4189
  %4191 = vrot.lane.b32.xlu0 %v4175, 109
  %v4192 = vpop.permute.xlu0 %4191
  %4193 = vrot.lane.b32.xlu0 %v4176, 109
  %v4194 = vpop.permute.xlu0 %4193
  %vm4195 = vcmask 130048
  %v4196 = vsel %vm4195, %v4188, 0
  %v4198 = vsel %vm4195, %v4190, 0
  %v4200 = vsel %vm4195, %v4192, 0
  %v4202 = vsel %vm4195, %v4194, 0
  %4204 = vmatprep.subr.mxu0 0.0
  %4205 = vmatpush1.msra.mxu0 %v4170
  %4206 = vmatprep.subr.mxu0 0.0
  %4207 = vmatpush1.msra.mxu0 %v4171
  %4208 = vmatprep.subr.mxu0 0.0
  %4209 = vmatpush1.msra.mxu0 0.0
  %4210 = vmatprep.subr.mxu0 0.0
  %4211 = vmatpush1.msra.mxu0 0.0
  %4212 = vmatprep.subr.mxu0 0.0
  %4213 = vmatpush1.msra.mxu0 0.0
  %4214 = vmatprep.subr.mxu0 0.0
  %4215 = vmatpush1.msra.mxu0 0.0
  %4216 = vmatprep.subr.mxu0 0.0
  %4217 = vmatpush1.msra.mxu0 0.0
  %4218 = vmatprep.subr.mxu0 0.0
  %4219 = vmatpush1.msra.mxu0 0.0
  %4220 = vmatprep.subr.mxu0 0.0
  %4221 = vmatpush1.msra.mxu0 0.0
  %4222 = vmatprep.subr.mxu0 0.0
  %4223 = vmatpush1.msra.mxu0 0.0
  %4224 = vmatprep.subr.mxu0 0.0
  %4225 = vmatpush1.msra.mxu0 0.0
  %4226 = vmatprep.subr.mxu0 0.0
  %4227 = vmatpush1.msra.mxu0 0.0
  %4228 = vmatprep.subr.mxu0 0.0
  %4229 = vmatpush1.msra.mxu0 0.0
  %4230 = vmatprep.subr.mxu0 0.0
  %4231 = vmatpush1.msra.mxu0 0.0
  %4232 = vmatprep.subr.mxu0 0.0
  %4233 = vmatpush1.msra.mxu0 0.0
  %4234 = vmatprep.subr.mxu0 0.0
  %4235 = vmatpush1.msra.mxu0 0.0
  %4236 = vmatprep.subr.mxu0 0.0
  %4237 = vmatpush1.msra.mxu0 0.0
  %4238 = vmatprep.subr.mxu0 0.0
  %4239 = vmatpush1.msra.mxu0 0.0
  %4240 = vmatprep.subr.mxu0 0.0
  %4241 = vmatpush1.msra.mxu0 0.0
  %4242 = vmatprep.subr.mxu0 0.0
  %4243 = vmatpush1.msra.mxu0 0.0
  %4244 = vmatprep.subr.mxu0 0.0
  %4245 = vmatpush1.msra.mxu0 0.0
  %4246 = vmatprep.subr.mxu0 0.0
  %4247 = vmatpush1.msra.mxu0 0.0
  %4248 = vmatprep.subr.mxu0 0.0
  %4249 = vmatpush1.msra.mxu0 0.0
  %4250 = vmatprep.subr.mxu0 0.0
  %4251 = vmatpush1.msra.mxu0 0.0
  %4252 = vmatprep.subr.mxu0 0.0
  %4253 = vmatpush1.msra.mxu0 0.0
  %4254 = vmatprep.subr.mxu0 0.0
  %4255 = vmatpush1.msra.mxu0 0.0
  %4256 = vmatprep.subr.mxu0 0.0
  %4257 = vmatpush1.msra.mxu0 0.0
  %4258 = vmatprep.subr.mxu0 0.0
  %4259 = vmatpush1.msra.mxu0 0.0
  %4260 = vmatprep.subr.mxu0 0.0
  %4261 = vmatpush1.msra.mxu0 0.0
  %4262 = vmatprep.subr.mxu0 0.0
  %4263 = vmatpush1.msra.mxu0 0.0
  %4264 = vmatprep.subr.mxu0 0.0
  %4265 = vmatpush1.msra.mxu0 0.0
  %4266 = vmatprep.subr.mxu0 0.0
  %4267 = vmatpush1.msra.mxu0 0.0
  %4268 = vmatprep.mubr.f32.mxu0 0.0
  %4269 = vmatmul.mubr.f32.gmra.mrb[0].mxu0 %v4196
  %v4270 = vpop.f32.mrb[0].mxu0
  %v4271 = vadd.f32 %v4181, %v4270
  %v4272 = vpop.f32.mrb[0].mxu0
  %4273 = vmatprep.mubr.f32.mxu0 0.0
  %4274 = vmatmul.mubr.f32.gmra.mrb[0].mxu0 %v4198
  %v4275 = vpop.f32.mrb[0].mxu0
  %v4276 = vadd.f32 %v4181, %v4275
  %v4277 = vpop.f32.mrb[0].mxu0
  %4278 = vmatprep.mubr.f32.mxu0 0.0
  %4279 = vmatmul.mubr.f32.gmra.mrb[0].mxu0 %v4200
  %v4280 = vpop.f32.mrb[0].mxu0
  %v4281 = vadd.f32 %v4181, %v4280
  %v4282 = vpop.f32.mrb[0].mxu0
  %4283 = vmatprep.mubr.f32.mxu0 0.0
  %4284 = vmatmul.mubr.f32.gmra.mrb[0].mxu0 %v4202
  %v4285 = vpop.f32.mrb[0].mxu0
  %v4286 = vadd.f32 %v4181, %v4285
  %v4287 = vpop.f32.mrb[0].mxu0
  %4288 = vdwg.mxu0
  %4289 = vst.msk [vmem:[#allocation5] sm:$0xff] %vm83, %v4271
  %4290 = vst.msk [vmem:[#allocation5 + $0x8] sm:$0xff] %vm83, %v4276
  %4291 = vst.msk [vmem:[#allocation5 + $0x10] sm:$0xff] %vm83, %v4281
  %4292 = vst.msk [vmem:[#allocation5 + $0x18] sm:$0xff] %vm83, %v4286
  %v4293 = vld [vmem:[#allocation2] sm:$0xff]
  %v4294 = vld [vmem:[#allocation2 + $0x8] sm:$0xff]
  %v4295 = vld [vmem:[#allocation2 + $0x10] sm:$0xff]
  %v4296 = vld [vmem:[#allocation2 + $0x18] sm:$0xff]
  %4301 = vrot.lane.b32.xlu0 %v4293, 55
  %v4302 = vpop.permute.xlu0 %4301
  %4303 = vrot.lane.b32.xlu0 %v4294, 55
  %v4304 = vpop.permute.xlu0 %4303
  %4305 = vrot.lane.b32.xlu0 %v4295, 55
  %v4306 = vpop.permute.xlu0 %4305
  %4307 = vrot.lane.b32.xlu0 %v4296, 55
  %v4308 = vpop.permute.xlu0 %4307
  %v4309 = vsel %vm4195, %v4302, 0
  %v4311 = vsel %vm4195, %v4304, 0
  %v4313 = vsel %vm4195, %v4306, 0
  %v4315 = vsel %vm4195, %v4308, 0
  %4317 = vmatprep.subr.mxu0 0.0
  %4318 = vmatpush1.msra.mxu0 %v4170
  %4319 = vmatprep.subr.mxu0 0.0
  %4320 = vmatpush1.msra.mxu0 %v4171
  %4321 = vmatprep.subr.mxu0 0.0
  %4322 = vmatpush1.msra.mxu0 0.0
  %4323 = vmatprep.subr.mxu0 0.0
  %4324 = vmatpush1.msra.mxu0 0.0
  %4325 = vmatprep.subr.mxu0 0.0
  %4326 = vmatpush1.msra.mxu0 0.0
  %4327 = vmatprep.subr.mxu0 0.0
  %4328 = vmatpush1.msra.mxu0 0.0
  %4329 = vmatprep.subr.mxu0 0.0
  %4330 = vmatpush1.msra.mxu0 0.0
  %4331 = vmatprep.subr.mxu0 0.0
  %4332 = vmatpush1.msra.mxu0 0.0
  %4333 = vmatprep.subr.mxu0 0.0
  %4334 = vmatpush1.msra.mxu0 0.0
  %4335 = vmatprep.subr.mxu0 0.0
  %4336 = vmatpush1.msra.mxu0 0.0
  %4337 = vmatprep.subr.mxu0 0.0
  %4338 = vmatpush1.msra.mxu0 0.0
  %4339 = vmatprep.subr.mxu0 0.0
  %4340 = vmatpush1.msra.mxu0 0.0
  %4341 = vmatprep.subr.mxu0 0.0
  %4342 = vmatpush1.msra.mxu0 0.0
  %4343 = vmatprep.subr.mxu0 0.0
  %4344 = vmatpush1.msra.mxu0 0.0
  %4345 = vmatprep.subr.mxu0 0.0
  %4346 = vmatpush1.msra.mxu0 0.0
  %4347 = vmatprep.subr.mxu0 0.0
  %4348 = vmatpush1.msra.mxu0 0.0
  %4349 = vmatprep.subr.mxu0 0.0
  %4350 = vmatpush1.msra.mxu0 0.0
  %4351 = vmatprep.subr.mxu0 0.0
  %4352 = vmatpush1.msra.mxu0 0.0
  %4353 = vmatprep.subr.mxu0 0.0
  %4354 = vmatpush1.msra.mxu0 0.0
  %4355 = vmatprep.subr.mxu0 0.0
  %4356 = vmatpush1.msra.mxu0 0.0
  %4357 = vmatprep.subr.mxu0 0.0
  %4358 = vmatpush1.msra.mxu0 0.0
  %4359 = vmatprep.subr.mxu0 0.0
  %4360 = vmatpush1.msra.mxu0 0.0
  %4361 = vmatprep.subr.mxu0 0.0
  %4362 = vmatpush1.msra.mxu0 0.0
  %4363 = vmatprep.subr.mxu0 0.0
  %4364 = vmatpush1.msra.mxu0 0.0
  %4365 = vmatprep.subr.mxu0 0.0
  %4366 = vmatpush1.msra.mxu0 0.0
  %4367 = vmatprep.subr.mxu0 0.0
  %4368 = vmatpush1.msra.mxu0 0.0
  %4369 = vmatprep.subr.mxu0 0.0
  %4370 = vmatpush1.msra.mxu0 0.0
  %4371 = vmatprep.subr.mxu0 0.0
  %4372 = vmatpush1.msra.mxu0 0.0
  %4373 = vmatprep.subr.mxu0 0.0
  %4374 = vmatpush1.msra.mxu0 0.0
  %4375 = vmatprep.subr.mxu0 0.0
  %4376 = vmatpush1.msra.mxu0 0.0
  %4377 = vmatprep.subr.mxu0 0.0
  %4378 = vmatpush1.msra.mxu0 0.0
  %4379 = vmatprep.subr.mxu0 0.0
  %4380 = vmatpush1.msra.mxu0 0.0
  %4381 = vmatprep.mubr.f32.mxu0 0.0
  %4382 = vmatmul.mubr.f32.gmra.mrb[0].mxu0 %v4309
  %v4383 = vpop.f32.mrb[0].mxu0
  %v4384 = vadd.f32 %v4181, %v4383
  %v4385 = vpop.f32.mrb[0].mxu0
  %4386 = vmatprep.mubr.f32.mxu0 0.0
  %4387 = vmatmul.mubr.f32.gmra.mrb[0].mxu0 %v4311
  %v4388 = vpop.f32.mrb[0].mxu0
  %v4389 = vadd.f32 %v4181, %v4388
  %v4390 = vpop.f32.mrb[0].mxu0
  %4391 = vmatprep.mubr.f32.mxu0 0.0
  %4392 = vmatmul.mubr.f32.gmra.mrb[0].mxu0 %v4313
  %v4393 = vpop.f32.mrb[0].mxu0
  %v4394 = vadd.f32 %v4181, %v4393
  %v4395 = vpop.f32.mrb[0].mxu0
  %4396 = vmatprep.mubr.f32.mxu0 0.0
  %4397 = vmatmul.mubr.f32.gmra.mrb[0].mxu0 %v4315
  %v4398 = vpop.f32.mrb[0].mxu0
  %v4399 = vadd.f32 %v4181, %v4398
  %v4400 = vpop.f32.mrb[0].mxu0
  %4401 = vdwg.mxu0
  %4406 = vrot.lane.b32.xlu0 %v4384, 32
  %v4407 = vpop.permute.xlu0 %4406
  %4408 = vrot.lane.b32.xlu0 %v4389, 32
  %v4409 = vpop.permute.xlu0 %4408
  %4410 = vrot.lane.b32.xlu0 %v4394, 32
  %v4411 = vpop.permute.xlu0 %4410
  %4412 = vrot.lane.b32.xlu0 %v4399, 32
  %v4413 = vpop.permute.xlu0 %4412
  %vm4418 = vcmask 523520
  %4419 = vst.msk [vmem:[#allocation5] sm:$0xff] %vm4418, %v4407
  %4420 = vst.msk [vmem:[#allocation5 + $0x8] sm:$0xff] %vm4418, %v4409
  %4421 = vst.msk [vmem:[#allocation5 + $0x10] sm:$0xff] %vm4418, %v4411
  %4422 = vst.msk [vmem:[#allocation5 + $0x18] sm:$0xff] %vm4418, %v4413
  %v4423 = vld [vmem:[%s8] sm:$0xff]
  %v4424 = vld [vmem:[%s8 + $0x8] sm:$0xff]
  %v4425 = vld [vmem:[%s8 + $0x10] sm:$0xff]
  %v4426 = vld [vmem:[%s8 + $0x18] sm:$0xff]
  %v4427 = vld [vmem:[%s8 + $0x20] sm:$0xff]
  %v4428 = vld [vmem:[%s8 + $0x28] sm:$0xff]
  %v4429 = vld [vmem:[%s8 + $0x30] sm:$0xff]
  %v4430 = vld [vmem:[%s8 + $0x38] sm:$0xff]
  loop: start=0, step=1, limit=32
  $region50: #{forward.1} parent=0 // loop_pre_header
    _
  $region51: #{forward.1} parent=0 // loop_header
    %s4432 = sphi 0, %s4436
    %p4433 = scmp.ge.s32.totalorder %s4432, 32
    %v4437 = vphi 0.0, %v4515
  $region52: #{forward.1} parent=0 // loop_header_branch
    %4435 = sbr.rel (%p4433) target = $region56
  $region53: #{forward.1} parent=0 // loop_body
    %s4438 = scalar_lea.vmem [#allocation5], %s4432
    %v4439 = vld [vmem:[%s4438] sm:$0x1]
    %vm4440 = vcmask 523264
    %v4442 = vsel %vm4440, %v4437, 0
    %4444 = vmatprep.subr.mxu0 0.0
    %4445 = vmatpush1.msra.mxu0 %v4423
    %4446 = vmatprep.subr.mxu0 0.0
    %4447 = vmatpush1.msra.mxu0 %v4424
    %4448 = vmatprep.subr.mxu0 0.0
    %4449 = vmatpush1.msra.mxu0 %v4425
    %4450 = vmatprep.subr.mxu0 0.0
    %4451 = vmatpush1.msra.mxu0 %v4426
    %4452 = vmatprep.subr.mxu0 0.0
    %4453 = vmatpush1.msra.mxu0 %v4427
    %4454 = vmatprep.subr.mxu0 0.0
    %4455 = vmatpush1.msra.mxu0 %v4428
    %4456 = vmatprep.subr.mxu0 0.0
    %4457 = vmatpush1.msra.mxu0 %v4429
    %4458 = vmatprep.subr.mxu0 0.0
    %4459 = vmatpush1.msra.mxu0 %v4430
    %4460 = vmatprep.subr.mxu0 0.0
    %4461 = vmatpush1.msra.mxu0 0.0
    %4462 = vmatprep.subr.mxu0 0.0
    %4463 = vmatpush1.msra.mxu0 0.0
    %4464 = vmatprep.subr.mxu0 0.0
    %4465 = vmatpush1.msra.mxu0 0.0
    %4466 = vmatprep.subr.mxu0 0.0
    %4467 = vmatpush1.msra.mxu0 0.0
    %4468 = vmatprep.subr.mxu0 0.0
    %4469 = vmatpush1.msra.mxu0 0.0
    %4470 = vmatprep.subr.mxu0 0.0
    %4471 = vmatpush1.msra.mxu0 0.0
    %4472 = vmatprep.subr.mxu0 0.0
    %4473 = vmatpush1.msra.mxu0 0.0
    %4474 = vmatprep.subr.mxu0 0.0
    %4475 = vmatpush1.msra.mxu0 0.0
    %4476 = vmatprep.subr.mxu0 0.0
    %4477 = vmatpush1.msra.mxu0 0.0
    %4478 = vmatprep.subr.mxu0 0.0
    %4479 = vmatpush1.msra.mxu0 0.0
    %4480 = vmatprep.subr.mxu0 0.0
    %4481 = vmatpush1.msra.mxu0 0.0
    %4482 = vmatprep.subr.mxu0 0.0
    %4483 = vmatpush1.msra.mxu0 0.0
    %4484 = vmatprep.subr.mxu0 0.0
    %4485 = vmatpush1.msra.mxu0 0.0
    %4486 = vmatprep.subr.mxu0 0.0
    %4487 = vmatpush1.msra.mxu0 0.0
    %4488 = vmatprep.subr.mxu0 0.0
    %4489 = vmatpush1.msra.mxu0 0.0
    %4490 = vmatprep.subr.mxu0 0.0
    %4491 = vmatpush1.msra.mxu0 0.0
    %4492 = vmatprep.subr.mxu0 0.0
    %4493 = vmatpush1.msra.mxu0 0.0
    %4494 = vmatprep.subr.mxu0 0.0
    %4495 = vmatpush1.msra.mxu0 0.0
    %4496 = vmatprep.subr.mxu0 0.0
    %4497 = vmatpush1.msra.mxu0 0.0
    %4498 = vmatprep.subr.mxu0 0.0
    %4499 = vmatpush1.msra.mxu0 0.0
    %4500 = vmatprep.subr.mxu0 0.0
    %4501 = vmatpush1.msra.mxu0 0.0
    %4502 = vmatprep.subr.mxu0 0.0
    %4503 = vmatpush1.msra.mxu0 0.0
    %4504 = vmatprep.subr.mxu0 0.0
    %4505 = vmatpush1.msra.mxu0 0.0
    %4506 = vmatprep.subr.mxu0 0.0
    %4507 = vmatpush1.msra.mxu0 0.0
    %4508 = vmatprep.mubr.f32.mxu0 0.0
    %4509 = vmatmul.mubr.f32.gmra.mrb[0].mxu0 %v4442
    %v4510 = vpop.f32.mrb[0].mxu0
    %v4511 = vadd.f32 0.0, %v4510
    %v4512 = vpop.f32.mrb[0].mxu0
    %4513 = vdwg.mxu0
    %v4514 = vadd.f32 %v4439, %v4511
    %v4515 = vtanh.pop %v4514
  $region54: #{forward.1} parent=0 // loop_footer
    %s4436 = sadd.s32 1, %s4432
  $region55: #{forward.1} parent=0 // loop_footer_branch
    %4431 = sbr.rel target = $region51
  $region56: #{forward.1} parent=0 // loop_exit
    _
  %v4516 = vld [vmem:[%s10] sm:$0xff]
  %v4517 = vld [vmem:[%s10 + $0x8] sm:$0xff]
  %v4518 = vld [vmem:[%s10 + $0x10] sm:$0xff]
  %v4519 = vld [vmem:[%s10 + $0x18] sm:$0xff]
  %v4520 = vld [vmem:[%s10 + $0x20] sm:$0xff]
  %v4521 = vld [vmem:[%s10 + $0x28] sm:$0xff]
  %v4522 = vld [vmem:[%s10 + $0x30] sm:$0xff]
  %v4523 = vld [vmem:[%s10 + $0x38] sm:$0xff]
  %v4524 = vld [vmem:[%s11] sm:$0x1]
  %vm4525 = vcmask 523264
  %v4527 = vsel %vm4525, %v4437, 0
  %4529 = vmatprep.subr.mxu0 0.0
  %4530 = vmatpush1.msra.mxu0 %v4516
  %4531 = vmatprep.subr.mxu0 0.0
  %4532 = vmatpush1.msra.mxu0 %v4517
  %4533 = vmatprep.subr.mxu0 0.0
  %4534 = vmatpush1.msra.mxu0 %v4518
  %4535 = vmatprep.subr.mxu0 0.0
  %4536 = vmatpush1.msra.mxu0 %v4519
  %4537 = vmatprep.subr.mxu0 0.0
  %4538 = vmatpush1.msra.mxu0 %v4520
  %4539 = vmatprep.subr.mxu0 0.0
  %4540 = vmatpush1.msra.mxu0 %v4521
  %4541 = vmatprep.subr.mxu0 0.0
  %4542 = vmatpush1.msra.mxu0 %v4522
  %4543 = vmatprep.subr.mxu0 0.0
  %4544 = vmatpush1.msra.mxu0 %v4523
  %4545 = vmatprep.subr.mxu0 0.0
  %4546 = vmatpush1.msra.mxu0 0.0
  %4547 = vmatprep.subr.mxu0 0.0
  %4548 = vmatpush1.msra.mxu0 0.0
  %4549 = vmatprep.subr.mxu0 0.0
  %4550 = vmatpush1.msra.mxu0 0.0
  %4551 = vmatprep.subr.mxu0 0.0
  %4552 = vmatpush1.msra.mxu0 0.0
  %4553 = vmatprep.subr.mxu0 0.0
  %4554 = vmatpush1.msra.mxu0 0.0
  %4555 = vmatprep.subr.mxu0 0.0
  %4556 = vmatpush1.msra.mxu0 0.0
  %4557 = vmatprep.subr.mxu0 0.0
  %4558 = vmatpush1.msra.mxu0 0.0
  %4559 = vmatprep.subr.mxu0 0.0
  %4560 = vmatpush1.msra.mxu0 0.0
  %4561 = vmatprep.subr.mxu0 0.0
  %4562 = vmatpush1.msra.mxu0 0.0
  %4563 = vmatprep.subr.mxu0 0.0
  %4564 = vmatpush1.msra.mxu0 0.0
  %4565 = vmatprep.subr.mxu0 0.0
  %4566 = vmatpush1.msra.mxu0 0.0
  %4567 = vmatprep.subr.mxu0 0.0
  %4568 = vmatpush1.msra.mxu0 0.0
  %4569 = vmatprep.subr.mxu0 0.0
  %4570 = vmatpush1.msra.mxu0 0.0
  %4571 = vmatprep.subr.mxu0 0.0
  %4572 = vmatpush1.msra.mxu0 0.0
  %4573 = vmatprep.subr.mxu0 0.0
  %4574 = vmatpush1.msra.mxu0 0.0
  %4575 = vmatprep.subr.mxu0 0.0
  %4576 = vmatpush1.msra.mxu0 0.0
  %4577 = vmatprep.subr.mxu0 0.0
  %4578 = vmatpush1.msra.mxu0 0.0
  %4579 = vmatprep.subr.mxu0 0.0
  %4580 = vmatpush1.msra.mxu0 0.0
  %4581 = vmatprep.subr.mxu0 0.0
  %4582 = vmatpush1.msra.mxu0 0.0
  %4583 = vmatprep.subr.mxu0 0.0
  %4584 = vmatpush1.msra.mxu0 0.0
  %4585 = vmatprep.subr.mxu0 0.0
  %4586 = vmatpush1.msra.mxu0 0.0
  %4587 = vmatprep.subr.mxu0 0.0
  %4588 = vmatpush1.msra.mxu0 0.0
  %4589 = vmatprep.subr.mxu0 0.0
  %4590 = vmatpush1.msra.mxu0 0.0
  %4591 = vmatprep.subr.mxu0 0.0
  %4592 = vmatpush1.msra.mxu0 0.0
  %4593 = vmatprep.mubr.f32.mxu0 0.0
  %4594 = vmatmul.mubr.f32.gmra.mrb[0].mxu0 %v4527
  %v4595 = vpop.f32.mrb[0].mxu0
  %v4596 = vadd.f32 %v4524, %v4595
  %v4597 = vpop.f32.mrb[0].mxu0
  %4598 = vdwg.mxu0
  %vm4599 = vcmask 40960
  %4600 = vst.msk [vmem:[%s12] sm:$0x1] %vm4599, %v4596
  // Predicated region
  $region57: #{forward.1} parent=0 // pred_check
    _
  $region58: #{forward.1} parent=0 // pred_check_branch
    %4602 = sbr.rel (0) target = $region60
  $region59: #{forward.1} parent=0 // pred_region
    _
  $region60: #{forward.1} parent=0 // pred_fallthru
    _
  // Predicated region
  $region61: #{forward.1} parent=0 // pred_check
    _
  $region62: #{forward.1} parent=0 // pred_check_branch
    %4604 = sbr.rel (0) target = $region64
  $region63: #{forward.1} parent=0 // pred_region
    _
  $region64: #{forward.1} parent=0 // pred_fallthru
    _

</llo_original>
